<compile_context>
chip_gen: v5e
topology: v5e:2x2
jax: 0.10.0
libtpu: 0.0.40
codegen_flags: <defaults>
</compile_context>

<pallas_src>
import functools
import math

import jax
import jax.numpy as jnp
from jax.experimental import pallas as pl
from jax.experimental.pallas import tpu as pltpu

EPS_F32 = 0.004        # self.eps[torch.float32]
MIN_NORM = 1e-15       # self.min_norm
MAX_NORM = 1.0e6       # self.max_norm


def _round_up(x, m):
    return ((x + m - 1) // m) * m


def _cdiv(a, b):
    return -(-a // b)


def _arcosh(z):
    return jnp.log(z + jnp.sqrt(z * z - 1.0))


def _sinh(z):
    e = jnp.exp(z)
    return 0.5 * (e - 1.0 / e)


def _cosh_sinh(z):
    # One EUP exp serves both cosh and sinh.
    e = jnp.exp(z)
    inv = 1.0 / e
    return 0.5 * (e + inv), 0.5 * (e - inv)


def _vmem_capacity_bytes():
    """Per-core VMEM capacity; conservative 64 MiB (v7x) if the query is unavailable."""
    try:
        info = pltpu.get_tpu_info()
        cap = getattr(info, "vmem_capacity_bytes", None)
        if cap:
            return int(cap)
    except Exception:
        pass
    return 64 * 1024 * 1024


def hyplinear_kernel(x_ref, wt_ref, ub_ref, o_ref, *, use_bias):
    """One row-tile of the HypLinear forward.

    x_ref : (tm, Din)        hyperboloid points, column 0 is the time coordinate
                             (true Din, no lane padding -- equals the full array dim).
    wt_ref: (Din, Dout_pad)  weight.T with output column 0 zeroed host-side (that
                             column is discarded by expmap0 -> exact).  May be bf16.
    ub_ref: (1, Dout_pad)    precomputed logmap0(proj(expmap0(proj_tan0(bias)))),
                             column 0 and padded columns are zero.
    """
    x = x_ref[...].astype(jnp.float32)
    wt = wt_ref[...]
    din = x.shape[-1]
    dout = wt.shape[-1]

    col_in = jax.lax.broadcasted_iota(jnp.int32, (1, din), 1)
    mask_in = (col_in != 0).astype(jnp.float32)
    col_out = jax.lax.broadcasted_iota(jnp.int32, (1, dout), 1)
    first_out = (col_out == 0).astype(jnp.float32)

    # ---- logmap0(x): u = arcosh(x0) * y / ||y||, time coordinate zeroed ----
    x_sp = x * mask_in                                            # zero time coord (exact ||y||)
    y_sq = jnp.sum(x_sp * x_sp, axis=-1, keepdims=True)
    inv_y_norm = jax.lax.rsqrt(jnp.maximum(y_sq, MIN_NORM * MIN_NORM))
    x0_in = jnp.maximum(x[:, 0:1], 1.0 + EPS_F32)                 # static lane-0 slice
    u = (_arcosh(x0_in) * inv_y_norm) * x_sp                      # (tm, Din), col 0 == 0

    # ---- u @ W^T on the MXU (opt-in bf16 operands) ----
    if wt.dtype != jnp.float32:
        u = u.astype(wt.dtype)
    mu = jnp.dot(u, wt, preferred_element_type=jnp.float32)       # (tm, Dout), col 0 == 0

    # ---- expmap0(mu) + proj (the forward's extra proj is idempotent -> dropped) ----
    mu_sq = jnp.sum(mu * mu, axis=-1, keepdims=True)
    mu_sq_c = jnp.maximum(mu_sq, MIN_NORM * MIN_NORM)
    inv_mu_norm = jax.lax.rsqrt(mu_sq_c)
    mu_norm = mu_sq_c * inv_mu_norm                               # == clamp(||mu_sp||, 1e-15)
    scale = _sinh(mu_norm) * inv_mu_norm
    res_sp = scale * mu                                           # spatial part, col 0 == 0
    sp_sq = (scale * scale) * mu_sq                               # == ||res_sp||^2
    x0 = jnp.sqrt(jnp.maximum(sp_sq, EPS_F32))                    # proj'd time coordinate

    if use_bias:
        ub = ub_ref[...].astype(jnp.float32)                      # (1, Dout), col 0 == 0
        # (1, Dout) reduce once per tile -- negligible vs the removed (tm, Dout) reductions.
        ub_sq = jnp.sum(ub * ub, axis=-1, keepdims=True)
        # ---- ptransp0(res, ub) + proj_tan, with rpt_sp = ub - coef*res_sp never built ----
        inv_yn = jax.lax.rsqrt(jnp.maximum(sp_sq, MIN_NORM * MIN_NORM))   # 1/clamp(||res_sp||,1e-15)
        alpha_raw = jnp.sum(res_sp * ub, axis=-1, keepdims=True)  # only full-width reduction
        coef = (alpha_raw * x0) * (inv_yn * inv_yn)               # alpha * x0 / ||res_sp||
        sp2 = ub_sq - 2.0 * coef * alpha_raw + coef * coef * sp_sq   # == ||rpt_sp||^2
        ux = alpha_raw - coef * sp_sq                             # == <res_sp, rpt_sp>
        vals0 = ux / x0                                           # clamp(x0, eps) inert: x0 >= sqrt(eps)
        # ---- expmap(v_tan, res) + proj (final proj idempotent) ----
        mdot = sp2 - vals0 * vals0                                # minkowski_dot(v_tan, v_tan)
        # min-clamp at 1e-15 is inert: theta >= sqrt(eps) = 0.063
        theta = jnp.minimum(jnp.sqrt(jnp.maximum(mdot, EPS_F32)), MAX_NORM)
        c_t, s_t = _cosh_sinh(theta)
        g = s_t * pl.reciprocal(theta, approx=True)               # sinh(theta)/theta
        # ||c_t*res_sp + g*rpt_sp||^2 without another full-width reduction:
        res_sq = (c_t * c_t) * sp_sq + (2.0 * c_t) * g * ux + (g * g) * sp2
        res_sp = (c_t - g * coef) * res_sp + g * ub               # == c_t*res_sp + g*rpt_sp
        x0 = jnp.sqrt(jnp.maximum(res_sq, EPS_F32))

    o_ref[...] = (x0 * first_out + res_sp).astype(o_ref.dtype)


def _precompute_ub(bias, dout):
    """logmap0(proj(expmap0(proj_tan0(bias)))) -- identical for every tile/row, so it
    is computed once in plain JAX (one-time param prep) and fed as a (1, Dout) constant."""
    b = jnp.asarray(bias, jnp.float32).reshape(1, dout)
    y = b[:, 1:]                                                  # proj_tan0 drops the time coord
    y_sq = jnp.sum(y * y, axis=-1, keepdims=True)
    x_norm = jnp.maximum(jnp.sqrt(y_sq), MIN_NORM)
    sp = jnp.sinh(x_norm) * y / x_norm                            # expmap0 spatial part
    sp_sq = jnp.sum(sp * sp, axis=-1, keepdims=True)
    x0 = jnp.sqrt(jnp.maximum(sp_sq, EPS_F32))                    # proj (applied twice; idempotent)
    y_norm = jnp.maximum(jnp.sqrt(sp_sq), MIN_NORM)
    theta = jnp.maximum(x0, 1.0 + EPS_F32)
    ub_sp = jnp.arccosh(theta) * sp / y_norm                      # logmap0
    return jnp.concatenate([jnp.zeros((1, 1), jnp.float32), ub_sp], axis=-1)


def prepare_hyplinear_params(weight, bias=None, *, use_bias=True, matmul_dtype=jnp.float32):
    """One-time parameter preprocessing, hoisted out of the per-forward path.

    weight: (out_features, in_features); bias: (out_features,).
    matmul_dtype=jnp.bfloat16 enables the fast/half-footprint MXU path (opt-in)."""
    weight = jnp.asarray(weight, jnp.float32)
    dout, din = weight.shape
    dout_p = _round_up(dout, 128)

    wt = weight.T                                                 # (din, dout)
    wt = wt.at[:, 0].set(0.0)                                     # output time column: discarded by expmap0
    wt = jnp.pad(wt, ((0, 0), (0, dout_p - dout)))                # lane-dense output width
    wt = wt.astype(matmul_dtype)

    if use_bias:
        ub = _precompute_ub(bias, dout)
    else:
        ub = jnp.zeros((1, dout), jnp.float32)
    ub = jnp.pad(ub, ((0, 0), (0, dout_p - dout)))

    return {"wt": wt, "ub": ub, "din": din, "dout": dout, "dout_p": dout_p,
            "use_bias": bool(use_bias)}


def hyp_linear_forward(x, params, *, block_rows=512):
    """x: (N, in_features) f32; params from prepare_hyplinear_params()."""
    x = jnp.asarray(x, jnp.float32)
    n, din = x.shape
    wt, ub = params["wt"], params["ub"]
    dout, dout_p = params["dout"], params["dout_p"]
    use_bias = params["use_bias"]
    assert wt.shape[0] == din, "weight / input feature mismatch"

    # ---- Row tiling: big tiles amortize the ~0.35us/step overhead; a single huge
    # tile is split in two so v7x's two TensorCores both get work. ----
    rows8 = _round_up(max(n, 1), 8)
    block_rows = max(8, min(_round_up(block_rows, 8), rows8))
    num_tiles = _cdiv(rows8, block_rows)
    if num_tiles == 1 and rows8 > 256:
        num_tiles = 2
    block_rows = _round_up(_cdiv(rows8, num_tiles), 8)

    # ---- VMEM accounting: double-buffered x/out tiles + single resident weight. ----
    wt_bytes = wt.size * wt.dtype.itemsize
    def vmem_need(br):
        return (2 * br * din * 4          # x tiles (double-buffered)
                + 2 * br * dout_p * 4     # out tiles (double-buffered)
                + wt_bytes                # resident weight (constant index_map)
                + 2 * dout_p * 4)         # ub
    budget = int(_vmem_capacity_bytes() * 0.85)       # leave compiler headroom
    while vmem_need(block_rows) > budget and block_rows > 64:
        block_rows = _round_up(block_rows // 2, 8)
    # TODO(synk): if the resident weight alone exceeds the budget (very large layers),
    #             add a Dout grid axis so the weight is tiled instead of fully resident.
    vmem_limit = int(min(max(vmem_need(block_rows) + (2 << 20), 8 << 20), budget))

    n_p = _round_up(n, block_rows)
    if n_p != n:
        x = jnp.pad(x, ((0, n_p - n), (0, 0)))        # pad rows only; features stay unpadded
    grid = (n_p // block_rows,)

    kernel = functools.partial(hyplinear_kernel, use_bias=use_bias)
    out_p = pl.pallas_call(
        kernel,
        out_shape=jax.ShapeDtypeStruct((n_p, dout_p), jnp.float32),
        grid_spec=pltpu.PrefetchScalarGridSpec(
            num_scalar_prefetch=0,
            grid=grid,
            in_specs=[
                pl.BlockSpec((block_rows, din), lambda i: (i, 0)),
                pl.BlockSpec((din, dout_p), lambda i: (0, 0)),
                pl.BlockSpec((1, dout_p), lambda i: (0, 0)),
            ],
            out_specs=pl.BlockSpec((block_rows, dout_p), lambda i: (i, 0)),
        ),
        compiler_params=pltpu.CompilerParams(
            dimension_semantics=("parallel",),
            vmem_limit_bytes=vmem_limit,
        ),
    )(x, wt, ub)

    if n_p != n or dout_p != dout:
        out_p = out_p[:n, :dout]
    return out_p


def _reference_forward(x, weight, bias, use_bias):
    """Literal (unfused) JAX port of HypLinear.forward for validation."""
    def proj(z):
        y = z[:, 1:]
        t = jnp.sqrt(jnp.maximum(jnp.sum(y * y, axis=1, keepdims=True), EPS_F32))
        return jnp.concatenate([t, y], axis=1)

    def proj_tan(u, z):
        ux = jnp.sum(z[:, 1:] * u[:, 1:], axis=1, keepdims=True)
        t = ux / jnp.maximum(z[:, 0:1], EPS_F32)
        return jnp.concatenate([t, u[:, 1:]], axis=1)

    def expmap0(u):
        y = u[:, 1:]
        nrm = jnp.maximum(jnp.sqrt(jnp.sum(y * y, axis=1, keepdims=True)), MIN_NORM)
        return proj(jnp.concatenate([jnp.cosh(nrm), jnp.sinh(nrm) * y / nrm], axis=1))

    def logmap0(z):
        y = z[:, 1:]
        nrm = jnp.maximum(jnp.sqrt(jnp.sum(y * y, axis=1, keepdims=True)), MIN_NORM)
        theta = jnp.maximum(z[:, 0:1], 1.0 + EPS_F32)
        return jnp.concatenate([jnp.zeros_like(theta), jnp.arccosh(theta) * y / nrm], axis=1)

    def minkowski_dot(a, b):
        return jnp.sum(a * b, axis=-1, keepdims=True) - 2.0 * a[:, 0:1] * b[:, 0:1]

    def expmap(u, z):
        normu = jnp.sqrt(jnp.maximum(minkowski_dot(u, u), EPS_F32))
        theta = jnp.maximum(jnp.minimum(normu, MAX_NORM), MIN_NORM)
        return proj(jnp.cosh(theta) * z + jnp.sinh(theta) * u / theta)

    def ptransp0(z, u):
        x0 = z[:, 0:1]
        y = z[:, 1:]
        y_norm = jnp.maximum(jnp.sqrt(jnp.sum(y * y, axis=1, keepdims=True)), MIN_NORM)
        y_unit = y / y_norm
        alpha = jnp.sum(y_unit * u[:, 1:], axis=1, keepdims=True)
        res_t = u[:, 0:1] - alpha * (-y_norm)
        res_sp = u[:, 1:] - alpha * (x0 * y_unit)
        return proj_tan(jnp.concatenate([res_t, res_sp], axis=1), z)

    u = logmap0(x)
    mu = jnp.dot(u, weight.T, precision=jax.lax.Precision.HIGHEST)
    res = proj(expmap0(mu))
    if use_bias:
        b = bias.reshape(1, -1)
        b = jnp.concatenate([jnp.zeros((1, 1), b.dtype), b[:, 1:]], axis=1)   # proj_tan0
        hyp_bias = proj(expmap0(b))
        ub = jnp.broadcast_to(logmap0(hyp_bias), res.shape)
        res = proj(expmap(ptransp0(res, ub), res))
    return res


if __name__ == "__main__":
    key = jax.random.PRNGKey(0)
    in_features, out_features = 16, 16
    n_rows = 512                                      # 2 row-tiles -> both v7x cores busy

    k1, k2, k3 = jax.random.split(key, 3)

    # Valid hyperboloid points: x0 = sqrt(1 + ||y||^2), y ~ 0.5 * N(0, 1).
    y = 0.5 * jax.random.normal(k1, (n_rows, in_features - 1), dtype=jnp.float32)
    x0 = jnp.sqrt(1.0 + jnp.sum(y * y, axis=-1, keepdims=True))
    x = jnp.concatenate([x0, y], axis=-1)             # (512, 16)

    # xavier_uniform_ with gain sqrt(2); small non-zero bias to exercise mobius_add.
    bound = math.sqrt(2.0) * math.sqrt(6.0 / (in_features + out_features))
    weight = jax.random.uniform(
        k2, (out_features, in_features), jnp.float32, minval=-bound, maxval=bound
    )
    bias = 0.1 * jax.random.normal(k3, (out_features,), dtype=jnp.float32)

    params = prepare_hyplinear_params(weight, bias, use_bias=True)   # one-time prep
    out = hyp_linear_forward(x, params, block_rows=512)
    out = jax.block_until_ready(out)

    assert out.shape == (n_rows, out_features)
    assert bool(jnp.all(jnp.isfinite(out)))

    ref = _reference_forward(x, weight, bias, use_bias=True)
    err = float(jnp.max(jnp.abs(out - ref) / (1.0 + jnp.abs(ref))))
    assert err < 3e-2, f"mismatch vs reference: {err}"
    print("KERNEL_OK")
</pallas_src>

<mosaic_0001>
module attributes {stable_mosaic.version = 11 : i64} {
  func.func @hyplinear_kernel(%arg0: i32, %arg1: memref<256x16xf32, #tpu.memory_space<vmem>>, %arg2: memref<16x128xf32, #tpu.memory_space<vmem>>, %arg3: memref<1x128xf32, #tpu.memory_space<vmem>>, %arg4: memref<256x128xf32, #tpu.memory_space<vmem>>) attributes {dimension_semantics = [#tpu.dimension_semantics<parallel>], iteration_bounds = array<i64: 2>, scalar_prefetch = 0 : i64, scratch_operands = 0 : i64, tpu.core_type = #tpu.core_type<tc>, window_params = [{transform_indices = @transform_0, window_bounds = array<i64: 256, 16>}, {pipeline_mode = #tpu.pipeline_mode<synchronous>, transform_indices = @transform_1, window_bounds = array<i64: 16, 128>}, {pipeline_mode = #tpu.pipeline_mode<synchronous>, transform_indices = @transform_2, window_bounds = array<i64: 1, 128>}, {transform_indices = @transform_3, window_bounds = array<i64: 256, 128>}]} {
    %c0 = arith.constant 0 : index
    %c0_0 = arith.constant 0 : index
    %0 = vector.load %arg1[%c0, %c0_0] : memref<256x16xf32, #tpu.memory_space<vmem>>, vector<256x16xf32>
    %c0_1 = arith.constant 0 : index
    %c0_2 = arith.constant 0 : index
    %1 = vector.load %arg2[%c0_1, %c0_2] : memref<16x128xf32, #tpu.memory_space<vmem>>, vector<16x128xf32>
    %2 = tpu.iota {dimensions = array<i32: 1>} : vector<1x16xi32>
    %c0_i32 = arith.constant 0 : i32
    %3 = vector.broadcast %c0_i32 : i32 to vector<1x16xi32>
    %4 = arith.cmpi ne, %2, %3 : vector<1x16xi32>
    %5 = arith.extui %4 : vector<1x16xi1> to vector<1x16xi32>
    %6 = arith.sitofp %5 : vector<1x16xi32> to vector<1x16xf32>
    %7 = tpu.iota {dimensions = array<i32: 1>} : vector<1x128xi32>
    %c0_i32_3 = arith.constant 0 : i32
    %8 = vector.broadcast %c0_i32_3 : i32 to vector<1x128xi32>
    %9 = arith.cmpi eq, %7, %8 : vector<1x128xi32>
    %10 = arith.extui %9 : vector<1x128xi1> to vector<1x128xi32>
    %11 = arith.sitofp %10 : vector<1x128xi32> to vector<1x128xf32>
    %12 = vector.broadcast %6 : vector<1x16xf32> to vector<256x16xf32>
    %13 = arith.mulf %0, %12 : vector<256x16xf32>
    %14 = arith.mulf %13, %13 : vector<256x16xf32>
    %cst = arith.constant dense<0.000000e+00> : vector<256xf32>
    %15 = vector.multi_reduction <add>, %14, %cst [1] : vector<256x16xf32> to vector<256xf32>
    %16 = vector.shape_cast %15 : vector<256xf32> to vector<256x1xf32>
    %cst_4 = arith.constant 1.000000e-30 : f32
    %17 = vector.broadcast %cst_4 : f32 to vector<256x1xf32>
    %18 = arith.maximumf %16, %17 : vector<256x1xf32>
    %19 = math.rsqrt %18 : vector<256x1xf32>
    %20 = vector.extract_strided_slice %0 {offsets = [0, 0], sizes = [256, 1], strides = [1, 1]} : vector<256x16xf32> to vector<256x1xf32>
    %cst_5 = arith.constant 1.004000e+00 : f32
    %21 = vector.broadcast %cst_5 : f32 to vector<256x1xf32>
    %22 = arith.maximumf %20, %21 : vector<256x1xf32>
    %23 = arith.mulf %22, %22 : vector<256x1xf32>
    %cst_6 = arith.constant 1.000000e+00 : f32
    %24 = vector.broadcast %cst_6 : f32 to vector<256x1xf32>
    %25 = arith.subf %23, %24 : vector<256x1xf32>
    %26 = math.sqrt %25 : vector<256x1xf32>
    %27 = arith.addf %22, %26 : vector<256x1xf32>
    %28 = math.log %27 : vector<256x1xf32>
    %29 = arith.mulf %28, %19 : vector<256x1xf32>
    %30 = vector.broadcast %29 : vector<256x1xf32> to vector<256x16xf32>
    %31 = arith.mulf %30, %13 : vector<256x16xf32>
    %cst_7 = arith.constant dense<0.000000e+00> : vector<256x128xf32>
    %32 = tpu.matmul %31, %1, %cst_7 {dimension_numbers = #tpu.dot_dimension_numbers<[1], [0], [0], [1], [0, 0, 1, 1], [], []>} : vector<256x16xf32>, vector<16x128xf32>, vector<256x128xf32> -> vector<256x128xf32>
    %33 = arith.mulf %32, %32 : vector<256x128xf32>
    %cst_8 = arith.constant dense<0.000000e+00> : vector<256xf32>
    %34 = vector.multi_reduction <add>, %33, %cst_8 [1] : vector<256x128xf32> to vector<256xf32>
    %35 = vector.shape_cast %34 : vector<256xf32> to vector<256x1xf32>
    %cst_9 = arith.constant 1.000000e-30 : f32
    %36 = vector.broadcast %cst_9 : f32 to vector<256x1xf32>
    %37 = arith.maximumf %35, %36 : vector<256x1xf32>
    %38 = math.rsqrt %37 : vector<256x1xf32>
    %39 = arith.mulf %37, %38 : vector<256x1xf32>
    %40 = math.exp %39 : vector<256x1xf32>
    %cst_10 = arith.constant 1.000000e+00 : f32
    %41 = vector.broadcast %cst_10 : f32 to vector<256x1xf32>
    %42 = arith.divf %41, %40 : vector<256x1xf32>
    %43 = arith.subf %40, %42 : vector<256x1xf32>
    %cst_11 = arith.constant 5.000000e-01 : f32
    %44 = vector.broadcast %cst_11 : f32 to vector<256x1xf32>
    %45 = arith.mulf %44, %43 : vector<256x1xf32>
    %46 = arith.mulf %45, %38 : vector<256x1xf32>
    %47 = vector.broadcast %46 : vector<256x1xf32> to vector<256x128xf32>
    %48 = arith.mulf %47, %32 : vector<256x128xf32>
    %49 = arith.mulf %46, %46 : vector<256x1xf32>
    %50 = arith.mulf %49, %35 : vector<256x1xf32>
    %cst_12 = arith.constant 4.000000e-03 : f32
    %51 = vector.broadcast %cst_12 : f32 to vector<256x1xf32>
    %52 = arith.maximumf %50, %51 : vector<256x1xf32>
    %53 = math.sqrt %52 : vector<256x1xf32>
    %c0_13 = arith.constant 0 : index
    %c0_14 = arith.constant 0 : index
    %54 = vector.load %arg3[%c0_13, %c0_14] : memref<1x128xf32, #tpu.memory_space<vmem>>, vector<1x128xf32>
    %55 = arith.mulf %54, %54 : vector<1x128xf32>
    %cst_15 = arith.constant dense<0.000000e+00> : vector<1xf32>
    %56 = vector.multi_reduction <add>, %55, %cst_15 [1] : vector<1x128xf32> to vector<1xf32>
    %57 = vector.shape_cast %56 : vector<1xf32> to vector<1x1xf32>
    %cst_16 = arith.constant 1.000000e-30 : f32
    %58 = vector.broadcast %cst_16 : f32 to vector<256x1xf32>
    %59 = arith.maximumf %50, %58 : vector<256x1xf32>
    %60 = math.rsqrt %59 : vector<256x1xf32>
    %61 = vector.broadcast %54 : vector<1x128xf32> to vector<256x128xf32>
    %62 = arith.mulf %48, %61 : vector<256x128xf32>
    %cst_17 = arith.constant dense<0.000000e+00> : vector<256xf32>
    %63 = vector.multi_reduction <add>, %62, %cst_17 [1] : vector<256x128xf32> to vector<256xf32>
    %64 = vector.shape_cast %63 : vector<256xf32> to vector<256x1xf32>
    %65 = arith.mulf %64, %53 : vector<256x1xf32>
    %66 = arith.mulf %60, %60 : vector<256x1xf32>
    %67 = arith.mulf %65, %66 : vector<256x1xf32>
    %cst_18 = arith.constant 2.000000e+00 : f32
    %68 = vector.broadcast %cst_18 : f32 to vector<256x1xf32>
    %69 = arith.mulf %68, %67 : vector<256x1xf32>
    %70 = arith.mulf %69, %64 : vector<256x1xf32>
    %71 = vector.broadcast %57 : vector<1x1xf32> to vector<256x1xf32>
    %72 = arith.subf %71, %70 : vector<256x1xf32>
    %73 = arith.mulf %67, %67 : vector<256x1xf32>
    %74 = arith.mulf %73, %50 : vector<256x1xf32>
    %75 = arith.addf %72, %74 : vector<256x1xf32>
    %76 = arith.mulf %67, %50 : vector<256x1xf32>
    %77 = arith.subf %64, %76 : vector<256x1xf32>
    %78 = arith.divf %77, %53 : vector<256x1xf32>
    %79 = arith.mulf %78, %78 : vector<256x1xf32>
    %80 = arith.subf %75, %79 : vector<256x1xf32>
    %cst_19 = arith.constant 4.000000e-03 : f32
    %81 = vector.broadcast %cst_19 : f32 to vector<256x1xf32>
    %82 = arith.maximumf %80, %81 : vector<256x1xf32>
    %83 = math.sqrt %82 : vector<256x1xf32>
    %cst_20 = arith.constant 1.000000e+06 : f32
    %84 = vector.broadcast %cst_20 : f32 to vector<256x1xf32>
    %85 = arith.minimumf %83, %84 : vector<256x1xf32>
    %86 = math.exp %85 : vector<256x1xf32>
    %cst_21 = arith.constant 1.000000e+00 : f32
    %87 = vector.broadcast %cst_21 : f32 to vector<256x1xf32>
    %88 = arith.divf %87, %86 : vector<256x1xf32>
    %89 = arith.addf %86, %88 : vector<256x1xf32>
    %cst_22 = arith.constant 5.000000e-01 : f32
    %90 = vector.broadcast %cst_22 : f32 to vector<256x1xf32>
    %91 = arith.mulf %90, %89 : vector<256x1xf32>
    %92 = arith.subf %86, %88 : vector<256x1xf32>
    %cst_23 = arith.constant 5.000000e-01 : f32
    %93 = vector.broadcast %cst_23 : f32 to vector<256x1xf32>
    %94 = arith.mulf %93, %92 : vector<256x1xf32>
    %95 = tpu.reciprocal %85 {approx = true} : vector<256x1xf32> -> vector<256x1xf32>
    %96 = arith.mulf %94, %95 : vector<256x1xf32>
    %97 = arith.mulf %91, %91 : vector<256x1xf32>
    %98 = arith.mulf %97, %50 : vector<256x1xf32>
    %cst_24 = arith.constant 2.000000e+00 : f32
    %99 = vector.broadcast %cst_24 : f32 to vector<256x1xf32>
    %100 = arith.mulf %99, %91 : vector<256x1xf32>
    %101 = arith.mulf %100, %96 : vector<256x1xf32>
    %102 = arith.mulf %101, %77 : vector<256x1xf32>
    %103 = arith.addf %98, %102 : vector<256x1xf32>
    %104 = arith.mulf %96, %96 : vector<256x1xf32>
    %105 = arith.mulf %104, %75 : vector<256x1xf32>
    %106 = arith.addf %103, %105 : vector<256x1xf32>
    %107 = arith.mulf %96, %67 : vector<256x1xf32>
    %108 = arith.subf %91, %107 : vector<256x1xf32>
    %109 = vector.broadcast %108 : vector<256x1xf32> to vector<256x128xf32>
    %110 = arith.mulf %109, %48 : vector<256x128xf32>
    %111 = vector.broadcast %96 : vector<256x1xf32> to vector<256x128xf32>
    %112 = vector.broadcast %54 : vector<1x128xf32> to vector<256x128xf32>
    %113 = arith.mulf %111, %112 : vector<256x128xf32>
    %114 = arith.addf %110, %113 : vector<256x128xf32>
    %cst_25 = arith.constant 4.000000e-03 : f32
    %115 = vector.broadcast %cst_25 : f32 to vector<256x1xf32>
    %116 = arith.maximumf %106, %115 : vector<256x1xf32>
    %117 = math.sqrt %116 : vector<256x1xf32>
    %118 = vector.broadcast %117 : vector<256x1xf32> to vector<256x128xf32>
    %119 = vector.broadcast %11 : vector<1x128xf32> to vector<256x128xf32>
    %120 = arith.mulf %118, %119 : vector<256x128xf32>
    %121 = arith.addf %120, %114 : vector<256x128xf32>
    %c0_26 = arith.constant 0 : index
    %c0_27 = arith.constant 0 : index
    %122 = vector.load %arg4[%c0_26, %c0_27] : memref<256x128xf32, #tpu.memory_space<vmem>>, vector<256x128xf32>
    tpu.vector_store %arg4[%c0_26, %c0_27], %121 {strides = array<i32>} : memref<256x128xf32, #tpu.memory_space<vmem>>, vector<256x128xf32>,
    return
  }
  func.func @transform_0(%arg0: i32) -> (i32, i32) {
    %c0_i32 = arith.constant 0 : i32
    %c0_i32_0 = arith.constant 0 : i32
    return %arg0, %c0_i32 : i32, i32
  }
  func.func @transform_1(%arg0: i32) -> (i32, i32) {
    %c0_i32 = arith.constant 0 : i32
    %c0_i32_0 = arith.constant 0 : i32
    %c0_i32_1 = arith.constant 0 : i32
    return %c0_i32, %c0_i32_0 : i32, i32
  }
  func.func @transform_2(%arg0: i32) -> (i32, i32) {
    %c0_i32 = arith.constant 0 : i32
    %c0_i32_0 = arith.constant 0 : i32
    %c0_i32_1 = arith.constant 0 : i32
    return %c0_i32, %c0_i32_0 : i32, i32
  }
  func.func @transform_3(%arg0: i32) -> (i32, i32) {
    %c0_i32 = arith.constant 0 : i32
    %c0_i32_0 = arith.constant 0 : i32
    return %arg0, %c0_i32 : i32, i32
  }
}

</mosaic_0001>

<llo_original>
// kernel: tpu_custom_call.1
$region0: #{tpu_custom_call.1}
  #allocation0 [shape = 'u32[]', space=smem, size = 0x4, offset = 0x4, fixed_abs, tag = 'smem constant byte address 0x4 - core index']
  #allocation1 [shape = 'u32[72,128]{1,0:T(1,128)}', space=vmem, size = 0x9000, scoped, tag = 'internal scratch']
  %s0 = inlined_call_operand.vmem [shape: f32[512,16], index: 0, kind: input, shape index: {}]
  %s1 = inlined_call_operand.vmem [shape: f32[16,128], index: 1, kind: input, shape index: {}]
  %s2 = inlined_call_operand.vmem [shape: f32[1,128], index: 2, kind: input, shape index: {}]
  %s3 = inlined_call_operand.hbm [shape: f32[512,128], index: 3, kind: output, shape index: {}]
  %s4 = sld [smem:[#allocation0]]
  $region45: #{tpu_custom_call.1} parent=0
    _
  %s6 = ssub.s32 1, %s4
  %s7 = scalar_select 0, %s6, %s4
  $region1: #{tpu_custom_call.1} parent=0
    #allocation2 [shape = 'u8[262144]{0}', space=vmem, size = 0x40000, scoped, tag = 'output window, operand 0']
    #allocation3 [shape = 's32[2]{0}', space=sflag, size = 0x8, scoped, tag = 'scoped memory for tpu_custom_call.1']
    %8 = vsyncpa [#allocation3], 0
    %s9 = scalar_lea.sflag [#allocation3], 1
    %10 = vsyncpa %s9, 0
    loop: start=0, step=1, limit=4
    $region2: #{tpu_custom_call.1} parent=1 // loop_pre_header
      _
    $region3: #{tpu_custom_call.1} parent=1 // loop_header
      %s12 = sphi 0, %s16
      %p13 = scmp.ge.s32.totalorder %s12, 4
      %s22 = sphi 0, %s24
      %s25 = sphi 0, %s22
      %s26 = sphi 0, %s25
      %s42 = sphi 0, %s26
      %s46 = sphi 0, %s46
      %s48 = sphi 0, %s46
      %s49 = sphi 0, %s48
      %s63 = sphi 0, %s49
      %s67 = sphi 0, %s67
      %s69 = sphi 0, %s67
      %s70 = sphi 0, %s69
      %s84 = sphi 0, %s70
      %s90 = sphi 0, %s92
      %s93 = sphi 0, %s90
      %s94 = sphi 0, %s93
      %s110 = sphi 0, %s94
    $region4: #{tpu_custom_call.1} parent=1 // loop_header_branch
      %15 = sbr.rel (%p13) target = $region8
    $region5: #{tpu_custom_call.1} parent=1 // loop_body
      %s17 = ssub.s32 %s12, 1
      %s18 = ssub.s32 %s12, 2
      %s19 = sadd.s32 %s12, 1
      %s20 = ssub.s32 %s12, %s19
      %p21 = scmp.eq.s32.totalorder %s20, 0
      %s23 = sadd.s32 %s22, 1
      %s24 = scalar_select %p21, %s22, %s23
      %p27 = pneg %p21
      %p28 = scmp.eq.s32.totalorder %s12, 1
      %p29 = por %p27, %p28
      %p30 = scmp.ne.s32.totalorder %s22, %s25
      %p31 = scmp.eq.s32.totalorder %s12, 0
      %p32 = por %p30, %p31
      %p33 = scmp.ne.s32.totalorder %s22, %s25
      %p34 = scmp.eq.s32.totalorder %s17, 1
      %p35 = por %p33, %p34
      %p36 = scmp.ne.s32.totalorder %s25, %s26
      %p37 = scmp.eq.s32.totalorder %s17, 0
      %p38 = por %p36, %p37
      %p39 = scmp.ne.s32.totalorder %s25, %s26
      %p40 = scmp.eq.s32.totalorder %s18, 1
      %p41 = por %p39, %p40
      %p43 = scmp.ne.s32.totalorder %s26, %s42
      %p44 = scmp.eq.s32.totalorder %s18, 0
      %p45 = por %p43, %p44
      %s47 = sadd.s32 %s46, 1
      %p50 = scmp.eq.s32.totalorder %s12, 1
      %p51 = scmp.ne.s32.totalorder %s46, %s48
      %p52 = scmp.eq.s32.totalorder %s12, 0
      %p53 = por %p51, %p52
      %p54 = scmp.ne.s32.totalorder %s46, %s48
      %p55 = scmp.eq.s32.totalorder %s17, 1
      %p56 = por %p54, %p55
      %p57 = scmp.ne.s32.totalorder %s48, %s49
      %p58 = scmp.eq.s32.totalorder %s17, 0
      %p59 = por %p57, %p58
      %p60 = scmp.ne.s32.totalorder %s48, %s49
      %p61 = scmp.eq.s32.totalorder %s18, 1
      %p62 = por %p60, %p61
      %p64 = scmp.ne.s32.totalorder %s49, %s63
      %p65 = scmp.eq.s32.totalorder %s18, 0
      %p66 = por %p64, %p65
      %s68 = sadd.s32 %s67, 1
      %p71 = scmp.eq.s32.totalorder %s12, 1
      %p72 = scmp.ne.s32.totalorder %s67, %s69
      %p73 = scmp.eq.s32.totalorder %s12, 0
      %p74 = por %p72, %p73
      %p75 = scmp.ne.s32.totalorder %s67, %s69
      %p76 = scmp.eq.s32.totalorder %s17, 1
      %p77 = por %p75, %p76
      %p78 = scmp.ne.s32.totalorder %s69, %s70
      %p79 = scmp.eq.s32.totalorder %s17, 0
      %p80 = por %p78, %p79
      %p81 = scmp.ne.s32.totalorder %s69, %s70
      %p82 = scmp.eq.s32.totalorder %s18, 1
      %p83 = por %p81, %p82
      %p85 = scmp.ne.s32.totalorder %s70, %s84
      %p86 = scmp.eq.s32.totalorder %s18, 0
      %p87 = por %p85, %p86
      %s88 = ssub.s32 %s12, %s19
      %p89 = scmp.eq.s32.totalorder %s88, 0
      %s91 = sadd.s32 %s90, 1
      %s92 = scalar_select %p89, %s90, %s91
      %p95 = pneg %p89
      %p96 = scmp.eq.s32.totalorder %s12, 1
      %p97 = por %p95, %p96
      %p98 = scmp.ne.s32.totalorder %s90, %s93
      %p99 = scmp.eq.s32.totalorder %s12, 0
      %p100 = por %p98, %p99
      %p101 = scmp.ne.s32.totalorder %s90, %s93
      %p102 = scmp.eq.s32.totalorder %s17, 1
      %p103 = por %p101, %p102
      %p104 = scmp.ne.s32.totalorder %s93, %s94
      %p105 = scmp.eq.s32.totalorder %s17, 0
      %p106 = por %p104, %p105
      %p107 = scmp.ne.s32.totalorder %s93, %s94
      %p108 = scmp.eq.s32.totalorder %s18, 1
      %p109 = por %p107, %p108
      %p111 = scmp.ne.s32.totalorder %s94, %s110
      %p112 = scmp.eq.s32.totalorder %s18, 0
      %p113 = por %p111, %p112
      %p114 = scmp.le.s32.totalorder 1, %s12
      %p115 = scmp.lt.s32.totalorder %s12, 3
      %p116 = pnand %p114, %p115
      %p117 = pneg %p116
      // Predicated region
      $region9: #{tpu_custom_call.1} parent=5 // pred_check
        _
      $region10: #{tpu_custom_call.1} parent=5 // pred_check_branch
        %119 = sbr.rel (%p116) target = $region12
      $region11: #{tpu_custom_call.1} parent=5 // pred_region
        %s120 = ssub.s32 %s12, 1
        // Predicated region
        $region13: #{tpu_custom_call.1} parent=11 // pred_check
          %p121 = pneg %p59
        $region14: #{tpu_custom_call.1} parent=11 // pred_check_branch
          %123 = sbr.rel (%p121) target = $region16
        $region15: #{tpu_custom_call.1} parent=11 // pred_region
          _
        $region16: #{tpu_custom_call.1} parent=11 // pred_fallthru
          _
        // Predicated region
        $region17: #{tpu_custom_call.1} parent=11 // pred_check
          %p124 = pneg %p80
        $region18: #{tpu_custom_call.1} parent=11 // pred_check_branch
          %126 = sbr.rel (%p124) target = $region20
        $region19: #{tpu_custom_call.1} parent=11 // pred_region
          _
        $region20: #{tpu_custom_call.1} parent=11 // pred_fallthru
          _
      $region12: #{tpu_custom_call.1} parent=5 // pred_fallthru
        _
      %p127 = scmp.lt.s32.totalorder %s12, 2
      // Predicated region
      $region21: #{tpu_custom_call.1} parent=5 // pred_check
        %p128 = pneg %p127
      $region22: #{tpu_custom_call.1} parent=5 // pred_check_branch
        %130 = sbr.rel (%p128) target = $region24
      $region23: #{tpu_custom_call.1} parent=5 // pred_region
        // Predicated region
        $region25: #{tpu_custom_call.1} parent=23 // pred_check
          %p131 = pneg %p32
        $region26: #{tpu_custom_call.1} parent=23 // pred_check_branch
          %133 = sbr.rel (%p131) target = $region28
        $region27: #{tpu_custom_call.1} parent=23 // pred_region
          %s134 = smul.u32 32, %s12
          %p135 = scmp.lt.s32.totalorder %s134, 63
          %s136 = scalar_select %p135, %s134, 63
          %s137 = smul.addr %s136, 8
          %s138 = scalar_lea.vmem %s0, %s137
          %s139 = smul.u32 32, %s12
        $region28: #{tpu_custom_call.1} parent=23 // pred_fallthru
          _
      $region24: #{tpu_custom_call.1} parent=5 // pred_fallthru
        _
      %p140 = scmp.le.s32.totalorder 1, %s12
      %p141 = scmp.lt.s32.totalorder %s12, 3
      %p142 = pnand %p140, %p141
      %p143 = pneg %p142
      // Predicated region
      $region29: #{tpu_custom_call.1} parent=5 // pred_check
        _
      $region30: #{tpu_custom_call.1} parent=5 // pred_check_branch
        %145 = sbr.rel (%p142) target = $region32
      $region31: #{tpu_custom_call.1} parent=5 // pred_region
        %s146 = ssub.s32 %s12, 1
        %s147 = smul.u32 32, %s17
        %p148 = scmp.lt.s32.totalorder %s147, 63
        %s149 = scalar_select %p148, %s147, 63
        %s150 = smul.addr %s149, 8
        %s151 = scalar_lea.vmem %s0, %s150
        %p152 = pneg %p38
        %p153 = pneg %p35
        %p154 = pneg %p59
        %p155 = pneg %p56
        %p156 = pneg %p80
        %p157 = pneg %p77
        %p158 = pneg %p106
        %p159 = pneg %p103
        %s160 = sand.u32 %s93, 1
        %s161 = scalar_lea.sflag [#allocation3], %s160
        %s162 = sand.u32 %s93, 1
        %s163 = smul.addr %s162, 256
        %s164 = scalar_lea.vmem [#allocation2], %s163
        %s165 = smul.u32 32, %s17
        %p166 = scmp.lt.s32.totalorder %s165, 63
        %s167 = scalar_select %p166, %s165, 63
        %s168 = smul.addr %s167, 8
        %s169 = scalar_lea.vmem %s0, %s168
        %s170 = smul.u32 32, %s17
        %s171 = smul.u32 32, %s17
        %v172 = vld [vmem:[%s169] sm:$0xff]
        %v173 = vld [vmem:[%s169 + $0x8] sm:$0xff]
        %v174 = vld [vmem:[%s169 + $0x10] sm:$0xff]
        %v175 = vld [vmem:[%s169 + $0x18] sm:$0xff]
        %v176 = vld [vmem:[%s169 + $0x20] sm:$0xff]
        %v177 = vld [vmem:[%s169 + $0x28] sm:$0xff]
        %v178 = vld [vmem:[%s169 + $0x30] sm:$0xff]
        %v179 = vld [vmem:[%s169 + $0x38] sm:$0xff]
        %v180 = vld [vmem:[%s169 + $0x40] sm:$0xff]
        %v181 = vld [vmem:[%s169 + $0x48] sm:$0xff]
        %v182 = vld [vmem:[%s169 + $0x50] sm:$0xff]
        %v183 = vld [vmem:[%s169 + $0x58] sm:$0xff]
        %v184 = vld [vmem:[%s169 + $0x60] sm:$0xff]
        %v185 = vld [vmem:[%s169 + $0x68] sm:$0xff]
        %v186 = vld [vmem:[%s169 + $0x70] sm:$0xff]
        %v187 = vld [vmem:[%s169 + $0x78] sm:$0xff]
        %v188 = vld [vmem:[%s169 + $0x80] sm:$0xff]
        %v189 = vld [vmem:[%s169 + $0x88] sm:$0xff]
        %v190 = vld [vmem:[%s169 + $0x90] sm:$0xff]
        %v191 = vld [vmem:[%s169 + $0x98] sm:$0xff]
        %v192 = vld [vmem:[%s169 + $0xa0] sm:$0xff]
        %v193 = vld [vmem:[%s169 + $0xa8] sm:$0xff]
        %v194 = vld [vmem:[%s169 + $0xb0] sm:$0xff]
        %v195 = vld [vmem:[%s169 + $0xb8] sm:$0xff]
        %v196 = vld [vmem:[%s169 + $0xc0] sm:$0xff]
        %v197 = vld [vmem:[%s169 + $0xc8] sm:$0xff]
        %v198 = vld [vmem:[%s169 + $0xd0] sm:$0xff]
        %v199 = vld [vmem:[%s169 + $0xd8] sm:$0xff]
        %v200 = vld [vmem:[%s169 + $0xe0] sm:$0xff]
        %v201 = vld [vmem:[%s169 + $0xe8] sm:$0xff]
        %v202 = vld [vmem:[%s169 + $0xf0] sm:$0xff]
        %v203 = vld [vmem:[%s169 + $0xf8] sm:$0xff]
        %v204 = vld [vmem:[%s1] sm:$0xff]
        %v205 = vld [vmem:[%s1 + $0x8] sm:$0xff]
        %v206 = vlaneseq
        %v207 = vand.u32 %v206, 127
        %vm208 = vcmp.ne.s32.totalorder %v207, 0
        %v209 = vsel %vm208, 1, 0
        %v210 = vcvt.s32.f32 %v209
        %vm211 = vcmp.eq.s32.totalorder %v207, 0
        %v212 = vsel %vm211, 1, 0
        %v213 = vcvt.s32.f32 %v212
        %v214 = vmul.f32 %v172, %v210
        %v215 = vmul.f32 %v173, %v210
        %v216 = vmul.f32 %v174, %v210
        %v217 = vmul.f32 %v175, %v210
        %v218 = vmul.f32 %v176, %v210
        %v219 = vmul.f32 %v177, %v210
        %v220 = vmul.f32 %v178, %v210
        %v221 = vmul.f32 %v179, %v210
        %v222 = vmul.f32 %v180, %v210
        %v223 = vmul.f32 %v181, %v210
        %v224 = vmul.f32 %v182, %v210
        %v225 = vmul.f32 %v183, %v210
        %v226 = vmul.f32 %v184, %v210
        %v227 = vmul.f32 %v185, %v210
        %v228 = vmul.f32 %v186, %v210
        %v229 = vmul.f32 %v187, %v210
        %v230 = vmul.f32 %v188, %v210
        %v231 = vmul.f32 %v189, %v210
        %v232 = vmul.f32 %v190, %v210
        %v233 = vmul.f32 %v191, %v210
        %v234 = vmul.f32 %v192, %v210
        %v235 = vmul.f32 %v193, %v210
        %v236 = vmul.f32 %v194, %v210
        %v237 = vmul.f32 %v195, %v210
        %v238 = vmul.f32 %v196, %v210
        %v239 = vmul.f32 %v197, %v210
        %v240 = vmul.f32 %v198, %v210
        %v241 = vmul.f32 %v199, %v210
        %v242 = vmul.f32 %v200, %v210
        %v243 = vmul.f32 %v201, %v210
        %v244 = vmul.f32 %v202, %v210
        %v245 = vmul.f32 %v203, %v210
        %v246 = vmul.f32 %v214, %v214
        %v247 = vmul.f32 %v215, %v215
        %v248 = vmul.f32 %v216, %v216
        %v249 = vmul.f32 %v217, %v217
        %v250 = vmul.f32 %v218, %v218
        %v251 = vmul.f32 %v219, %v219
        %v252 = vmul.f32 %v220, %v220
        %v253 = vmul.f32 %v221, %v221
        %v254 = vmul.f32 %v222, %v222
        %v255 = vmul.f32 %v223, %v223
        %v256 = vmul.f32 %v224, %v224
        %v257 = vmul.f32 %v225, %v225
        %v258 = vmul.f32 %v226, %v226
        %v259 = vmul.f32 %v227, %v227
        %v260 = vmul.f32 %v228, %v228
        %v261 = vmul.f32 %v229, %v229
        %v262 = vmul.f32 %v230, %v230
        %v263 = vmul.f32 %v231, %v231
        %v264 = vmul.f32 %v232, %v232
        %v265 = vmul.f32 %v233, %v233
        %v266 = vmul.f32 %v234, %v234
        %v267 = vmul.f32 %v235, %v235
        %v268 = vmul.f32 %v236, %v236
        %v269 = vmul.f32 %v237, %v237
        %v270 = vmul.f32 %v238, %v238
        %v271 = vmul.f32 %v239, %v239
        %v272 = vmul.f32 %v240, %v240
        %v273 = vmul.f32 %v241, %v241
        %v274 = vmul.f32 %v242, %v242
        %v275 = vmul.f32 %v243, %v243
        %v276 = vmul.f32 %v244, %v244
        %v277 = vmul.f32 %v245, %v245
        %vm278 = vcmask 130048
        %v279 = vsel %vm278, %v246, 0.0
        %280 = vadd.xlane.f32.xlu0 %v279
        %v281 = vpop.xlane.xlu0 %280
        %v282 = vsel %vm278, %v247, 0.0
        %283 = vadd.xlane.f32.xlu0 %v282
        %v284 = vpop.xlane.xlu0 %283
        %v285 = vsel %vm278, %v248, 0.0
        %286 = vadd.xlane.f32.xlu0 %v285
        %v287 = vpop.xlane.xlu0 %286
        %v288 = vsel %vm278, %v249, 0.0
        %289 = vadd.xlane.f32.xlu0 %v288
        %v290 = vpop.xlane.xlu0 %289
        %v291 = vsel %vm278, %v250, 0.0
        %292 = vadd.xlane.f32.xlu0 %v291
        %v293 = vpop.xlane.xlu0 %292
        %v294 = vsel %vm278, %v251, 0.0
        %295 = vadd.xlane.f32.xlu0 %v294
        %v296 = vpop.xlane.xlu0 %295
        %v297 = vsel %vm278, %v252, 0.0
        %298 = vadd.xlane.f32.xlu0 %v297
        %v299 = vpop.xlane.xlu0 %298
        %v300 = vsel %vm278, %v253, 0.0
        %301 = vadd.xlane.f32.xlu0 %v300
        %v302 = vpop.xlane.xlu0 %301
        %v303 = vsel %vm278, %v254, 0.0
        %304 = vadd.xlane.f32.xlu0 %v303
        %v305 = vpop.xlane.xlu0 %304
        %v306 = vsel %vm278, %v255, 0.0
        %307 = vadd.xlane.f32.xlu0 %v306
        %v308 = vpop.xlane.xlu0 %307
        %v309 = vsel %vm278, %v256, 0.0
        %310 = vadd.xlane.f32.xlu0 %v309
        %v311 = vpop.xlane.xlu0 %310
        %v312 = vsel %vm278, %v257, 0.0
        %313 = vadd.xlane.f32.xlu0 %v312
        %v314 = vpop.xlane.xlu0 %313
        %v315 = vsel %vm278, %v258, 0.0
        %316 = vadd.xlane.f32.xlu0 %v315
        %v317 = vpop.xlane.xlu0 %316
        %v318 = vsel %vm278, %v259, 0.0
        %319 = vadd.xlane.f32.xlu0 %v318
        %v320 = vpop.xlane.xlu0 %319
        %v321 = vsel %vm278, %v260, 0.0
        %322 = vadd.xlane.f32.xlu0 %v321
        %v323 = vpop.xlane.xlu0 %322
        %v324 = vsel %vm278, %v261, 0.0
        %325 = vadd.xlane.f32.xlu0 %v324
        %v326 = vpop.xlane.xlu0 %325
        %v327 = vsel %vm278, %v262, 0.0
        %328 = vadd.xlane.f32.xlu0 %v327
        %v329 = vpop.xlane.xlu0 %328
        %v330 = vsel %vm278, %v263, 0.0
        %331 = vadd.xlane.f32.xlu0 %v330
        %v332 = vpop.xlane.xlu0 %331
        %v333 = vsel %vm278, %v264, 0.0
        %334 = vadd.xlane.f32.xlu0 %v333
        %v335 = vpop.xlane.xlu0 %334
        %v336 = vsel %vm278, %v265, 0.0
        %337 = vadd.xlane.f32.xlu0 %v336
        %v338 = vpop.xlane.xlu0 %337
        %v339 = vsel %vm278, %v266, 0.0
        %340 = vadd.xlane.f32.xlu0 %v339
        %v341 = vpop.xlane.xlu0 %340
        %v342 = vsel %vm278, %v267, 0.0
        %343 = vadd.xlane.f32.xlu0 %v342
        %v344 = vpop.xlane.xlu0 %343
        %v345 = vsel %vm278, %v268, 0.0
        %346 = vadd.xlane.f32.xlu0 %v345
        %v347 = vpop.xlane.xlu0 %346
        %v348 = vsel %vm278, %v269, 0.0
        %349 = vadd.xlane.f32.xlu0 %v348
        %v350 = vpop.xlane.xlu0 %349
        %v351 = vsel %vm278, %v270, 0.0
        %352 = vadd.xlane.f32.xlu0 %v351
        %v353 = vpop.xlane.xlu0 %352
        %v354 = vsel %vm278, %v271, 0.0
        %355 = vadd.xlane.f32.xlu0 %v354
        %v356 = vpop.xlane.xlu0 %355
        %v357 = vsel %vm278, %v272, 0.0
        %358 = vadd.xlane.f32.xlu0 %v357
        %v359 = vpop.xlane.xlu0 %358
        %v360 = vsel %vm278, %v273, 0.0
        %361 = vadd.xlane.f32.xlu0 %v360
        %v362 = vpop.xlane.xlu0 %361
        %v363 = vsel %vm278, %v274, 0.0
        %364 = vadd.xlane.f32.xlu0 %v363
        %v365 = vpop.xlane.xlu0 %364
        %v366 = vsel %vm278, %v275, 0.0
        %367 = vadd.xlane.f32.xlu0 %v366
        %v368 = vpop.xlane.xlu0 %367
        %v369 = vsel %vm278, %v276, 0.0
        %370 = vadd.xlane.f32.xlu0 %v369
        %v371 = vpop.xlane.xlu0 %370
        %v372 = vsel %vm278, %v277, 0.0
        %373 = vadd.xlane.f32.xlu0 %v372
        %v374 = vpop.xlane.xlu0 %373
        %v375 = vmax.f32 %v281, 1e-30
        %v376 = vmax.f32 %v284, 1e-30
        %v377 = vmax.f32 %v287, 1e-30
        %v378 = vmax.f32 %v290, 1e-30
        %v379 = vmax.f32 %v293, 1e-30
        %v380 = vmax.f32 %v296, 1e-30
        %v381 = vmax.f32 %v299, 1e-30
        %v382 = vmax.f32 %v302, 1e-30
        %v383 = vmax.f32 %v305, 1e-30
        %v384 = vmax.f32 %v308, 1e-30
        %v385 = vmax.f32 %v311, 1e-30
        %v386 = vmax.f32 %v314, 1e-30
        %v387 = vmax.f32 %v317, 1e-30
        %v388 = vmax.f32 %v320, 1e-30
        %v389 = vmax.f32 %v323, 1e-30
        %v390 = vmax.f32 %v326, 1e-30
        %v391 = vmax.f32 %v329, 1e-30
        %v392 = vmax.f32 %v332, 1e-30
        %v393 = vmax.f32 %v335, 1e-30
        %v394 = vmax.f32 %v338, 1e-30
        %v395 = vmax.f32 %v341, 1e-30
        %v396 = vmax.f32 %v344, 1e-30
        %v397 = vmax.f32 %v347, 1e-30
        %v398 = vmax.f32 %v350, 1e-30
        %v399 = vmax.f32 %v353, 1e-30
        %v400 = vmax.f32 %v356, 1e-30
        %v401 = vmax.f32 %v359, 1e-30
        %v402 = vmax.f32 %v362, 1e-30
        %v403 = vmax.f32 %v365, 1e-30
        %v404 = vmax.f32 %v368, 1e-30
        %v405 = vmax.f32 %v371, 1e-30
        %v406 = vmax.f32 %v374, 1e-30
        %v407 = vrsqrt.pop %v375
        %v408 = vmul.f32 %v407, %v375
        %v409 = vmul.f32 %v408, %v407
        %v410 = vmul.f32 0.5, %v409
        %v411 = vsub.f32 1.5, %v410
        %v412 = vmul.f32 %v407, %v411
        %vm413 = vweird.f32 %v375
        %vm414 = vweird.f32 %v407
        %vm415 = vmor %vm413, %vm414
        %v416 = vsel %vm415, %v407, %v412
        %v417 = vrsqrt.pop %v376
        %v418 = vmul.f32 %v417, %v376
        %v419 = vmul.f32 %v418, %v417
        %v420 = vmul.f32 0.5, %v419
        %v421 = vsub.f32 1.5, %v420
        %v422 = vmul.f32 %v417, %v421
        %vm423 = vweird.f32 %v376
        %vm424 = vweird.f32 %v417
        %vm425 = vmor %vm423, %vm424
        %v426 = vsel %vm425, %v417, %v422
        %v427 = vrsqrt.pop %v377
        %v428 = vmul.f32 %v427, %v377
        %v429 = vmul.f32 %v428, %v427
        %v430 = vmul.f32 0.5, %v429
        %v431 = vsub.f32 1.5, %v430
        %v432 = vmul.f32 %v427, %v431
        %vm433 = vweird.f32 %v377
        %vm434 = vweird.f32 %v427
        %vm435 = vmor %vm433, %vm434
        %v436 = vsel %vm435, %v427, %v432
        %v437 = vrsqrt.pop %v378
        %v438 = vmul.f32 %v437, %v378
        %v439 = vmul.f32 %v438, %v437
        %v440 = vmul.f32 0.5, %v439
        %v441 = vsub.f32 1.5, %v440
        %v442 = vmul.f32 %v437, %v441
        %vm443 = vweird.f32 %v378
        %vm444 = vweird.f32 %v437
        %vm445 = vmor %vm443, %vm444
        %v446 = vsel %vm445, %v437, %v442
        %v447 = vrsqrt.pop %v379
        %v448 = vmul.f32 %v447, %v379
        %v449 = vmul.f32 %v448, %v447
        %v450 = vmul.f32 0.5, %v449
        %v451 = vsub.f32 1.5, %v450
        %v452 = vmul.f32 %v447, %v451
        %vm453 = vweird.f32 %v379
        %vm454 = vweird.f32 %v447
        %vm455 = vmor %vm453, %vm454
        %v456 = vsel %vm455, %v447, %v452
        %v457 = vrsqrt.pop %v380
        %v458 = vmul.f32 %v457, %v380
        %v459 = vmul.f32 %v458, %v457
        %v460 = vmul.f32 0.5, %v459
        %v461 = vsub.f32 1.5, %v460
        %v462 = vmul.f32 %v457, %v461
        %vm463 = vweird.f32 %v380
        %vm464 = vweird.f32 %v457
        %vm465 = vmor %vm463, %vm464
        %v466 = vsel %vm465, %v457, %v462
        %v467 = vrsqrt.pop %v381
        %v468 = vmul.f32 %v467, %v381
        %v469 = vmul.f32 %v468, %v467
        %v470 = vmul.f32 0.5, %v469
        %v471 = vsub.f32 1.5, %v470
        %v472 = vmul.f32 %v467, %v471
        %vm473 = vweird.f32 %v381
        %vm474 = vweird.f32 %v467
        %vm475 = vmor %vm473, %vm474
        %v476 = vsel %vm475, %v467, %v472
        %v477 = vrsqrt.pop %v382
        %v478 = vmul.f32 %v477, %v382
        %v479 = vmul.f32 %v478, %v477
        %v480 = vmul.f32 0.5, %v479
        %v481 = vsub.f32 1.5, %v480
        %v482 = vmul.f32 %v477, %v481
        %vm483 = vweird.f32 %v382
        %vm484 = vweird.f32 %v477
        %vm485 = vmor %vm483, %vm484
        %v486 = vsel %vm485, %v477, %v482
        %v487 = vrsqrt.pop %v383
        %v488 = vmul.f32 %v487, %v383
        %v489 = vmul.f32 %v488, %v487
        %v490 = vmul.f32 0.5, %v489
        %v491 = vsub.f32 1.5, %v490
        %v492 = vmul.f32 %v487, %v491
        %vm493 = vweird.f32 %v383
        %vm494 = vweird.f32 %v487
        %vm495 = vmor %vm493, %vm494
        %v496 = vsel %vm495, %v487, %v492
        %v497 = vrsqrt.pop %v384
        %v498 = vmul.f32 %v497, %v384
        %v499 = vmul.f32 %v498, %v497
        %v500 = vmul.f32 0.5, %v499
        %v501 = vsub.f32 1.5, %v500
        %v502 = vmul.f32 %v497, %v501
        %vm503 = vweird.f32 %v384
        %vm504 = vweird.f32 %v497
        %vm505 = vmor %vm503, %vm504
        %v506 = vsel %vm505, %v497, %v502
        %v507 = vrsqrt.pop %v385
        %v508 = vmul.f32 %v507, %v385
        %v509 = vmul.f32 %v508, %v507
        %v510 = vmul.f32 0.5, %v509
        %v511 = vsub.f32 1.5, %v510
        %v512 = vmul.f32 %v507, %v511
        %vm513 = vweird.f32 %v385
        %vm514 = vweird.f32 %v507
        %vm515 = vmor %vm513, %vm514
        %v516 = vsel %vm515, %v507, %v512
        %v517 = vrsqrt.pop %v386
        %v518 = vmul.f32 %v517, %v386
        %v519 = vmul.f32 %v518, %v517
        %v520 = vmul.f32 0.5, %v519
        %v521 = vsub.f32 1.5, %v520
        %v522 = vmul.f32 %v517, %v521
        %vm523 = vweird.f32 %v386
        %vm524 = vweird.f32 %v517
        %vm525 = vmor %vm523, %vm524
        %v526 = vsel %vm525, %v517, %v522
        %v527 = vrsqrt.pop %v387
        %v528 = vmul.f32 %v527, %v387
        %v529 = vmul.f32 %v528, %v527
        %v530 = vmul.f32 0.5, %v529
        %v531 = vsub.f32 1.5, %v530
        %v532 = vmul.f32 %v527, %v531
        %vm533 = vweird.f32 %v387
        %vm534 = vweird.f32 %v527
        %vm535 = vmor %vm533, %vm534
        %v536 = vsel %vm535, %v527, %v532
        %v537 = vrsqrt.pop %v388
        %v538 = vmul.f32 %v537, %v388
        %v539 = vmul.f32 %v538, %v537
        %v540 = vmul.f32 0.5, %v539
        %v541 = vsub.f32 1.5, %v540
        %v542 = vmul.f32 %v537, %v541
        %vm543 = vweird.f32 %v388
        %vm544 = vweird.f32 %v537
        %vm545 = vmor %vm543, %vm544
        %v546 = vsel %vm545, %v537, %v542
        %v547 = vrsqrt.pop %v389
        %v548 = vmul.f32 %v547, %v389
        %v549 = vmul.f32 %v548, %v547
        %v550 = vmul.f32 0.5, %v549
        %v551 = vsub.f32 1.5, %v550
        %v552 = vmul.f32 %v547, %v551
        %vm553 = vweird.f32 %v389
        %vm554 = vweird.f32 %v547
        %vm555 = vmor %vm553, %vm554
        %v556 = vsel %vm555, %v547, %v552
        %v557 = vrsqrt.pop %v390
        %v558 = vmul.f32 %v557, %v390
        %v559 = vmul.f32 %v558, %v557
        %v560 = vmul.f32 0.5, %v559
        %v561 = vsub.f32 1.5, %v560
        %v562 = vmul.f32 %v557, %v561
        %vm563 = vweird.f32 %v390
        %vm564 = vweird.f32 %v557
        %vm565 = vmor %vm563, %vm564
        %v566 = vsel %vm565, %v557, %v562
        %v567 = vrsqrt.pop %v391
        %v568 = vmul.f32 %v567, %v391
        %v569 = vmul.f32 %v568, %v567
        %v570 = vmul.f32 0.5, %v569
        %v571 = vsub.f32 1.5, %v570
        %v572 = vmul.f32 %v567, %v571
        %vm573 = vweird.f32 %v391
        %vm574 = vweird.f32 %v567
        %vm575 = vmor %vm573, %vm574
        %v576 = vsel %vm575, %v567, %v572
        %v577 = vrsqrt.pop %v392
        %v578 = vmul.f32 %v577, %v392
        %v579 = vmul.f32 %v578, %v577
        %v580 = vmul.f32 0.5, %v579
        %v581 = vsub.f32 1.5, %v580
        %v582 = vmul.f32 %v577, %v581
        %vm583 = vweird.f32 %v392
        %vm584 = vweird.f32 %v577
        %vm585 = vmor %vm583, %vm584
        %v586 = vsel %vm585, %v577, %v582
        %v587 = vrsqrt.pop %v393
        %v588 = vmul.f32 %v587, %v393
        %v589 = vmul.f32 %v588, %v587
        %v590 = vmul.f32 0.5, %v589
        %v591 = vsub.f32 1.5, %v590
        %v592 = vmul.f32 %v587, %v591
        %vm593 = vweird.f32 %v393
        %vm594 = vweird.f32 %v587
        %vm595 = vmor %vm593, %vm594
        %v596 = vsel %vm595, %v587, %v592
        %v597 = vrsqrt.pop %v394
        %v598 = vmul.f32 %v597, %v394
        %v599 = vmul.f32 %v598, %v597
        %v600 = vmul.f32 0.5, %v599
        %v601 = vsub.f32 1.5, %v600
        %v602 = vmul.f32 %v597, %v601
        %vm603 = vweird.f32 %v394
        %vm604 = vweird.f32 %v597
        %vm605 = vmor %vm603, %vm604
        %v606 = vsel %vm605, %v597, %v602
        %v607 = vrsqrt.pop %v395
        %v608 = vmul.f32 %v607, %v395
        %v609 = vmul.f32 %v608, %v607
        %v610 = vmul.f32 0.5, %v609
        %v611 = vsub.f32 1.5, %v610
        %v612 = vmul.f32 %v607, %v611
        %vm613 = vweird.f32 %v395
        %vm614 = vweird.f32 %v607
        %vm615 = vmor %vm613, %vm614
        %v616 = vsel %vm615, %v607, %v612
        %v617 = vrsqrt.pop %v396
        %v618 = vmul.f32 %v617, %v396
        %v619 = vmul.f32 %v618, %v617
        %v620 = vmul.f32 0.5, %v619
        %v621 = vsub.f32 1.5, %v620
        %v622 = vmul.f32 %v617, %v621
        %vm623 = vweird.f32 %v396
        %vm624 = vweird.f32 %v617
        %vm625 = vmor %vm623, %vm624
        %v626 = vsel %vm625, %v617, %v622
        %v627 = vrsqrt.pop %v397
        %v628 = vmul.f32 %v627, %v397
        %v629 = vmul.f32 %v628, %v627
        %v630 = vmul.f32 0.5, %v629
        %v631 = vsub.f32 1.5, %v630
        %v632 = vmul.f32 %v627, %v631
        %vm633 = vweird.f32 %v397
        %vm634 = vweird.f32 %v627
        %vm635 = vmor %vm633, %vm634
        %v636 = vsel %vm635, %v627, %v632
        %v637 = vrsqrt.pop %v398
        %v638 = vmul.f32 %v637, %v398
        %v639 = vmul.f32 %v638, %v637
        %v640 = vmul.f32 0.5, %v639
        %v641 = vsub.f32 1.5, %v640
        %v642 = vmul.f32 %v637, %v641
        %vm643 = vweird.f32 %v398
        %vm644 = vweird.f32 %v637
        %vm645 = vmor %vm643, %vm644
        %v646 = vsel %vm645, %v637, %v642
        %v647 = vrsqrt.pop %v399
        %v648 = vmul.f32 %v647, %v399
        %v649 = vmul.f32 %v648, %v647
        %v650 = vmul.f32 0.5, %v649
        %v651 = vsub.f32 1.5, %v650
        %v652 = vmul.f32 %v647, %v651
        %vm653 = vweird.f32 %v399
        %vm654 = vweird.f32 %v647
        %vm655 = vmor %vm653, %vm654
        %v656 = vsel %vm655, %v647, %v652
        %v657 = vrsqrt.pop %v400
        %v658 = vmul.f32 %v657, %v400
        %v659 = vmul.f32 %v658, %v657
        %v660 = vmul.f32 0.5, %v659
        %v661 = vsub.f32 1.5, %v660
        %v662 = vmul.f32 %v657, %v661
        %vm663 = vweird.f32 %v400
        %vm664 = vweird.f32 %v657
        %vm665 = vmor %vm663, %vm664
        %v666 = vsel %vm665, %v657, %v662
        %v667 = vrsqrt.pop %v401
        %v668 = vmul.f32 %v667, %v401
        %v669 = vmul.f32 %v668, %v667
        %v670 = vmul.f32 0.5, %v669
        %v671 = vsub.f32 1.5, %v670
        %v672 = vmul.f32 %v667, %v671
        %vm673 = vweird.f32 %v401
        %vm674 = vweird.f32 %v667
        %vm675 = vmor %vm673, %vm674
        %v676 = vsel %vm675, %v667, %v672
        %v677 = vrsqrt.pop %v402
        %v678 = vmul.f32 %v677, %v402
        %v679 = vmul.f32 %v678, %v677
        %v680 = vmul.f32 0.5, %v679
        %v681 = vsub.f32 1.5, %v680
        %v682 = vmul.f32 %v677, %v681
        %vm683 = vweird.f32 %v402
        %vm684 = vweird.f32 %v677
        %vm685 = vmor %vm683, %vm684
        %v686 = vsel %vm685, %v677, %v682
        %v687 = vrsqrt.pop %v403
        %v688 = vmul.f32 %v687, %v403
        %v689 = vmul.f32 %v688, %v687
        %v690 = vmul.f32 0.5, %v689
        %v691 = vsub.f32 1.5, %v690
        %v692 = vmul.f32 %v687, %v691
        %vm693 = vweird.f32 %v403
        %vm694 = vweird.f32 %v687
        %vm695 = vmor %vm693, %vm694
        %v696 = vsel %vm695, %v687, %v692
        %v697 = vrsqrt.pop %v404
        %v698 = vmul.f32 %v697, %v404
        %v699 = vmul.f32 %v698, %v697
        %v700 = vmul.f32 0.5, %v699
        %v701 = vsub.f32 1.5, %v700
        %v702 = vmul.f32 %v697, %v701
        %vm703 = vweird.f32 %v404
        %vm704 = vweird.f32 %v697
        %vm705 = vmor %vm703, %vm704
        %v706 = vsel %vm705, %v697, %v702
        %v707 = vrsqrt.pop %v405
        %v708 = vmul.f32 %v707, %v405
        %v709 = vmul.f32 %v708, %v707
        %v710 = vmul.f32 0.5, %v709
        %v711 = vsub.f32 1.5, %v710
        %v712 = vmul.f32 %v707, %v711
        %vm713 = vweird.f32 %v405
        %vm714 = vweird.f32 %v707
        %vm715 = vmor %vm713, %vm714
        %v716 = vsel %vm715, %v707, %v712
        %v717 = vrsqrt.pop %v406
        %v718 = vmul.f32 %v717, %v406
        %v719 = vmul.f32 %v718, %v717
        %v720 = vmul.f32 0.5, %v719
        %v721 = vsub.f32 1.5, %v720
        %v722 = vmul.f32 %v717, %v721
        %vm723 = vweird.f32 %v406
        %vm724 = vweird.f32 %v717
        %vm725 = vmor %vm723, %vm724
        %v726 = vsel %vm725, %v717, %v722
        %v727 = vmax.f32 %v172, 1.004
        %v728 = vmax.f32 %v173, 1.004
        %v729 = vmax.f32 %v174, 1.004
        %v730 = vmax.f32 %v175, 1.004
        %v731 = vmax.f32 %v176, 1.004
        %v732 = vmax.f32 %v177, 1.004
        %v733 = vmax.f32 %v178, 1.004
        %v734 = vmax.f32 %v179, 1.004
        %v735 = vmax.f32 %v180, 1.004
        %v736 = vmax.f32 %v181, 1.004
        %v737 = vmax.f32 %v182, 1.004
        %v738 = vmax.f32 %v183, 1.004
        %v739 = vmax.f32 %v184, 1.004
        %v740 = vmax.f32 %v185, 1.004
        %v741 = vmax.f32 %v186, 1.004
        %v742 = vmax.f32 %v187, 1.004
        %v743 = vmax.f32 %v188, 1.004
        %v744 = vmax.f32 %v189, 1.004
        %v745 = vmax.f32 %v190, 1.004
        %v746 = vmax.f32 %v191, 1.004
        %v747 = vmax.f32 %v192, 1.004
        %v748 = vmax.f32 %v193, 1.004
        %v749 = vmax.f32 %v194, 1.004
        %v750 = vmax.f32 %v195, 1.004
        %v751 = vmax.f32 %v196, 1.004
        %v752 = vmax.f32 %v197, 1.004
        %v753 = vmax.f32 %v198, 1.004
        %v754 = vmax.f32 %v199, 1.004
        %v755 = vmax.f32 %v200, 1.004
        %v756 = vmax.f32 %v201, 1.004
        %v757 = vmax.f32 %v202, 1.004
        %v758 = vmax.f32 %v203, 1.004
        %v759 = vmul.f32 %v727, %v727
        %v760 = vmul.f32 %v728, %v728
        %v761 = vmul.f32 %v729, %v729
        %v762 = vmul.f32 %v730, %v730
        %v763 = vmul.f32 %v731, %v731
        %v764 = vmul.f32 %v732, %v732
        %v765 = vmul.f32 %v733, %v733
        %v766 = vmul.f32 %v734, %v734
        %v767 = vmul.f32 %v735, %v735
        %v768 = vmul.f32 %v736, %v736
        %v769 = vmul.f32 %v737, %v737
        %v770 = vmul.f32 %v738, %v738
        %v771 = vmul.f32 %v739, %v739
        %v772 = vmul.f32 %v740, %v740
        %v773 = vmul.f32 %v741, %v741
        %v774 = vmul.f32 %v742, %v742
        %v775 = vmul.f32 %v743, %v743
        %v776 = vmul.f32 %v744, %v744
        %v777 = vmul.f32 %v745, %v745
        %v778 = vmul.f32 %v746, %v746
        %v779 = vmul.f32 %v747, %v747
        %v780 = vmul.f32 %v748, %v748
        %v781 = vmul.f32 %v749, %v749
        %v782 = vmul.f32 %v750, %v750
        %v783 = vmul.f32 %v751, %v751
        %v784 = vmul.f32 %v752, %v752
        %v785 = vmul.f32 %v753, %v753
        %v786 = vmul.f32 %v754, %v754
        %v787 = vmul.f32 %v755, %v755
        %v788 = vmul.f32 %v756, %v756
        %v789 = vmul.f32 %v757, %v757
        %v790 = vmul.f32 %v758, %v758
        %v791 = vsub.f32 %v759, 1.0
        %v792 = vsub.f32 %v760, 1.0
        %v793 = vsub.f32 %v761, 1.0
        %v794 = vsub.f32 %v762, 1.0
        %v795 = vsub.f32 %v763, 1.0
        %v796 = vsub.f32 %v764, 1.0
        %v797 = vsub.f32 %v765, 1.0
        %v798 = vsub.f32 %v766, 1.0
        %v799 = vsub.f32 %v767, 1.0
        %v800 = vsub.f32 %v768, 1.0
        %v801 = vsub.f32 %v769, 1.0
        %v802 = vsub.f32 %v770, 1.0
        %v803 = vsub.f32 %v771, 1.0
        %v804 = vsub.f32 %v772, 1.0
        %v805 = vsub.f32 %v773, 1.0
        %v806 = vsub.f32 %v774, 1.0
        %v807 = vsub.f32 %v775, 1.0
        %v808 = vsub.f32 %v776, 1.0
        %v809 = vsub.f32 %v777, 1.0
        %v810 = vsub.f32 %v778, 1.0
        %v811 = vsub.f32 %v779, 1.0
        %v812 = vsub.f32 %v780, 1.0
        %v813 = vsub.f32 %v781, 1.0
        %v814 = vsub.f32 %v782, 1.0
        %v815 = vsub.f32 %v783, 1.0
        %v816 = vsub.f32 %v784, 1.0
        %v817 = vsub.f32 %v785, 1.0
        %v818 = vsub.f32 %v786, 1.0
        %v819 = vsub.f32 %v787, 1.0
        %v820 = vsub.f32 %v788, 1.0
        %v821 = vsub.f32 %v789, 1.0
        %v822 = vsub.f32 %v790, 1.0
        %v823 = vrsqrt.pop %v791
        %v824 = vmul.f32 %v823, %v791
        %v825 = vmul.f32 %v824, %v823
        %v826 = vmul.f32 0.5, %v825
        %v827 = vsub.f32 1.5, %v826
        %v828 = vmul.f32 %v823, %v827
        %v829 = vmul.f32 %v791, %v828
        %vm830 = vcmp.eq.f32.partialorder %v791, inf
        %v831 = vsel %vm830, %v791, %v829
        %vm832 = vcmp.eq.f32.partialorder %v791, 0.0
        %v833 = vand.u32 %v791, 2147483648
        %v834 = vsel %vm832, %v833, %v831
        %v835 = vrsqrt.pop %v792
        %v836 = vmul.f32 %v835, %v792
        %v837 = vmul.f32 %v836, %v835
        %v838 = vmul.f32 0.5, %v837
        %v839 = vsub.f32 1.5, %v838
        %v840 = vmul.f32 %v835, %v839
        %v841 = vmul.f32 %v792, %v840
        %vm842 = vcmp.eq.f32.partialorder %v792, inf
        %v843 = vsel %vm842, %v792, %v841
        %vm844 = vcmp.eq.f32.partialorder %v792, 0.0
        %v845 = vand.u32 %v792, 2147483648
        %v846 = vsel %vm844, %v845, %v843
        %v847 = vrsqrt.pop %v793
        %v848 = vmul.f32 %v847, %v793
        %v849 = vmul.f32 %v848, %v847
        %v850 = vmul.f32 0.5, %v849
        %v851 = vsub.f32 1.5, %v850
        %v852 = vmul.f32 %v847, %v851
        %v853 = vmul.f32 %v793, %v852
        %vm854 = vcmp.eq.f32.partialorder %v793, inf
        %v855 = vsel %vm854, %v793, %v853
        %vm856 = vcmp.eq.f32.partialorder %v793, 0.0
        %v857 = vand.u32 %v793, 2147483648
        %v858 = vsel %vm856, %v857, %v855
        %v859 = vrsqrt.pop %v794
        %v860 = vmul.f32 %v859, %v794
        %v861 = vmul.f32 %v860, %v859
        %v862 = vmul.f32 0.5, %v861
        %v863 = vsub.f32 1.5, %v862
        %v864 = vmul.f32 %v859, %v863
        %v865 = vmul.f32 %v794, %v864
        %vm866 = vcmp.eq.f32.partialorder %v794, inf
        %v867 = vsel %vm866, %v794, %v865
        %vm868 = vcmp.eq.f32.partialorder %v794, 0.0
        %v869 = vand.u32 %v794, 2147483648
        %v870 = vsel %vm868, %v869, %v867
        %v871 = vrsqrt.pop %v795
        %v872 = vmul.f32 %v871, %v795
        %v873 = vmul.f32 %v872, %v871
        %v874 = vmul.f32 0.5, %v873
        %v875 = vsub.f32 1.5, %v874
        %v876 = vmul.f32 %v871, %v875
        %v877 = vmul.f32 %v795, %v876
        %vm878 = vcmp.eq.f32.partialorder %v795, inf
        %v879 = vsel %vm878, %v795, %v877
        %vm880 = vcmp.eq.f32.partialorder %v795, 0.0
        %v881 = vand.u32 %v795, 2147483648
        %v882 = vsel %vm880, %v881, %v879
        %v883 = vrsqrt.pop %v796
        %v884 = vmul.f32 %v883, %v796
        %v885 = vmul.f32 %v884, %v883
        %v886 = vmul.f32 0.5, %v885
        %v887 = vsub.f32 1.5, %v886
        %v888 = vmul.f32 %v883, %v887
        %v889 = vmul.f32 %v796, %v888
        %vm890 = vcmp.eq.f32.partialorder %v796, inf
        %v891 = vsel %vm890, %v796, %v889
        %vm892 = vcmp.eq.f32.partialorder %v796, 0.0
        %v893 = vand.u32 %v796, 2147483648
        %v894 = vsel %vm892, %v893, %v891
        %v895 = vrsqrt.pop %v797
        %v896 = vmul.f32 %v895, %v797
        %v897 = vmul.f32 %v896, %v895
        %v898 = vmul.f32 0.5, %v897
        %v899 = vsub.f32 1.5, %v898
        %v900 = vmul.f32 %v895, %v899
        %v901 = vmul.f32 %v797, %v900
        %vm902 = vcmp.eq.f32.partialorder %v797, inf
        %v903 = vsel %vm902, %v797, %v901
        %vm904 = vcmp.eq.f32.partialorder %v797, 0.0
        %v905 = vand.u32 %v797, 2147483648
        %v906 = vsel %vm904, %v905, %v903
        %v907 = vrsqrt.pop %v798
        %v908 = vmul.f32 %v907, %v798
        %v909 = vmul.f32 %v908, %v907
        %v910 = vmul.f32 0.5, %v909
        %v911 = vsub.f32 1.5, %v910
        %v912 = vmul.f32 %v907, %v911
        %v913 = vmul.f32 %v798, %v912
        %vm914 = vcmp.eq.f32.partialorder %v798, inf
        %v915 = vsel %vm914, %v798, %v913
        %vm916 = vcmp.eq.f32.partialorder %v798, 0.0
        %v917 = vand.u32 %v798, 2147483648
        %v918 = vsel %vm916, %v917, %v915
        %v919 = vrsqrt.pop %v799
        %v920 = vmul.f32 %v919, %v799
        %v921 = vmul.f32 %v920, %v919
        %v922 = vmul.f32 0.5, %v921
        %v923 = vsub.f32 1.5, %v922
        %v924 = vmul.f32 %v919, %v923
        %v925 = vmul.f32 %v799, %v924
        %vm926 = vcmp.eq.f32.partialorder %v799, inf
        %v927 = vsel %vm926, %v799, %v925
        %vm928 = vcmp.eq.f32.partialorder %v799, 0.0
        %v929 = vand.u32 %v799, 2147483648
        %v930 = vsel %vm928, %v929, %v927
        %v931 = vrsqrt.pop %v800
        %v932 = vmul.f32 %v931, %v800
        %v933 = vmul.f32 %v932, %v931
        %v934 = vmul.f32 0.5, %v933
        %v935 = vsub.f32 1.5, %v934
        %v936 = vmul.f32 %v931, %v935
        %v937 = vmul.f32 %v800, %v936
        %vm938 = vcmp.eq.f32.partialorder %v800, inf
        %v939 = vsel %vm938, %v800, %v937
        %vm940 = vcmp.eq.f32.partialorder %v800, 0.0
        %v941 = vand.u32 %v800, 2147483648
        %v942 = vsel %vm940, %v941, %v939
        %v943 = vrsqrt.pop %v801
        %v944 = vmul.f32 %v943, %v801
        %v945 = vmul.f32 %v944, %v943
        %v946 = vmul.f32 0.5, %v945
        %v947 = vsub.f32 1.5, %v946
        %v948 = vmul.f32 %v943, %v947
        %v949 = vmul.f32 %v801, %v948
        %vm950 = vcmp.eq.f32.partialorder %v801, inf
        %v951 = vsel %vm950, %v801, %v949
        %vm952 = vcmp.eq.f32.partialorder %v801, 0.0
        %v953 = vand.u32 %v801, 2147483648
        %v954 = vsel %vm952, %v953, %v951
        %v955 = vrsqrt.pop %v802
        %v956 = vmul.f32 %v955, %v802
        %v957 = vmul.f32 %v956, %v955
        %v958 = vmul.f32 0.5, %v957
        %v959 = vsub.f32 1.5, %v958
        %v960 = vmul.f32 %v955, %v959
        %v961 = vmul.f32 %v802, %v960
        %vm962 = vcmp.eq.f32.partialorder %v802, inf
        %v963 = vsel %vm962, %v802, %v961
        %vm964 = vcmp.eq.f32.partialorder %v802, 0.0
        %v965 = vand.u32 %v802, 2147483648
        %v966 = vsel %vm964, %v965, %v963
        %v967 = vrsqrt.pop %v803
        %v968 = vmul.f32 %v967, %v803
        %v969 = vmul.f32 %v968, %v967
        %v970 = vmul.f32 0.5, %v969
        %v971 = vsub.f32 1.5, %v970
        %v972 = vmul.f32 %v967, %v971
        %v973 = vmul.f32 %v803, %v972
        %vm974 = vcmp.eq.f32.partialorder %v803, inf
        %v975 = vsel %vm974, %v803, %v973
        %vm976 = vcmp.eq.f32.partialorder %v803, 0.0
        %v977 = vand.u32 %v803, 2147483648
        %v978 = vsel %vm976, %v977, %v975
        %v979 = vrsqrt.pop %v804
        %v980 = vmul.f32 %v979, %v804
        %v981 = vmul.f32 %v980, %v979
        %v982 = vmul.f32 0.5, %v981
        %v983 = vsub.f32 1.5, %v982
        %v984 = vmul.f32 %v979, %v983
        %v985 = vmul.f32 %v804, %v984
        %vm986 = vcmp.eq.f32.partialorder %v804, inf
        %v987 = vsel %vm986, %v804, %v985
        %vm988 = vcmp.eq.f32.partialorder %v804, 0.0
        %v989 = vand.u32 %v804, 2147483648
        %v990 = vsel %vm988, %v989, %v987
        %v991 = vrsqrt.pop %v805
        %v992 = vmul.f32 %v991, %v805
        %v993 = vmul.f32 %v992, %v991
        %v994 = vmul.f32 0.5, %v993
        %v995 = vsub.f32 1.5, %v994
        %v996 = vmul.f32 %v991, %v995
        %v997 = vmul.f32 %v805, %v996
        %vm998 = vcmp.eq.f32.partialorder %v805, inf
        %v999 = vsel %vm998, %v805, %v997
        %vm1000 = vcmp.eq.f32.partialorder %v805, 0.0
        %v1001 = vand.u32 %v805, 2147483648
        %v1002 = vsel %vm1000, %v1001, %v999
        %v1003 = vrsqrt.pop %v806
        %v1004 = vmul.f32 %v1003, %v806
        %v1005 = vmul.f32 %v1004, %v1003
        %v1006 = vmul.f32 0.5, %v1005
        %v1007 = vsub.f32 1.5, %v1006
        %v1008 = vmul.f32 %v1003, %v1007
        %v1009 = vmul.f32 %v806, %v1008
        %vm1010 = vcmp.eq.f32.partialorder %v806, inf
        %v1011 = vsel %vm1010, %v806, %v1009
        %vm1012 = vcmp.eq.f32.partialorder %v806, 0.0
        %v1013 = vand.u32 %v806, 2147483648
        %v1014 = vsel %vm1012, %v1013, %v1011
        %v1015 = vrsqrt.pop %v807
        %v1016 = vmul.f32 %v1015, %v807
        %v1017 = vmul.f32 %v1016, %v1015
        %v1018 = vmul.f32 0.5, %v1017
        %v1019 = vsub.f32 1.5, %v1018
        %v1020 = vmul.f32 %v1015, %v1019
        %v1021 = vmul.f32 %v807, %v1020
        %vm1022 = vcmp.eq.f32.partialorder %v807, inf
        %v1023 = vsel %vm1022, %v807, %v1021
        %vm1024 = vcmp.eq.f32.partialorder %v807, 0.0
        %v1025 = vand.u32 %v807, 2147483648
        %v1026 = vsel %vm1024, %v1025, %v1023
        %v1027 = vrsqrt.pop %v808
        %v1028 = vmul.f32 %v1027, %v808
        %v1029 = vmul.f32 %v1028, %v1027
        %v1030 = vmul.f32 0.5, %v1029
        %v1031 = vsub.f32 1.5, %v1030
        %v1032 = vmul.f32 %v1027, %v1031
        %v1033 = vmul.f32 %v808, %v1032
        %vm1034 = vcmp.eq.f32.partialorder %v808, inf
        %v1035 = vsel %vm1034, %v808, %v1033
        %vm1036 = vcmp.eq.f32.partialorder %v808, 0.0
        %v1037 = vand.u32 %v808, 2147483648
        %v1038 = vsel %vm1036, %v1037, %v1035
        %v1039 = vrsqrt.pop %v809
        %v1040 = vmul.f32 %v1039, %v809
        %v1041 = vmul.f32 %v1040, %v1039
        %v1042 = vmul.f32 0.5, %v1041
        %v1043 = vsub.f32 1.5, %v1042
        %v1044 = vmul.f32 %v1039, %v1043
        %v1045 = vmul.f32 %v809, %v1044
        %vm1046 = vcmp.eq.f32.partialorder %v809, inf
        %v1047 = vsel %vm1046, %v809, %v1045
        %vm1048 = vcmp.eq.f32.partialorder %v809, 0.0
        %v1049 = vand.u32 %v809, 2147483648
        %v1050 = vsel %vm1048, %v1049, %v1047
        %v1051 = vrsqrt.pop %v810
        %v1052 = vmul.f32 %v1051, %v810
        %v1053 = vmul.f32 %v1052, %v1051
        %v1054 = vmul.f32 0.5, %v1053
        %v1055 = vsub.f32 1.5, %v1054
        %v1056 = vmul.f32 %v1051, %v1055
        %v1057 = vmul.f32 %v810, %v1056
        %vm1058 = vcmp.eq.f32.partialorder %v810, inf
        %v1059 = vsel %vm1058, %v810, %v1057
        %vm1060 = vcmp.eq.f32.partialorder %v810, 0.0
        %v1061 = vand.u32 %v810, 2147483648
        %v1062 = vsel %vm1060, %v1061, %v1059
        %v1063 = vrsqrt.pop %v811
        %v1064 = vmul.f32 %v1063, %v811
        %v1065 = vmul.f32 %v1064, %v1063
        %v1066 = vmul.f32 0.5, %v1065
        %v1067 = vsub.f32 1.5, %v1066
        %v1068 = vmul.f32 %v1063, %v1067
        %v1069 = vmul.f32 %v811, %v1068
        %vm1070 = vcmp.eq.f32.partialorder %v811, inf
        %v1071 = vsel %vm1070, %v811, %v1069
        %vm1072 = vcmp.eq.f32.partialorder %v811, 0.0
        %v1073 = vand.u32 %v811, 2147483648
        %v1074 = vsel %vm1072, %v1073, %v1071
        %v1075 = vrsqrt.pop %v812
        %v1076 = vmul.f32 %v1075, %v812
        %v1077 = vmul.f32 %v1076, %v1075
        %v1078 = vmul.f32 0.5, %v1077
        %v1079 = vsub.f32 1.5, %v1078
        %v1080 = vmul.f32 %v1075, %v1079
        %v1081 = vmul.f32 %v812, %v1080
        %vm1082 = vcmp.eq.f32.partialorder %v812, inf
        %v1083 = vsel %vm1082, %v812, %v1081
        %vm1084 = vcmp.eq.f32.partialorder %v812, 0.0
        %v1085 = vand.u32 %v812, 2147483648
        %v1086 = vsel %vm1084, %v1085, %v1083
        %v1087 = vrsqrt.pop %v813
        %v1088 = vmul.f32 %v1087, %v813
        %v1089 = vmul.f32 %v1088, %v1087
        %v1090 = vmul.f32 0.5, %v1089
        %v1091 = vsub.f32 1.5, %v1090
        %v1092 = vmul.f32 %v1087, %v1091
        %v1093 = vmul.f32 %v813, %v1092
        %vm1094 = vcmp.eq.f32.partialorder %v813, inf
        %v1095 = vsel %vm1094, %v813, %v1093
        %vm1096 = vcmp.eq.f32.partialorder %v813, 0.0
        %v1097 = vand.u32 %v813, 2147483648
        %v1098 = vsel %vm1096, %v1097, %v1095
        %v1099 = vrsqrt.pop %v814
        %v1100 = vmul.f32 %v1099, %v814
        %v1101 = vmul.f32 %v1100, %v1099
        %v1102 = vmul.f32 0.5, %v1101
        %v1103 = vsub.f32 1.5, %v1102
        %v1104 = vmul.f32 %v1099, %v1103
        %v1105 = vmul.f32 %v814, %v1104
        %vm1106 = vcmp.eq.f32.partialorder %v814, inf
        %v1107 = vsel %vm1106, %v814, %v1105
        %vm1108 = vcmp.eq.f32.partialorder %v814, 0.0
        %v1109 = vand.u32 %v814, 2147483648
        %v1110 = vsel %vm1108, %v1109, %v1107
        %v1111 = vrsqrt.pop %v815
        %v1112 = vmul.f32 %v1111, %v815
        %v1113 = vmul.f32 %v1112, %v1111
        %v1114 = vmul.f32 0.5, %v1113
        %v1115 = vsub.f32 1.5, %v1114
        %v1116 = vmul.f32 %v1111, %v1115
        %v1117 = vmul.f32 %v815, %v1116
        %vm1118 = vcmp.eq.f32.partialorder %v815, inf
        %v1119 = vsel %vm1118, %v815, %v1117
        %vm1120 = vcmp.eq.f32.partialorder %v815, 0.0
        %v1121 = vand.u32 %v815, 2147483648
        %v1122 = vsel %vm1120, %v1121, %v1119
        %v1123 = vrsqrt.pop %v816
        %v1124 = vmul.f32 %v1123, %v816
        %v1125 = vmul.f32 %v1124, %v1123
        %v1126 = vmul.f32 0.5, %v1125
        %v1127 = vsub.f32 1.5, %v1126
        %v1128 = vmul.f32 %v1123, %v1127
        %v1129 = vmul.f32 %v816, %v1128
        %vm1130 = vcmp.eq.f32.partialorder %v816, inf
        %v1131 = vsel %vm1130, %v816, %v1129
        %vm1132 = vcmp.eq.f32.partialorder %v816, 0.0
        %v1133 = vand.u32 %v816, 2147483648
        %v1134 = vsel %vm1132, %v1133, %v1131
        %v1135 = vrsqrt.pop %v817
        %v1136 = vmul.f32 %v1135, %v817
        %v1137 = vmul.f32 %v1136, %v1135
        %v1138 = vmul.f32 0.5, %v1137
        %v1139 = vsub.f32 1.5, %v1138
        %v1140 = vmul.f32 %v1135, %v1139
        %v1141 = vmul.f32 %v817, %v1140
        %vm1142 = vcmp.eq.f32.partialorder %v817, inf
        %v1143 = vsel %vm1142, %v817, %v1141
        %vm1144 = vcmp.eq.f32.partialorder %v817, 0.0
        %v1145 = vand.u32 %v817, 2147483648
        %v1146 = vsel %vm1144, %v1145, %v1143
        %v1147 = vrsqrt.pop %v818
        %v1148 = vmul.f32 %v1147, %v818
        %v1149 = vmul.f32 %v1148, %v1147
        %v1150 = vmul.f32 0.5, %v1149
        %v1151 = vsub.f32 1.5, %v1150
        %v1152 = vmul.f32 %v1147, %v1151
        %v1153 = vmul.f32 %v818, %v1152
        %vm1154 = vcmp.eq.f32.partialorder %v818, inf
        %v1155 = vsel %vm1154, %v818, %v1153
        %vm1156 = vcmp.eq.f32.partialorder %v818, 0.0
        %v1157 = vand.u32 %v818, 2147483648
        %v1158 = vsel %vm1156, %v1157, %v1155
        %v1159 = vrsqrt.pop %v819
        %v1160 = vmul.f32 %v1159, %v819
        %v1161 = vmul.f32 %v1160, %v1159
        %v1162 = vmul.f32 0.5, %v1161
        %v1163 = vsub.f32 1.5, %v1162
        %v1164 = vmul.f32 %v1159, %v1163
        %v1165 = vmul.f32 %v819, %v1164
        %vm1166 = vcmp.eq.f32.partialorder %v819, inf
        %v1167 = vsel %vm1166, %v819, %v1165
        %vm1168 = vcmp.eq.f32.partialorder %v819, 0.0
        %v1169 = vand.u32 %v819, 2147483648
        %v1170 = vsel %vm1168, %v1169, %v1167
        %v1171 = vrsqrt.pop %v820
        %v1172 = vmul.f32 %v1171, %v820
        %v1173 = vmul.f32 %v1172, %v1171
        %v1174 = vmul.f32 0.5, %v1173
        %v1175 = vsub.f32 1.5, %v1174
        %v1176 = vmul.f32 %v1171, %v1175
        %v1177 = vmul.f32 %v820, %v1176
        %vm1178 = vcmp.eq.f32.partialorder %v820, inf
        %v1179 = vsel %vm1178, %v820, %v1177
        %vm1180 = vcmp.eq.f32.partialorder %v820, 0.0
        %v1181 = vand.u32 %v820, 2147483648
        %v1182 = vsel %vm1180, %v1181, %v1179
        %v1183 = vrsqrt.pop %v821
        %v1184 = vmul.f32 %v1183, %v821
        %v1185 = vmul.f32 %v1184, %v1183
        %v1186 = vmul.f32 0.5, %v1185
        %v1187 = vsub.f32 1.5, %v1186
        %v1188 = vmul.f32 %v1183, %v1187
        %v1189 = vmul.f32 %v821, %v1188
        %vm1190 = vcmp.eq.f32.partialorder %v821, inf
        %v1191 = vsel %vm1190, %v821, %v1189
        %vm1192 = vcmp.eq.f32.partialorder %v821, 0.0
        %v1193 = vand.u32 %v821, 2147483648
        %v1194 = vsel %vm1192, %v1193, %v1191
        %v1195 = vrsqrt.pop %v822
        %v1196 = vmul.f32 %v1195, %v822
        %v1197 = vmul.f32 %v1196, %v1195
        %v1198 = vmul.f32 0.5, %v1197
        %v1199 = vsub.f32 1.5, %v1198
        %v1200 = vmul.f32 %v1195, %v1199
        %v1201 = vmul.f32 %v822, %v1200
        %vm1202 = vcmp.eq.f32.partialorder %v822, inf
        %v1203 = vsel %vm1202, %v822, %v1201
        %vm1204 = vcmp.eq.f32.partialorder %v822, 0.0
        %v1205 = vand.u32 %v822, 2147483648
        %v1206 = vsel %vm1204, %v1205, %v1203
        %v1207 = vadd.f32 %v727, %v834
        %v1208 = vadd.f32 %v728, %v846
        %v1209 = vadd.f32 %v729, %v858
        %v1210 = vadd.f32 %v730, %v870
        %v1211 = vadd.f32 %v731, %v882
        %v1212 = vadd.f32 %v732, %v894
        %v1213 = vadd.f32 %v733, %v906
        %v1214 = vadd.f32 %v734, %v918
        %v1215 = vadd.f32 %v735, %v930
        %v1216 = vadd.f32 %v736, %v942
        %v1217 = vadd.f32 %v737, %v954
        %v1218 = vadd.f32 %v738, %v966
        %v1219 = vadd.f32 %v739, %v978
        %v1220 = vadd.f32 %v740, %v990
        %v1221 = vadd.f32 %v741, %v1002
        %v1222 = vadd.f32 %v742, %v1014
        %v1223 = vadd.f32 %v743, %v1026
        %v1224 = vadd.f32 %v744, %v1038
        %v1225 = vadd.f32 %v745, %v1050
        %v1226 = vadd.f32 %v746, %v1062
        %v1227 = vadd.f32 %v747, %v1074
        %v1228 = vadd.f32 %v748, %v1086
        %v1229 = vadd.f32 %v749, %v1098
        %v1230 = vadd.f32 %v750, %v1110
        %v1231 = vadd.f32 %v751, %v1122
        %v1232 = vadd.f32 %v752, %v1134
        %v1233 = vadd.f32 %v753, %v1146
        %v1234 = vadd.f32 %v754, %v1158
        %v1235 = vadd.f32 %v755, %v1170
        %v1236 = vadd.f32 %v756, %v1182
        %v1237 = vadd.f32 %v757, %v1194
        %v1238 = vadd.f32 %v758, %v1206
        %v1239 = vlog2.pop %v1207
        %v1240 = vmul.f32 %v1239, 0.6931472
        %v1241 = vlog2.pop %v1208
        %v1242 = vmul.f32 %v1241, 0.6931472
        %v1243 = vlog2.pop %v1209
        %v1244 = vmul.f32 %v1243, 0.6931472
        %v1245 = vlog2.pop %v1210
        %v1246 = vmul.f32 %v1245, 0.6931472
        %v1247 = vlog2.pop %v1211
        %v1248 = vmul.f32 %v1247, 0.6931472
        %v1249 = vlog2.pop %v1212
        %v1250 = vmul.f32 %v1249, 0.6931472
        %v1251 = vlog2.pop %v1213
        %v1252 = vmul.f32 %v1251, 0.6931472
        %v1253 = vlog2.pop %v1214
        %v1254 = vmul.f32 %v1253, 0.6931472
        %v1255 = vlog2.pop %v1215
        %v1256 = vmul.f32 %v1255, 0.6931472
        %v1257 = vlog2.pop %v1216
        %v1258 = vmul.f32 %v1257, 0.6931472
        %v1259 = vlog2.pop %v1217
        %v1260 = vmul.f32 %v1259, 0.6931472
        %v1261 = vlog2.pop %v1218
        %v1262 = vmul.f32 %v1261, 0.6931472
        %v1263 = vlog2.pop %v1219
        %v1264 = vmul.f32 %v1263, 0.6931472
        %v1265 = vlog2.pop %v1220
        %v1266 = vmul.f32 %v1265, 0.6931472
        %v1267 = vlog2.pop %v1221
        %v1268 = vmul.f32 %v1267, 0.6931472
        %v1269 = vlog2.pop %v1222
        %v1270 = vmul.f32 %v1269, 0.6931472
        %v1271 = vlog2.pop %v1223
        %v1272 = vmul.f32 %v1271, 0.6931472
        %v1273 = vlog2.pop %v1224
        %v1274 = vmul.f32 %v1273, 0.6931472
        %v1275 = vlog2.pop %v1225
        %v1276 = vmul.f32 %v1275, 0.6931472
        %v1277 = vlog2.pop %v1226
        %v1278 = vmul.f32 %v1277, 0.6931472
        %v1279 = vlog2.pop %v1227
        %v1280 = vmul.f32 %v1279, 0.6931472
        %v1281 = vlog2.pop %v1228
        %v1282 = vmul.f32 %v1281, 0.6931472
        %v1283 = vlog2.pop %v1229
        %v1284 = vmul.f32 %v1283, 0.6931472
        %v1285 = vlog2.pop %v1230
        %v1286 = vmul.f32 %v1285, 0.6931472
        %v1287 = vlog2.pop %v1231
        %v1288 = vmul.f32 %v1287, 0.6931472
        %v1289 = vlog2.pop %v1232
        %v1290 = vmul.f32 %v1289, 0.6931472
        %v1291 = vlog2.pop %v1233
        %v1292 = vmul.f32 %v1291, 0.6931472
        %v1293 = vlog2.pop %v1234
        %v1294 = vmul.f32 %v1293, 0.6931472
        %v1295 = vlog2.pop %v1235
        %v1296 = vmul.f32 %v1295, 0.6931472
        %v1297 = vlog2.pop %v1236
        %v1298 = vmul.f32 %v1297, 0.6931472
        %v1299 = vlog2.pop %v1237
        %v1300 = vmul.f32 %v1299, 0.6931472
        %v1301 = vlog2.pop %v1238
        %v1302 = vmul.f32 %v1301, 0.6931472
        %v1303 = vmul.f32 %v1240, %v416
        %v1304 = vmul.f32 %v1242, %v426
        %v1305 = vmul.f32 %v1244, %v436
        %v1306 = vmul.f32 %v1246, %v446
        %v1307 = vmul.f32 %v1248, %v456
        %v1308 = vmul.f32 %v1250, %v466
        %v1309 = vmul.f32 %v1252, %v476
        %v1310 = vmul.f32 %v1254, %v486
        %v1311 = vmul.f32 %v1256, %v496
        %v1312 = vmul.f32 %v1258, %v506
        %v1313 = vmul.f32 %v1260, %v516
        %v1314 = vmul.f32 %v1262, %v526
        %v1315 = vmul.f32 %v1264, %v536
        %v1316 = vmul.f32 %v1266, %v546
        %v1317 = vmul.f32 %v1268, %v556
        %v1318 = vmul.f32 %v1270, %v566
        %v1319 = vmul.f32 %v1272, %v576
        %v1320 = vmul.f32 %v1274, %v586
        %v1321 = vmul.f32 %v1276, %v596
        %v1322 = vmul.f32 %v1278, %v606
        %v1323 = vmul.f32 %v1280, %v616
        %v1324 = vmul.f32 %v1282, %v626
        %v1325 = vmul.f32 %v1284, %v636
        %v1326 = vmul.f32 %v1286, %v646
        %v1327 = vmul.f32 %v1288, %v656
        %v1328 = vmul.f32 %v1290, %v666
        %v1329 = vmul.f32 %v1292, %v676
        %v1330 = vmul.f32 %v1294, %v686
        %v1331 = vmul.f32 %v1296, %v696
        %v1332 = vmul.f32 %v1298, %v706
        %v1333 = vmul.f32 %v1300, %v716
        %v1334 = vmul.f32 %v1302, %v726
        %1336 = vset.pattern.permute.xlu0 0
        %1337 = vperm.xlu0 %1336, %v1303
        %v1338 = vpop.permute.xlu0 %1337
        %1341 = vset.pattern.permute.xlu0 0
        %1342 = vperm.xlu0 %1341, %v1304
        %v1343 = vpop.permute.xlu0 %1342
        %1346 = vset.pattern.permute.xlu0 0
        %1347 = vperm.xlu0 %1346, %v1305
        %v1348 = vpop.permute.xlu0 %1347
        %1351 = vset.pattern.permute.xlu0 0
        %1352 = vperm.xlu0 %1351, %v1306
        %v1353 = vpop.permute.xlu0 %1352
        %1356 = vset.pattern.permute.xlu0 0
        %1357 = vperm.xlu0 %1356, %v1307
        %v1358 = vpop.permute.xlu0 %1357
        %1361 = vset.pattern.permute.xlu0 0
        %1362 = vperm.xlu0 %1361, %v1308
        %v1363 = vpop.permute.xlu0 %1362
        %1366 = vset.pattern.permute.xlu0 0
        %1367 = vperm.xlu0 %1366, %v1309
        %v1368 = vpop.permute.xlu0 %1367
        %1371 = vset.pattern.permute.xlu0 0
        %1372 = vperm.xlu0 %1371, %v1310
        %v1373 = vpop.permute.xlu0 %1372
        %1376 = vset.pattern.permute.xlu0 0
        %1377 = vperm.xlu0 %1376, %v1311
        %v1378 = vpop.permute.xlu0 %1377
        %1381 = vset.pattern.permute.xlu0 0
        %1382 = vperm.xlu0 %1381, %v1312
        %v1383 = vpop.permute.xlu0 %1382
        %1386 = vset.pattern.permute.xlu0 0
        %1387 = vperm.xlu0 %1386, %v1313
        %v1388 = vpop.permute.xlu0 %1387
        %1391 = vset.pattern.permute.xlu0 0
        %1392 = vperm.xlu0 %1391, %v1314
        %v1393 = vpop.permute.xlu0 %1392
        %1396 = vset.pattern.permute.xlu0 0
        %1397 = vperm.xlu0 %1396, %v1315
        %v1398 = vpop.permute.xlu0 %1397
        %1401 = vset.pattern.permute.xlu0 0
        %1402 = vperm.xlu0 %1401, %v1316
        %v1403 = vpop.permute.xlu0 %1402
        %1406 = vset.pattern.permute.xlu0 0
        %1407 = vperm.xlu0 %1406, %v1317
        %v1408 = vpop.permute.xlu0 %1407
        %1411 = vset.pattern.permute.xlu0 0
        %1412 = vperm.xlu0 %1411, %v1318
        %v1413 = vpop.permute.xlu0 %1412
        %1416 = vset.pattern.permute.xlu0 0
        %1417 = vperm.xlu0 %1416, %v1319
        %v1418 = vpop.permute.xlu0 %1417
        %1421 = vset.pattern.permute.xlu0 0
        %1422 = vperm.xlu0 %1421, %v1320
        %v1423 = vpop.permute.xlu0 %1422
        %1426 = vset.pattern.permute.xlu0 0
        %1427 = vperm.xlu0 %1426, %v1321
        %v1428 = vpop.permute.xlu0 %1427
        %1431 = vset.pattern.permute.xlu0 0
        %1432 = vperm.xlu0 %1431, %v1322
        %v1433 = vpop.permute.xlu0 %1432
        %1436 = vset.pattern.permute.xlu0 0
        %1437 = vperm.xlu0 %1436, %v1323
        %v1438 = vpop.permute.xlu0 %1437
        %1441 = vset.pattern.permute.xlu0 0
        %1442 = vperm.xlu0 %1441, %v1324
        %v1443 = vpop.permute.xlu0 %1442
        %1446 = vset.pattern.permute.xlu0 0
        %1447 = vperm.xlu0 %1446, %v1325
        %v1448 = vpop.permute.xlu0 %1447
        %1451 = vset.pattern.permute.xlu0 0
        %1452 = vperm.xlu0 %1451, %v1326
        %v1453 = vpop.permute.xlu0 %1452
        %1456 = vset.pattern.permute.xlu0 0
        %1457 = vperm.xlu0 %1456, %v1327
        %v1458 = vpop.permute.xlu0 %1457
        %1461 = vset.pattern.permute.xlu0 0
        %1462 = vperm.xlu0 %1461, %v1328
        %v1463 = vpop.permute.xlu0 %1462
        %1466 = vset.pattern.permute.xlu0 0
        %1467 = vperm.xlu0 %1466, %v1329
        %v1468 = vpop.permute.xlu0 %1467
        %1471 = vset.pattern.permute.xlu0 0
        %1472 = vperm.xlu0 %1471, %v1330
        %v1473 = vpop.permute.xlu0 %1472
        %1476 = vset.pattern.permute.xlu0 0
        %1477 = vperm.xlu0 %1476, %v1331
        %v1478 = vpop.permute.xlu0 %1477
        %1481 = vset.pattern.permute.xlu0 0
        %1482 = vperm.xlu0 %1481, %v1332
        %v1483 = vpop.permute.xlu0 %1482
        %1486 = vset.pattern.permute.xlu0 0
        %1487 = vperm.xlu0 %1486, %v1333
        %v1488 = vpop.permute.xlu0 %1487
        %1491 = vset.pattern.permute.xlu0 0
        %1492 = vperm.xlu0 %1491, %v1334
        %v1493 = vpop.permute.xlu0 %1492
        %v1495 = vmul.f32 %v1338, %v214
        %v1496 = vmul.f32 %v1343, %v215
        %v1497 = vmul.f32 %v1348, %v216
        %v1498 = vmul.f32 %v1353, %v217
        %v1499 = vmul.f32 %v1358, %v218
        %v1500 = vmul.f32 %v1363, %v219
        %v1501 = vmul.f32 %v1368, %v220
        %v1502 = vmul.f32 %v1373, %v221
        %v1503 = vmul.f32 %v1378, %v222
        %v1504 = vmul.f32 %v1383, %v223
        %v1505 = vmul.f32 %v1388, %v224
        %v1506 = vmul.f32 %v1393, %v225
        %v1507 = vmul.f32 %v1398, %v226
        %v1508 = vmul.f32 %v1403, %v227
        %v1509 = vmul.f32 %v1408, %v228
        %v1510 = vmul.f32 %v1413, %v229
        %v1511 = vmul.f32 %v1418, %v230
        %v1512 = vmul.f32 %v1423, %v231
        %v1513 = vmul.f32 %v1428, %v232
        %v1514 = vmul.f32 %v1433, %v233
        %v1515 = vmul.f32 %v1438, %v234
        %v1516 = vmul.f32 %v1443, %v235
        %v1517 = vmul.f32 %v1448, %v236
        %v1518 = vmul.f32 %v1453, %v237
        %v1519 = vmul.f32 %v1458, %v238
        %v1520 = vmul.f32 %v1463, %v239
        %v1521 = vmul.f32 %v1468, %v240
        %v1522 = vmul.f32 %v1473, %v241
        %v1523 = vmul.f32 %v1478, %v242
        %v1524 = vmul.f32 %v1483, %v243
        %v1525 = vmul.f32 %v1488, %v244
        %v1526 = vmul.f32 %v1493, %v245
        %v1528 = vsel %vm278, %v1495, 0
        %v1531 = vsel %vm278, %v1496, 0
        %v1534 = vsel %vm278, %v1497, 0
        %v1537 = vsel %vm278, %v1498, 0
        %v1540 = vsel %vm278, %v1499, 0
        %v1543 = vsel %vm278, %v1500, 0
        %v1546 = vsel %vm278, %v1501, 0
        %v1549 = vsel %vm278, %v1502, 0
        %v1552 = vsel %vm278, %v1503, 0
        %v1555 = vsel %vm278, %v1504, 0
        %v1558 = vsel %vm278, %v1505, 0
        %v1561 = vsel %vm278, %v1506, 0
        %v1564 = vsel %vm278, %v1507, 0
        %v1567 = vsel %vm278, %v1508, 0
        %v1570 = vsel %vm278, %v1509, 0
        %v1573 = vsel %vm278, %v1510, 0
        %v1576 = vsel %vm278, %v1511, 0
        %v1579 = vsel %vm278, %v1512, 0
        %v1582 = vsel %vm278, %v1513, 0
        %v1585 = vsel %vm278, %v1514, 0
        %v1588 = vsel %vm278, %v1515, 0
        %v1591 = vsel %vm278, %v1516, 0
        %v1594 = vsel %vm278, %v1517, 0
        %v1597 = vsel %vm278, %v1518, 0
        %v1600 = vsel %vm278, %v1519, 0
        %v1603 = vsel %vm278, %v1520, 0
        %v1606 = vsel %vm278, %v1521, 0
        %v1609 = vsel %vm278, %v1522, 0
        %v1612 = vsel %vm278, %v1523, 0
        %v1615 = vsel %vm278, %v1524, 0
        %v1618 = vsel %vm278, %v1525, 0
        %v1621 = vsel %vm278, %v1526, 0
        %1623 = vmatpush.msra.mxu0 0.0
        %1624 = vmatpush.msra.mxu0 0.0
        %1625 = vmatpush.msra.mxu0 0.0
        %1626 = vmatpush.msra.mxu0 0.0
        %1627 = vmatpush.msra.mxu0 0.0
        %1628 = vmatpush.msra.mxu0 0.0
        %1629 = vmatpush.msra.mxu0 0.0
        %1630 = vmatpush.msra.mxu0 0.0
        %1631 = vmatpush.msra.mxu0 0.0
        %1632 = vmatpush.msra.mxu0 0.0
        %1633 = vmatpush.msra.mxu0 0.0
        %1634 = vmatpush.msra.mxu0 0.0
        %1635 = vmatpush.msra.mxu0 0.0
        %1636 = vmatpush.msra.mxu0 0.0
        %1637 = vmatpush.msra.mxu0 %v205
        %1638 = vmatpush.msra.mxu0 %v204
        %1639 = vmatmul.f32.gmra.mxu0 %v1528
        %v1640 = vpop.f32.mrf.mxu0
        %v1641 = vadd.f32 0.0, %v1640
        %1642 = vmatmul.f32.gmra.mxu0 %v1531
        %v1643 = vpop.f32.mrf.mxu0
        %v1644 = vadd.f32 0.0, %v1643
        %1645 = vmatmul.f32.gmra.mxu0 %v1534
        %v1646 = vpop.f32.mrf.mxu0
        %v1647 = vadd.f32 0.0, %v1646
        %1648 = vmatmul.f32.gmra.mxu0 %v1537
        %v1649 = vpop.f32.mrf.mxu0
        %v1650 = vadd.f32 0.0, %v1649
        %1651 = vmatmul.f32.gmra.mxu0 %v1540
        %v1652 = vpop.f32.mrf.mxu0
        %v1653 = vadd.f32 0.0, %v1652
        %1654 = vmatmul.f32.gmra.mxu0 %v1543
        %v1655 = vpop.f32.mrf.mxu0
        %v1656 = vadd.f32 0.0, %v1655
        %1657 = vmatmul.f32.gmra.mxu0 %v1546
        %v1658 = vpop.f32.mrf.mxu0
        %v1659 = vadd.f32 0.0, %v1658
        %1660 = vmatmul.f32.gmra.mxu0 %v1549
        %v1661 = vpop.f32.mrf.mxu0
        %v1662 = vadd.f32 0.0, %v1661
        %1663 = vmatmul.f32.gmra.mxu0 %v1552
        %v1664 = vpop.f32.mrf.mxu0
        %v1665 = vadd.f32 0.0, %v1664
        %1666 = vmatmul.f32.gmra.mxu0 %v1555
        %v1667 = vpop.f32.mrf.mxu0
        %v1668 = vadd.f32 0.0, %v1667
        %1669 = vmatmul.f32.gmra.mxu0 %v1558
        %v1670 = vpop.f32.mrf.mxu0
        %v1671 = vadd.f32 0.0, %v1670
        %1672 = vmatmul.f32.gmra.mxu0 %v1561
        %v1673 = vpop.f32.mrf.mxu0
        %v1674 = vadd.f32 0.0, %v1673
        %1675 = vmatmul.f32.gmra.mxu0 %v1564
        %v1676 = vpop.f32.mrf.mxu0
        %v1677 = vadd.f32 0.0, %v1676
        %1678 = vmatmul.f32.gmra.mxu0 %v1567
        %v1679 = vpop.f32.mrf.mxu0
        %v1680 = vadd.f32 0.0, %v1679
        %1681 = vmatmul.f32.gmra.mxu0 %v1570
        %v1682 = vpop.f32.mrf.mxu0
        %v1683 = vadd.f32 0.0, %v1682
        %1684 = vmatmul.f32.gmra.mxu0 %v1573
        %v1685 = vpop.f32.mrf.mxu0
        %v1686 = vadd.f32 0.0, %v1685
        %1687 = vmatmul.f32.gmra.mxu0 %v1576
        %v1688 = vpop.f32.mrf.mxu0
        %v1689 = vadd.f32 0.0, %v1688
        %1690 = vmatmul.f32.gmra.mxu0 %v1579
        %v1691 = vpop.f32.mrf.mxu0
        %v1692 = vadd.f32 0.0, %v1691
        %1693 = vmatmul.f32.gmra.mxu0 %v1582
        %v1694 = vpop.f32.mrf.mxu0
        %v1695 = vadd.f32 0.0, %v1694
        %1696 = vmatmul.f32.gmra.mxu0 %v1585
        %v1697 = vpop.f32.mrf.mxu0
        %v1698 = vadd.f32 0.0, %v1697
        %1699 = vmatmul.f32.gmra.mxu0 %v1588
        %v1700 = vpop.f32.mrf.mxu0
        %v1701 = vadd.f32 0.0, %v1700
        %1702 = vmatmul.f32.gmra.mxu0 %v1591
        %v1703 = vpop.f32.mrf.mxu0
        %v1704 = vadd.f32 0.0, %v1703
        %1705 = vmatmul.f32.gmra.mxu0 %v1594
        %v1706 = vpop.f32.mrf.mxu0
        %v1707 = vadd.f32 0.0, %v1706
        %1708 = vmatmul.f32.gmra.mxu0 %v1597
        %v1709 = vpop.f32.mrf.mxu0
        %v1710 = vadd.f32 0.0, %v1709
        %1711 = vmatmul.f32.gmra.mxu0 %v1600
        %v1712 = vpop.f32.mrf.mxu0
        %v1713 = vadd.f32 0.0, %v1712
        %1714 = vmatmul.f32.gmra.mxu0 %v1603
        %v1715 = vpop.f32.mrf.mxu0
        %v1716 = vadd.f32 0.0, %v1715
        %1717 = vmatmul.f32.gmra.mxu0 %v1606
        %v1718 = vpop.f32.mrf.mxu0
        %v1719 = vadd.f32 0.0, %v1718
        %1720 = vmatmul.f32.gmra.mxu0 %v1609
        %v1721 = vpop.f32.mrf.mxu0
        %v1722 = vadd.f32 0.0, %v1721
        %1723 = vmatmul.f32.gmra.mxu0 %v1612
        %v1724 = vpop.f32.mrf.mxu0
        %v1725 = vadd.f32 0.0, %v1724
        %1726 = vmatmul.f32.gmra.mxu0 %v1615
        %v1727 = vpop.f32.mrf.mxu0
        %v1728 = vadd.f32 0.0, %v1727
        %1729 = vmatmul.f32.gmra.mxu0 %v1618
        %v1730 = vpop.f32.mrf.mxu0
        %v1731 = vadd.f32 0.0, %v1730
        %1732 = vmatmul.f32.gmra.mxu0 %v1621
        %v1733 = vpop.f32.mrf.mxu0
        %v1734 = vadd.f32 0.0, %v1733
        %1735 = vdwg.mxu0
        %v1736 = vmul.f32 %v1641, %v1641
        %v1737 = vmul.f32 %v1644, %v1644
        %v1738 = vmul.f32 %v1647, %v1647
        %v1739 = vmul.f32 %v1650, %v1650
        %v1740 = vmul.f32 %v1653, %v1653
        %v1741 = vmul.f32 %v1656, %v1656
        %v1742 = vmul.f32 %v1659, %v1659
        %v1743 = vmul.f32 %v1662, %v1662
        %v1744 = vmul.f32 %v1665, %v1665
        %v1745 = vmul.f32 %v1668, %v1668
        %v1746 = vmul.f32 %v1671, %v1671
        %v1747 = vmul.f32 %v1674, %v1674
        %v1748 = vmul.f32 %v1677, %v1677
        %v1749 = vmul.f32 %v1680, %v1680
        %v1750 = vmul.f32 %v1683, %v1683
        %v1751 = vmul.f32 %v1686, %v1686
        %v1752 = vmul.f32 %v1689, %v1689
        %v1753 = vmul.f32 %v1692, %v1692
        %v1754 = vmul.f32 %v1695, %v1695
        %v1755 = vmul.f32 %v1698, %v1698
        %v1756 = vmul.f32 %v1701, %v1701
        %v1757 = vmul.f32 %v1704, %v1704
        %v1758 = vmul.f32 %v1707, %v1707
        %v1759 = vmul.f32 %v1710, %v1710
        %v1760 = vmul.f32 %v1713, %v1713
        %v1761 = vmul.f32 %v1716, %v1716
        %v1762 = vmul.f32 %v1719, %v1719
        %v1763 = vmul.f32 %v1722, %v1722
        %v1764 = vmul.f32 %v1725, %v1725
        %v1765 = vmul.f32 %v1728, %v1728
        %v1766 = vmul.f32 %v1731, %v1731
        %v1767 = vmul.f32 %v1734, %v1734
        %1768 = vadd.xlane.f32.xlu0 %v1736
        %v1769 = vpop.xlane.xlu0 %1768
        %1770 = vadd.xlane.f32.xlu0 %v1737
        %v1771 = vpop.xlane.xlu0 %1770
        %1772 = vadd.xlane.f32.xlu0 %v1738
        %v1773 = vpop.xlane.xlu0 %1772
        %1774 = vadd.xlane.f32.xlu0 %v1739
        %v1775 = vpop.xlane.xlu0 %1774
        %1776 = vadd.xlane.f32.xlu0 %v1740
        %v1777 = vpop.xlane.xlu0 %1776
        %1778 = vadd.xlane.f32.xlu0 %v1741
        %v1779 = vpop.xlane.xlu0 %1778
        %1780 = vadd.xlane.f32.xlu0 %v1742
        %v1781 = vpop.xlane.xlu0 %1780
        %1782 = vadd.xlane.f32.xlu0 %v1743
        %v1783 = vpop.xlane.xlu0 %1782
        %1784 = vadd.xlane.f32.xlu0 %v1744
        %v1785 = vpop.xlane.xlu0 %1784
        %1786 = vadd.xlane.f32.xlu0 %v1745
        %v1787 = vpop.xlane.xlu0 %1786
        %1788 = vadd.xlane.f32.xlu0 %v1746
        %v1789 = vpop.xlane.xlu0 %1788
        %1790 = vadd.xlane.f32.xlu0 %v1747
        %v1791 = vpop.xlane.xlu0 %1790
        %1792 = vadd.xlane.f32.xlu0 %v1748
        %v1793 = vpop.xlane.xlu0 %1792
        %1794 = vadd.xlane.f32.xlu0 %v1749
        %v1795 = vpop.xlane.xlu0 %1794
        %1796 = vadd.xlane.f32.xlu0 %v1750
        %v1797 = vpop.xlane.xlu0 %1796
        %1798 = vadd.xlane.f32.xlu0 %v1751
        %v1799 = vpop.xlane.xlu0 %1798
        %1800 = vadd.xlane.f32.xlu0 %v1752
        %v1801 = vpop.xlane.xlu0 %1800
        %1802 = vadd.xlane.f32.xlu0 %v1753
        %v1803 = vpop.xlane.xlu0 %1802
        %1804 = vadd.xlane.f32.xlu0 %v1754
        %v1805 = vpop.xlane.xlu0 %1804
        %1806 = vadd.xlane.f32.xlu0 %v1755
        %v1807 = vpop.xlane.xlu0 %1806
        %1808 = vadd.xlane.f32.xlu0 %v1756
        %v1809 = vpop.xlane.xlu0 %1808
        %1810 = vadd.xlane.f32.xlu0 %v1757
        %v1811 = vpop.xlane.xlu0 %1810
        %1812 = vadd.xlane.f32.xlu0 %v1758
        %v1813 = vpop.xlane.xlu0 %1812
        %1814 = vadd.xlane.f32.xlu0 %v1759
        %v1815 = vpop.xlane.xlu0 %1814
        %1816 = vadd.xlane.f32.xlu0 %v1760
        %v1817 = vpop.xlane.xlu0 %1816
        %1818 = vadd.xlane.f32.xlu0 %v1761
        %v1819 = vpop.xlane.xlu0 %1818
        %1820 = vadd.xlane.f32.xlu0 %v1762
        %v1821 = vpop.xlane.xlu0 %1820
        %1822 = vadd.xlane.f32.xlu0 %v1763
        %v1823 = vpop.xlane.xlu0 %1822
        %1824 = vadd.xlane.f32.xlu0 %v1764
        %v1825 = vpop.xlane.xlu0 %1824
        %1826 = vadd.xlane.f32.xlu0 %v1765
        %v1827 = vpop.xlane.xlu0 %1826
        %1828 = vadd.xlane.f32.xlu0 %v1766
        %v1829 = vpop.xlane.xlu0 %1828
        %1830 = vadd.xlane.f32.xlu0 %v1767
        %v1831 = vpop.xlane.xlu0 %1830
        %v1832 = vmax.f32 %v1769, 1e-30
        %v1833 = vmax.f32 %v1771, 1e-30
        %v1834 = vmax.f32 %v1773, 1e-30
        %v1835 = vmax.f32 %v1775, 1e-30
        %v1836 = vmax.f32 %v1777, 1e-30
        %v1837 = vmax.f32 %v1779, 1e-30
        %v1838 = vmax.f32 %v1781, 1e-30
        %v1839 = vmax.f32 %v1783, 1e-30
        %v1840 = vmax.f32 %v1785, 1e-30
        %v1841 = vmax.f32 %v1787, 1e-30
        %v1842 = vmax.f32 %v1789, 1e-30
        %v1843 = vmax.f32 %v1791, 1e-30
        %v1844 = vmax.f32 %v1793, 1e-30
        %v1845 = vmax.f32 %v1795, 1e-30
        %v1846 = vmax.f32 %v1797, 1e-30
        %v1847 = vmax.f32 %v1799, 1e-30
        %v1848 = vmax.f32 %v1801, 1e-30
        %v1849 = vmax.f32 %v1803, 1e-30
        %v1850 = vmax.f32 %v1805, 1e-30
        %v1851 = vmax.f32 %v1807, 1e-30
        %v1852 = vmax.f32 %v1809, 1e-30
        %v1853 = vmax.f32 %v1811, 1e-30
        %v1854 = vmax.f32 %v1813, 1e-30
        %v1855 = vmax.f32 %v1815, 1e-30
        %v1856 = vmax.f32 %v1817, 1e-30
        %v1857 = vmax.f32 %v1819, 1e-30
        %v1858 = vmax.f32 %v1821, 1e-30
        %v1859 = vmax.f32 %v1823, 1e-30
        %v1860 = vmax.f32 %v1825, 1e-30
        %v1861 = vmax.f32 %v1827, 1e-30
        %v1862 = vmax.f32 %v1829, 1e-30
        %v1863 = vmax.f32 %v1831, 1e-30
        %v1864 = vrsqrt.pop %v1832
        %v1865 = vmul.f32 %v1864, %v1832
        %v1866 = vmul.f32 %v1865, %v1864
        %v1867 = vmul.f32 0.5, %v1866
        %v1868 = vsub.f32 1.5, %v1867
        %v1869 = vmul.f32 %v1864, %v1868
        %vm1870 = vweird.f32 %v1832
        %vm1871 = vweird.f32 %v1864
        %vm1872 = vmor %vm1870, %vm1871
        %v1873 = vsel %vm1872, %v1864, %v1869
        %v1874 = vrsqrt.pop %v1833
        %v1875 = vmul.f32 %v1874, %v1833
        %v1876 = vmul.f32 %v1875, %v1874
        %v1877 = vmul.f32 0.5, %v1876
        %v1878 = vsub.f32 1.5, %v1877
        %v1879 = vmul.f32 %v1874, %v1878
        %vm1880 = vweird.f32 %v1833
        %vm1881 = vweird.f32 %v1874
        %vm1882 = vmor %vm1880, %vm1881
        %v1883 = vsel %vm1882, %v1874, %v1879
        %v1884 = vrsqrt.pop %v1834
        %v1885 = vmul.f32 %v1884, %v1834
        %v1886 = vmul.f32 %v1885, %v1884
        %v1887 = vmul.f32 0.5, %v1886
        %v1888 = vsub.f32 1.5, %v1887
        %v1889 = vmul.f32 %v1884, %v1888
        %vm1890 = vweird.f32 %v1834
        %vm1891 = vweird.f32 %v1884
        %vm1892 = vmor %vm1890, %vm1891
        %v1893 = vsel %vm1892, %v1884, %v1889
        %v1894 = vrsqrt.pop %v1835
        %v1895 = vmul.f32 %v1894, %v1835
        %v1896 = vmul.f32 %v1895, %v1894
        %v1897 = vmul.f32 0.5, %v1896
        %v1898 = vsub.f32 1.5, %v1897
        %v1899 = vmul.f32 %v1894, %v1898
        %vm1900 = vweird.f32 %v1835
        %vm1901 = vweird.f32 %v1894
        %vm1902 = vmor %vm1900, %vm1901
        %v1903 = vsel %vm1902, %v1894, %v1899
        %v1904 = vrsqrt.pop %v1836
        %v1905 = vmul.f32 %v1904, %v1836
        %v1906 = vmul.f32 %v1905, %v1904
        %v1907 = vmul.f32 0.5, %v1906
        %v1908 = vsub.f32 1.5, %v1907
        %v1909 = vmul.f32 %v1904, %v1908
        %vm1910 = vweird.f32 %v1836
        %vm1911 = vweird.f32 %v1904
        %vm1912 = vmor %vm1910, %vm1911
        %v1913 = vsel %vm1912, %v1904, %v1909
        %v1914 = vrsqrt.pop %v1837
        %v1915 = vmul.f32 %v1914, %v1837
        %v1916 = vmul.f32 %v1915, %v1914
        %v1917 = vmul.f32 0.5, %v1916
        %v1918 = vsub.f32 1.5, %v1917
        %v1919 = vmul.f32 %v1914, %v1918
        %vm1920 = vweird.f32 %v1837
        %vm1921 = vweird.f32 %v1914
        %vm1922 = vmor %vm1920, %vm1921
        %v1923 = vsel %vm1922, %v1914, %v1919
        %v1924 = vrsqrt.pop %v1838
        %v1925 = vmul.f32 %v1924, %v1838
        %v1926 = vmul.f32 %v1925, %v1924
        %v1927 = vmul.f32 0.5, %v1926
        %v1928 = vsub.f32 1.5, %v1927
        %v1929 = vmul.f32 %v1924, %v1928
        %vm1930 = vweird.f32 %v1838
        %vm1931 = vweird.f32 %v1924
        %vm1932 = vmor %vm1930, %vm1931
        %v1933 = vsel %vm1932, %v1924, %v1929
        %v1934 = vrsqrt.pop %v1839
        %v1935 = vmul.f32 %v1934, %v1839
        %v1936 = vmul.f32 %v1935, %v1934
        %v1937 = vmul.f32 0.5, %v1936
        %v1938 = vsub.f32 1.5, %v1937
        %v1939 = vmul.f32 %v1934, %v1938
        %vm1940 = vweird.f32 %v1839
        %vm1941 = vweird.f32 %v1934
        %vm1942 = vmor %vm1940, %vm1941
        %v1943 = vsel %vm1942, %v1934, %v1939
        %v1944 = vrsqrt.pop %v1840
        %v1945 = vmul.f32 %v1944, %v1840
        %v1946 = vmul.f32 %v1945, %v1944
        %v1947 = vmul.f32 0.5, %v1946
        %v1948 = vsub.f32 1.5, %v1947
        %v1949 = vmul.f32 %v1944, %v1948
        %vm1950 = vweird.f32 %v1840
        %vm1951 = vweird.f32 %v1944
        %vm1952 = vmor %vm1950, %vm1951
        %v1953 = vsel %vm1952, %v1944, %v1949
        %v1954 = vrsqrt.pop %v1841
        %v1955 = vmul.f32 %v1954, %v1841
        %v1956 = vmul.f32 %v1955, %v1954
        %v1957 = vmul.f32 0.5, %v1956
        %v1958 = vsub.f32 1.5, %v1957
        %v1959 = vmul.f32 %v1954, %v1958
        %vm1960 = vweird.f32 %v1841
        %vm1961 = vweird.f32 %v1954
        %vm1962 = vmor %vm1960, %vm1961
        %v1963 = vsel %vm1962, %v1954, %v1959
        %v1964 = vrsqrt.pop %v1842
        %v1965 = vmul.f32 %v1964, %v1842
        %v1966 = vmul.f32 %v1965, %v1964
        %v1967 = vmul.f32 0.5, %v1966
        %v1968 = vsub.f32 1.5, %v1967
        %v1969 = vmul.f32 %v1964, %v1968
        %vm1970 = vweird.f32 %v1842
        %vm1971 = vweird.f32 %v1964
        %vm1972 = vmor %vm1970, %vm1971
        %v1973 = vsel %vm1972, %v1964, %v1969
        %v1974 = vrsqrt.pop %v1843
        %v1975 = vmul.f32 %v1974, %v1843
        %v1976 = vmul.f32 %v1975, %v1974
        %v1977 = vmul.f32 0.5, %v1976
        %v1978 = vsub.f32 1.5, %v1977
        %v1979 = vmul.f32 %v1974, %v1978
        %vm1980 = vweird.f32 %v1843
        %vm1981 = vweird.f32 %v1974
        %vm1982 = vmor %vm1980, %vm1981
        %v1983 = vsel %vm1982, %v1974, %v1979
        %v1984 = vrsqrt.pop %v1844
        %v1985 = vmul.f32 %v1984, %v1844
        %v1986 = vmul.f32 %v1985, %v1984
        %v1987 = vmul.f32 0.5, %v1986
        %v1988 = vsub.f32 1.5, %v1987
        %v1989 = vmul.f32 %v1984, %v1988
        %vm1990 = vweird.f32 %v1844
        %vm1991 = vweird.f32 %v1984
        %vm1992 = vmor %vm1990, %vm1991
        %v1993 = vsel %vm1992, %v1984, %v1989
        %v1994 = vrsqrt.pop %v1845
        %v1995 = vmul.f32 %v1994, %v1845
        %v1996 = vmul.f32 %v1995, %v1994
        %v1997 = vmul.f32 0.5, %v1996
        %v1998 = vsub.f32 1.5, %v1997
        %v1999 = vmul.f32 %v1994, %v1998
        %vm2000 = vweird.f32 %v1845
        %vm2001 = vweird.f32 %v1994
        %vm2002 = vmor %vm2000, %vm2001
        %v2003 = vsel %vm2002, %v1994, %v1999
        %v2004 = vrsqrt.pop %v1846
        %v2005 = vmul.f32 %v2004, %v1846
        %v2006 = vmul.f32 %v2005, %v2004
        %v2007 = vmul.f32 0.5, %v2006
        %v2008 = vsub.f32 1.5, %v2007
        %v2009 = vmul.f32 %v2004, %v2008
        %vm2010 = vweird.f32 %v1846
        %vm2011 = vweird.f32 %v2004
        %vm2012 = vmor %vm2010, %vm2011
        %v2013 = vsel %vm2012, %v2004, %v2009
        %v2014 = vrsqrt.pop %v1847
        %v2015 = vmul.f32 %v2014, %v1847
        %v2016 = vmul.f32 %v2015, %v2014
        %v2017 = vmul.f32 0.5, %v2016
        %v2018 = vsub.f32 1.5, %v2017
        %v2019 = vmul.f32 %v2014, %v2018
        %vm2020 = vweird.f32 %v1847
        %vm2021 = vweird.f32 %v2014
        %vm2022 = vmor %vm2020, %vm2021
        %v2023 = vsel %vm2022, %v2014, %v2019
        %v2024 = vrsqrt.pop %v1848
        %v2025 = vmul.f32 %v2024, %v1848
        %v2026 = vmul.f32 %v2025, %v2024
        %v2027 = vmul.f32 0.5, %v2026
        %v2028 = vsub.f32 1.5, %v2027
        %v2029 = vmul.f32 %v2024, %v2028
        %vm2030 = vweird.f32 %v1848
        %vm2031 = vweird.f32 %v2024
        %vm2032 = vmor %vm2030, %vm2031
        %v2033 = vsel %vm2032, %v2024, %v2029
        %v2034 = vrsqrt.pop %v1849
        %v2035 = vmul.f32 %v2034, %v1849
        %v2036 = vmul.f32 %v2035, %v2034
        %v2037 = vmul.f32 0.5, %v2036
        %v2038 = vsub.f32 1.5, %v2037
        %v2039 = vmul.f32 %v2034, %v2038
        %vm2040 = vweird.f32 %v1849
        %vm2041 = vweird.f32 %v2034
        %vm2042 = vmor %vm2040, %vm2041
        %v2043 = vsel %vm2042, %v2034, %v2039
        %v2044 = vrsqrt.pop %v1850
        %v2045 = vmul.f32 %v2044, %v1850
        %v2046 = vmul.f32 %v2045, %v2044
        %v2047 = vmul.f32 0.5, %v2046
        %v2048 = vsub.f32 1.5, %v2047
        %v2049 = vmul.f32 %v2044, %v2048
        %vm2050 = vweird.f32 %v1850
        %vm2051 = vweird.f32 %v2044
        %vm2052 = vmor %vm2050, %vm2051
        %v2053 = vsel %vm2052, %v2044, %v2049
        %v2054 = vrsqrt.pop %v1851
        %v2055 = vmul.f32 %v2054, %v1851
        %v2056 = vmul.f32 %v2055, %v2054
        %v2057 = vmul.f32 0.5, %v2056
        %v2058 = vsub.f32 1.5, %v2057
        %v2059 = vmul.f32 %v2054, %v2058
        %vm2060 = vweird.f32 %v1851
        %vm2061 = vweird.f32 %v2054
        %vm2062 = vmor %vm2060, %vm2061
        %v2063 = vsel %vm2062, %v2054, %v2059
        %v2064 = vrsqrt.pop %v1852
        %v2065 = vmul.f32 %v2064, %v1852
        %v2066 = vmul.f32 %v2065, %v2064
        %v2067 = vmul.f32 0.5, %v2066
        %v2068 = vsub.f32 1.5, %v2067
        %v2069 = vmul.f32 %v2064, %v2068
        %vm2070 = vweird.f32 %v1852
        %vm2071 = vweird.f32 %v2064
        %vm2072 = vmor %vm2070, %vm2071
        %v2073 = vsel %vm2072, %v2064, %v2069
        %v2074 = vrsqrt.pop %v1853
        %v2075 = vmul.f32 %v2074, %v1853
        %v2076 = vmul.f32 %v2075, %v2074
        %v2077 = vmul.f32 0.5, %v2076
        %v2078 = vsub.f32 1.5, %v2077
        %v2079 = vmul.f32 %v2074, %v2078
        %vm2080 = vweird.f32 %v1853
        %vm2081 = vweird.f32 %v2074
        %vm2082 = vmor %vm2080, %vm2081
        %v2083 = vsel %vm2082, %v2074, %v2079
        %v2084 = vrsqrt.pop %v1854
        %v2085 = vmul.f32 %v2084, %v1854
        %v2086 = vmul.f32 %v2085, %v2084
        %v2087 = vmul.f32 0.5, %v2086
        %v2088 = vsub.f32 1.5, %v2087
        %v2089 = vmul.f32 %v2084, %v2088
        %vm2090 = vweird.f32 %v1854
        %vm2091 = vweird.f32 %v2084
        %vm2092 = vmor %vm2090, %vm2091
        %v2093 = vsel %vm2092, %v2084, %v2089
        %v2094 = vrsqrt.pop %v1855
        %v2095 = vmul.f32 %v2094, %v1855
        %v2096 = vmul.f32 %v2095, %v2094
        %v2097 = vmul.f32 0.5, %v2096
        %v2098 = vsub.f32 1.5, %v2097
        %v2099 = vmul.f32 %v2094, %v2098
        %vm2100 = vweird.f32 %v1855
        %vm2101 = vweird.f32 %v2094
        %vm2102 = vmor %vm2100, %vm2101
        %v2103 = vsel %vm2102, %v2094, %v2099
        %v2104 = vrsqrt.pop %v1856
        %v2105 = vmul.f32 %v2104, %v1856
        %v2106 = vmul.f32 %v2105, %v2104
        %v2107 = vmul.f32 0.5, %v2106
        %v2108 = vsub.f32 1.5, %v2107
        %v2109 = vmul.f32 %v2104, %v2108
        %vm2110 = vweird.f32 %v1856
        %vm2111 = vweird.f32 %v2104
        %vm2112 = vmor %vm2110, %vm2111
        %v2113 = vsel %vm2112, %v2104, %v2109
        %v2114 = vrsqrt.pop %v1857
        %v2115 = vmul.f32 %v2114, %v1857
        %v2116 = vmul.f32 %v2115, %v2114
        %v2117 = vmul.f32 0.5, %v2116
        %v2118 = vsub.f32 1.5, %v2117
        %v2119 = vmul.f32 %v2114, %v2118
        %vm2120 = vweird.f32 %v1857
        %vm2121 = vweird.f32 %v2114
        %vm2122 = vmor %vm2120, %vm2121
        %v2123 = vsel %vm2122, %v2114, %v2119
        %v2124 = vrsqrt.pop %v1858
        %v2125 = vmul.f32 %v2124, %v1858
        %v2126 = vmul.f32 %v2125, %v2124
        %v2127 = vmul.f32 0.5, %v2126
        %v2128 = vsub.f32 1.5, %v2127
        %v2129 = vmul.f32 %v2124, %v2128
        %vm2130 = vweird.f32 %v1858
        %vm2131 = vweird.f32 %v2124
        %vm2132 = vmor %vm2130, %vm2131
        %v2133 = vsel %vm2132, %v2124, %v2129
        %v2134 = vrsqrt.pop %v1859
        %v2135 = vmul.f32 %v2134, %v1859
        %v2136 = vmul.f32 %v2135, %v2134
        %v2137 = vmul.f32 0.5, %v2136
        %v2138 = vsub.f32 1.5, %v2137
        %v2139 = vmul.f32 %v2134, %v2138
        %vm2140 = vweird.f32 %v1859
        %vm2141 = vweird.f32 %v2134
        %vm2142 = vmor %vm2140, %vm2141
        %v2143 = vsel %vm2142, %v2134, %v2139
        %v2144 = vrsqrt.pop %v1860
        %v2145 = vmul.f32 %v2144, %v1860
        %v2146 = vmul.f32 %v2145, %v2144
        %v2147 = vmul.f32 0.5, %v2146
        %v2148 = vsub.f32 1.5, %v2147
        %v2149 = vmul.f32 %v2144, %v2148
        %vm2150 = vweird.f32 %v1860
        %vm2151 = vweird.f32 %v2144
        %vm2152 = vmor %vm2150, %vm2151
        %v2153 = vsel %vm2152, %v2144, %v2149
        %v2154 = vrsqrt.pop %v1861
        %v2155 = vmul.f32 %v2154, %v1861
        %v2156 = vmul.f32 %v2155, %v2154
        %v2157 = vmul.f32 0.5, %v2156
        %v2158 = vsub.f32 1.5, %v2157
        %v2159 = vmul.f32 %v2154, %v2158
        %vm2160 = vweird.f32 %v1861
        %vm2161 = vweird.f32 %v2154
        %vm2162 = vmor %vm2160, %vm2161
        %v2163 = vsel %vm2162, %v2154, %v2159
        %v2164 = vrsqrt.pop %v1862
        %v2165 = vmul.f32 %v2164, %v1862
        %v2166 = vmul.f32 %v2165, %v2164
        %v2167 = vmul.f32 0.5, %v2166
        %v2168 = vsub.f32 1.5, %v2167
        %v2169 = vmul.f32 %v2164, %v2168
        %vm2170 = vweird.f32 %v1862
        %vm2171 = vweird.f32 %v2164
        %vm2172 = vmor %vm2170, %vm2171
        %v2173 = vsel %vm2172, %v2164, %v2169
        %v2174 = vrsqrt.pop %v1863
        %v2175 = vmul.f32 %v2174, %v1863
        %v2176 = vmul.f32 %v2175, %v2174
        %v2177 = vmul.f32 0.5, %v2176
        %v2178 = vsub.f32 1.5, %v2177
        %v2179 = vmul.f32 %v2174, %v2178
        %vm2180 = vweird.f32 %v1863
        %vm2181 = vweird.f32 %v2174
        %vm2182 = vmor %vm2180, %vm2181
        %v2183 = vsel %vm2182, %v2174, %v2179
        %v2184 = vmul.f32 %v1832, %v1873
        %v2185 = vmul.f32 %v1833, %v1883
        %v2186 = vmul.f32 %v1834, %v1893
        %v2187 = vmul.f32 %v1835, %v1903
        %v2188 = vmul.f32 %v1836, %v1913
        %v2189 = vmul.f32 %v1837, %v1923
        %v2190 = vmul.f32 %v1838, %v1933
        %v2191 = vmul.f32 %v1839, %v1943
        %v2192 = vmul.f32 %v1840, %v1953
        %v2193 = vmul.f32 %v1841, %v1963
        %v2194 = vmul.f32 %v1842, %v1973
        %v2195 = vmul.f32 %v1843, %v1983
        %v2196 = vmul.f32 %v1844, %v1993
        %v2197 = vmul.f32 %v1845, %v2003
        %v2198 = vmul.f32 %v1846, %v2013
        %v2199 = vmul.f32 %v1847, %v2023
        %v2200 = vmul.f32 %v1848, %v2033
        %v2201 = vmul.f32 %v1849, %v2043
        %v2202 = vmul.f32 %v1850, %v2053
        %v2203 = vmul.f32 %v1851, %v2063
        %v2204 = vmul.f32 %v1852, %v2073
        %v2205 = vmul.f32 %v1853, %v2083
        %v2206 = vmul.f32 %v1854, %v2093
        %v2207 = vmul.f32 %v1855, %v2103
        %v2208 = vmul.f32 %v1856, %v2113
        %v2209 = vmul.f32 %v1857, %v2123
        %v2210 = vmul.f32 %v1858, %v2133
        %v2211 = vmul.f32 %v1859, %v2143
        %v2212 = vmul.f32 %v1860, %v2153
        %v2213 = vmul.f32 %v1861, %v2163
        %v2214 = vmul.f32 %v1862, %v2173
        %v2215 = vmul.f32 %v1863, %v2183
        %v2216 = vmul.f32 %v2184, 1.442695
        %v2217 = vpow.pop %v2216
        %v2218 = vmul.f32 %v2185, 1.442695
        %v2219 = vpow.pop %v2218
        %v2220 = vmul.f32 %v2186, 1.442695
        %v2221 = vpow.pop %v2220
        %v2222 = vmul.f32 %v2187, 1.442695
        %v2223 = vpow.pop %v2222
        %v2224 = vmul.f32 %v2188, 1.442695
        %v2225 = vpow.pop %v2224
        %v2226 = vmul.f32 %v2189, 1.442695
        %v2227 = vpow.pop %v2226
        %v2228 = vmul.f32 %v2190, 1.442695
        %v2229 = vpow.pop %v2228
        %v2230 = vmul.f32 %v2191, 1.442695
        %v2231 = vpow.pop %v2230
        %v2232 = vmul.f32 %v2192, 1.442695
        %v2233 = vpow.pop %v2232
        %v2234 = vmul.f32 %v2193, 1.442695
        %v2235 = vpow.pop %v2234
        %v2236 = vmul.f32 %v2194, 1.442695
        %v2237 = vpow.pop %v2236
        %v2238 = vmul.f32 %v2195, 1.442695
        %v2239 = vpow.pop %v2238
        %v2240 = vmul.f32 %v2196, 1.442695
        %v2241 = vpow.pop %v2240
        %v2242 = vmul.f32 %v2197, 1.442695
        %v2243 = vpow.pop %v2242
        %v2244 = vmul.f32 %v2198, 1.442695
        %v2245 = vpow.pop %v2244
        %v2246 = vmul.f32 %v2199, 1.442695
        %v2247 = vpow.pop %v2246
        %v2248 = vmul.f32 %v2200, 1.442695
        %v2249 = vpow.pop %v2248
        %v2250 = vmul.f32 %v2201, 1.442695
        %v2251 = vpow.pop %v2250
        %v2252 = vmul.f32 %v2202, 1.442695
        %v2253 = vpow.pop %v2252
        %v2254 = vmul.f32 %v2203, 1.442695
        %v2255 = vpow.pop %v2254
        %v2256 = vmul.f32 %v2204, 1.442695
        %v2257 = vpow.pop %v2256
        %v2258 = vmul.f32 %v2205, 1.442695
        %v2259 = vpow.pop %v2258
        %v2260 = vmul.f32 %v2206, 1.442695
        %v2261 = vpow.pop %v2260
        %v2262 = vmul.f32 %v2207, 1.442695
        %v2263 = vpow.pop %v2262
        %v2264 = vmul.f32 %v2208, 1.442695
        %v2265 = vpow.pop %v2264
        %v2266 = vmul.f32 %v2209, 1.442695
        %v2267 = vpow.pop %v2266
        %v2268 = vmul.f32 %v2210, 1.442695
        %v2269 = vpow.pop %v2268
        %v2270 = vmul.f32 %v2211, 1.442695
        %v2271 = vpow.pop %v2270
        %v2272 = vmul.f32 %v2212, 1.442695
        %v2273 = vpow.pop %v2272
        %v2274 = vmul.f32 %v2213, 1.442695
        %v2275 = vpow.pop %v2274
        %v2276 = vmul.f32 %v2214, 1.442695
        %v2277 = vpow.pop %v2276
        %v2278 = vmul.f32 %v2215, 1.442695
        %v2279 = vpow.pop %v2278
        %v2280 = vrcp.pop %v2217
        %v2281 = vmul.f32 %v2217, %v2280
        %v2282 = vsub.f32 1.0, %v2281
        %v2283 = vmul.f32 %v2280, %v2282
        %v2284 = vadd.f32 %v2280, %v2283
        %vm2285 = vweird.f32 %v2217
        %vm2286 = vweird.f32 %v2280
        %vm2287 = vmor %vm2285, %vm2286
        %v2288 = vsel %vm2287, %v2280, %v2284
        %v2289 = vand.u32 2147483647, %v2217
        %vm2290 = vcmp.eq.f32.partialorder %v2289, 8.507059e+37
        %v2291 = vand.u32 %v2217, 2147483648
        %v2292 = vor.u32 1.1754944e-38, %v2291
        %v2293 = vsel %vm2290, %v2292, %v2288
        %v2294 = vmul.f32 1.0, %v2293
        %v2295 = vrcp.pop %v2219
        %v2296 = vmul.f32 %v2219, %v2295
        %v2297 = vsub.f32 1.0, %v2296
        %v2298 = vmul.f32 %v2295, %v2297
        %v2299 = vadd.f32 %v2295, %v2298
        %vm2300 = vweird.f32 %v2219
        %vm2301 = vweird.f32 %v2295
        %vm2302 = vmor %vm2300, %vm2301
        %v2303 = vsel %vm2302, %v2295, %v2299
        %v2304 = vand.u32 2147483647, %v2219
        %vm2305 = vcmp.eq.f32.partialorder %v2304, 8.507059e+37
        %v2306 = vand.u32 %v2219, 2147483648
        %v2307 = vor.u32 1.1754944e-38, %v2306
        %v2308 = vsel %vm2305, %v2307, %v2303
        %v2309 = vmul.f32 1.0, %v2308
        %v2310 = vrcp.pop %v2221
        %v2311 = vmul.f32 %v2221, %v2310
        %v2312 = vsub.f32 1.0, %v2311
        %v2313 = vmul.f32 %v2310, %v2312
        %v2314 = vadd.f32 %v2310, %v2313
        %vm2315 = vweird.f32 %v2221
        %vm2316 = vweird.f32 %v2310
        %vm2317 = vmor %vm2315, %vm2316
        %v2318 = vsel %vm2317, %v2310, %v2314
        %v2319 = vand.u32 2147483647, %v2221
        %vm2320 = vcmp.eq.f32.partialorder %v2319, 8.507059e+37
        %v2321 = vand.u32 %v2221, 2147483648
        %v2322 = vor.u32 1.1754944e-38, %v2321
        %v2323 = vsel %vm2320, %v2322, %v2318
        %v2324 = vmul.f32 1.0, %v2323
        %v2325 = vrcp.pop %v2223
        %v2326 = vmul.f32 %v2223, %v2325
        %v2327 = vsub.f32 1.0, %v2326
        %v2328 = vmul.f32 %v2325, %v2327
        %v2329 = vadd.f32 %v2325, %v2328
        %vm2330 = vweird.f32 %v2223
        %vm2331 = vweird.f32 %v2325
        %vm2332 = vmor %vm2330, %vm2331
        %v2333 = vsel %vm2332, %v2325, %v2329
        %v2334 = vand.u32 2147483647, %v2223
        %vm2335 = vcmp.eq.f32.partialorder %v2334, 8.507059e+37
        %v2336 = vand.u32 %v2223, 2147483648
        %v2337 = vor.u32 1.1754944e-38, %v2336
        %v2338 = vsel %vm2335, %v2337, %v2333
        %v2339 = vmul.f32 1.0, %v2338
        %v2340 = vrcp.pop %v2225
        %v2341 = vmul.f32 %v2225, %v2340
        %v2342 = vsub.f32 1.0, %v2341
        %v2343 = vmul.f32 %v2340, %v2342
        %v2344 = vadd.f32 %v2340, %v2343
        %vm2345 = vweird.f32 %v2225
        %vm2346 = vweird.f32 %v2340
        %vm2347 = vmor %vm2345, %vm2346
        %v2348 = vsel %vm2347, %v2340, %v2344
        %v2349 = vand.u32 2147483647, %v2225
        %vm2350 = vcmp.eq.f32.partialorder %v2349, 8.507059e+37
        %v2351 = vand.u32 %v2225, 2147483648
        %v2352 = vor.u32 1.1754944e-38, %v2351
        %v2353 = vsel %vm2350, %v2352, %v2348
        %v2354 = vmul.f32 1.0, %v2353
        %v2355 = vrcp.pop %v2227
        %v2356 = vmul.f32 %v2227, %v2355
        %v2357 = vsub.f32 1.0, %v2356
        %v2358 = vmul.f32 %v2355, %v2357
        %v2359 = vadd.f32 %v2355, %v2358
        %vm2360 = vweird.f32 %v2227
        %vm2361 = vweird.f32 %v2355
        %vm2362 = vmor %vm2360, %vm2361
        %v2363 = vsel %vm2362, %v2355, %v2359
        %v2364 = vand.u32 2147483647, %v2227
        %vm2365 = vcmp.eq.f32.partialorder %v2364, 8.507059e+37
        %v2366 = vand.u32 %v2227, 2147483648
        %v2367 = vor.u32 1.1754944e-38, %v2366
        %v2368 = vsel %vm2365, %v2367, %v2363
        %v2369 = vmul.f32 1.0, %v2368
        %v2370 = vrcp.pop %v2229
        %v2371 = vmul.f32 %v2229, %v2370
        %v2372 = vsub.f32 1.0, %v2371
        %v2373 = vmul.f32 %v2370, %v2372
        %v2374 = vadd.f32 %v2370, %v2373
        %vm2375 = vweird.f32 %v2229
        %vm2376 = vweird.f32 %v2370
        %vm2377 = vmor %vm2375, %vm2376
        %v2378 = vsel %vm2377, %v2370, %v2374
        %v2379 = vand.u32 2147483647, %v2229
        %vm2380 = vcmp.eq.f32.partialorder %v2379, 8.507059e+37
        %v2381 = vand.u32 %v2229, 2147483648
        %v2382 = vor.u32 1.1754944e-38, %v2381
        %v2383 = vsel %vm2380, %v2382, %v2378
        %v2384 = vmul.f32 1.0, %v2383
        %v2385 = vrcp.pop %v2231
        %v2386 = vmul.f32 %v2231, %v2385
        %v2387 = vsub.f32 1.0, %v2386
        %v2388 = vmul.f32 %v2385, %v2387
        %v2389 = vadd.f32 %v2385, %v2388
        %vm2390 = vweird.f32 %v2231
        %vm2391 = vweird.f32 %v2385
        %vm2392 = vmor %vm2390, %vm2391
        %v2393 = vsel %vm2392, %v2385, %v2389
        %v2394 = vand.u32 2147483647, %v2231
        %vm2395 = vcmp.eq.f32.partialorder %v2394, 8.507059e+37
        %v2396 = vand.u32 %v2231, 2147483648
        %v2397 = vor.u32 1.1754944e-38, %v2396
        %v2398 = vsel %vm2395, %v2397, %v2393
        %v2399 = vmul.f32 1.0, %v2398
        %v2400 = vrcp.pop %v2233
        %v2401 = vmul.f32 %v2233, %v2400
        %v2402 = vsub.f32 1.0, %v2401
        %v2403 = vmul.f32 %v2400, %v2402
        %v2404 = vadd.f32 %v2400, %v2403
        %vm2405 = vweird.f32 %v2233
        %vm2406 = vweird.f32 %v2400
        %vm2407 = vmor %vm2405, %vm2406
        %v2408 = vsel %vm2407, %v2400, %v2404
        %v2409 = vand.u32 2147483647, %v2233
        %vm2410 = vcmp.eq.f32.partialorder %v2409, 8.507059e+37
        %v2411 = vand.u32 %v2233, 2147483648
        %v2412 = vor.u32 1.1754944e-38, %v2411
        %v2413 = vsel %vm2410, %v2412, %v2408
        %v2414 = vmul.f32 1.0, %v2413
        %v2415 = vrcp.pop %v2235
        %v2416 = vmul.f32 %v2235, %v2415
        %v2417 = vsub.f32 1.0, %v2416
        %v2418 = vmul.f32 %v2415, %v2417
        %v2419 = vadd.f32 %v2415, %v2418
        %vm2420 = vweird.f32 %v2235
        %vm2421 = vweird.f32 %v2415
        %vm2422 = vmor %vm2420, %vm2421
        %v2423 = vsel %vm2422, %v2415, %v2419
        %v2424 = vand.u32 2147483647, %v2235
        %vm2425 = vcmp.eq.f32.partialorder %v2424, 8.507059e+37
        %v2426 = vand.u32 %v2235, 2147483648
        %v2427 = vor.u32 1.1754944e-38, %v2426
        %v2428 = vsel %vm2425, %v2427, %v2423
        %v2429 = vmul.f32 1.0, %v2428
        %v2430 = vrcp.pop %v2237
        %v2431 = vmul.f32 %v2237, %v2430
        %v2432 = vsub.f32 1.0, %v2431
        %v2433 = vmul.f32 %v2430, %v2432
        %v2434 = vadd.f32 %v2430, %v2433
        %vm2435 = vweird.f32 %v2237
        %vm2436 = vweird.f32 %v2430
        %vm2437 = vmor %vm2435, %vm2436
        %v2438 = vsel %vm2437, %v2430, %v2434
        %v2439 = vand.u32 2147483647, %v2237
        %vm2440 = vcmp.eq.f32.partialorder %v2439, 8.507059e+37
        %v2441 = vand.u32 %v2237, 2147483648
        %v2442 = vor.u32 1.1754944e-38, %v2441
        %v2443 = vsel %vm2440, %v2442, %v2438
        %v2444 = vmul.f32 1.0, %v2443
        %v2445 = vrcp.pop %v2239
        %v2446 = vmul.f32 %v2239, %v2445
        %v2447 = vsub.f32 1.0, %v2446
        %v2448 = vmul.f32 %v2445, %v2447
        %v2449 = vadd.f32 %v2445, %v2448
        %vm2450 = vweird.f32 %v2239
        %vm2451 = vweird.f32 %v2445
        %vm2452 = vmor %vm2450, %vm2451
        %v2453 = vsel %vm2452, %v2445, %v2449
        %v2454 = vand.u32 2147483647, %v2239
        %vm2455 = vcmp.eq.f32.partialorder %v2454, 8.507059e+37
        %v2456 = vand.u32 %v2239, 2147483648
        %v2457 = vor.u32 1.1754944e-38, %v2456
        %v2458 = vsel %vm2455, %v2457, %v2453
        %v2459 = vmul.f32 1.0, %v2458
        %v2460 = vrcp.pop %v2241
        %v2461 = vmul.f32 %v2241, %v2460
        %v2462 = vsub.f32 1.0, %v2461
        %v2463 = vmul.f32 %v2460, %v2462
        %v2464 = vadd.f32 %v2460, %v2463
        %vm2465 = vweird.f32 %v2241
        %vm2466 = vweird.f32 %v2460
        %vm2467 = vmor %vm2465, %vm2466
        %v2468 = vsel %vm2467, %v2460, %v2464
        %v2469 = vand.u32 2147483647, %v2241
        %vm2470 = vcmp.eq.f32.partialorder %v2469, 8.507059e+37
        %v2471 = vand.u32 %v2241, 2147483648
        %v2472 = vor.u32 1.1754944e-38, %v2471
        %v2473 = vsel %vm2470, %v2472, %v2468
        %v2474 = vmul.f32 1.0, %v2473
        %v2475 = vrcp.pop %v2243
        %v2476 = vmul.f32 %v2243, %v2475
        %v2477 = vsub.f32 1.0, %v2476
        %v2478 = vmul.f32 %v2475, %v2477
        %v2479 = vadd.f32 %v2475, %v2478
        %vm2480 = vweird.f32 %v2243
        %vm2481 = vweird.f32 %v2475
        %vm2482 = vmor %vm2480, %vm2481
        %v2483 = vsel %vm2482, %v2475, %v2479
        %v2484 = vand.u32 2147483647, %v2243
        %vm2485 = vcmp.eq.f32.partialorder %v2484, 8.507059e+37
        %v2486 = vand.u32 %v2243, 2147483648
        %v2487 = vor.u32 1.1754944e-38, %v2486
        %v2488 = vsel %vm2485, %v2487, %v2483
        %v2489 = vmul.f32 1.0, %v2488
        %v2490 = vrcp.pop %v2245
        %v2491 = vmul.f32 %v2245, %v2490
        %v2492 = vsub.f32 1.0, %v2491
        %v2493 = vmul.f32 %v2490, %v2492
        %v2494 = vadd.f32 %v2490, %v2493
        %vm2495 = vweird.f32 %v2245
        %vm2496 = vweird.f32 %v2490
        %vm2497 = vmor %vm2495, %vm2496
        %v2498 = vsel %vm2497, %v2490, %v2494
        %v2499 = vand.u32 2147483647, %v2245
        %vm2500 = vcmp.eq.f32.partialorder %v2499, 8.507059e+37
        %v2501 = vand.u32 %v2245, 2147483648
        %v2502 = vor.u32 1.1754944e-38, %v2501
        %v2503 = vsel %vm2500, %v2502, %v2498
        %v2504 = vmul.f32 1.0, %v2503
        %v2505 = vrcp.pop %v2247
        %v2506 = vmul.f32 %v2247, %v2505
        %v2507 = vsub.f32 1.0, %v2506
        %v2508 = vmul.f32 %v2505, %v2507
        %v2509 = vadd.f32 %v2505, %v2508
        %vm2510 = vweird.f32 %v2247
        %vm2511 = vweird.f32 %v2505
        %vm2512 = vmor %vm2510, %vm2511
        %v2513 = vsel %vm2512, %v2505, %v2509
        %v2514 = vand.u32 2147483647, %v2247
        %vm2515 = vcmp.eq.f32.partialorder %v2514, 8.507059e+37
        %v2516 = vand.u32 %v2247, 2147483648
        %v2517 = vor.u32 1.1754944e-38, %v2516
        %v2518 = vsel %vm2515, %v2517, %v2513
        %v2519 = vmul.f32 1.0, %v2518
        %v2520 = vrcp.pop %v2249
        %v2521 = vmul.f32 %v2249, %v2520
        %v2522 = vsub.f32 1.0, %v2521
        %v2523 = vmul.f32 %v2520, %v2522
        %v2524 = vadd.f32 %v2520, %v2523
        %vm2525 = vweird.f32 %v2249
        %vm2526 = vweird.f32 %v2520
        %vm2527 = vmor %vm2525, %vm2526
        %v2528 = vsel %vm2527, %v2520, %v2524
        %v2529 = vand.u32 2147483647, %v2249
        %vm2530 = vcmp.eq.f32.partialorder %v2529, 8.507059e+37
        %v2531 = vand.u32 %v2249, 2147483648
        %v2532 = vor.u32 1.1754944e-38, %v2531
        %v2533 = vsel %vm2530, %v2532, %v2528
        %v2534 = vmul.f32 1.0, %v2533
        %v2535 = vrcp.pop %v2251
        %v2536 = vmul.f32 %v2251, %v2535
        %v2537 = vsub.f32 1.0, %v2536
        %v2538 = vmul.f32 %v2535, %v2537
        %v2539 = vadd.f32 %v2535, %v2538
        %vm2540 = vweird.f32 %v2251
        %vm2541 = vweird.f32 %v2535
        %vm2542 = vmor %vm2540, %vm2541
        %v2543 = vsel %vm2542, %v2535, %v2539
        %v2544 = vand.u32 2147483647, %v2251
        %vm2545 = vcmp.eq.f32.partialorder %v2544, 8.507059e+37
        %v2546 = vand.u32 %v2251, 2147483648
        %v2547 = vor.u32 1.1754944e-38, %v2546
        %v2548 = vsel %vm2545, %v2547, %v2543
        %v2549 = vmul.f32 1.0, %v2548
        %v2550 = vrcp.pop %v2253
        %v2551 = vmul.f32 %v2253, %v2550
        %v2552 = vsub.f32 1.0, %v2551
        %v2553 = vmul.f32 %v2550, %v2552
        %v2554 = vadd.f32 %v2550, %v2553
        %vm2555 = vweird.f32 %v2253
        %vm2556 = vweird.f32 %v2550
        %vm2557 = vmor %vm2555, %vm2556
        %v2558 = vsel %vm2557, %v2550, %v2554
        %v2559 = vand.u32 2147483647, %v2253
        %vm2560 = vcmp.eq.f32.partialorder %v2559, 8.507059e+37
        %v2561 = vand.u32 %v2253, 2147483648
        %v2562 = vor.u32 1.1754944e-38, %v2561
        %v2563 = vsel %vm2560, %v2562, %v2558
        %v2564 = vmul.f32 1.0, %v2563
        %v2565 = vrcp.pop %v2255
        %v2566 = vmul.f32 %v2255, %v2565
        %v2567 = vsub.f32 1.0, %v2566
        %v2568 = vmul.f32 %v2565, %v2567
        %v2569 = vadd.f32 %v2565, %v2568
        %vm2570 = vweird.f32 %v2255
        %vm2571 = vweird.f32 %v2565
        %vm2572 = vmor %vm2570, %vm2571
        %v2573 = vsel %vm2572, %v2565, %v2569
        %v2574 = vand.u32 2147483647, %v2255
        %vm2575 = vcmp.eq.f32.partialorder %v2574, 8.507059e+37
        %v2576 = vand.u32 %v2255, 2147483648
        %v2577 = vor.u32 1.1754944e-38, %v2576
        %v2578 = vsel %vm2575, %v2577, %v2573
        %v2579 = vmul.f32 1.0, %v2578
        %v2580 = vrcp.pop %v2257
        %v2581 = vmul.f32 %v2257, %v2580
        %v2582 = vsub.f32 1.0, %v2581
        %v2583 = vmul.f32 %v2580, %v2582
        %v2584 = vadd.f32 %v2580, %v2583
        %vm2585 = vweird.f32 %v2257
        %vm2586 = vweird.f32 %v2580
        %vm2587 = vmor %vm2585, %vm2586
        %v2588 = vsel %vm2587, %v2580, %v2584
        %v2589 = vand.u32 2147483647, %v2257
        %vm2590 = vcmp.eq.f32.partialorder %v2589, 8.507059e+37
        %v2591 = vand.u32 %v2257, 2147483648
        %v2592 = vor.u32 1.1754944e-38, %v2591
        %v2593 = vsel %vm2590, %v2592, %v2588
        %v2594 = vmul.f32 1.0, %v2593
        %v2595 = vrcp.pop %v2259
        %v2596 = vmul.f32 %v2259, %v2595
        %v2597 = vsub.f32 1.0, %v2596
        %v2598 = vmul.f32 %v2595, %v2597
        %v2599 = vadd.f32 %v2595, %v2598
        %vm2600 = vweird.f32 %v2259
        %vm2601 = vweird.f32 %v2595
        %vm2602 = vmor %vm2600, %vm2601
        %v2603 = vsel %vm2602, %v2595, %v2599
        %v2604 = vand.u32 2147483647, %v2259
        %vm2605 = vcmp.eq.f32.partialorder %v2604, 8.507059e+37
        %v2606 = vand.u32 %v2259, 2147483648
        %v2607 = vor.u32 1.1754944e-38, %v2606
        %v2608 = vsel %vm2605, %v2607, %v2603
        %v2609 = vmul.f32 1.0, %v2608
        %v2610 = vrcp.pop %v2261
        %v2611 = vmul.f32 %v2261, %v2610
        %v2612 = vsub.f32 1.0, %v2611
        %v2613 = vmul.f32 %v2610, %v2612
        %v2614 = vadd.f32 %v2610, %v2613
        %vm2615 = vweird.f32 %v2261
        %vm2616 = vweird.f32 %v2610
        %vm2617 = vmor %vm2615, %vm2616
        %v2618 = vsel %vm2617, %v2610, %v2614
        %v2619 = vand.u32 2147483647, %v2261
        %vm2620 = vcmp.eq.f32.partialorder %v2619, 8.507059e+37
        %v2621 = vand.u32 %v2261, 2147483648
        %v2622 = vor.u32 1.1754944e-38, %v2621
        %v2623 = vsel %vm2620, %v2622, %v2618
        %v2624 = vmul.f32 1.0, %v2623
        %v2625 = vrcp.pop %v2263
        %v2626 = vmul.f32 %v2263, %v2625
        %v2627 = vsub.f32 1.0, %v2626
        %v2628 = vmul.f32 %v2625, %v2627
        %v2629 = vadd.f32 %v2625, %v2628
        %vm2630 = vweird.f32 %v2263
        %vm2631 = vweird.f32 %v2625
        %vm2632 = vmor %vm2630, %vm2631
        %v2633 = vsel %vm2632, %v2625, %v2629
        %v2634 = vand.u32 2147483647, %v2263
        %vm2635 = vcmp.eq.f32.partialorder %v2634, 8.507059e+37
        %v2636 = vand.u32 %v2263, 2147483648
        %v2637 = vor.u32 1.1754944e-38, %v2636
        %v2638 = vsel %vm2635, %v2637, %v2633
        %v2639 = vmul.f32 1.0, %v2638
        %v2640 = vrcp.pop %v2265
        %v2641 = vmul.f32 %v2265, %v2640
        %v2642 = vsub.f32 1.0, %v2641
        %v2643 = vmul.f32 %v2640, %v2642
        %v2644 = vadd.f32 %v2640, %v2643
        %vm2645 = vweird.f32 %v2265
        %vm2646 = vweird.f32 %v2640
        %vm2647 = vmor %vm2645, %vm2646
        %v2648 = vsel %vm2647, %v2640, %v2644
        %v2649 = vand.u32 2147483647, %v2265
        %vm2650 = vcmp.eq.f32.partialorder %v2649, 8.507059e+37
        %v2651 = vand.u32 %v2265, 2147483648
        %v2652 = vor.u32 1.1754944e-38, %v2651
        %v2653 = vsel %vm2650, %v2652, %v2648
        %v2654 = vmul.f32 1.0, %v2653
        %v2655 = vrcp.pop %v2267
        %v2656 = vmul.f32 %v2267, %v2655
        %v2657 = vsub.f32 1.0, %v2656
        %v2658 = vmul.f32 %v2655, %v2657
        %v2659 = vadd.f32 %v2655, %v2658
        %vm2660 = vweird.f32 %v2267
        %vm2661 = vweird.f32 %v2655
        %vm2662 = vmor %vm2660, %vm2661
        %v2663 = vsel %vm2662, %v2655, %v2659
        %v2664 = vand.u32 2147483647, %v2267
        %vm2665 = vcmp.eq.f32.partialorder %v2664, 8.507059e+37
        %v2666 = vand.u32 %v2267, 2147483648
        %v2667 = vor.u32 1.1754944e-38, %v2666
        %v2668 = vsel %vm2665, %v2667, %v2663
        %v2669 = vmul.f32 1.0, %v2668
        %v2670 = vrcp.pop %v2269
        %v2671 = vmul.f32 %v2269, %v2670
        %v2672 = vsub.f32 1.0, %v2671
        %v2673 = vmul.f32 %v2670, %v2672
        %v2674 = vadd.f32 %v2670, %v2673
        %vm2675 = vweird.f32 %v2269
        %vm2676 = vweird.f32 %v2670
        %vm2677 = vmor %vm2675, %vm2676
        %v2678 = vsel %vm2677, %v2670, %v2674
        %v2679 = vand.u32 2147483647, %v2269
        %vm2680 = vcmp.eq.f32.partialorder %v2679, 8.507059e+37
        %v2681 = vand.u32 %v2269, 2147483648
        %v2682 = vor.u32 1.1754944e-38, %v2681
        %v2683 = vsel %vm2680, %v2682, %v2678
        %v2684 = vmul.f32 1.0, %v2683
        %v2685 = vrcp.pop %v2271
        %v2686 = vmul.f32 %v2271, %v2685
        %v2687 = vsub.f32 1.0, %v2686
        %v2688 = vmul.f32 %v2685, %v2687
        %v2689 = vadd.f32 %v2685, %v2688
        %vm2690 = vweird.f32 %v2271
        %vm2691 = vweird.f32 %v2685
        %vm2692 = vmor %vm2690, %vm2691
        %v2693 = vsel %vm2692, %v2685, %v2689
        %v2694 = vand.u32 2147483647, %v2271
        %vm2695 = vcmp.eq.f32.partialorder %v2694, 8.507059e+37
        %v2696 = vand.u32 %v2271, 2147483648
        %v2697 = vor.u32 1.1754944e-38, %v2696
        %v2698 = vsel %vm2695, %v2697, %v2693
        %v2699 = vmul.f32 1.0, %v2698
        %v2700 = vrcp.pop %v2273
        %v2701 = vmul.f32 %v2273, %v2700
        %v2702 = vsub.f32 1.0, %v2701
        %v2703 = vmul.f32 %v2700, %v2702
        %v2704 = vadd.f32 %v2700, %v2703
        %vm2705 = vweird.f32 %v2273
        %vm2706 = vweird.f32 %v2700
        %vm2707 = vmor %vm2705, %vm2706
        %v2708 = vsel %vm2707, %v2700, %v2704
        %v2709 = vand.u32 2147483647, %v2273
        %vm2710 = vcmp.eq.f32.partialorder %v2709, 8.507059e+37
        %v2711 = vand.u32 %v2273, 2147483648
        %v2712 = vor.u32 1.1754944e-38, %v2711
        %v2713 = vsel %vm2710, %v2712, %v2708
        %v2714 = vmul.f32 1.0, %v2713
        %v2715 = vrcp.pop %v2275
        %v2716 = vmul.f32 %v2275, %v2715
        %v2717 = vsub.f32 1.0, %v2716
        %v2718 = vmul.f32 %v2715, %v2717
        %v2719 = vadd.f32 %v2715, %v2718
        %vm2720 = vweird.f32 %v2275
        %vm2721 = vweird.f32 %v2715
        %vm2722 = vmor %vm2720, %vm2721
        %v2723 = vsel %vm2722, %v2715, %v2719
        %v2724 = vand.u32 2147483647, %v2275
        %vm2725 = vcmp.eq.f32.partialorder %v2724, 8.507059e+37
        %v2726 = vand.u32 %v2275, 2147483648
        %v2727 = vor.u32 1.1754944e-38, %v2726
        %v2728 = vsel %vm2725, %v2727, %v2723
        %v2729 = vmul.f32 1.0, %v2728
        %v2730 = vrcp.pop %v2277
        %v2731 = vmul.f32 %v2277, %v2730
        %v2732 = vsub.f32 1.0, %v2731
        %v2733 = vmul.f32 %v2730, %v2732
        %v2734 = vadd.f32 %v2730, %v2733
        %vm2735 = vweird.f32 %v2277
        %vm2736 = vweird.f32 %v2730
        %vm2737 = vmor %vm2735, %vm2736
        %v2738 = vsel %vm2737, %v2730, %v2734
        %v2739 = vand.u32 2147483647, %v2277
        %vm2740 = vcmp.eq.f32.partialorder %v2739, 8.507059e+37
        %v2741 = vand.u32 %v2277, 2147483648
        %v2742 = vor.u32 1.1754944e-38, %v2741
        %v2743 = vsel %vm2740, %v2742, %v2738
        %v2744 = vmul.f32 1.0, %v2743
        %v2745 = vrcp.pop %v2279
        %v2746 = vmul.f32 %v2279, %v2745
        %v2747 = vsub.f32 1.0, %v2746
        %v2748 = vmul.f32 %v2745, %v2747
        %v2749 = vadd.f32 %v2745, %v2748
        %vm2750 = vweird.f32 %v2279
        %vm2751 = vweird.f32 %v2745
        %vm2752 = vmor %vm2750, %vm2751
        %v2753 = vsel %vm2752, %v2745, %v2749
        %v2754 = vand.u32 2147483647, %v2279
        %vm2755 = vcmp.eq.f32.partialorder %v2754, 8.507059e+37
        %v2756 = vand.u32 %v2279, 2147483648
        %v2757 = vor.u32 1.1754944e-38, %v2756
        %v2758 = vsel %vm2755, %v2757, %v2753
        %v2759 = vmul.f32 1.0, %v2758
        %v2760 = vsub.f32 %v2217, %v2294
        %v2761 = vsub.f32 %v2219, %v2309
        %v2762 = vsub.f32 %v2221, %v2324
        %v2763 = vsub.f32 %v2223, %v2339
        %v2764 = vsub.f32 %v2225, %v2354
        %v2765 = vsub.f32 %v2227, %v2369
        %v2766 = vsub.f32 %v2229, %v2384
        %v2767 = vsub.f32 %v2231, %v2399
        %v2768 = vsub.f32 %v2233, %v2414
        %v2769 = vsub.f32 %v2235, %v2429
        %v2770 = vsub.f32 %v2237, %v2444
        %v2771 = vsub.f32 %v2239, %v2459
        %v2772 = vsub.f32 %v2241, %v2474
        %v2773 = vsub.f32 %v2243, %v2489
        %v2774 = vsub.f32 %v2245, %v2504
        %v2775 = vsub.f32 %v2247, %v2519
        %v2776 = vsub.f32 %v2249, %v2534
        %v2777 = vsub.f32 %v2251, %v2549
        %v2778 = vsub.f32 %v2253, %v2564
        %v2779 = vsub.f32 %v2255, %v2579
        %v2780 = vsub.f32 %v2257, %v2594
        %v2781 = vsub.f32 %v2259, %v2609
        %v2782 = vsub.f32 %v2261, %v2624
        %v2783 = vsub.f32 %v2263, %v2639
        %v2784 = vsub.f32 %v2265, %v2654
        %v2785 = vsub.f32 %v2267, %v2669
        %v2786 = vsub.f32 %v2269, %v2684
        %v2787 = vsub.f32 %v2271, %v2699
        %v2788 = vsub.f32 %v2273, %v2714
        %v2789 = vsub.f32 %v2275, %v2729
        %v2790 = vsub.f32 %v2277, %v2744
        %v2791 = vsub.f32 %v2279, %v2759
        %v2792 = vmul.f32 %v2760, 0.5
        %v2793 = vmul.f32 %v2761, 0.5
        %v2794 = vmul.f32 %v2762, 0.5
        %v2795 = vmul.f32 %v2763, 0.5
        %v2796 = vmul.f32 %v2764, 0.5
        %v2797 = vmul.f32 %v2765, 0.5
        %v2798 = vmul.f32 %v2766, 0.5
        %v2799 = vmul.f32 %v2767, 0.5
        %v2800 = vmul.f32 %v2768, 0.5
        %v2801 = vmul.f32 %v2769, 0.5
        %v2802 = vmul.f32 %v2770, 0.5
        %v2803 = vmul.f32 %v2771, 0.5
        %v2804 = vmul.f32 %v2772, 0.5
        %v2805 = vmul.f32 %v2773, 0.5
        %v2806 = vmul.f32 %v2774, 0.5
        %v2807 = vmul.f32 %v2775, 0.5
        %v2808 = vmul.f32 %v2776, 0.5
        %v2809 = vmul.f32 %v2777, 0.5
        %v2810 = vmul.f32 %v2778, 0.5
        %v2811 = vmul.f32 %v2779, 0.5
        %v2812 = vmul.f32 %v2780, 0.5
        %v2813 = vmul.f32 %v2781, 0.5
        %v2814 = vmul.f32 %v2782, 0.5
        %v2815 = vmul.f32 %v2783, 0.5
        %v2816 = vmul.f32 %v2784, 0.5
        %v2817 = vmul.f32 %v2785, 0.5
        %v2818 = vmul.f32 %v2786, 0.5
        %v2819 = vmul.f32 %v2787, 0.5
        %v2820 = vmul.f32 %v2788, 0.5
        %v2821 = vmul.f32 %v2789, 0.5
        %v2822 = vmul.f32 %v2790, 0.5
        %v2823 = vmul.f32 %v2791, 0.5
        %v2824 = vmul.f32 %v2792, %v1873
        %v2825 = vmul.f32 %v2793, %v1883
        %v2826 = vmul.f32 %v2794, %v1893
        %v2827 = vmul.f32 %v2795, %v1903
        %v2828 = vmul.f32 %v2796, %v1913
        %v2829 = vmul.f32 %v2797, %v1923
        %v2830 = vmul.f32 %v2798, %v1933
        %v2831 = vmul.f32 %v2799, %v1943
        %v2832 = vmul.f32 %v2800, %v1953
        %v2833 = vmul.f32 %v2801, %v1963
        %v2834 = vmul.f32 %v2802, %v1973
        %v2835 = vmul.f32 %v2803, %v1983
        %v2836 = vmul.f32 %v2804, %v1993
        %v2837 = vmul.f32 %v2805, %v2003
        %v2838 = vmul.f32 %v2806, %v2013
        %v2839 = vmul.f32 %v2807, %v2023
        %v2840 = vmul.f32 %v2808, %v2033
        %v2841 = vmul.f32 %v2809, %v2043
        %v2842 = vmul.f32 %v2810, %v2053
        %v2843 = vmul.f32 %v2811, %v2063
        %v2844 = vmul.f32 %v2812, %v2073
        %v2845 = vmul.f32 %v2813, %v2083
        %v2846 = vmul.f32 %v2814, %v2093
        %v2847 = vmul.f32 %v2815, %v2103
        %v2848 = vmul.f32 %v2816, %v2113
        %v2849 = vmul.f32 %v2817, %v2123
        %v2850 = vmul.f32 %v2818, %v2133
        %v2851 = vmul.f32 %v2819, %v2143
        %v2852 = vmul.f32 %v2820, %v2153
        %v2853 = vmul.f32 %v2821, %v2163
        %v2854 = vmul.f32 %v2822, %v2173
        %v2855 = vmul.f32 %v2823, %v2183
        %v2856 = vmul.f32 %v2824, %v1641
        %v2857 = vmul.f32 %v2825, %v1644
        %v2858 = vmul.f32 %v2826, %v1647
        %v2859 = vmul.f32 %v2827, %v1650
        %v2860 = vmul.f32 %v2828, %v1653
        %v2861 = vmul.f32 %v2829, %v1656
        %v2862 = vmul.f32 %v2830, %v1659
        %v2863 = vmul.f32 %v2831, %v1662
        %v2864 = vmul.f32 %v2832, %v1665
        %v2865 = vmul.f32 %v2833, %v1668
        %v2866 = vmul.f32 %v2834, %v1671
        %v2867 = vmul.f32 %v2835, %v1674
        %v2868 = vmul.f32 %v2836, %v1677
        %v2869 = vmul.f32 %v2837, %v1680
        %v2870 = vmul.f32 %v2838, %v1683
        %v2871 = vmul.f32 %v2839, %v1686
        %v2872 = vmul.f32 %v2840, %v1689
        %v2873 = vmul.f32 %v2841, %v1692
        %v2874 = vmul.f32 %v2842, %v1695
        %v2875 = vmul.f32 %v2843, %v1698
        %v2876 = vmul.f32 %v2844, %v1701
        %v2877 = vmul.f32 %v2845, %v1704
        %v2878 = vmul.f32 %v2846, %v1707
        %v2879 = vmul.f32 %v2847, %v1710
        %v2880 = vmul.f32 %v2848, %v1713
        %v2881 = vmul.f32 %v2849, %v1716
        %v2882 = vmul.f32 %v2850, %v1719
        %v2883 = vmul.f32 %v2851, %v1722
        %v2884 = vmul.f32 %v2852, %v1725
        %v2885 = vmul.f32 %v2853, %v1728
        %v2886 = vmul.f32 %v2854, %v1731
        %v2887 = vmul.f32 %v2855, %v1734
        %v2888 = vmul.f32 %v2824, %v2824
        %v2889 = vmul.f32 %v2825, %v2825
        %v2890 = vmul.f32 %v2826, %v2826
        %v2891 = vmul.f32 %v2827, %v2827
        %v2892 = vmul.f32 %v2828, %v2828
        %v2893 = vmul.f32 %v2829, %v2829
        %v2894 = vmul.f32 %v2830, %v2830
        %v2895 = vmul.f32 %v2831, %v2831
        %v2896 = vmul.f32 %v2832, %v2832
        %v2897 = vmul.f32 %v2833, %v2833
        %v2898 = vmul.f32 %v2834, %v2834
        %v2899 = vmul.f32 %v2835, %v2835
        %v2900 = vmul.f32 %v2836, %v2836
        %v2901 = vmul.f32 %v2837, %v2837
        %v2902 = vmul.f32 %v2838, %v2838
        %v2903 = vmul.f32 %v2839, %v2839
        %v2904 = vmul.f32 %v2840, %v2840
        %v2905 = vmul.f32 %v2841, %v2841
        %v2906 = vmul.f32 %v2842, %v2842
        %v2907 = vmul.f32 %v2843, %v2843
        %v2908 = vmul.f32 %v2844, %v2844
        %v2909 = vmul.f32 %v2845, %v2845
        %v2910 = vmul.f32 %v2846, %v2846
        %v2911 = vmul.f32 %v2847, %v2847
        %v2912 = vmul.f32 %v2848, %v2848
        %v2913 = vmul.f32 %v2849, %v2849
        %v2914 = vmul.f32 %v2850, %v2850
        %v2915 = vmul.f32 %v2851, %v2851
        %v2916 = vmul.f32 %v2852, %v2852
        %v2917 = vmul.f32 %v2853, %v2853
        %v2918 = vmul.f32 %v2854, %v2854
        %v2919 = vmul.f32 %v2855, %v2855
        %v2920 = vmul.f32 %v2888, %v1769
        %v2921 = vmul.f32 %v2889, %v1771
        %v2922 = vmul.f32 %v2890, %v1773
        %v2923 = vmul.f32 %v2891, %v1775
        %v2924 = vmul.f32 %v2892, %v1777
        %v2925 = vmul.f32 %v2893, %v1779
        %v2926 = vmul.f32 %v2894, %v1781
        %v2927 = vmul.f32 %v2895, %v1783
        %v2928 = vmul.f32 %v2896, %v1785
        %v2929 = vmul.f32 %v2897, %v1787
        %v2930 = vmul.f32 %v2898, %v1789
        %v2931 = vmul.f32 %v2899, %v1791
        %v2932 = vmul.f32 %v2900, %v1793
        %v2933 = vmul.f32 %v2901, %v1795
        %v2934 = vmul.f32 %v2902, %v1797
        %v2935 = vmul.f32 %v2903, %v1799
        %v2936 = vmul.f32 %v2904, %v1801
        %v2937 = vmul.f32 %v2905, %v1803
        %v2938 = vmul.f32 %v2906, %v1805
        %v2939 = vmul.f32 %v2907, %v1807
        %v2940 = vmul.f32 %v2908, %v1809
        %v2941 = vmul.f32 %v2909, %v1811
        %v2942 = vmul.f32 %v2910, %v1813
        %v2943 = vmul.f32 %v2911, %v1815
        %v2944 = vmul.f32 %v2912, %v1817
        %v2945 = vmul.f32 %v2913, %v1819
        %v2946 = vmul.f32 %v2914, %v1821
        %v2947 = vmul.f32 %v2915, %v1823
        %v2948 = vmul.f32 %v2916, %v1825
        %v2949 = vmul.f32 %v2917, %v1827
        %v2950 = vmul.f32 %v2918, %v1829
        %v2951 = vmul.f32 %v2919, %v1831
        %v2952 = vmax.f32 %v2920, 0.004
        %v2953 = vmax.f32 %v2921, 0.004
        %v2954 = vmax.f32 %v2922, 0.004
        %v2955 = vmax.f32 %v2923, 0.004
        %v2956 = vmax.f32 %v2924, 0.004
        %v2957 = vmax.f32 %v2925, 0.004
        %v2958 = vmax.f32 %v2926, 0.004
        %v2959 = vmax.f32 %v2927, 0.004
        %v2960 = vmax.f32 %v2928, 0.004
        %v2961 = vmax.f32 %v2929, 0.004
        %v2962 = vmax.f32 %v2930, 0.004
        %v2963 = vmax.f32 %v2931, 0.004
        %v2964 = vmax.f32 %v2932, 0.004
        %v2965 = vmax.f32 %v2933, 0.004
        %v2966 = vmax.f32 %v2934, 0.004
        %v2967 = vmax.f32 %v2935, 0.004
        %v2968 = vmax.f32 %v2936, 0.004
        %v2969 = vmax.f32 %v2937, 0.004
        %v2970 = vmax.f32 %v2938, 0.004
        %v2971 = vmax.f32 %v2939, 0.004
        %v2972 = vmax.f32 %v2940, 0.004
        %v2973 = vmax.f32 %v2941, 0.004
        %v2974 = vmax.f32 %v2942, 0.004
        %v2975 = vmax.f32 %v2943, 0.004
        %v2976 = vmax.f32 %v2944, 0.004
        %v2977 = vmax.f32 %v2945, 0.004
        %v2978 = vmax.f32 %v2946, 0.004
        %v2979 = vmax.f32 %v2947, 0.004
        %v2980 = vmax.f32 %v2948, 0.004
        %v2981 = vmax.f32 %v2949, 0.004
        %v2982 = vmax.f32 %v2950, 0.004
        %v2983 = vmax.f32 %v2951, 0.004
        %v2984 = vrsqrt.pop %v2952
        %v2985 = vmul.f32 %v2984, %v2952
        %v2986 = vmul.f32 %v2985, %v2984
        %v2987 = vmul.f32 0.5, %v2986
        %v2988 = vsub.f32 1.5, %v2987
        %v2989 = vmul.f32 %v2984, %v2988
        %v2990 = vmul.f32 %v2952, %v2989
        %vm2991 = vcmp.eq.f32.partialorder %v2952, inf
        %v2992 = vsel %vm2991, %v2952, %v2990
        %vm2993 = vcmp.eq.f32.partialorder %v2952, 0.0
        %v2994 = vand.u32 %v2952, 2147483648
        %v2995 = vsel %vm2993, %v2994, %v2992
        %v2996 = vrsqrt.pop %v2953
        %v2997 = vmul.f32 %v2996, %v2953
        %v2998 = vmul.f32 %v2997, %v2996
        %v2999 = vmul.f32 0.5, %v2998
        %v3000 = vsub.f32 1.5, %v2999
        %v3001 = vmul.f32 %v2996, %v3000
        %v3002 = vmul.f32 %v2953, %v3001
        %vm3003 = vcmp.eq.f32.partialorder %v2953, inf
        %v3004 = vsel %vm3003, %v2953, %v3002
        %vm3005 = vcmp.eq.f32.partialorder %v2953, 0.0
        %v3006 = vand.u32 %v2953, 2147483648
        %v3007 = vsel %vm3005, %v3006, %v3004
        %v3008 = vrsqrt.pop %v2954
        %v3009 = vmul.f32 %v3008, %v2954
        %v3010 = vmul.f32 %v3009, %v3008
        %v3011 = vmul.f32 0.5, %v3010
        %v3012 = vsub.f32 1.5, %v3011
        %v3013 = vmul.f32 %v3008, %v3012
        %v3014 = vmul.f32 %v2954, %v3013
        %vm3015 = vcmp.eq.f32.partialorder %v2954, inf
        %v3016 = vsel %vm3015, %v2954, %v3014
        %vm3017 = vcmp.eq.f32.partialorder %v2954, 0.0
        %v3018 = vand.u32 %v2954, 2147483648
        %v3019 = vsel %vm3017, %v3018, %v3016
        %v3020 = vrsqrt.pop %v2955
        %v3021 = vmul.f32 %v3020, %v2955
        %v3022 = vmul.f32 %v3021, %v3020
        %v3023 = vmul.f32 0.5, %v3022
        %v3024 = vsub.f32 1.5, %v3023
        %v3025 = vmul.f32 %v3020, %v3024
        %v3026 = vmul.f32 %v2955, %v3025
        %vm3027 = vcmp.eq.f32.partialorder %v2955, inf
        %v3028 = vsel %vm3027, %v2955, %v3026
        %vm3029 = vcmp.eq.f32.partialorder %v2955, 0.0
        %v3030 = vand.u32 %v2955, 2147483648
        %v3031 = vsel %vm3029, %v3030, %v3028
        %v3032 = vrsqrt.pop %v2956
        %v3033 = vmul.f32 %v3032, %v2956
        %v3034 = vmul.f32 %v3033, %v3032
        %v3035 = vmul.f32 0.5, %v3034
        %v3036 = vsub.f32 1.5, %v3035
        %v3037 = vmul.f32 %v3032, %v3036
        %v3038 = vmul.f32 %v2956, %v3037
        %vm3039 = vcmp.eq.f32.partialorder %v2956, inf
        %v3040 = vsel %vm3039, %v2956, %v3038
        %vm3041 = vcmp.eq.f32.partialorder %v2956, 0.0
        %v3042 = vand.u32 %v2956, 2147483648
        %v3043 = vsel %vm3041, %v3042, %v3040
        %v3044 = vrsqrt.pop %v2957
        %v3045 = vmul.f32 %v3044, %v2957
        %v3046 = vmul.f32 %v3045, %v3044
        %v3047 = vmul.f32 0.5, %v3046
        %v3048 = vsub.f32 1.5, %v3047
        %v3049 = vmul.f32 %v3044, %v3048
        %v3050 = vmul.f32 %v2957, %v3049
        %vm3051 = vcmp.eq.f32.partialorder %v2957, inf
        %v3052 = vsel %vm3051, %v2957, %v3050
        %vm3053 = vcmp.eq.f32.partialorder %v2957, 0.0
        %v3054 = vand.u32 %v2957, 2147483648
        %v3055 = vsel %vm3053, %v3054, %v3052
        %v3056 = vrsqrt.pop %v2958
        %v3057 = vmul.f32 %v3056, %v2958
        %v3058 = vmul.f32 %v3057, %v3056
        %v3059 = vmul.f32 0.5, %v3058
        %v3060 = vsub.f32 1.5, %v3059
        %v3061 = vmul.f32 %v3056, %v3060
        %v3062 = vmul.f32 %v2958, %v3061
        %vm3063 = vcmp.eq.f32.partialorder %v2958, inf
        %v3064 = vsel %vm3063, %v2958, %v3062
        %vm3065 = vcmp.eq.f32.partialorder %v2958, 0.0
        %v3066 = vand.u32 %v2958, 2147483648
        %v3067 = vsel %vm3065, %v3066, %v3064
        %v3068 = vrsqrt.pop %v2959
        %v3069 = vmul.f32 %v3068, %v2959
        %v3070 = vmul.f32 %v3069, %v3068
        %v3071 = vmul.f32 0.5, %v3070
        %v3072 = vsub.f32 1.5, %v3071
        %v3073 = vmul.f32 %v3068, %v3072
        %v3074 = vmul.f32 %v2959, %v3073
        %vm3075 = vcmp.eq.f32.partialorder %v2959, inf
        %v3076 = vsel %vm3075, %v2959, %v3074
        %vm3077 = vcmp.eq.f32.partialorder %v2959, 0.0
        %v3078 = vand.u32 %v2959, 2147483648
        %v3079 = vsel %vm3077, %v3078, %v3076
        %v3080 = vrsqrt.pop %v2960
        %v3081 = vmul.f32 %v3080, %v2960
        %v3082 = vmul.f32 %v3081, %v3080
        %v3083 = vmul.f32 0.5, %v3082
        %v3084 = vsub.f32 1.5, %v3083
        %v3085 = vmul.f32 %v3080, %v3084
        %v3086 = vmul.f32 %v2960, %v3085
        %vm3087 = vcmp.eq.f32.partialorder %v2960, inf
        %v3088 = vsel %vm3087, %v2960, %v3086
        %vm3089 = vcmp.eq.f32.partialorder %v2960, 0.0
        %v3090 = vand.u32 %v2960, 2147483648
        %v3091 = vsel %vm3089, %v3090, %v3088
        %v3092 = vrsqrt.pop %v2961
        %v3093 = vmul.f32 %v3092, %v2961
        %v3094 = vmul.f32 %v3093, %v3092
        %v3095 = vmul.f32 0.5, %v3094
        %v3096 = vsub.f32 1.5, %v3095
        %v3097 = vmul.f32 %v3092, %v3096
        %v3098 = vmul.f32 %v2961, %v3097
        %vm3099 = vcmp.eq.f32.partialorder %v2961, inf
        %v3100 = vsel %vm3099, %v2961, %v3098
        %vm3101 = vcmp.eq.f32.partialorder %v2961, 0.0
        %v3102 = vand.u32 %v2961, 2147483648
        %v3103 = vsel %vm3101, %v3102, %v3100
        %v3104 = vrsqrt.pop %v2962
        %v3105 = vmul.f32 %v3104, %v2962
        %v3106 = vmul.f32 %v3105, %v3104
        %v3107 = vmul.f32 0.5, %v3106
        %v3108 = vsub.f32 1.5, %v3107
        %v3109 = vmul.f32 %v3104, %v3108
        %v3110 = vmul.f32 %v2962, %v3109
        %vm3111 = vcmp.eq.f32.partialorder %v2962, inf
        %v3112 = vsel %vm3111, %v2962, %v3110
        %vm3113 = vcmp.eq.f32.partialorder %v2962, 0.0
        %v3114 = vand.u32 %v2962, 2147483648
        %v3115 = vsel %vm3113, %v3114, %v3112
        %v3116 = vrsqrt.pop %v2963
        %v3117 = vmul.f32 %v3116, %v2963
        %v3118 = vmul.f32 %v3117, %v3116
        %v3119 = vmul.f32 0.5, %v3118
        %v3120 = vsub.f32 1.5, %v3119
        %v3121 = vmul.f32 %v3116, %v3120
        %v3122 = vmul.f32 %v2963, %v3121
        %vm3123 = vcmp.eq.f32.partialorder %v2963, inf
        %v3124 = vsel %vm3123, %v2963, %v3122
        %vm3125 = vcmp.eq.f32.partialorder %v2963, 0.0
        %v3126 = vand.u32 %v2963, 2147483648
        %v3127 = vsel %vm3125, %v3126, %v3124
        %v3128 = vrsqrt.pop %v2964
        %v3129 = vmul.f32 %v3128, %v2964
        %v3130 = vmul.f32 %v3129, %v3128
        %v3131 = vmul.f32 0.5, %v3130
        %v3132 = vsub.f32 1.5, %v3131
        %v3133 = vmul.f32 %v3128, %v3132
        %v3134 = vmul.f32 %v2964, %v3133
        %vm3135 = vcmp.eq.f32.partialorder %v2964, inf
        %v3136 = vsel %vm3135, %v2964, %v3134
        %vm3137 = vcmp.eq.f32.partialorder %v2964, 0.0
        %v3138 = vand.u32 %v2964, 2147483648
        %v3139 = vsel %vm3137, %v3138, %v3136
        %v3140 = vrsqrt.pop %v2965
        %v3141 = vmul.f32 %v3140, %v2965
        %v3142 = vmul.f32 %v3141, %v3140
        %v3143 = vmul.f32 0.5, %v3142
        %v3144 = vsub.f32 1.5, %v3143
        %v3145 = vmul.f32 %v3140, %v3144
        %v3146 = vmul.f32 %v2965, %v3145
        %vm3147 = vcmp.eq.f32.partialorder %v2965, inf
        %v3148 = vsel %vm3147, %v2965, %v3146
        %vm3149 = vcmp.eq.f32.partialorder %v2965, 0.0
        %v3150 = vand.u32 %v2965, 2147483648
        %v3151 = vsel %vm3149, %v3150, %v3148
        %v3152 = vrsqrt.pop %v2966
        %v3153 = vmul.f32 %v3152, %v2966
        %v3154 = vmul.f32 %v3153, %v3152
        %v3155 = vmul.f32 0.5, %v3154
        %v3156 = vsub.f32 1.5, %v3155
        %v3157 = vmul.f32 %v3152, %v3156
        %v3158 = vmul.f32 %v2966, %v3157
        %vm3159 = vcmp.eq.f32.partialorder %v2966, inf
        %v3160 = vsel %vm3159, %v2966, %v3158
        %vm3161 = vcmp.eq.f32.partialorder %v2966, 0.0
        %v3162 = vand.u32 %v2966, 2147483648
        %v3163 = vsel %vm3161, %v3162, %v3160
        %v3164 = vrsqrt.pop %v2967
        %v3165 = vmul.f32 %v3164, %v2967
        %v3166 = vmul.f32 %v3165, %v3164
        %v3167 = vmul.f32 0.5, %v3166
        %v3168 = vsub.f32 1.5, %v3167
        %v3169 = vmul.f32 %v3164, %v3168
        %v3170 = vmul.f32 %v2967, %v3169
        %vm3171 = vcmp.eq.f32.partialorder %v2967, inf
        %v3172 = vsel %vm3171, %v2967, %v3170
        %vm3173 = vcmp.eq.f32.partialorder %v2967, 0.0
        %v3174 = vand.u32 %v2967, 2147483648
        %v3175 = vsel %vm3173, %v3174, %v3172
        %v3176 = vrsqrt.pop %v2968
        %v3177 = vmul.f32 %v3176, %v2968
        %v3178 = vmul.f32 %v3177, %v3176
        %v3179 = vmul.f32 0.5, %v3178
        %v3180 = vsub.f32 1.5, %v3179
        %v3181 = vmul.f32 %v3176, %v3180
        %v3182 = vmul.f32 %v2968, %v3181
        %vm3183 = vcmp.eq.f32.partialorder %v2968, inf
        %v3184 = vsel %vm3183, %v2968, %v3182
        %vm3185 = vcmp.eq.f32.partialorder %v2968, 0.0
        %v3186 = vand.u32 %v2968, 2147483648
        %v3187 = vsel %vm3185, %v3186, %v3184
        %v3188 = vrsqrt.pop %v2969
        %v3189 = vmul.f32 %v3188, %v2969
        %v3190 = vmul.f32 %v3189, %v3188
        %v3191 = vmul.f32 0.5, %v3190
        %v3192 = vsub.f32 1.5, %v3191
        %v3193 = vmul.f32 %v3188, %v3192
        %v3194 = vmul.f32 %v2969, %v3193
        %vm3195 = vcmp.eq.f32.partialorder %v2969, inf
        %v3196 = vsel %vm3195, %v2969, %v3194
        %vm3197 = vcmp.eq.f32.partialorder %v2969, 0.0
        %v3198 = vand.u32 %v2969, 2147483648
        %v3199 = vsel %vm3197, %v3198, %v3196
        %v3200 = vrsqrt.pop %v2970
        %v3201 = vmul.f32 %v3200, %v2970
        %v3202 = vmul.f32 %v3201, %v3200
        %v3203 = vmul.f32 0.5, %v3202
        %v3204 = vsub.f32 1.5, %v3203
        %v3205 = vmul.f32 %v3200, %v3204
        %v3206 = vmul.f32 %v2970, %v3205
        %vm3207 = vcmp.eq.f32.partialorder %v2970, inf
        %v3208 = vsel %vm3207, %v2970, %v3206
        %vm3209 = vcmp.eq.f32.partialorder %v2970, 0.0
        %v3210 = vand.u32 %v2970, 2147483648
        %v3211 = vsel %vm3209, %v3210, %v3208
        %v3212 = vrsqrt.pop %v2971
        %v3213 = vmul.f32 %v3212, %v2971
        %v3214 = vmul.f32 %v3213, %v3212
        %v3215 = vmul.f32 0.5, %v3214
        %v3216 = vsub.f32 1.5, %v3215
        %v3217 = vmul.f32 %v3212, %v3216
        %v3218 = vmul.f32 %v2971, %v3217
        %vm3219 = vcmp.eq.f32.partialorder %v2971, inf
        %v3220 = vsel %vm3219, %v2971, %v3218
        %vm3221 = vcmp.eq.f32.partialorder %v2971, 0.0
        %v3222 = vand.u32 %v2971, 2147483648
        %v3223 = vsel %vm3221, %v3222, %v3220
        %v3224 = vrsqrt.pop %v2972
        %v3225 = vmul.f32 %v3224, %v2972
        %v3226 = vmul.f32 %v3225, %v3224
        %v3227 = vmul.f32 0.5, %v3226
        %v3228 = vsub.f32 1.5, %v3227
        %v3229 = vmul.f32 %v3224, %v3228
        %v3230 = vmul.f32 %v2972, %v3229
        %vm3231 = vcmp.eq.f32.partialorder %v2972, inf
        %v3232 = vsel %vm3231, %v2972, %v3230
        %vm3233 = vcmp.eq.f32.partialorder %v2972, 0.0
        %v3234 = vand.u32 %v2972, 2147483648
        %v3235 = vsel %vm3233, %v3234, %v3232
        %v3236 = vrsqrt.pop %v2973
        %v3237 = vmul.f32 %v3236, %v2973
        %v3238 = vmul.f32 %v3237, %v3236
        %v3239 = vmul.f32 0.5, %v3238
        %v3240 = vsub.f32 1.5, %v3239
        %v3241 = vmul.f32 %v3236, %v3240
        %v3242 = vmul.f32 %v2973, %v3241
        %vm3243 = vcmp.eq.f32.partialorder %v2973, inf
        %v3244 = vsel %vm3243, %v2973, %v3242
        %vm3245 = vcmp.eq.f32.partialorder %v2973, 0.0
        %v3246 = vand.u32 %v2973, 2147483648
        %v3247 = vsel %vm3245, %v3246, %v3244
        %v3248 = vrsqrt.pop %v2974
        %v3249 = vmul.f32 %v3248, %v2974
        %v3250 = vmul.f32 %v3249, %v3248
        %v3251 = vmul.f32 0.5, %v3250
        %v3252 = vsub.f32 1.5, %v3251
        %v3253 = vmul.f32 %v3248, %v3252
        %v3254 = vmul.f32 %v2974, %v3253
        %vm3255 = vcmp.eq.f32.partialorder %v2974, inf
        %v3256 = vsel %vm3255, %v2974, %v3254
        %vm3257 = vcmp.eq.f32.partialorder %v2974, 0.0
        %v3258 = vand.u32 %v2974, 2147483648
        %v3259 = vsel %vm3257, %v3258, %v3256
        %v3260 = vrsqrt.pop %v2975
        %v3261 = vmul.f32 %v3260, %v2975
        %v3262 = vmul.f32 %v3261, %v3260
        %v3263 = vmul.f32 0.5, %v3262
        %v3264 = vsub.f32 1.5, %v3263
        %v3265 = vmul.f32 %v3260, %v3264
        %v3266 = vmul.f32 %v2975, %v3265
        %vm3267 = vcmp.eq.f32.partialorder %v2975, inf
        %v3268 = vsel %vm3267, %v2975, %v3266
        %vm3269 = vcmp.eq.f32.partialorder %v2975, 0.0
        %v3270 = vand.u32 %v2975, 2147483648
        %v3271 = vsel %vm3269, %v3270, %v3268
        %v3272 = vrsqrt.pop %v2976
        %v3273 = vmul.f32 %v3272, %v2976
        %v3274 = vmul.f32 %v3273, %v3272
        %v3275 = vmul.f32 0.5, %v3274
        %v3276 = vsub.f32 1.5, %v3275
        %v3277 = vmul.f32 %v3272, %v3276
        %v3278 = vmul.f32 %v2976, %v3277
        %vm3279 = vcmp.eq.f32.partialorder %v2976, inf
        %v3280 = vsel %vm3279, %v2976, %v3278
        %vm3281 = vcmp.eq.f32.partialorder %v2976, 0.0
        %v3282 = vand.u32 %v2976, 2147483648
        %v3283 = vsel %vm3281, %v3282, %v3280
        %v3284 = vrsqrt.pop %v2977
        %v3285 = vmul.f32 %v3284, %v2977
        %v3286 = vmul.f32 %v3285, %v3284
        %v3287 = vmul.f32 0.5, %v3286
        %v3288 = vsub.f32 1.5, %v3287
        %v3289 = vmul.f32 %v3284, %v3288
        %v3290 = vmul.f32 %v2977, %v3289
        %vm3291 = vcmp.eq.f32.partialorder %v2977, inf
        %v3292 = vsel %vm3291, %v2977, %v3290
        %vm3293 = vcmp.eq.f32.partialorder %v2977, 0.0
        %v3294 = vand.u32 %v2977, 2147483648
        %v3295 = vsel %vm3293, %v3294, %v3292
        %v3296 = vrsqrt.pop %v2978
        %v3297 = vmul.f32 %v3296, %v2978
        %v3298 = vmul.f32 %v3297, %v3296
        %v3299 = vmul.f32 0.5, %v3298
        %v3300 = vsub.f32 1.5, %v3299
        %v3301 = vmul.f32 %v3296, %v3300
        %v3302 = vmul.f32 %v2978, %v3301
        %vm3303 = vcmp.eq.f32.partialorder %v2978, inf
        %v3304 = vsel %vm3303, %v2978, %v3302
        %vm3305 = vcmp.eq.f32.partialorder %v2978, 0.0
        %v3306 = vand.u32 %v2978, 2147483648
        %v3307 = vsel %vm3305, %v3306, %v3304
        %v3308 = vrsqrt.pop %v2979
        %v3309 = vmul.f32 %v3308, %v2979
        %v3310 = vmul.f32 %v3309, %v3308
        %v3311 = vmul.f32 0.5, %v3310
        %v3312 = vsub.f32 1.5, %v3311
        %v3313 = vmul.f32 %v3308, %v3312
        %v3314 = vmul.f32 %v2979, %v3313
        %vm3315 = vcmp.eq.f32.partialorder %v2979, inf
        %v3316 = vsel %vm3315, %v2979, %v3314
        %vm3317 = vcmp.eq.f32.partialorder %v2979, 0.0
        %v3318 = vand.u32 %v2979, 2147483648
        %v3319 = vsel %vm3317, %v3318, %v3316
        %v3320 = vrsqrt.pop %v2980
        %v3321 = vmul.f32 %v3320, %v2980
        %v3322 = vmul.f32 %v3321, %v3320
        %v3323 = vmul.f32 0.5, %v3322
        %v3324 = vsub.f32 1.5, %v3323
        %v3325 = vmul.f32 %v3320, %v3324
        %v3326 = vmul.f32 %v2980, %v3325
        %vm3327 = vcmp.eq.f32.partialorder %v2980, inf
        %v3328 = vsel %vm3327, %v2980, %v3326
        %vm3329 = vcmp.eq.f32.partialorder %v2980, 0.0
        %v3330 = vand.u32 %v2980, 2147483648
        %v3331 = vsel %vm3329, %v3330, %v3328
        %v3332 = vrsqrt.pop %v2981
        %v3333 = vmul.f32 %v3332, %v2981
        %v3334 = vmul.f32 %v3333, %v3332
        %v3335 = vmul.f32 0.5, %v3334
        %v3336 = vsub.f32 1.5, %v3335
        %v3337 = vmul.f32 %v3332, %v3336
        %v3338 = vmul.f32 %v2981, %v3337
        %vm3339 = vcmp.eq.f32.partialorder %v2981, inf
        %v3340 = vsel %vm3339, %v2981, %v3338
        %vm3341 = vcmp.eq.f32.partialorder %v2981, 0.0
        %v3342 = vand.u32 %v2981, 2147483648
        %v3343 = vsel %vm3341, %v3342, %v3340
        %v3344 = vrsqrt.pop %v2982
        %v3345 = vmul.f32 %v3344, %v2982
        %v3346 = vmul.f32 %v3345, %v3344
        %v3347 = vmul.f32 0.5, %v3346
        %v3348 = vsub.f32 1.5, %v3347
        %v3349 = vmul.f32 %v3344, %v3348
        %v3350 = vmul.f32 %v2982, %v3349
        %vm3351 = vcmp.eq.f32.partialorder %v2982, inf
        %v3352 = vsel %vm3351, %v2982, %v3350
        %vm3353 = vcmp.eq.f32.partialorder %v2982, 0.0
        %v3354 = vand.u32 %v2982, 2147483648
        %v3355 = vsel %vm3353, %v3354, %v3352
        %v3356 = vrsqrt.pop %v2983
        %v3357 = vmul.f32 %v3356, %v2983
        %v3358 = vmul.f32 %v3357, %v3356
        %v3359 = vmul.f32 0.5, %v3358
        %v3360 = vsub.f32 1.5, %v3359
        %v3361 = vmul.f32 %v3356, %v3360
        %v3362 = vmul.f32 %v2983, %v3361
        %vm3363 = vcmp.eq.f32.partialorder %v2983, inf
        %v3364 = vsel %vm3363, %v2983, %v3362
        %vm3365 = vcmp.eq.f32.partialorder %v2983, 0.0
        %v3366 = vand.u32 %v2983, 2147483648
        %v3367 = vsel %vm3365, %v3366, %v3364
        %v3368 = vld [vmem:[%s2] sm:$0x1]
        %v3369 = vmul.f32 %v3368, %v3368
        %vm3370 = vcmask 1040384
        %v3371 = vsel %vm3370, %v3369, 0.0
        %3372 = vadd.xlane.f32.xlu0 %v3371
        %v3373 = vpop.xlane.xlu0 %3372
        %v3374 = vmax.f32 %v2920, 1e-30
        %v3375 = vmax.f32 %v2921, 1e-30
        %v3376 = vmax.f32 %v2922, 1e-30
        %v3377 = vmax.f32 %v2923, 1e-30
        %v3378 = vmax.f32 %v2924, 1e-30
        %v3379 = vmax.f32 %v2925, 1e-30
        %v3380 = vmax.f32 %v2926, 1e-30
        %v3381 = vmax.f32 %v2927, 1e-30
        %v3382 = vmax.f32 %v2928, 1e-30
        %v3383 = vmax.f32 %v2929, 1e-30
        %v3384 = vmax.f32 %v2930, 1e-30
        %v3385 = vmax.f32 %v2931, 1e-30
        %v3386 = vmax.f32 %v2932, 1e-30
        %v3387 = vmax.f32 %v2933, 1e-30
        %v3388 = vmax.f32 %v2934, 1e-30
        %v3389 = vmax.f32 %v2935, 1e-30
        %v3390 = vmax.f32 %v2936, 1e-30
        %v3391 = vmax.f32 %v2937, 1e-30
        %v3392 = vmax.f32 %v2938, 1e-30
        %v3393 = vmax.f32 %v2939, 1e-30
        %v3394 = vmax.f32 %v2940, 1e-30
        %v3395 = vmax.f32 %v2941, 1e-30
        %v3396 = vmax.f32 %v2942, 1e-30
        %v3397 = vmax.f32 %v2943, 1e-30
        %v3398 = vmax.f32 %v2944, 1e-30
        %v3399 = vmax.f32 %v2945, 1e-30
        %v3400 = vmax.f32 %v2946, 1e-30
        %v3401 = vmax.f32 %v2947, 1e-30
        %v3402 = vmax.f32 %v2948, 1e-30
        %v3403 = vmax.f32 %v2949, 1e-30
        %v3404 = vmax.f32 %v2950, 1e-30
        %v3405 = vmax.f32 %v2951, 1e-30
        %v3406 = vrsqrt.pop %v3374
        %v3407 = vmul.f32 %v3406, %v3374
        %v3408 = vmul.f32 %v3407, %v3406
        %v3409 = vmul.f32 0.5, %v3408
        %v3410 = vsub.f32 1.5, %v3409
        %v3411 = vmul.f32 %v3406, %v3410
        %vm3412 = vweird.f32 %v3374
        %vm3413 = vweird.f32 %v3406
        %vm3414 = vmor %vm3412, %vm3413
        %v3415 = vsel %vm3414, %v3406, %v3411
        %v3416 = vrsqrt.pop %v3375
        %v3417 = vmul.f32 %v3416, %v3375
        %v3418 = vmul.f32 %v3417, %v3416
        %v3419 = vmul.f32 0.5, %v3418
        %v3420 = vsub.f32 1.5, %v3419
        %v3421 = vmul.f32 %v3416, %v3420
        %vm3422 = vweird.f32 %v3375
        %vm3423 = vweird.f32 %v3416
        %vm3424 = vmor %vm3422, %vm3423
        %v3425 = vsel %vm3424, %v3416, %v3421
        %v3426 = vrsqrt.pop %v3376
        %v3427 = vmul.f32 %v3426, %v3376
        %v3428 = vmul.f32 %v3427, %v3426
        %v3429 = vmul.f32 0.5, %v3428
        %v3430 = vsub.f32 1.5, %v3429
        %v3431 = vmul.f32 %v3426, %v3430
        %vm3432 = vweird.f32 %v3376
        %vm3433 = vweird.f32 %v3426
        %vm3434 = vmor %vm3432, %vm3433
        %v3435 = vsel %vm3434, %v3426, %v3431
        %v3436 = vrsqrt.pop %v3377
        %v3437 = vmul.f32 %v3436, %v3377
        %v3438 = vmul.f32 %v3437, %v3436
        %v3439 = vmul.f32 0.5, %v3438
        %v3440 = vsub.f32 1.5, %v3439
        %v3441 = vmul.f32 %v3436, %v3440
        %vm3442 = vweird.f32 %v3377
        %vm3443 = vweird.f32 %v3436
        %vm3444 = vmor %vm3442, %vm3443
        %v3445 = vsel %vm3444, %v3436, %v3441
        %v3446 = vrsqrt.pop %v3378
        %v3447 = vmul.f32 %v3446, %v3378
        %v3448 = vmul.f32 %v3447, %v3446
        %v3449 = vmul.f32 0.5, %v3448
        %v3450 = vsub.f32 1.5, %v3449
        %v3451 = vmul.f32 %v3446, %v3450
        %vm3452 = vweird.f32 %v3378
        %vm3453 = vweird.f32 %v3446
        %vm3454 = vmor %vm3452, %vm3453
        %v3455 = vsel %vm3454, %v3446, %v3451
        %v3456 = vrsqrt.pop %v3379
        %v3457 = vmul.f32 %v3456, %v3379
        %v3458 = vmul.f32 %v3457, %v3456
        %v3459 = vmul.f32 0.5, %v3458
        %v3460 = vsub.f32 1.5, %v3459
        %v3461 = vmul.f32 %v3456, %v3460
        %vm3462 = vweird.f32 %v3379
        %vm3463 = vweird.f32 %v3456
        %vm3464 = vmor %vm3462, %vm3463
        %v3465 = vsel %vm3464, %v3456, %v3461
        %v3466 = vrsqrt.pop %v3380
        %v3467 = vmul.f32 %v3466, %v3380
        %v3468 = vmul.f32 %v3467, %v3466
        %v3469 = vmul.f32 0.5, %v3468
        %v3470 = vsub.f32 1.5, %v3469
        %v3471 = vmul.f32 %v3466, %v3470
        %vm3472 = vweird.f32 %v3380
        %vm3473 = vweird.f32 %v3466
        %vm3474 = vmor %vm3472, %vm3473
        %v3475 = vsel %vm3474, %v3466, %v3471
        %v3476 = vrsqrt.pop %v3381
        %v3477 = vmul.f32 %v3476, %v3381
        %v3478 = vmul.f32 %v3477, %v3476
        %v3479 = vmul.f32 0.5, %v3478
        %v3480 = vsub.f32 1.5, %v3479
        %v3481 = vmul.f32 %v3476, %v3480
        %vm3482 = vweird.f32 %v3381
        %vm3483 = vweird.f32 %v3476
        %vm3484 = vmor %vm3482, %vm3483
        %v3485 = vsel %vm3484, %v3476, %v3481
        %v3486 = vrsqrt.pop %v3382
        %v3487 = vmul.f32 %v3486, %v3382
        %v3488 = vmul.f32 %v3487, %v3486
        %v3489 = vmul.f32 0.5, %v3488
        %v3490 = vsub.f32 1.5, %v3489
        %v3491 = vmul.f32 %v3486, %v3490
        %vm3492 = vweird.f32 %v3382
        %vm3493 = vweird.f32 %v3486
        %vm3494 = vmor %vm3492, %vm3493
        %v3495 = vsel %vm3494, %v3486, %v3491
        %v3496 = vrsqrt.pop %v3383
        %v3497 = vmul.f32 %v3496, %v3383
        %v3498 = vmul.f32 %v3497, %v3496
        %v3499 = vmul.f32 0.5, %v3498
        %v3500 = vsub.f32 1.5, %v3499
        %v3501 = vmul.f32 %v3496, %v3500
        %vm3502 = vweird.f32 %v3383
        %vm3503 = vweird.f32 %v3496
        %vm3504 = vmor %vm3502, %vm3503
        %v3505 = vsel %vm3504, %v3496, %v3501
        %v3506 = vrsqrt.pop %v3384
        %v3507 = vmul.f32 %v3506, %v3384
        %v3508 = vmul.f32 %v3507, %v3506
        %v3509 = vmul.f32 0.5, %v3508
        %v3510 = vsub.f32 1.5, %v3509
        %v3511 = vmul.f32 %v3506, %v3510
        %vm3512 = vweird.f32 %v3384
        %vm3513 = vweird.f32 %v3506
        %vm3514 = vmor %vm3512, %vm3513
        %v3515 = vsel %vm3514, %v3506, %v3511
        %v3516 = vrsqrt.pop %v3385
        %v3517 = vmul.f32 %v3516, %v3385
        %v3518 = vmul.f32 %v3517, %v3516
        %v3519 = vmul.f32 0.5, %v3518
        %v3520 = vsub.f32 1.5, %v3519
        %v3521 = vmul.f32 %v3516, %v3520
        %vm3522 = vweird.f32 %v3385
        %vm3523 = vweird.f32 %v3516
        %vm3524 = vmor %vm3522, %vm3523
        %v3525 = vsel %vm3524, %v3516, %v3521
        %v3526 = vrsqrt.pop %v3386
        %v3527 = vmul.f32 %v3526, %v3386
        %v3528 = vmul.f32 %v3527, %v3526
        %v3529 = vmul.f32 0.5, %v3528
        %v3530 = vsub.f32 1.5, %v3529
        %v3531 = vmul.f32 %v3526, %v3530
        %vm3532 = vweird.f32 %v3386
        %vm3533 = vweird.f32 %v3526
        %vm3534 = vmor %vm3532, %vm3533
        %v3535 = vsel %vm3534, %v3526, %v3531
        %v3536 = vrsqrt.pop %v3387
        %v3537 = vmul.f32 %v3536, %v3387
        %v3538 = vmul.f32 %v3537, %v3536
        %v3539 = vmul.f32 0.5, %v3538
        %v3540 = vsub.f32 1.5, %v3539
        %v3541 = vmul.f32 %v3536, %v3540
        %vm3542 = vweird.f32 %v3387
        %vm3543 = vweird.f32 %v3536
        %vm3544 = vmor %vm3542, %vm3543
        %v3545 = vsel %vm3544, %v3536, %v3541
        %v3546 = vrsqrt.pop %v3388
        %v3547 = vmul.f32 %v3546, %v3388
        %v3548 = vmul.f32 %v3547, %v3546
        %v3549 = vmul.f32 0.5, %v3548
        %v3550 = vsub.f32 1.5, %v3549
        %v3551 = vmul.f32 %v3546, %v3550
        %vm3552 = vweird.f32 %v3388
        %vm3553 = vweird.f32 %v3546
        %vm3554 = vmor %vm3552, %vm3553
        %v3555 = vsel %vm3554, %v3546, %v3551
        %v3556 = vrsqrt.pop %v3389
        %v3557 = vmul.f32 %v3556, %v3389
        %v3558 = vmul.f32 %v3557, %v3556
        %v3559 = vmul.f32 0.5, %v3558
        %v3560 = vsub.f32 1.5, %v3559
        %v3561 = vmul.f32 %v3556, %v3560
        %vm3562 = vweird.f32 %v3389
        %vm3563 = vweird.f32 %v3556
        %vm3564 = vmor %vm3562, %vm3563
        %v3565 = vsel %vm3564, %v3556, %v3561
        %v3566 = vrsqrt.pop %v3390
        %v3567 = vmul.f32 %v3566, %v3390
        %v3568 = vmul.f32 %v3567, %v3566
        %v3569 = vmul.f32 0.5, %v3568
        %v3570 = vsub.f32 1.5, %v3569
        %v3571 = vmul.f32 %v3566, %v3570
        %vm3572 = vweird.f32 %v3390
        %vm3573 = vweird.f32 %v3566
        %vm3574 = vmor %vm3572, %vm3573
        %v3575 = vsel %vm3574, %v3566, %v3571
        %v3576 = vrsqrt.pop %v3391
        %v3577 = vmul.f32 %v3576, %v3391
        %v3578 = vmul.f32 %v3577, %v3576
        %v3579 = vmul.f32 0.5, %v3578
        %v3580 = vsub.f32 1.5, %v3579
        %v3581 = vmul.f32 %v3576, %v3580
        %vm3582 = vweird.f32 %v3391
        %vm3583 = vweird.f32 %v3576
        %vm3584 = vmor %vm3582, %vm3583
        %v3585 = vsel %vm3584, %v3576, %v3581
        %v3586 = vrsqrt.pop %v3392
        %v3587 = vmul.f32 %v3586, %v3392
        %v3588 = vmul.f32 %v3587, %v3586
        %v3589 = vmul.f32 0.5, %v3588
        %v3590 = vsub.f32 1.5, %v3589
        %v3591 = vmul.f32 %v3586, %v3590
        %vm3592 = vweird.f32 %v3392
        %vm3593 = vweird.f32 %v3586
        %vm3594 = vmor %vm3592, %vm3593
        %v3595 = vsel %vm3594, %v3586, %v3591
        %v3596 = vrsqrt.pop %v3393
        %v3597 = vmul.f32 %v3596, %v3393
        %v3598 = vmul.f32 %v3597, %v3596
        %v3599 = vmul.f32 0.5, %v3598
        %v3600 = vsub.f32 1.5, %v3599
        %v3601 = vmul.f32 %v3596, %v3600
        %vm3602 = vweird.f32 %v3393
        %vm3603 = vweird.f32 %v3596
        %vm3604 = vmor %vm3602, %vm3603
        %v3605 = vsel %vm3604, %v3596, %v3601
        %v3606 = vrsqrt.pop %v3394
        %v3607 = vmul.f32 %v3606, %v3394
        %v3608 = vmul.f32 %v3607, %v3606
        %v3609 = vmul.f32 0.5, %v3608
        %v3610 = vsub.f32 1.5, %v3609
        %v3611 = vmul.f32 %v3606, %v3610
        %vm3612 = vweird.f32 %v3394
        %vm3613 = vweird.f32 %v3606
        %vm3614 = vmor %vm3612, %vm3613
        %v3615 = vsel %vm3614, %v3606, %v3611
        %v3616 = vrsqrt.pop %v3395
        %v3617 = vmul.f32 %v3616, %v3395
        %v3618 = vmul.f32 %v3617, %v3616
        %v3619 = vmul.f32 0.5, %v3618
        %v3620 = vsub.f32 1.5, %v3619
        %v3621 = vmul.f32 %v3616, %v3620
        %vm3622 = vweird.f32 %v3395
        %vm3623 = vweird.f32 %v3616
        %vm3624 = vmor %vm3622, %vm3623
        %v3625 = vsel %vm3624, %v3616, %v3621
        %v3626 = vrsqrt.pop %v3396
        %v3627 = vmul.f32 %v3626, %v3396
        %v3628 = vmul.f32 %v3627, %v3626
        %v3629 = vmul.f32 0.5, %v3628
        %v3630 = vsub.f32 1.5, %v3629
        %v3631 = vmul.f32 %v3626, %v3630
        %vm3632 = vweird.f32 %v3396
        %vm3633 = vweird.f32 %v3626
        %vm3634 = vmor %vm3632, %vm3633
        %v3635 = vsel %vm3634, %v3626, %v3631
        %v3636 = vrsqrt.pop %v3397
        %v3637 = vmul.f32 %v3636, %v3397
        %v3638 = vmul.f32 %v3637, %v3636
        %v3639 = vmul.f32 0.5, %v3638
        %v3640 = vsub.f32 1.5, %v3639
        %v3641 = vmul.f32 %v3636, %v3640
        %vm3642 = vweird.f32 %v3397
        %vm3643 = vweird.f32 %v3636
        %vm3644 = vmor %vm3642, %vm3643
        %v3645 = vsel %vm3644, %v3636, %v3641
        %v3646 = vrsqrt.pop %v3398
        %v3647 = vmul.f32 %v3646, %v3398
        %v3648 = vmul.f32 %v3647, %v3646
        %v3649 = vmul.f32 0.5, %v3648
        %v3650 = vsub.f32 1.5, %v3649
        %v3651 = vmul.f32 %v3646, %v3650
        %vm3652 = vweird.f32 %v3398
        %vm3653 = vweird.f32 %v3646
        %vm3654 = vmor %vm3652, %vm3653
        %v3655 = vsel %vm3654, %v3646, %v3651
        %v3656 = vrsqrt.pop %v3399
        %v3657 = vmul.f32 %v3656, %v3399
        %v3658 = vmul.f32 %v3657, %v3656
        %v3659 = vmul.f32 0.5, %v3658
        %v3660 = vsub.f32 1.5, %v3659
        %v3661 = vmul.f32 %v3656, %v3660
        %vm3662 = vweird.f32 %v3399
        %vm3663 = vweird.f32 %v3656
        %vm3664 = vmor %vm3662, %vm3663
        %v3665 = vsel %vm3664, %v3656, %v3661
        %v3666 = vrsqrt.pop %v3400
        %v3667 = vmul.f32 %v3666, %v3400
        %v3668 = vmul.f32 %v3667, %v3666
        %v3669 = vmul.f32 0.5, %v3668
        %v3670 = vsub.f32 1.5, %v3669
        %v3671 = vmul.f32 %v3666, %v3670
        %vm3672 = vweird.f32 %v3400
        %vm3673 = vweird.f32 %v3666
        %vm3674 = vmor %vm3672, %vm3673
        %v3675 = vsel %vm3674, %v3666, %v3671
        %v3676 = vrsqrt.pop %v3401
        %v3677 = vmul.f32 %v3676, %v3401
        %v3678 = vmul.f32 %v3677, %v3676
        %v3679 = vmul.f32 0.5, %v3678
        %v3680 = vsub.f32 1.5, %v3679
        %v3681 = vmul.f32 %v3676, %v3680
        %vm3682 = vweird.f32 %v3401
        %vm3683 = vweird.f32 %v3676
        %vm3684 = vmor %vm3682, %vm3683
        %v3685 = vsel %vm3684, %v3676, %v3681
        %v3686 = vrsqrt.pop %v3402
        %v3687 = vmul.f32 %v3686, %v3402
        %v3688 = vmul.f32 %v3687, %v3686
        %v3689 = vmul.f32 0.5, %v3688
        %v3690 = vsub.f32 1.5, %v3689
        %v3691 = vmul.f32 %v3686, %v3690
        %vm3692 = vweird.f32 %v3402
        %vm3693 = vweird.f32 %v3686
        %vm3694 = vmor %vm3692, %vm3693
        %v3695 = vsel %vm3694, %v3686, %v3691
        %v3696 = vrsqrt.pop %v3403
        %v3697 = vmul.f32 %v3696, %v3403
        %v3698 = vmul.f32 %v3697, %v3696
        %v3699 = vmul.f32 0.5, %v3698
        %v3700 = vsub.f32 1.5, %v3699
        %v3701 = vmul.f32 %v3696, %v3700
        %vm3702 = vweird.f32 %v3403
        %vm3703 = vweird.f32 %v3696
        %vm3704 = vmor %vm3702, %vm3703
        %v3705 = vsel %vm3704, %v3696, %v3701
        %v3706 = vrsqrt.pop %v3404
        %v3707 = vmul.f32 %v3706, %v3404
        %v3708 = vmul.f32 %v3707, %v3706
        %v3709 = vmul.f32 0.5, %v3708
        %v3710 = vsub.f32 1.5, %v3709
        %v3711 = vmul.f32 %v3706, %v3710
        %vm3712 = vweird.f32 %v3404
        %vm3713 = vweird.f32 %v3706
        %vm3714 = vmor %vm3712, %vm3713
        %v3715 = vsel %vm3714, %v3706, %v3711
        %v3716 = vrsqrt.pop %v3405
        %v3717 = vmul.f32 %v3716, %v3405
        %v3718 = vmul.f32 %v3717, %v3716
        %v3719 = vmul.f32 0.5, %v3718
        %v3720 = vsub.f32 1.5, %v3719
        %v3721 = vmul.f32 %v3716, %v3720
        %vm3722 = vweird.f32 %v3405
        %vm3723 = vweird.f32 %v3716
        %vm3724 = vmor %vm3722, %vm3723
        %v3725 = vsel %vm3724, %v3716, %v3721
        %v3727 = vperm.slane %v3368, 0
        %v3729 = vmul.f32 %v2856, %v3727
        %v3730 = vmul.f32 %v2857, %v3727
        %v3731 = vmul.f32 %v2858, %v3727
        %v3732 = vmul.f32 %v2859, %v3727
        %v3733 = vmul.f32 %v2860, %v3727
        %v3734 = vmul.f32 %v2861, %v3727
        %v3735 = vmul.f32 %v2862, %v3727
        %v3736 = vmul.f32 %v2863, %v3727
        %v3737 = vmul.f32 %v2864, %v3727
        %v3738 = vmul.f32 %v2865, %v3727
        %v3739 = vmul.f32 %v2866, %v3727
        %v3740 = vmul.f32 %v2867, %v3727
        %v3741 = vmul.f32 %v2868, %v3727
        %v3742 = vmul.f32 %v2869, %v3727
        %v3743 = vmul.f32 %v2870, %v3727
        %v3744 = vmul.f32 %v2871, %v3727
        %v3745 = vmul.f32 %v2872, %v3727
        %v3746 = vmul.f32 %v2873, %v3727
        %v3747 = vmul.f32 %v2874, %v3727
        %v3748 = vmul.f32 %v2875, %v3727
        %v3749 = vmul.f32 %v2876, %v3727
        %v3750 = vmul.f32 %v2877, %v3727
        %v3751 = vmul.f32 %v2878, %v3727
        %v3752 = vmul.f32 %v2879, %v3727
        %v3753 = vmul.f32 %v2880, %v3727
        %v3754 = vmul.f32 %v2881, %v3727
        %v3755 = vmul.f32 %v2882, %v3727
        %v3756 = vmul.f32 %v2883, %v3727
        %v3757 = vmul.f32 %v2884, %v3727
        %v3758 = vmul.f32 %v2885, %v3727
        %v3759 = vmul.f32 %v2886, %v3727
        %v3760 = vmul.f32 %v2887, %v3727
        %3761 = vadd.xlane.f32.xlu0 %v3729
        %v3762 = vpop.xlane.xlu0 %3761
        %3763 = vadd.xlane.f32.xlu0 %v3730
        %v3764 = vpop.xlane.xlu0 %3763
        %3765 = vadd.xlane.f32.xlu0 %v3731
        %v3766 = vpop.xlane.xlu0 %3765
        %3767 = vadd.xlane.f32.xlu0 %v3732
        %v3768 = vpop.xlane.xlu0 %3767
        %3769 = vadd.xlane.f32.xlu0 %v3733
        %v3770 = vpop.xlane.xlu0 %3769
        %3771 = vadd.xlane.f32.xlu0 %v3734
        %v3772 = vpop.xlane.xlu0 %3771
        %3773 = vadd.xlane.f32.xlu0 %v3735
        %v3774 = vpop.xlane.xlu0 %3773
        %3775 = vadd.xlane.f32.xlu0 %v3736
        %v3776 = vpop.xlane.xlu0 %3775
        %3777 = vadd.xlane.f32.xlu0 %v3737
        %v3778 = vpop.xlane.xlu0 %3777
        %3779 = vadd.xlane.f32.xlu0 %v3738
        %v3780 = vpop.xlane.xlu0 %3779
        %3781 = vadd.xlane.f32.xlu0 %v3739
        %v3782 = vpop.xlane.xlu0 %3781
        %3783 = vadd.xlane.f32.xlu0 %v3740
        %v3784 = vpop.xlane.xlu0 %3783
        %3785 = vadd.xlane.f32.xlu0 %v3741
        %v3786 = vpop.xlane.xlu0 %3785
        %3787 = vadd.xlane.f32.xlu0 %v3742
        %v3788 = vpop.xlane.xlu0 %3787
        %3789 = vadd.xlane.f32.xlu0 %v3743
        %v3790 = vpop.xlane.xlu0 %3789
        %3791 = vadd.xlane.f32.xlu0 %v3744
        %v3792 = vpop.xlane.xlu0 %3791
        %3793 = vadd.xlane.f32.xlu0 %v3745
        %v3794 = vpop.xlane.xlu0 %3793
        %3795 = vadd.xlane.f32.xlu0 %v3746
        %v3796 = vpop.xlane.xlu0 %3795
        %3797 = vadd.xlane.f32.xlu0 %v3747
        %v3798 = vpop.xlane.xlu0 %3797
        %3799 = vadd.xlane.f32.xlu0 %v3748
        %v3800 = vpop.xlane.xlu0 %3799
        %3801 = vadd.xlane.f32.xlu0 %v3749
        %v3802 = vpop.xlane.xlu0 %3801
        %3803 = vadd.xlane.f32.xlu0 %v3750
        %v3804 = vpop.xlane.xlu0 %3803
        %3805 = vadd.xlane.f32.xlu0 %v3751
        %v3806 = vpop.xlane.xlu0 %3805
        %3807 = vadd.xlane.f32.xlu0 %v3752
        %v3808 = vpop.xlane.xlu0 %3807
        %3809 = vadd.xlane.f32.xlu0 %v3753
        %v3810 = vpop.xlane.xlu0 %3809
        %3811 = vadd.xlane.f32.xlu0 %v3754
        %v3812 = vpop.xlane.xlu0 %3811
        %3813 = vadd.xlane.f32.xlu0 %v3755
        %v3814 = vpop.xlane.xlu0 %3813
        %3815 = vadd.xlane.f32.xlu0 %v3756
        %v3816 = vpop.xlane.xlu0 %3815
        %3817 = vadd.xlane.f32.xlu0 %v3757
        %v3818 = vpop.xlane.xlu0 %3817
        %3819 = vadd.xlane.f32.xlu0 %v3758
        %v3820 = vpop.xlane.xlu0 %3819
        %3821 = vadd.xlane.f32.xlu0 %v3759
        %v3822 = vpop.xlane.xlu0 %3821
        %3823 = vadd.xlane.f32.xlu0 %v3760
        %v3824 = vpop.xlane.xlu0 %3823
        %v3825 = vmul.f32 %v3762, %v2995
        %v3826 = vmul.f32 %v3764, %v3007
        %v3827 = vmul.f32 %v3766, %v3019
        %v3828 = vmul.f32 %v3768, %v3031
        %v3829 = vmul.f32 %v3770, %v3043
        %v3830 = vmul.f32 %v3772, %v3055
        %v3831 = vmul.f32 %v3774, %v3067
        %v3832 = vmul.f32 %v3776, %v3079
        %v3833 = vmul.f32 %v3778, %v3091
        %v3834 = vmul.f32 %v3780, %v3103
        %v3835 = vmul.f32 %v3782, %v3115
        %v3836 = vmul.f32 %v3784, %v3127
        %v3837 = vmul.f32 %v3786, %v3139
        %v3838 = vmul.f32 %v3788, %v3151
        %v3839 = vmul.f32 %v3790, %v3163
        %v3840 = vmul.f32 %v3792, %v3175
        %v3841 = vmul.f32 %v3794, %v3187
        %v3842 = vmul.f32 %v3796, %v3199
        %v3843 = vmul.f32 %v3798, %v3211
        %v3844 = vmul.f32 %v3800, %v3223
        %v3845 = vmul.f32 %v3802, %v3235
        %v3846 = vmul.f32 %v3804, %v3247
        %v3847 = vmul.f32 %v3806, %v3259
        %v3848 = vmul.f32 %v3808, %v3271
        %v3849 = vmul.f32 %v3810, %v3283
        %v3850 = vmul.f32 %v3812, %v3295
        %v3851 = vmul.f32 %v3814, %v3307
        %v3852 = vmul.f32 %v3816, %v3319
        %v3853 = vmul.f32 %v3818, %v3331
        %v3854 = vmul.f32 %v3820, %v3343
        %v3855 = vmul.f32 %v3822, %v3355
        %v3856 = vmul.f32 %v3824, %v3367
        %v3857 = vmul.f32 %v3415, %v3415
        %v3858 = vmul.f32 %v3425, %v3425
        %v3859 = vmul.f32 %v3435, %v3435
        %v3860 = vmul.f32 %v3445, %v3445
        %v3861 = vmul.f32 %v3455, %v3455
        %v3862 = vmul.f32 %v3465, %v3465
        %v3863 = vmul.f32 %v3475, %v3475
        %v3864 = vmul.f32 %v3485, %v3485
        %v3865 = vmul.f32 %v3495, %v3495
        %v3866 = vmul.f32 %v3505, %v3505
        %v3867 = vmul.f32 %v3515, %v3515
        %v3868 = vmul.f32 %v3525, %v3525
        %v3869 = vmul.f32 %v3535, %v3535
        %v3870 = vmul.f32 %v3545, %v3545
        %v3871 = vmul.f32 %v3555, %v3555
        %v3872 = vmul.f32 %v3565, %v3565
        %v3873 = vmul.f32 %v3575, %v3575
        %v3874 = vmul.f32 %v3585, %v3585
        %v3875 = vmul.f32 %v3595, %v3595
        %v3876 = vmul.f32 %v3605, %v3605
        %v3877 = vmul.f32 %v3615, %v3615
        %v3878 = vmul.f32 %v3625, %v3625
        %v3879 = vmul.f32 %v3635, %v3635
        %v3880 = vmul.f32 %v3645, %v3645
        %v3881 = vmul.f32 %v3655, %v3655
        %v3882 = vmul.f32 %v3665, %v3665
        %v3883 = vmul.f32 %v3675, %v3675
        %v3884 = vmul.f32 %v3685, %v3685
        %v3885 = vmul.f32 %v3695, %v3695
        %v3886 = vmul.f32 %v3705, %v3705
        %v3887 = vmul.f32 %v3715, %v3715
        %v3888 = vmul.f32 %v3725, %v3725
        %v3889 = vmul.f32 %v3825, %v3857
        %v3890 = vmul.f32 %v3826, %v3858
        %v3891 = vmul.f32 %v3827, %v3859
        %v3892 = vmul.f32 %v3828, %v3860
        %v3893 = vmul.f32 %v3829, %v3861
        %v3894 = vmul.f32 %v3830, %v3862
        %v3895 = vmul.f32 %v3831, %v3863
        %v3896 = vmul.f32 %v3832, %v3864
        %v3897 = vmul.f32 %v3833, %v3865
        %v3898 = vmul.f32 %v3834, %v3866
        %v3899 = vmul.f32 %v3835, %v3867
        %v3900 = vmul.f32 %v3836, %v3868
        %v3901 = vmul.f32 %v3837, %v3869
        %v3902 = vmul.f32 %v3838, %v3870
        %v3903 = vmul.f32 %v3839, %v3871
        %v3904 = vmul.f32 %v3840, %v3872
        %v3905 = vmul.f32 %v3841, %v3873
        %v3906 = vmul.f32 %v3842, %v3874
        %v3907 = vmul.f32 %v3843, %v3875
        %v3908 = vmul.f32 %v3844, %v3876
        %v3909 = vmul.f32 %v3845, %v3877
        %v3910 = vmul.f32 %v3846, %v3878
        %v3911 = vmul.f32 %v3847, %v3879
        %v3912 = vmul.f32 %v3848, %v3880
        %v3913 = vmul.f32 %v3849, %v3881
        %v3914 = vmul.f32 %v3850, %v3882
        %v3915 = vmul.f32 %v3851, %v3883
        %v3916 = vmul.f32 %v3852, %v3884
        %v3917 = vmul.f32 %v3853, %v3885
        %v3918 = vmul.f32 %v3854, %v3886
        %v3919 = vmul.f32 %v3855, %v3887
        %v3920 = vmul.f32 %v3856, %v3888
        %v3921 = vmul.f32 %v3889, 2.0
        %v3922 = vmul.f32 %v3890, 2.0
        %v3923 = vmul.f32 %v3891, 2.0
        %v3924 = vmul.f32 %v3892, 2.0
        %v3925 = vmul.f32 %v3893, 2.0
        %v3926 = vmul.f32 %v3894, 2.0
        %v3927 = vmul.f32 %v3895, 2.0
        %v3928 = vmul.f32 %v3896, 2.0
        %v3929 = vmul.f32 %v3897, 2.0
        %v3930 = vmul.f32 %v3898, 2.0
        %v3931 = vmul.f32 %v3899, 2.0
        %v3932 = vmul.f32 %v3900, 2.0
        %v3933 = vmul.f32 %v3901, 2.0
        %v3934 = vmul.f32 %v3902, 2.0
        %v3935 = vmul.f32 %v3903, 2.0
        %v3936 = vmul.f32 %v3904, 2.0
        %v3937 = vmul.f32 %v3905, 2.0
        %v3938 = vmul.f32 %v3906, 2.0
        %v3939 = vmul.f32 %v3907, 2.0
        %v3940 = vmul.f32 %v3908, 2.0
        %v3941 = vmul.f32 %v3909, 2.0
        %v3942 = vmul.f32 %v3910, 2.0
        %v3943 = vmul.f32 %v3911, 2.0
        %v3944 = vmul.f32 %v3912, 2.0
        %v3945 = vmul.f32 %v3913, 2.0
        %v3946 = vmul.f32 %v3914, 2.0
        %v3947 = vmul.f32 %v3915, 2.0
        %v3948 = vmul.f32 %v3916, 2.0
        %v3949 = vmul.f32 %v3917, 2.0
        %v3950 = vmul.f32 %v3918, 2.0
        %v3951 = vmul.f32 %v3919, 2.0
        %v3952 = vmul.f32 %v3920, 2.0
        %v3953 = vmul.f32 %v3921, %v3762
        %v3954 = vmul.f32 %v3922, %v3764
        %v3955 = vmul.f32 %v3923, %v3766
        %v3956 = vmul.f32 %v3924, %v3768
        %v3957 = vmul.f32 %v3925, %v3770
        %v3958 = vmul.f32 %v3926, %v3772
        %v3959 = vmul.f32 %v3927, %v3774
        %v3960 = vmul.f32 %v3928, %v3776
        %v3961 = vmul.f32 %v3929, %v3778
        %v3962 = vmul.f32 %v3930, %v3780
        %v3963 = vmul.f32 %v3931, %v3782
        %v3964 = vmul.f32 %v3932, %v3784
        %v3965 = vmul.f32 %v3933, %v3786
        %v3966 = vmul.f32 %v3934, %v3788
        %v3967 = vmul.f32 %v3935, %v3790
        %v3968 = vmul.f32 %v3936, %v3792
        %v3969 = vmul.f32 %v3937, %v3794
        %v3970 = vmul.f32 %v3938, %v3796
        %v3971 = vmul.f32 %v3939, %v3798
        %v3972 = vmul.f32 %v3940, %v3800
        %v3973 = vmul.f32 %v3941, %v3802
        %v3974 = vmul.f32 %v3942, %v3804
        %v3975 = vmul.f32 %v3943, %v3806
        %v3976 = vmul.f32 %v3944, %v3808
        %v3977 = vmul.f32 %v3945, %v3810
        %v3978 = vmul.f32 %v3946, %v3812
        %v3979 = vmul.f32 %v3947, %v3814
        %v3980 = vmul.f32 %v3948, %v3816
        %v3981 = vmul.f32 %v3949, %v3818
        %v3982 = vmul.f32 %v3950, %v3820
        %v3983 = vmul.f32 %v3951, %v3822
        %v3984 = vmul.f32 %v3952, %v3824
        %v3985 = vperm.slane %v3373, 0
        %v3986 = vsub.f32 %v3985, %v3953
        %v3987 = vsub.f32 %v3985, %v3954
        %v3988 = vsub.f32 %v3985, %v3955
        %v3989 = vsub.f32 %v3985, %v3956
        %v3990 = vsub.f32 %v3985, %v3957
        %v3991 = vsub.f32 %v3985, %v3958
        %v3992 = vsub.f32 %v3985, %v3959
        %v3993 = vsub.f32 %v3985, %v3960
        %v3994 = vsub.f32 %v3985, %v3961
        %v3995 = vsub.f32 %v3985, %v3962
        %v3996 = vsub.f32 %v3985, %v3963
        %v3997 = vsub.f32 %v3985, %v3964
        %v3998 = vsub.f32 %v3985, %v3965
        %v3999 = vsub.f32 %v3985, %v3966
        %v4000 = vsub.f32 %v3985, %v3967
        %v4001 = vsub.f32 %v3985, %v3968
        %v4002 = vsub.f32 %v3985, %v3969
        %v4003 = vsub.f32 %v3985, %v3970
        %v4004 = vsub.f32 %v3985, %v3971
        %v4005 = vsub.f32 %v3985, %v3972
        %v4006 = vsub.f32 %v3985, %v3973
        %v4007 = vsub.f32 %v3985, %v3974
        %v4008 = vsub.f32 %v3985, %v3975
        %v4009 = vsub.f32 %v3985, %v3976
        %v4010 = vsub.f32 %v3985, %v3977
        %v4011 = vsub.f32 %v3985, %v3978
        %v4012 = vsub.f32 %v3985, %v3979
        %v4013 = vsub.f32 %v3985, %v3980
        %v4014 = vsub.f32 %v3985, %v3981
        %v4015 = vsub.f32 %v3985, %v3982
        %v4016 = vsub.f32 %v3985, %v3983
        %v4017 = vsub.f32 %v3985, %v3984
        %v4018 = vmul.f32 %v3889, %v3889
        %v4019 = vmul.f32 %v3890, %v3890
        %v4020 = vmul.f32 %v3891, %v3891
        %v4021 = vmul.f32 %v3892, %v3892
        %v4022 = vmul.f32 %v3893, %v3893
        %v4023 = vmul.f32 %v3894, %v3894
        %v4024 = vmul.f32 %v3895, %v3895
        %v4025 = vmul.f32 %v3896, %v3896
        %v4026 = vmul.f32 %v3897, %v3897
        %v4027 = vmul.f32 %v3898, %v3898
        %v4028 = vmul.f32 %v3899, %v3899
        %v4029 = vmul.f32 %v3900, %v3900
        %v4030 = vmul.f32 %v3901, %v3901
        %v4031 = vmul.f32 %v3902, %v3902
        %v4032 = vmul.f32 %v3903, %v3903
        %v4033 = vmul.f32 %v3904, %v3904
        %v4034 = vmul.f32 %v3905, %v3905
        %v4035 = vmul.f32 %v3906, %v3906
        %v4036 = vmul.f32 %v3907, %v3907
        %v4037 = vmul.f32 %v3908, %v3908
        %v4038 = vmul.f32 %v3909, %v3909
        %v4039 = vmul.f32 %v3910, %v3910
        %v4040 = vmul.f32 %v3911, %v3911
        %v4041 = vmul.f32 %v3912, %v3912
        %v4042 = vmul.f32 %v3913, %v3913
        %v4043 = vmul.f32 %v3914, %v3914
        %v4044 = vmul.f32 %v3915, %v3915
        %v4045 = vmul.f32 %v3916, %v3916
        %v4046 = vmul.f32 %v3917, %v3917
        %v4047 = vmul.f32 %v3918, %v3918
        %v4048 = vmul.f32 %v3919, %v3919
        %v4049 = vmul.f32 %v3920, %v3920
        %v4050 = vmul.f32 %v4018, %v2920
        %v4051 = vmul.f32 %v4019, %v2921
        %v4052 = vmul.f32 %v4020, %v2922
        %v4053 = vmul.f32 %v4021, %v2923
        %v4054 = vmul.f32 %v4022, %v2924
        %v4055 = vmul.f32 %v4023, %v2925
        %v4056 = vmul.f32 %v4024, %v2926
        %v4057 = vmul.f32 %v4025, %v2927
        %v4058 = vmul.f32 %v4026, %v2928
        %v4059 = vmul.f32 %v4027, %v2929
        %v4060 = vmul.f32 %v4028, %v2930
        %v4061 = vmul.f32 %v4029, %v2931
        %v4062 = vmul.f32 %v4030, %v2932
        %v4063 = vmul.f32 %v4031, %v2933
        %v4064 = vmul.f32 %v4032, %v2934
        %v4065 = vmul.f32 %v4033, %v2935
        %v4066 = vmul.f32 %v4034, %v2936
        %v4067 = vmul.f32 %v4035, %v2937
        %v4068 = vmul.f32 %v4036, %v2938
        %v4069 = vmul.f32 %v4037, %v2939
        %v4070 = vmul.f32 %v4038, %v2940
        %v4071 = vmul.f32 %v4039, %v2941
        %v4072 = vmul.f32 %v4040, %v2942
        %v4073 = vmul.f32 %v4041, %v2943
        %v4074 = vmul.f32 %v4042, %v2944
        %v4075 = vmul.f32 %v4043, %v2945
        %v4076 = vmul.f32 %v4044, %v2946
        %v4077 = vmul.f32 %v4045, %v2947
        %v4078 = vmul.f32 %v4046, %v2948
        %v4079 = vmul.f32 %v4047, %v2949
        %v4080 = vmul.f32 %v4048, %v2950
        %v4081 = vmul.f32 %v4049, %v2951
        %v4082 = vadd.f32 %v3986, %v4050
        %v4083 = vadd.f32 %v3987, %v4051
        %v4084 = vadd.f32 %v3988, %v4052
        %v4085 = vadd.f32 %v3989, %v4053
        %v4086 = vadd.f32 %v3990, %v4054
        %v4087 = vadd.f32 %v3991, %v4055
        %v4088 = vadd.f32 %v3992, %v4056
        %v4089 = vadd.f32 %v3993, %v4057
        %v4090 = vadd.f32 %v3994, %v4058
        %v4091 = vadd.f32 %v3995, %v4059
        %v4092 = vadd.f32 %v3996, %v4060
        %v4093 = vadd.f32 %v3997, %v4061
        %v4094 = vadd.f32 %v3998, %v4062
        %v4095 = vadd.f32 %v3999, %v4063
        %v4096 = vadd.f32 %v4000, %v4064
        %v4097 = vadd.f32 %v4001, %v4065
        %v4098 = vadd.f32 %v4002, %v4066
        %v4099 = vadd.f32 %v4003, %v4067
        %v4100 = vadd.f32 %v4004, %v4068
        %v4101 = vadd.f32 %v4005, %v4069
        %v4102 = vadd.f32 %v4006, %v4070
        %v4103 = vadd.f32 %v4007, %v4071
        %v4104 = vadd.f32 %v4008, %v4072
        %v4105 = vadd.f32 %v4009, %v4073
        %v4106 = vadd.f32 %v4010, %v4074
        %v4107 = vadd.f32 %v4011, %v4075
        %v4108 = vadd.f32 %v4012, %v4076
        %v4109 = vadd.f32 %v4013, %v4077
        %v4110 = vadd.f32 %v4014, %v4078
        %v4111 = vadd.f32 %v4015, %v4079
        %v4112 = vadd.f32 %v4016, %v4080
        %v4113 = vadd.f32 %v4017, %v4081
        %v4114 = vmul.f32 %v3889, %v2920
        %v4115 = vmul.f32 %v3890, %v2921
        %v4116 = vmul.f32 %v3891, %v2922
        %v4117 = vmul.f32 %v3892, %v2923
        %v4118 = vmul.f32 %v3893, %v2924
        %v4119 = vmul.f32 %v3894, %v2925
        %v4120 = vmul.f32 %v3895, %v2926
        %v4121 = vmul.f32 %v3896, %v2927
        %v4122 = vmul.f32 %v3897, %v2928
        %v4123 = vmul.f32 %v3898, %v2929
        %v4124 = vmul.f32 %v3899, %v2930
        %v4125 = vmul.f32 %v3900, %v2931
        %v4126 = vmul.f32 %v3901, %v2932
        %v4127 = vmul.f32 %v3902, %v2933
        %v4128 = vmul.f32 %v3903, %v2934
        %v4129 = vmul.f32 %v3904, %v2935
        %v4130 = vmul.f32 %v3905, %v2936
        %v4131 = vmul.f32 %v3906, %v2937
        %v4132 = vmul.f32 %v3907, %v2938
        %v4133 = vmul.f32 %v3908, %v2939
        %v4134 = vmul.f32 %v3909, %v2940
        %v4135 = vmul.f32 %v3910, %v2941
        %v4136 = vmul.f32 %v3911, %v2942
        %v4137 = vmul.f32 %v3912, %v2943
        %v4138 = vmul.f32 %v3913, %v2944
        %v4139 = vmul.f32 %v3914, %v2945
        %v4140 = vmul.f32 %v3915, %v2946
        %v4141 = vmul.f32 %v3916, %v2947
        %v4142 = vmul.f32 %v3917, %v2948
        %v4143 = vmul.f32 %v3918, %v2949
        %v4144 = vmul.f32 %v3919, %v2950
        %v4145 = vmul.f32 %v3920, %v2951
        %v4146 = vsub.f32 %v3762, %v4114
        %v4147 = vsub.f32 %v3764, %v4115
        %v4148 = vsub.f32 %v3766, %v4116
        %v4149 = vsub.f32 %v3768, %v4117
        %v4150 = vsub.f32 %v3770, %v4118
        %v4151 = vsub.f32 %v3772, %v4119
        %v4152 = vsub.f32 %v3774, %v4120
        %v4153 = vsub.f32 %v3776, %v4121
        %v4154 = vsub.f32 %v3778, %v4122
        %v4155 = vsub.f32 %v3780, %v4123
        %v4156 = vsub.f32 %v3782, %v4124
        %v4157 = vsub.f32 %v3784, %v4125
        %v4158 = vsub.f32 %v3786, %v4126
        %v4159 = vsub.f32 %v3788, %v4127
        %v4160 = vsub.f32 %v3790, %v4128
        %v4161 = vsub.f32 %v3792, %v4129
        %v4162 = vsub.f32 %v3794, %v4130
        %v4163 = vsub.f32 %v3796, %v4131
        %v4164 = vsub.f32 %v3798, %v4132
        %v4165 = vsub.f32 %v3800, %v4133
        %v4166 = vsub.f32 %v3802, %v4134
        %v4167 = vsub.f32 %v3804, %v4135
        %v4168 = vsub.f32 %v3806, %v4136
        %v4169 = vsub.f32 %v3808, %v4137
        %v4170 = vsub.f32 %v3810, %v4138
        %v4171 = vsub.f32 %v3812, %v4139
        %v4172 = vsub.f32 %v3814, %v4140
        %v4173 = vsub.f32 %v3816, %v4141
        %v4174 = vsub.f32 %v3818, %v4142
        %v4175 = vsub.f32 %v3820, %v4143
        %v4176 = vsub.f32 %v3822, %v4144
        %v4177 = vsub.f32 %v3824, %v4145
        %v4178 = vrcp.pop %v2995
        %v4179 = vmul.f32 %v2995, %v4178
        %v4180 = vsub.f32 1.0, %v4179
        %v4181 = vmul.f32 %v4178, %v4180
        %v4182 = vadd.f32 %v4178, %v4181
        %vm4183 = vweird.f32 %v2995
        %vm4184 = vweird.f32 %v4178
        %vm4185 = vmor %vm4183, %vm4184
        %v4186 = vsel %vm4185, %v4178, %v4182
        %v4187 = vand.u32 2147483647, %v2995
        %vm4188 = vcmp.eq.f32.partialorder %v4187, 8.507059e+37
        %v4189 = vand.u32 %v2995, 2147483648
        %v4190 = vor.u32 1.1754944e-38, %v4189
        %v4191 = vsel %vm4188, %v4190, %v4186
        %v4192 = vmul.f32 %v4146, %v4191
        %v4193 = vrcp.pop %v3007
        %v4194 = vmul.f32 %v3007, %v4193
        %v4195 = vsub.f32 1.0, %v4194
        %v4196 = vmul.f32 %v4193, %v4195
        %v4197 = vadd.f32 %v4193, %v4196
        %vm4198 = vweird.f32 %v3007
        %vm4199 = vweird.f32 %v4193
        %vm4200 = vmor %vm4198, %vm4199
        %v4201 = vsel %vm4200, %v4193, %v4197
        %v4202 = vand.u32 2147483647, %v3007
        %vm4203 = vcmp.eq.f32.partialorder %v4202, 8.507059e+37
        %v4204 = vand.u32 %v3007, 2147483648
        %v4205 = vor.u32 1.1754944e-38, %v4204
        %v4206 = vsel %vm4203, %v4205, %v4201
        %v4207 = vmul.f32 %v4147, %v4206
        %v4208 = vrcp.pop %v3019
        %v4209 = vmul.f32 %v3019, %v4208
        %v4210 = vsub.f32 1.0, %v4209
        %v4211 = vmul.f32 %v4208, %v4210
        %v4212 = vadd.f32 %v4208, %v4211
        %vm4213 = vweird.f32 %v3019
        %vm4214 = vweird.f32 %v4208
        %vm4215 = vmor %vm4213, %vm4214
        %v4216 = vsel %vm4215, %v4208, %v4212
        %v4217 = vand.u32 2147483647, %v3019
        %vm4218 = vcmp.eq.f32.partialorder %v4217, 8.507059e+37
        %v4219 = vand.u32 %v3019, 2147483648
        %v4220 = vor.u32 1.1754944e-38, %v4219
        %v4221 = vsel %vm4218, %v4220, %v4216
        %v4222 = vmul.f32 %v4148, %v4221
        %v4223 = vrcp.pop %v3031
        %v4224 = vmul.f32 %v3031, %v4223
        %v4225 = vsub.f32 1.0, %v4224
        %v4226 = vmul.f32 %v4223, %v4225
        %v4227 = vadd.f32 %v4223, %v4226
        %vm4228 = vweird.f32 %v3031
        %vm4229 = vweird.f32 %v4223
        %vm4230 = vmor %vm4228, %vm4229
        %v4231 = vsel %vm4230, %v4223, %v4227
        %v4232 = vand.u32 2147483647, %v3031
        %vm4233 = vcmp.eq.f32.partialorder %v4232, 8.507059e+37
        %v4234 = vand.u32 %v3031, 2147483648
        %v4235 = vor.u32 1.1754944e-38, %v4234
        %v4236 = vsel %vm4233, %v4235, %v4231
        %v4237 = vmul.f32 %v4149, %v4236
        %v4238 = vrcp.pop %v3043
        %v4239 = vmul.f32 %v3043, %v4238
        %v4240 = vsub.f32 1.0, %v4239
        %v4241 = vmul.f32 %v4238, %v4240
        %v4242 = vadd.f32 %v4238, %v4241
        %vm4243 = vweird.f32 %v3043
        %vm4244 = vweird.f32 %v4238
        %vm4245 = vmor %vm4243, %vm4244
        %v4246 = vsel %vm4245, %v4238, %v4242
        %v4247 = vand.u32 2147483647, %v3043
        %vm4248 = vcmp.eq.f32.partialorder %v4247, 8.507059e+37
        %v4249 = vand.u32 %v3043, 2147483648
        %v4250 = vor.u32 1.1754944e-38, %v4249
        %v4251 = vsel %vm4248, %v4250, %v4246
        %v4252 = vmul.f32 %v4150, %v4251
        %v4253 = vrcp.pop %v3055
        %v4254 = vmul.f32 %v3055, %v4253
        %v4255 = vsub.f32 1.0, %v4254
        %v4256 = vmul.f32 %v4253, %v4255
        %v4257 = vadd.f32 %v4253, %v4256
        %vm4258 = vweird.f32 %v3055
        %vm4259 = vweird.f32 %v4253
        %vm4260 = vmor %vm4258, %vm4259
        %v4261 = vsel %vm4260, %v4253, %v4257
        %v4262 = vand.u32 2147483647, %v3055
        %vm4263 = vcmp.eq.f32.partialorder %v4262, 8.507059e+37
        %v4264 = vand.u32 %v3055, 2147483648
        %v4265 = vor.u32 1.1754944e-38, %v4264
        %v4266 = vsel %vm4263, %v4265, %v4261
        %v4267 = vmul.f32 %v4151, %v4266
        %v4268 = vrcp.pop %v3067
        %v4269 = vmul.f32 %v3067, %v4268
        %v4270 = vsub.f32 1.0, %v4269
        %v4271 = vmul.f32 %v4268, %v4270
        %v4272 = vadd.f32 %v4268, %v4271
        %vm4273 = vweird.f32 %v3067
        %vm4274 = vweird.f32 %v4268
        %vm4275 = vmor %vm4273, %vm4274
        %v4276 = vsel %vm4275, %v4268, %v4272
        %v4277 = vand.u32 2147483647, %v3067
        %vm4278 = vcmp.eq.f32.partialorder %v4277, 8.507059e+37
        %v4279 = vand.u32 %v3067, 2147483648
        %v4280 = vor.u32 1.1754944e-38, %v4279
        %v4281 = vsel %vm4278, %v4280, %v4276
        %v4282 = vmul.f32 %v4152, %v4281
        %v4283 = vrcp.pop %v3079
        %v4284 = vmul.f32 %v3079, %v4283
        %v4285 = vsub.f32 1.0, %v4284
        %v4286 = vmul.f32 %v4283, %v4285
        %v4287 = vadd.f32 %v4283, %v4286
        %vm4288 = vweird.f32 %v3079
        %vm4289 = vweird.f32 %v4283
        %vm4290 = vmor %vm4288, %vm4289
        %v4291 = vsel %vm4290, %v4283, %v4287
        %v4292 = vand.u32 2147483647, %v3079
        %vm4293 = vcmp.eq.f32.partialorder %v4292, 8.507059e+37
        %v4294 = vand.u32 %v3079, 2147483648
        %v4295 = vor.u32 1.1754944e-38, %v4294
        %v4296 = vsel %vm4293, %v4295, %v4291
        %v4297 = vmul.f32 %v4153, %v4296
        %v4298 = vrcp.pop %v3091
        %v4299 = vmul.f32 %v3091, %v4298
        %v4300 = vsub.f32 1.0, %v4299
        %v4301 = vmul.f32 %v4298, %v4300
        %v4302 = vadd.f32 %v4298, %v4301
        %vm4303 = vweird.f32 %v3091
        %vm4304 = vweird.f32 %v4298
        %vm4305 = vmor %vm4303, %vm4304
        %v4306 = vsel %vm4305, %v4298, %v4302
        %v4307 = vand.u32 2147483647, %v3091
        %vm4308 = vcmp.eq.f32.partialorder %v4307, 8.507059e+37
        %v4309 = vand.u32 %v3091, 2147483648
        %v4310 = vor.u32 1.1754944e-38, %v4309
        %v4311 = vsel %vm4308, %v4310, %v4306
        %v4312 = vmul.f32 %v4154, %v4311
        %v4313 = vrcp.pop %v3103
        %v4314 = vmul.f32 %v3103, %v4313
        %v4315 = vsub.f32 1.0, %v4314
        %v4316 = vmul.f32 %v4313, %v4315
        %v4317 = vadd.f32 %v4313, %v4316
        %vm4318 = vweird.f32 %v3103
        %vm4319 = vweird.f32 %v4313
        %vm4320 = vmor %vm4318, %vm4319
        %v4321 = vsel %vm4320, %v4313, %v4317
        %v4322 = vand.u32 2147483647, %v3103
        %vm4323 = vcmp.eq.f32.partialorder %v4322, 8.507059e+37
        %v4324 = vand.u32 %v3103, 2147483648
        %v4325 = vor.u32 1.1754944e-38, %v4324
        %v4326 = vsel %vm4323, %v4325, %v4321
        %v4327 = vmul.f32 %v4155, %v4326
        %v4328 = vrcp.pop %v3115
        %v4329 = vmul.f32 %v3115, %v4328
        %v4330 = vsub.f32 1.0, %v4329
        %v4331 = vmul.f32 %v4328, %v4330
        %v4332 = vadd.f32 %v4328, %v4331
        %vm4333 = vweird.f32 %v3115
        %vm4334 = vweird.f32 %v4328
        %vm4335 = vmor %vm4333, %vm4334
        %v4336 = vsel %vm4335, %v4328, %v4332
        %v4337 = vand.u32 2147483647, %v3115
        %vm4338 = vcmp.eq.f32.partialorder %v4337, 8.507059e+37
        %v4339 = vand.u32 %v3115, 2147483648
        %v4340 = vor.u32 1.1754944e-38, %v4339
        %v4341 = vsel %vm4338, %v4340, %v4336
        %v4342 = vmul.f32 %v4156, %v4341
        %v4343 = vrcp.pop %v3127
        %v4344 = vmul.f32 %v3127, %v4343
        %v4345 = vsub.f32 1.0, %v4344
        %v4346 = vmul.f32 %v4343, %v4345
        %v4347 = vadd.f32 %v4343, %v4346
        %vm4348 = vweird.f32 %v3127
        %vm4349 = vweird.f32 %v4343
        %vm4350 = vmor %vm4348, %vm4349
        %v4351 = vsel %vm4350, %v4343, %v4347
        %v4352 = vand.u32 2147483647, %v3127
        %vm4353 = vcmp.eq.f32.partialorder %v4352, 8.507059e+37
        %v4354 = vand.u32 %v3127, 2147483648
        %v4355 = vor.u32 1.1754944e-38, %v4354
        %v4356 = vsel %vm4353, %v4355, %v4351
        %v4357 = vmul.f32 %v4157, %v4356
        %v4358 = vrcp.pop %v3139
        %v4359 = vmul.f32 %v3139, %v4358
        %v4360 = vsub.f32 1.0, %v4359
        %v4361 = vmul.f32 %v4358, %v4360
        %v4362 = vadd.f32 %v4358, %v4361
        %vm4363 = vweird.f32 %v3139
        %vm4364 = vweird.f32 %v4358
        %vm4365 = vmor %vm4363, %vm4364
        %v4366 = vsel %vm4365, %v4358, %v4362
        %v4367 = vand.u32 2147483647, %v3139
        %vm4368 = vcmp.eq.f32.partialorder %v4367, 8.507059e+37
        %v4369 = vand.u32 %v3139, 2147483648
        %v4370 = vor.u32 1.1754944e-38, %v4369
        %v4371 = vsel %vm4368, %v4370, %v4366
        %v4372 = vmul.f32 %v4158, %v4371
        %v4373 = vrcp.pop %v3151
        %v4374 = vmul.f32 %v3151, %v4373
        %v4375 = vsub.f32 1.0, %v4374
        %v4376 = vmul.f32 %v4373, %v4375
        %v4377 = vadd.f32 %v4373, %v4376
        %vm4378 = vweird.f32 %v3151
        %vm4379 = vweird.f32 %v4373
        %vm4380 = vmor %vm4378, %vm4379
        %v4381 = vsel %vm4380, %v4373, %v4377
        %v4382 = vand.u32 2147483647, %v3151
        %vm4383 = vcmp.eq.f32.partialorder %v4382, 8.507059e+37
        %v4384 = vand.u32 %v3151, 2147483648
        %v4385 = vor.u32 1.1754944e-38, %v4384
        %v4386 = vsel %vm4383, %v4385, %v4381
        %v4387 = vmul.f32 %v4159, %v4386
        %v4388 = vrcp.pop %v3163
        %v4389 = vmul.f32 %v3163, %v4388
        %v4390 = vsub.f32 1.0, %v4389
        %v4391 = vmul.f32 %v4388, %v4390
        %v4392 = vadd.f32 %v4388, %v4391
        %vm4393 = vweird.f32 %v3163
        %vm4394 = vweird.f32 %v4388
        %vm4395 = vmor %vm4393, %vm4394
        %v4396 = vsel %vm4395, %v4388, %v4392
        %v4397 = vand.u32 2147483647, %v3163
        %vm4398 = vcmp.eq.f32.partialorder %v4397, 8.507059e+37
        %v4399 = vand.u32 %v3163, 2147483648
        %v4400 = vor.u32 1.1754944e-38, %v4399
        %v4401 = vsel %vm4398, %v4400, %v4396
        %v4402 = vmul.f32 %v4160, %v4401
        %v4403 = vrcp.pop %v3175
        %v4404 = vmul.f32 %v3175, %v4403
        %v4405 = vsub.f32 1.0, %v4404
        %v4406 = vmul.f32 %v4403, %v4405
        %v4407 = vadd.f32 %v4403, %v4406
        %vm4408 = vweird.f32 %v3175
        %vm4409 = vweird.f32 %v4403
        %vm4410 = vmor %vm4408, %vm4409
        %v4411 = vsel %vm4410, %v4403, %v4407
        %v4412 = vand.u32 2147483647, %v3175
        %vm4413 = vcmp.eq.f32.partialorder %v4412, 8.507059e+37
        %v4414 = vand.u32 %v3175, 2147483648
        %v4415 = vor.u32 1.1754944e-38, %v4414
        %v4416 = vsel %vm4413, %v4415, %v4411
        %v4417 = vmul.f32 %v4161, %v4416
        %v4418 = vrcp.pop %v3187
        %v4419 = vmul.f32 %v3187, %v4418
        %v4420 = vsub.f32 1.0, %v4419
        %v4421 = vmul.f32 %v4418, %v4420
        %v4422 = vadd.f32 %v4418, %v4421
        %vm4423 = vweird.f32 %v3187
        %vm4424 = vweird.f32 %v4418
        %vm4425 = vmor %vm4423, %vm4424
        %v4426 = vsel %vm4425, %v4418, %v4422
        %v4427 = vand.u32 2147483647, %v3187
        %vm4428 = vcmp.eq.f32.partialorder %v4427, 8.507059e+37
        %v4429 = vand.u32 %v3187, 2147483648
        %v4430 = vor.u32 1.1754944e-38, %v4429
        %v4431 = vsel %vm4428, %v4430, %v4426
        %v4432 = vmul.f32 %v4162, %v4431
        %v4433 = vrcp.pop %v3199
        %v4434 = vmul.f32 %v3199, %v4433
        %v4435 = vsub.f32 1.0, %v4434
        %v4436 = vmul.f32 %v4433, %v4435
        %v4437 = vadd.f32 %v4433, %v4436
        %vm4438 = vweird.f32 %v3199
        %vm4439 = vweird.f32 %v4433
        %vm4440 = vmor %vm4438, %vm4439
        %v4441 = vsel %vm4440, %v4433, %v4437
        %v4442 = vand.u32 2147483647, %v3199
        %vm4443 = vcmp.eq.f32.partialorder %v4442, 8.507059e+37
        %v4444 = vand.u32 %v3199, 2147483648
        %v4445 = vor.u32 1.1754944e-38, %v4444
        %v4446 = vsel %vm4443, %v4445, %v4441
        %v4447 = vmul.f32 %v4163, %v4446
        %v4448 = vrcp.pop %v3211
        %v4449 = vmul.f32 %v3211, %v4448
        %v4450 = vsub.f32 1.0, %v4449
        %v4451 = vmul.f32 %v4448, %v4450
        %v4452 = vadd.f32 %v4448, %v4451
        %vm4453 = vweird.f32 %v3211
        %vm4454 = vweird.f32 %v4448
        %vm4455 = vmor %vm4453, %vm4454
        %v4456 = vsel %vm4455, %v4448, %v4452
        %v4457 = vand.u32 2147483647, %v3211
        %vm4458 = vcmp.eq.f32.partialorder %v4457, 8.507059e+37
        %v4459 = vand.u32 %v3211, 2147483648
        %v4460 = vor.u32 1.1754944e-38, %v4459
        %v4461 = vsel %vm4458, %v4460, %v4456
        %v4462 = vmul.f32 %v4164, %v4461
        %v4463 = vrcp.pop %v3223
        %v4464 = vmul.f32 %v3223, %v4463
        %v4465 = vsub.f32 1.0, %v4464
        %v4466 = vmul.f32 %v4463, %v4465
        %v4467 = vadd.f32 %v4463, %v4466
        %vm4468 = vweird.f32 %v3223
        %vm4469 = vweird.f32 %v4463
        %vm4470 = vmor %vm4468, %vm4469
        %v4471 = vsel %vm4470, %v4463, %v4467
        %v4472 = vand.u32 2147483647, %v3223
        %vm4473 = vcmp.eq.f32.partialorder %v4472, 8.507059e+37
        %v4474 = vand.u32 %v3223, 2147483648
        %v4475 = vor.u32 1.1754944e-38, %v4474
        %v4476 = vsel %vm4473, %v4475, %v4471
        %v4477 = vmul.f32 %v4165, %v4476
        %v4478 = vrcp.pop %v3235
        %v4479 = vmul.f32 %v3235, %v4478
        %v4480 = vsub.f32 1.0, %v4479
        %v4481 = vmul.f32 %v4478, %v4480
        %v4482 = vadd.f32 %v4478, %v4481
        %vm4483 = vweird.f32 %v3235
        %vm4484 = vweird.f32 %v4478
        %vm4485 = vmor %vm4483, %vm4484
        %v4486 = vsel %vm4485, %v4478, %v4482
        %v4487 = vand.u32 2147483647, %v3235
        %vm4488 = vcmp.eq.f32.partialorder %v4487, 8.507059e+37
        %v4489 = vand.u32 %v3235, 2147483648
        %v4490 = vor.u32 1.1754944e-38, %v4489
        %v4491 = vsel %vm4488, %v4490, %v4486
        %v4492 = vmul.f32 %v4166, %v4491
        %v4493 = vrcp.pop %v3247
        %v4494 = vmul.f32 %v3247, %v4493
        %v4495 = vsub.f32 1.0, %v4494
        %v4496 = vmul.f32 %v4493, %v4495
        %v4497 = vadd.f32 %v4493, %v4496
        %vm4498 = vweird.f32 %v3247
        %vm4499 = vweird.f32 %v4493
        %vm4500 = vmor %vm4498, %vm4499
        %v4501 = vsel %vm4500, %v4493, %v4497
        %v4502 = vand.u32 2147483647, %v3247
        %vm4503 = vcmp.eq.f32.partialorder %v4502, 8.507059e+37
        %v4504 = vand.u32 %v3247, 2147483648
        %v4505 = vor.u32 1.1754944e-38, %v4504
        %v4506 = vsel %vm4503, %v4505, %v4501
        %v4507 = vmul.f32 %v4167, %v4506
        %v4508 = vrcp.pop %v3259
        %v4509 = vmul.f32 %v3259, %v4508
        %v4510 = vsub.f32 1.0, %v4509
        %v4511 = vmul.f32 %v4508, %v4510
        %v4512 = vadd.f32 %v4508, %v4511
        %vm4513 = vweird.f32 %v3259
        %vm4514 = vweird.f32 %v4508
        %vm4515 = vmor %vm4513, %vm4514
        %v4516 = vsel %vm4515, %v4508, %v4512
        %v4517 = vand.u32 2147483647, %v3259
        %vm4518 = vcmp.eq.f32.partialorder %v4517, 8.507059e+37
        %v4519 = vand.u32 %v3259, 2147483648
        %v4520 = vor.u32 1.1754944e-38, %v4519
        %v4521 = vsel %vm4518, %v4520, %v4516
        %v4522 = vmul.f32 %v4168, %v4521
        %v4523 = vrcp.pop %v3271
        %v4524 = vmul.f32 %v3271, %v4523
        %v4525 = vsub.f32 1.0, %v4524
        %v4526 = vmul.f32 %v4523, %v4525
        %v4527 = vadd.f32 %v4523, %v4526
        %vm4528 = vweird.f32 %v3271
        %vm4529 = vweird.f32 %v4523
        %vm4530 = vmor %vm4528, %vm4529
        %v4531 = vsel %vm4530, %v4523, %v4527
        %v4532 = vand.u32 2147483647, %v3271
        %vm4533 = vcmp.eq.f32.partialorder %v4532, 8.507059e+37
        %v4534 = vand.u32 %v3271, 2147483648
        %v4535 = vor.u32 1.1754944e-38, %v4534
        %v4536 = vsel %vm4533, %v4535, %v4531
        %v4537 = vmul.f32 %v4169, %v4536
        %v4538 = vrcp.pop %v3283
        %v4539 = vmul.f32 %v3283, %v4538
        %v4540 = vsub.f32 1.0, %v4539
        %v4541 = vmul.f32 %v4538, %v4540
        %v4542 = vadd.f32 %v4538, %v4541
        %vm4543 = vweird.f32 %v3283
        %vm4544 = vweird.f32 %v4538
        %vm4545 = vmor %vm4543, %vm4544
        %v4546 = vsel %vm4545, %v4538, %v4542
        %v4547 = vand.u32 2147483647, %v3283
        %vm4548 = vcmp.eq.f32.partialorder %v4547, 8.507059e+37
        %v4549 = vand.u32 %v3283, 2147483648
        %v4550 = vor.u32 1.1754944e-38, %v4549
        %v4551 = vsel %vm4548, %v4550, %v4546
        %v4552 = vmul.f32 %v4170, %v4551
        %v4553 = vrcp.pop %v3295
        %v4554 = vmul.f32 %v3295, %v4553
        %v4555 = vsub.f32 1.0, %v4554
        %v4556 = vmul.f32 %v4553, %v4555
        %v4557 = vadd.f32 %v4553, %v4556
        %vm4558 = vweird.f32 %v3295
        %vm4559 = vweird.f32 %v4553
        %vm4560 = vmor %vm4558, %vm4559
        %v4561 = vsel %vm4560, %v4553, %v4557
        %v4562 = vand.u32 2147483647, %v3295
        %vm4563 = vcmp.eq.f32.partialorder %v4562, 8.507059e+37
        %v4564 = vand.u32 %v3295, 2147483648
        %v4565 = vor.u32 1.1754944e-38, %v4564
        %v4566 = vsel %vm4563, %v4565, %v4561
        %v4567 = vmul.f32 %v4171, %v4566
        %v4568 = vrcp.pop %v3307
        %v4569 = vmul.f32 %v3307, %v4568
        %v4570 = vsub.f32 1.0, %v4569
        %v4571 = vmul.f32 %v4568, %v4570
        %v4572 = vadd.f32 %v4568, %v4571
        %vm4573 = vweird.f32 %v3307
        %vm4574 = vweird.f32 %v4568
        %vm4575 = vmor %vm4573, %vm4574
        %v4576 = vsel %vm4575, %v4568, %v4572
        %v4577 = vand.u32 2147483647, %v3307
        %vm4578 = vcmp.eq.f32.partialorder %v4577, 8.507059e+37
        %v4579 = vand.u32 %v3307, 2147483648
        %v4580 = vor.u32 1.1754944e-38, %v4579
        %v4581 = vsel %vm4578, %v4580, %v4576
        %v4582 = vmul.f32 %v4172, %v4581
        %v4583 = vrcp.pop %v3319
        %v4584 = vmul.f32 %v3319, %v4583
        %v4585 = vsub.f32 1.0, %v4584
        %v4586 = vmul.f32 %v4583, %v4585
        %v4587 = vadd.f32 %v4583, %v4586
        %vm4588 = vweird.f32 %v3319
        %vm4589 = vweird.f32 %v4583
        %vm4590 = vmor %vm4588, %vm4589
        %v4591 = vsel %vm4590, %v4583, %v4587
        %v4592 = vand.u32 2147483647, %v3319
        %vm4593 = vcmp.eq.f32.partialorder %v4592, 8.507059e+37
        %v4594 = vand.u32 %v3319, 2147483648
        %v4595 = vor.u32 1.1754944e-38, %v4594
        %v4596 = vsel %vm4593, %v4595, %v4591
        %v4597 = vmul.f32 %v4173, %v4596
        %v4598 = vrcp.pop %v3331
        %v4599 = vmul.f32 %v3331, %v4598
        %v4600 = vsub.f32 1.0, %v4599
        %v4601 = vmul.f32 %v4598, %v4600
        %v4602 = vadd.f32 %v4598, %v4601
        %vm4603 = vweird.f32 %v3331
        %vm4604 = vweird.f32 %v4598
        %vm4605 = vmor %vm4603, %vm4604
        %v4606 = vsel %vm4605, %v4598, %v4602
        %v4607 = vand.u32 2147483647, %v3331
        %vm4608 = vcmp.eq.f32.partialorder %v4607, 8.507059e+37
        %v4609 = vand.u32 %v3331, 2147483648
        %v4610 = vor.u32 1.1754944e-38, %v4609
        %v4611 = vsel %vm4608, %v4610, %v4606
        %v4612 = vmul.f32 %v4174, %v4611
        %v4613 = vrcp.pop %v3343
        %v4614 = vmul.f32 %v3343, %v4613
        %v4615 = vsub.f32 1.0, %v4614
        %v4616 = vmul.f32 %v4613, %v4615
        %v4617 = vadd.f32 %v4613, %v4616
        %vm4618 = vweird.f32 %v3343
        %vm4619 = vweird.f32 %v4613
        %vm4620 = vmor %vm4618, %vm4619
        %v4621 = vsel %vm4620, %v4613, %v4617
        %v4622 = vand.u32 2147483647, %v3343
        %vm4623 = vcmp.eq.f32.partialorder %v4622, 8.507059e+37
        %v4624 = vand.u32 %v3343, 2147483648
        %v4625 = vor.u32 1.1754944e-38, %v4624
        %v4626 = vsel %vm4623, %v4625, %v4621
        %v4627 = vmul.f32 %v4175, %v4626
        %v4628 = vrcp.pop %v3355
        %v4629 = vmul.f32 %v3355, %v4628
        %v4630 = vsub.f32 1.0, %v4629
        %v4631 = vmul.f32 %v4628, %v4630
        %v4632 = vadd.f32 %v4628, %v4631
        %vm4633 = vweird.f32 %v3355
        %vm4634 = vweird.f32 %v4628
        %vm4635 = vmor %vm4633, %vm4634
        %v4636 = vsel %vm4635, %v4628, %v4632
        %v4637 = vand.u32 2147483647, %v3355
        %vm4638 = vcmp.eq.f32.partialorder %v4637, 8.507059e+37
        %v4639 = vand.u32 %v3355, 2147483648
        %v4640 = vor.u32 1.1754944e-38, %v4639
        %v4641 = vsel %vm4638, %v4640, %v4636
        %v4642 = vmul.f32 %v4176, %v4641
        %v4643 = vrcp.pop %v3367
        %v4644 = vmul.f32 %v3367, %v4643
        %v4645 = vsub.f32 1.0, %v4644
        %v4646 = vmul.f32 %v4643, %v4645
        %v4647 = vadd.f32 %v4643, %v4646
        %vm4648 = vweird.f32 %v3367
        %vm4649 = vweird.f32 %v4643
        %vm4650 = vmor %vm4648, %vm4649
        %v4651 = vsel %vm4650, %v4643, %v4647
        %v4652 = vand.u32 2147483647, %v3367
        %vm4653 = vcmp.eq.f32.partialorder %v4652, 8.507059e+37
        %v4654 = vand.u32 %v3367, 2147483648
        %v4655 = vor.u32 1.1754944e-38, %v4654
        %v4656 = vsel %vm4653, %v4655, %v4651
        %v4657 = vmul.f32 %v4177, %v4656
        %v4658 = vmul.f32 %v4192, %v4192
        %v4659 = vmul.f32 %v4207, %v4207
        %v4660 = vmul.f32 %v4222, %v4222
        %v4661 = vmul.f32 %v4237, %v4237
        %v4662 = vmul.f32 %v4252, %v4252
        %v4663 = vmul.f32 %v4267, %v4267
        %v4664 = vmul.f32 %v4282, %v4282
        %v4665 = vmul.f32 %v4297, %v4297
        %v4666 = vmul.f32 %v4312, %v4312
        %v4667 = vmul.f32 %v4327, %v4327
        %v4668 = vmul.f32 %v4342, %v4342
        %v4669 = vmul.f32 %v4357, %v4357
        %v4670 = vmul.f32 %v4372, %v4372
        %v4671 = vmul.f32 %v4387, %v4387
        %v4672 = vmul.f32 %v4402, %v4402
        %v4673 = vmul.f32 %v4417, %v4417
        %v4674 = vmul.f32 %v4432, %v4432
        %v4675 = vmul.f32 %v4447, %v4447
        %v4676 = vmul.f32 %v4462, %v4462
        %v4677 = vmul.f32 %v4477, %v4477
        %v4678 = vmul.f32 %v4492, %v4492
        %v4679 = vmul.f32 %v4507, %v4507
        %v4680 = vmul.f32 %v4522, %v4522
        %v4681 = vmul.f32 %v4537, %v4537
        %v4682 = vmul.f32 %v4552, %v4552
        %v4683 = vmul.f32 %v4567, %v4567
        %v4684 = vmul.f32 %v4582, %v4582
        %v4685 = vmul.f32 %v4597, %v4597
        %v4686 = vmul.f32 %v4612, %v4612
        %v4687 = vmul.f32 %v4627, %v4627
        %v4688 = vmul.f32 %v4642, %v4642
        %v4689 = vmul.f32 %v4657, %v4657
        %v4690 = vsub.f32 %v4082, %v4658
        %v4691 = vsub.f32 %v4083, %v4659
        %v4692 = vsub.f32 %v4084, %v4660
        %v4693 = vsub.f32 %v4085, %v4661
        %v4694 = vsub.f32 %v4086, %v4662
        %v4695 = vsub.f32 %v4087, %v4663
        %v4696 = vsub.f32 %v4088, %v4664
        %v4697 = vsub.f32 %v4089, %v4665
        %v4698 = vsub.f32 %v4090, %v4666
        %v4699 = vsub.f32 %v4091, %v4667
        %v4700 = vsub.f32 %v4092, %v4668
        %v4701 = vsub.f32 %v4093, %v4669
        %v4702 = vsub.f32 %v4094, %v4670
        %v4703 = vsub.f32 %v4095, %v4671
        %v4704 = vsub.f32 %v4096, %v4672
        %v4705 = vsub.f32 %v4097, %v4673
        %v4706 = vsub.f32 %v4098, %v4674
        %v4707 = vsub.f32 %v4099, %v4675
        %v4708 = vsub.f32 %v4100, %v4676
        %v4709 = vsub.f32 %v4101, %v4677
        %v4710 = vsub.f32 %v4102, %v4678
        %v4711 = vsub.f32 %v4103, %v4679
        %v4712 = vsub.f32 %v4104, %v4680
        %v4713 = vsub.f32 %v4105, %v4681
        %v4714 = vsub.f32 %v4106, %v4682
        %v4715 = vsub.f32 %v4107, %v4683
        %v4716 = vsub.f32 %v4108, %v4684
        %v4717 = vsub.f32 %v4109, %v4685
        %v4718 = vsub.f32 %v4110, %v4686
        %v4719 = vsub.f32 %v4111, %v4687
        %v4720 = vsub.f32 %v4112, %v4688
        %v4721 = vsub.f32 %v4113, %v4689
        %v4722 = vmax.f32 %v4690, 0.004
        %v4723 = vmax.f32 %v4691, 0.004
        %v4724 = vmax.f32 %v4692, 0.004
        %v4725 = vmax.f32 %v4693, 0.004
        %v4726 = vmax.f32 %v4694, 0.004
        %v4727 = vmax.f32 %v4695, 0.004
        %v4728 = vmax.f32 %v4696, 0.004
        %v4729 = vmax.f32 %v4697, 0.004
        %v4730 = vmax.f32 %v4698, 0.004
        %v4731 = vmax.f32 %v4699, 0.004
        %v4732 = vmax.f32 %v4700, 0.004
        %v4733 = vmax.f32 %v4701, 0.004
        %v4734 = vmax.f32 %v4702, 0.004
        %v4735 = vmax.f32 %v4703, 0.004
        %v4736 = vmax.f32 %v4704, 0.004
        %v4737 = vmax.f32 %v4705, 0.004
        %v4738 = vmax.f32 %v4706, 0.004
        %v4739 = vmax.f32 %v4707, 0.004
        %v4740 = vmax.f32 %v4708, 0.004
        %v4741 = vmax.f32 %v4709, 0.004
        %v4742 = vmax.f32 %v4710, 0.004
        %v4743 = vmax.f32 %v4711, 0.004
        %v4744 = vmax.f32 %v4712, 0.004
        %v4745 = vmax.f32 %v4713, 0.004
        %v4746 = vmax.f32 %v4714, 0.004
        %v4747 = vmax.f32 %v4715, 0.004
        %v4748 = vmax.f32 %v4716, 0.004
        %v4749 = vmax.f32 %v4717, 0.004
        %v4750 = vmax.f32 %v4718, 0.004
        %v4751 = vmax.f32 %v4719, 0.004
        %v4752 = vmax.f32 %v4720, 0.004
        %v4753 = vmax.f32 %v4721, 0.004
        %v4754 = vrsqrt.pop %v4722
        %v4755 = vmul.f32 %v4754, %v4722
        %v4756 = vmul.f32 %v4755, %v4754
        %v4757 = vmul.f32 0.5, %v4756
        %v4758 = vsub.f32 1.5, %v4757
        %v4759 = vmul.f32 %v4754, %v4758
        %v4760 = vmul.f32 %v4722, %v4759
        %vm4761 = vcmp.eq.f32.partialorder %v4722, inf
        %v4762 = vsel %vm4761, %v4722, %v4760
        %vm4763 = vcmp.eq.f32.partialorder %v4722, 0.0
        %v4764 = vand.u32 %v4722, 2147483648
        %v4765 = vsel %vm4763, %v4764, %v4762
        %v4766 = vrsqrt.pop %v4723
        %v4767 = vmul.f32 %v4766, %v4723
        %v4768 = vmul.f32 %v4767, %v4766
        %v4769 = vmul.f32 0.5, %v4768
        %v4770 = vsub.f32 1.5, %v4769
        %v4771 = vmul.f32 %v4766, %v4770
        %v4772 = vmul.f32 %v4723, %v4771
        %vm4773 = vcmp.eq.f32.partialorder %v4723, inf
        %v4774 = vsel %vm4773, %v4723, %v4772
        %vm4775 = vcmp.eq.f32.partialorder %v4723, 0.0
        %v4776 = vand.u32 %v4723, 2147483648
        %v4777 = vsel %vm4775, %v4776, %v4774
        %v4778 = vrsqrt.pop %v4724
        %v4779 = vmul.f32 %v4778, %v4724
        %v4780 = vmul.f32 %v4779, %v4778
        %v4781 = vmul.f32 0.5, %v4780
        %v4782 = vsub.f32 1.5, %v4781
        %v4783 = vmul.f32 %v4778, %v4782
        %v4784 = vmul.f32 %v4724, %v4783
        %vm4785 = vcmp.eq.f32.partialorder %v4724, inf
        %v4786 = vsel %vm4785, %v4724, %v4784
        %vm4787 = vcmp.eq.f32.partialorder %v4724, 0.0
        %v4788 = vand.u32 %v4724, 2147483648
        %v4789 = vsel %vm4787, %v4788, %v4786
        %v4790 = vrsqrt.pop %v4725
        %v4791 = vmul.f32 %v4790, %v4725
        %v4792 = vmul.f32 %v4791, %v4790
        %v4793 = vmul.f32 0.5, %v4792
        %v4794 = vsub.f32 1.5, %v4793
        %v4795 = vmul.f32 %v4790, %v4794
        %v4796 = vmul.f32 %v4725, %v4795
        %vm4797 = vcmp.eq.f32.partialorder %v4725, inf
        %v4798 = vsel %vm4797, %v4725, %v4796
        %vm4799 = vcmp.eq.f32.partialorder %v4725, 0.0
        %v4800 = vand.u32 %v4725, 2147483648
        %v4801 = vsel %vm4799, %v4800, %v4798
        %v4802 = vrsqrt.pop %v4726
        %v4803 = vmul.f32 %v4802, %v4726
        %v4804 = vmul.f32 %v4803, %v4802
        %v4805 = vmul.f32 0.5, %v4804
        %v4806 = vsub.f32 1.5, %v4805
        %v4807 = vmul.f32 %v4802, %v4806
        %v4808 = vmul.f32 %v4726, %v4807
        %vm4809 = vcmp.eq.f32.partialorder %v4726, inf
        %v4810 = vsel %vm4809, %v4726, %v4808
        %vm4811 = vcmp.eq.f32.partialorder %v4726, 0.0
        %v4812 = vand.u32 %v4726, 2147483648
        %v4813 = vsel %vm4811, %v4812, %v4810
        %v4814 = vrsqrt.pop %v4727
        %v4815 = vmul.f32 %v4814, %v4727
        %v4816 = vmul.f32 %v4815, %v4814
        %v4817 = vmul.f32 0.5, %v4816
        %v4818 = vsub.f32 1.5, %v4817
        %v4819 = vmul.f32 %v4814, %v4818
        %v4820 = vmul.f32 %v4727, %v4819
        %vm4821 = vcmp.eq.f32.partialorder %v4727, inf
        %v4822 = vsel %vm4821, %v4727, %v4820
        %vm4823 = vcmp.eq.f32.partialorder %v4727, 0.0
        %v4824 = vand.u32 %v4727, 2147483648
        %v4825 = vsel %vm4823, %v4824, %v4822
        %v4826 = vrsqrt.pop %v4728
        %v4827 = vmul.f32 %v4826, %v4728
        %v4828 = vmul.f32 %v4827, %v4826
        %v4829 = vmul.f32 0.5, %v4828
        %v4830 = vsub.f32 1.5, %v4829
        %v4831 = vmul.f32 %v4826, %v4830
        %v4832 = vmul.f32 %v4728, %v4831
        %vm4833 = vcmp.eq.f32.partialorder %v4728, inf
        %v4834 = vsel %vm4833, %v4728, %v4832
        %vm4835 = vcmp.eq.f32.partialorder %v4728, 0.0
        %v4836 = vand.u32 %v4728, 2147483648
        %v4837 = vsel %vm4835, %v4836, %v4834
        %v4838 = vrsqrt.pop %v4729
        %v4839 = vmul.f32 %v4838, %v4729
        %v4840 = vmul.f32 %v4839, %v4838
        %v4841 = vmul.f32 0.5, %v4840
        %v4842 = vsub.f32 1.5, %v4841
        %v4843 = vmul.f32 %v4838, %v4842
        %v4844 = vmul.f32 %v4729, %v4843
        %vm4845 = vcmp.eq.f32.partialorder %v4729, inf
        %v4846 = vsel %vm4845, %v4729, %v4844
        %vm4847 = vcmp.eq.f32.partialorder %v4729, 0.0
        %v4848 = vand.u32 %v4729, 2147483648
        %v4849 = vsel %vm4847, %v4848, %v4846
        %v4850 = vrsqrt.pop %v4730
        %v4851 = vmul.f32 %v4850, %v4730
        %v4852 = vmul.f32 %v4851, %v4850
        %v4853 = vmul.f32 0.5, %v4852
        %v4854 = vsub.f32 1.5, %v4853
        %v4855 = vmul.f32 %v4850, %v4854
        %v4856 = vmul.f32 %v4730, %v4855
        %vm4857 = vcmp.eq.f32.partialorder %v4730, inf
        %v4858 = vsel %vm4857, %v4730, %v4856
        %vm4859 = vcmp.eq.f32.partialorder %v4730, 0.0
        %v4860 = vand.u32 %v4730, 2147483648
        %v4861 = vsel %vm4859, %v4860, %v4858
        %v4862 = vrsqrt.pop %v4731
        %v4863 = vmul.f32 %v4862, %v4731
        %v4864 = vmul.f32 %v4863, %v4862
        %v4865 = vmul.f32 0.5, %v4864
        %v4866 = vsub.f32 1.5, %v4865
        %v4867 = vmul.f32 %v4862, %v4866
        %v4868 = vmul.f32 %v4731, %v4867
        %vm4869 = vcmp.eq.f32.partialorder %v4731, inf
        %v4870 = vsel %vm4869, %v4731, %v4868
        %vm4871 = vcmp.eq.f32.partialorder %v4731, 0.0
        %v4872 = vand.u32 %v4731, 2147483648
        %v4873 = vsel %vm4871, %v4872, %v4870
        %v4874 = vrsqrt.pop %v4732
        %v4875 = vmul.f32 %v4874, %v4732
        %v4876 = vmul.f32 %v4875, %v4874
        %v4877 = vmul.f32 0.5, %v4876
        %v4878 = vsub.f32 1.5, %v4877
        %v4879 = vmul.f32 %v4874, %v4878
        %v4880 = vmul.f32 %v4732, %v4879
        %vm4881 = vcmp.eq.f32.partialorder %v4732, inf
        %v4882 = vsel %vm4881, %v4732, %v4880
        %vm4883 = vcmp.eq.f32.partialorder %v4732, 0.0
        %v4884 = vand.u32 %v4732, 2147483648
        %v4885 = vsel %vm4883, %v4884, %v4882
        %v4886 = vrsqrt.pop %v4733
        %v4887 = vmul.f32 %v4886, %v4733
        %v4888 = vmul.f32 %v4887, %v4886
        %v4889 = vmul.f32 0.5, %v4888
        %v4890 = vsub.f32 1.5, %v4889
        %v4891 = vmul.f32 %v4886, %v4890
        %v4892 = vmul.f32 %v4733, %v4891
        %vm4893 = vcmp.eq.f32.partialorder %v4733, inf
        %v4894 = vsel %vm4893, %v4733, %v4892
        %vm4895 = vcmp.eq.f32.partialorder %v4733, 0.0
        %v4896 = vand.u32 %v4733, 2147483648
        %v4897 = vsel %vm4895, %v4896, %v4894
        %v4898 = vrsqrt.pop %v4734
        %v4899 = vmul.f32 %v4898, %v4734
        %v4900 = vmul.f32 %v4899, %v4898
        %v4901 = vmul.f32 0.5, %v4900
        %v4902 = vsub.f32 1.5, %v4901
        %v4903 = vmul.f32 %v4898, %v4902
        %v4904 = vmul.f32 %v4734, %v4903
        %vm4905 = vcmp.eq.f32.partialorder %v4734, inf
        %v4906 = vsel %vm4905, %v4734, %v4904
        %vm4907 = vcmp.eq.f32.partialorder %v4734, 0.0
        %v4908 = vand.u32 %v4734, 2147483648
        %v4909 = vsel %vm4907, %v4908, %v4906
        %v4910 = vrsqrt.pop %v4735
        %v4911 = vmul.f32 %v4910, %v4735
        %v4912 = vmul.f32 %v4911, %v4910
        %v4913 = vmul.f32 0.5, %v4912
        %v4914 = vsub.f32 1.5, %v4913
        %v4915 = vmul.f32 %v4910, %v4914
        %v4916 = vmul.f32 %v4735, %v4915
        %vm4917 = vcmp.eq.f32.partialorder %v4735, inf
        %v4918 = vsel %vm4917, %v4735, %v4916
        %vm4919 = vcmp.eq.f32.partialorder %v4735, 0.0
        %v4920 = vand.u32 %v4735, 2147483648
        %v4921 = vsel %vm4919, %v4920, %v4918
        %v4922 = vrsqrt.pop %v4736
        %v4923 = vmul.f32 %v4922, %v4736
        %v4924 = vmul.f32 %v4923, %v4922
        %v4925 = vmul.f32 0.5, %v4924
        %v4926 = vsub.f32 1.5, %v4925
        %v4927 = vmul.f32 %v4922, %v4926
        %v4928 = vmul.f32 %v4736, %v4927
        %vm4929 = vcmp.eq.f32.partialorder %v4736, inf
        %v4930 = vsel %vm4929, %v4736, %v4928
        %vm4931 = vcmp.eq.f32.partialorder %v4736, 0.0
        %v4932 = vand.u32 %v4736, 2147483648
        %v4933 = vsel %vm4931, %v4932, %v4930
        %v4934 = vrsqrt.pop %v4737
        %v4935 = vmul.f32 %v4934, %v4737
        %v4936 = vmul.f32 %v4935, %v4934
        %v4937 = vmul.f32 0.5, %v4936
        %v4938 = vsub.f32 1.5, %v4937
        %v4939 = vmul.f32 %v4934, %v4938
        %v4940 = vmul.f32 %v4737, %v4939
        %vm4941 = vcmp.eq.f32.partialorder %v4737, inf
        %v4942 = vsel %vm4941, %v4737, %v4940
        %vm4943 = vcmp.eq.f32.partialorder %v4737, 0.0
        %v4944 = vand.u32 %v4737, 2147483648
        %v4945 = vsel %vm4943, %v4944, %v4942
        %v4946 = vrsqrt.pop %v4738
        %v4947 = vmul.f32 %v4946, %v4738
        %v4948 = vmul.f32 %v4947, %v4946
        %v4949 = vmul.f32 0.5, %v4948
        %v4950 = vsub.f32 1.5, %v4949
        %v4951 = vmul.f32 %v4946, %v4950
        %v4952 = vmul.f32 %v4738, %v4951
        %vm4953 = vcmp.eq.f32.partialorder %v4738, inf
        %v4954 = vsel %vm4953, %v4738, %v4952
        %vm4955 = vcmp.eq.f32.partialorder %v4738, 0.0
        %v4956 = vand.u32 %v4738, 2147483648
        %v4957 = vsel %vm4955, %v4956, %v4954
        %v4958 = vrsqrt.pop %v4739
        %v4959 = vmul.f32 %v4958, %v4739
        %v4960 = vmul.f32 %v4959, %v4958
        %v4961 = vmul.f32 0.5, %v4960
        %v4962 = vsub.f32 1.5, %v4961
        %v4963 = vmul.f32 %v4958, %v4962
        %v4964 = vmul.f32 %v4739, %v4963
        %vm4965 = vcmp.eq.f32.partialorder %v4739, inf
        %v4966 = vsel %vm4965, %v4739, %v4964
        %vm4967 = vcmp.eq.f32.partialorder %v4739, 0.0
        %v4968 = vand.u32 %v4739, 2147483648
        %v4969 = vsel %vm4967, %v4968, %v4966
        %v4970 = vrsqrt.pop %v4740
        %v4971 = vmul.f32 %v4970, %v4740
        %v4972 = vmul.f32 %v4971, %v4970
        %v4973 = vmul.f32 0.5, %v4972
        %v4974 = vsub.f32 1.5, %v4973
        %v4975 = vmul.f32 %v4970, %v4974
        %v4976 = vmul.f32 %v4740, %v4975
        %vm4977 = vcmp.eq.f32.partialorder %v4740, inf
        %v4978 = vsel %vm4977, %v4740, %v4976
        %vm4979 = vcmp.eq.f32.partialorder %v4740, 0.0
        %v4980 = vand.u32 %v4740, 2147483648
        %v4981 = vsel %vm4979, %v4980, %v4978
        %v4982 = vrsqrt.pop %v4741
        %v4983 = vmul.f32 %v4982, %v4741
        %v4984 = vmul.f32 %v4983, %v4982
        %v4985 = vmul.f32 0.5, %v4984
        %v4986 = vsub.f32 1.5, %v4985
        %v4987 = vmul.f32 %v4982, %v4986
        %v4988 = vmul.f32 %v4741, %v4987
        %vm4989 = vcmp.eq.f32.partialorder %v4741, inf
        %v4990 = vsel %vm4989, %v4741, %v4988
        %vm4991 = vcmp.eq.f32.partialorder %v4741, 0.0
        %v4992 = vand.u32 %v4741, 2147483648
        %v4993 = vsel %vm4991, %v4992, %v4990
        %v4994 = vrsqrt.pop %v4742
        %v4995 = vmul.f32 %v4994, %v4742
        %v4996 = vmul.f32 %v4995, %v4994
        %v4997 = vmul.f32 0.5, %v4996
        %v4998 = vsub.f32 1.5, %v4997
        %v4999 = vmul.f32 %v4994, %v4998
        %v5000 = vmul.f32 %v4742, %v4999
        %vm5001 = vcmp.eq.f32.partialorder %v4742, inf
        %v5002 = vsel %vm5001, %v4742, %v5000
        %vm5003 = vcmp.eq.f32.partialorder %v4742, 0.0
        %v5004 = vand.u32 %v4742, 2147483648
        %v5005 = vsel %vm5003, %v5004, %v5002
        %v5006 = vrsqrt.pop %v4743
        %v5007 = vmul.f32 %v5006, %v4743
        %v5008 = vmul.f32 %v5007, %v5006
        %v5009 = vmul.f32 0.5, %v5008
        %v5010 = vsub.f32 1.5, %v5009
        %v5011 = vmul.f32 %v5006, %v5010
        %v5012 = vmul.f32 %v4743, %v5011
        %vm5013 = vcmp.eq.f32.partialorder %v4743, inf
        %v5014 = vsel %vm5013, %v4743, %v5012
        %vm5015 = vcmp.eq.f32.partialorder %v4743, 0.0
        %v5016 = vand.u32 %v4743, 2147483648
        %v5017 = vsel %vm5015, %v5016, %v5014
        %v5018 = vrsqrt.pop %v4744
        %v5019 = vmul.f32 %v5018, %v4744
        %v5020 = vmul.f32 %v5019, %v5018
        %v5021 = vmul.f32 0.5, %v5020
        %v5022 = vsub.f32 1.5, %v5021
        %v5023 = vmul.f32 %v5018, %v5022
        %v5024 = vmul.f32 %v4744, %v5023
        %vm5025 = vcmp.eq.f32.partialorder %v4744, inf
        %v5026 = vsel %vm5025, %v4744, %v5024
        %vm5027 = vcmp.eq.f32.partialorder %v4744, 0.0
        %v5028 = vand.u32 %v4744, 2147483648
        %v5029 = vsel %vm5027, %v5028, %v5026
        %v5030 = vrsqrt.pop %v4745
        %v5031 = vmul.f32 %v5030, %v4745
        %v5032 = vmul.f32 %v5031, %v5030
        %v5033 = vmul.f32 0.5, %v5032
        %v5034 = vsub.f32 1.5, %v5033
        %v5035 = vmul.f32 %v5030, %v5034
        %v5036 = vmul.f32 %v4745, %v5035
        %vm5037 = vcmp.eq.f32.partialorder %v4745, inf
        %v5038 = vsel %vm5037, %v4745, %v5036
        %vm5039 = vcmp.eq.f32.partialorder %v4745, 0.0
        %v5040 = vand.u32 %v4745, 2147483648
        %v5041 = vsel %vm5039, %v5040, %v5038
        %v5042 = vrsqrt.pop %v4746
        %v5043 = vmul.f32 %v5042, %v4746
        %v5044 = vmul.f32 %v5043, %v5042
        %v5045 = vmul.f32 0.5, %v5044
        %v5046 = vsub.f32 1.5, %v5045
        %v5047 = vmul.f32 %v5042, %v5046
        %v5048 = vmul.f32 %v4746, %v5047
        %vm5049 = vcmp.eq.f32.partialorder %v4746, inf
        %v5050 = vsel %vm5049, %v4746, %v5048
        %vm5051 = vcmp.eq.f32.partialorder %v4746, 0.0
        %v5052 = vand.u32 %v4746, 2147483648
        %v5053 = vsel %vm5051, %v5052, %v5050
        %v5054 = vrsqrt.pop %v4747
        %v5055 = vmul.f32 %v5054, %v4747
        %v5056 = vmul.f32 %v5055, %v5054
        %v5057 = vmul.f32 0.5, %v5056
        %v5058 = vsub.f32 1.5, %v5057
        %v5059 = vmul.f32 %v5054, %v5058
        %v5060 = vmul.f32 %v4747, %v5059
        %vm5061 = vcmp.eq.f32.partialorder %v4747, inf
        %v5062 = vsel %vm5061, %v4747, %v5060
        %vm5063 = vcmp.eq.f32.partialorder %v4747, 0.0
        %v5064 = vand.u32 %v4747, 2147483648
        %v5065 = vsel %vm5063, %v5064, %v5062
        %v5066 = vrsqrt.pop %v4748
        %v5067 = vmul.f32 %v5066, %v4748
        %v5068 = vmul.f32 %v5067, %v5066
        %v5069 = vmul.f32 0.5, %v5068
        %v5070 = vsub.f32 1.5, %v5069
        %v5071 = vmul.f32 %v5066, %v5070
        %v5072 = vmul.f32 %v4748, %v5071
        %vm5073 = vcmp.eq.f32.partialorder %v4748, inf
        %v5074 = vsel %vm5073, %v4748, %v5072
        %vm5075 = vcmp.eq.f32.partialorder %v4748, 0.0
        %v5076 = vand.u32 %v4748, 2147483648
        %v5077 = vsel %vm5075, %v5076, %v5074
        %v5078 = vrsqrt.pop %v4749
        %v5079 = vmul.f32 %v5078, %v4749
        %v5080 = vmul.f32 %v5079, %v5078
        %v5081 = vmul.f32 0.5, %v5080
        %v5082 = vsub.f32 1.5, %v5081
        %v5083 = vmul.f32 %v5078, %v5082
        %v5084 = vmul.f32 %v4749, %v5083
        %vm5085 = vcmp.eq.f32.partialorder %v4749, inf
        %v5086 = vsel %vm5085, %v4749, %v5084
        %vm5087 = vcmp.eq.f32.partialorder %v4749, 0.0
        %v5088 = vand.u32 %v4749, 2147483648
        %v5089 = vsel %vm5087, %v5088, %v5086
        %v5090 = vrsqrt.pop %v4750
        %v5091 = vmul.f32 %v5090, %v4750
        %v5092 = vmul.f32 %v5091, %v5090
        %v5093 = vmul.f32 0.5, %v5092
        %v5094 = vsub.f32 1.5, %v5093
        %v5095 = vmul.f32 %v5090, %v5094
        %v5096 = vmul.f32 %v4750, %v5095
        %vm5097 = vcmp.eq.f32.partialorder %v4750, inf
        %v5098 = vsel %vm5097, %v4750, %v5096
        %vm5099 = vcmp.eq.f32.partialorder %v4750, 0.0
        %v5100 = vand.u32 %v4750, 2147483648
        %v5101 = vsel %vm5099, %v5100, %v5098
        %v5102 = vrsqrt.pop %v4751
        %v5103 = vmul.f32 %v5102, %v4751
        %v5104 = vmul.f32 %v5103, %v5102
        %v5105 = vmul.f32 0.5, %v5104
        %v5106 = vsub.f32 1.5, %v5105
        %v5107 = vmul.f32 %v5102, %v5106
        %v5108 = vmul.f32 %v4751, %v5107
        %vm5109 = vcmp.eq.f32.partialorder %v4751, inf
        %v5110 = vsel %vm5109, %v4751, %v5108
        %vm5111 = vcmp.eq.f32.partialorder %v4751, 0.0
        %v5112 = vand.u32 %v4751, 2147483648
        %v5113 = vsel %vm5111, %v5112, %v5110
        %v5114 = vrsqrt.pop %v4752
        %v5115 = vmul.f32 %v5114, %v4752
        %v5116 = vmul.f32 %v5115, %v5114
        %v5117 = vmul.f32 0.5, %v5116
        %v5118 = vsub.f32 1.5, %v5117
        %v5119 = vmul.f32 %v5114, %v5118
        %v5120 = vmul.f32 %v4752, %v5119
        %vm5121 = vcmp.eq.f32.partialorder %v4752, inf
        %v5122 = vsel %vm5121, %v4752, %v5120
        %vm5123 = vcmp.eq.f32.partialorder %v4752, 0.0
        %v5124 = vand.u32 %v4752, 2147483648
        %v5125 = vsel %vm5123, %v5124, %v5122
        %v5126 = vrsqrt.pop %v4753
        %v5127 = vmul.f32 %v5126, %v4753
        %v5128 = vmul.f32 %v5127, %v5126
        %v5129 = vmul.f32 0.5, %v5128
        %v5130 = vsub.f32 1.5, %v5129
        %v5131 = vmul.f32 %v5126, %v5130
        %v5132 = vmul.f32 %v4753, %v5131
        %vm5133 = vcmp.eq.f32.partialorder %v4753, inf
        %v5134 = vsel %vm5133, %v4753, %v5132
        %vm5135 = vcmp.eq.f32.partialorder %v4753, 0.0
        %v5136 = vand.u32 %v4753, 2147483648
        %v5137 = vsel %vm5135, %v5136, %v5134
        %v5138 = vmin.f32 %v4765, 1000000.0
        %v5139 = vmin.f32 %v4777, 1000000.0
        %v5140 = vmin.f32 %v4789, 1000000.0
        %v5141 = vmin.f32 %v4801, 1000000.0
        %v5142 = vmin.f32 %v4813, 1000000.0
        %v5143 = vmin.f32 %v4825, 1000000.0
        %v5144 = vmin.f32 %v4837, 1000000.0
        %v5145 = vmin.f32 %v4849, 1000000.0
        %v5146 = vmin.f32 %v4861, 1000000.0
        %v5147 = vmin.f32 %v4873, 1000000.0
        %v5148 = vmin.f32 %v4885, 1000000.0
        %v5149 = vmin.f32 %v4897, 1000000.0
        %v5150 = vmin.f32 %v4909, 1000000.0
        %v5151 = vmin.f32 %v4921, 1000000.0
        %v5152 = vmin.f32 %v4933, 1000000.0
        %v5153 = vmin.f32 %v4945, 1000000.0
        %v5154 = vmin.f32 %v4957, 1000000.0
        %v5155 = vmin.f32 %v4969, 1000000.0
        %v5156 = vmin.f32 %v4981, 1000000.0
        %v5157 = vmin.f32 %v4993, 1000000.0
        %v5158 = vmin.f32 %v5005, 1000000.0
        %v5159 = vmin.f32 %v5017, 1000000.0
        %v5160 = vmin.f32 %v5029, 1000000.0
        %v5161 = vmin.f32 %v5041, 1000000.0
        %v5162 = vmin.f32 %v5053, 1000000.0
        %v5163 = vmin.f32 %v5065, 1000000.0
        %v5164 = vmin.f32 %v5077, 1000000.0
        %v5165 = vmin.f32 %v5089, 1000000.0
        %v5166 = vmin.f32 %v5101, 1000000.0
        %v5167 = vmin.f32 %v5113, 1000000.0
        %v5168 = vmin.f32 %v5125, 1000000.0
        %v5169 = vmin.f32 %v5137, 1000000.0
        %v5170 = vmul.f32 %v5138, 1.442695
        %v5171 = vpow.pop %v5170
        %v5172 = vmul.f32 %v5139, 1.442695
        %v5173 = vpow.pop %v5172
        %v5174 = vmul.f32 %v5140, 1.442695
        %v5175 = vpow.pop %v5174
        %v5176 = vmul.f32 %v5141, 1.442695
        %v5177 = vpow.pop %v5176
        %v5178 = vmul.f32 %v5142, 1.442695
        %v5179 = vpow.pop %v5178
        %v5180 = vmul.f32 %v5143, 1.442695
        %v5181 = vpow.pop %v5180
        %v5182 = vmul.f32 %v5144, 1.442695
        %v5183 = vpow.pop %v5182
        %v5184 = vmul.f32 %v5145, 1.442695
        %v5185 = vpow.pop %v5184
        %v5186 = vmul.f32 %v5146, 1.442695
        %v5187 = vpow.pop %v5186
        %v5188 = vmul.f32 %v5147, 1.442695
        %v5189 = vpow.pop %v5188
        %v5190 = vmul.f32 %v5148, 1.442695
        %v5191 = vpow.pop %v5190
        %v5192 = vmul.f32 %v5149, 1.442695
        %v5193 = vpow.pop %v5192
        %v5194 = vmul.f32 %v5150, 1.442695
        %v5195 = vpow.pop %v5194
        %v5196 = vmul.f32 %v5151, 1.442695
        %v5197 = vpow.pop %v5196
        %v5198 = vmul.f32 %v5152, 1.442695
        %v5199 = vpow.pop %v5198
        %v5200 = vmul.f32 %v5153, 1.442695
        %v5201 = vpow.pop %v5200
        %v5202 = vmul.f32 %v5154, 1.442695
        %v5203 = vpow.pop %v5202
        %v5204 = vmul.f32 %v5155, 1.442695
        %v5205 = vpow.pop %v5204
        %v5206 = vmul.f32 %v5156, 1.442695
        %v5207 = vpow.pop %v5206
        %v5208 = vmul.f32 %v5157, 1.442695
        %v5209 = vpow.pop %v5208
        %v5210 = vmul.f32 %v5158, 1.442695
        %v5211 = vpow.pop %v5210
        %v5212 = vmul.f32 %v5159, 1.442695
        %v5213 = vpow.pop %v5212
        %v5214 = vmul.f32 %v5160, 1.442695
        %v5215 = vpow.pop %v5214
        %v5216 = vmul.f32 %v5161, 1.442695
        %v5217 = vpow.pop %v5216
        %v5218 = vmul.f32 %v5162, 1.442695
        %v5219 = vpow.pop %v5218
        %v5220 = vmul.f32 %v5163, 1.442695
        %v5221 = vpow.pop %v5220
        %v5222 = vmul.f32 %v5164, 1.442695
        %v5223 = vpow.pop %v5222
        %v5224 = vmul.f32 %v5165, 1.442695
        %v5225 = vpow.pop %v5224
        %v5226 = vmul.f32 %v5166, 1.442695
        %v5227 = vpow.pop %v5226
        %v5228 = vmul.f32 %v5167, 1.442695
        %v5229 = vpow.pop %v5228
        %v5230 = vmul.f32 %v5168, 1.442695
        %v5231 = vpow.pop %v5230
        %v5232 = vmul.f32 %v5169, 1.442695
        %v5233 = vpow.pop %v5232
        %v5234 = vrcp.pop %v5171
        %v5235 = vmul.f32 %v5171, %v5234
        %v5236 = vsub.f32 1.0, %v5235
        %v5237 = vmul.f32 %v5234, %v5236
        %v5238 = vadd.f32 %v5234, %v5237
        %vm5239 = vweird.f32 %v5171
        %vm5240 = vweird.f32 %v5234
        %vm5241 = vmor %vm5239, %vm5240
        %v5242 = vsel %vm5241, %v5234, %v5238
        %v5243 = vand.u32 2147483647, %v5171
        %vm5244 = vcmp.eq.f32.partialorder %v5243, 8.507059e+37
        %v5245 = vand.u32 %v5171, 2147483648
        %v5246 = vor.u32 1.1754944e-38, %v5245
        %v5247 = vsel %vm5244, %v5246, %v5242
        %v5248 = vmul.f32 1.0, %v5247
        %v5249 = vrcp.pop %v5173
        %v5250 = vmul.f32 %v5173, %v5249
        %v5251 = vsub.f32 1.0, %v5250
        %v5252 = vmul.f32 %v5249, %v5251
        %v5253 = vadd.f32 %v5249, %v5252
        %vm5254 = vweird.f32 %v5173
        %vm5255 = vweird.f32 %v5249
        %vm5256 = vmor %vm5254, %vm5255
        %v5257 = vsel %vm5256, %v5249, %v5253
        %v5258 = vand.u32 2147483647, %v5173
        %vm5259 = vcmp.eq.f32.partialorder %v5258, 8.507059e+37
        %v5260 = vand.u32 %v5173, 2147483648
        %v5261 = vor.u32 1.1754944e-38, %v5260
        %v5262 = vsel %vm5259, %v5261, %v5257
        %v5263 = vmul.f32 1.0, %v5262
        %v5264 = vrcp.pop %v5175
        %v5265 = vmul.f32 %v5175, %v5264
        %v5266 = vsub.f32 1.0, %v5265
        %v5267 = vmul.f32 %v5264, %v5266
        %v5268 = vadd.f32 %v5264, %v5267
        %vm5269 = vweird.f32 %v5175
        %vm5270 = vweird.f32 %v5264
        %vm5271 = vmor %vm5269, %vm5270
        %v5272 = vsel %vm5271, %v5264, %v5268
        %v5273 = vand.u32 2147483647, %v5175
        %vm5274 = vcmp.eq.f32.partialorder %v5273, 8.507059e+37
        %v5275 = vand.u32 %v5175, 2147483648
        %v5276 = vor.u32 1.1754944e-38, %v5275
        %v5277 = vsel %vm5274, %v5276, %v5272
        %v5278 = vmul.f32 1.0, %v5277
        %v5279 = vrcp.pop %v5177
        %v5280 = vmul.f32 %v5177, %v5279
        %v5281 = vsub.f32 1.0, %v5280
        %v5282 = vmul.f32 %v5279, %v5281
        %v5283 = vadd.f32 %v5279, %v5282
        %vm5284 = vweird.f32 %v5177
        %vm5285 = vweird.f32 %v5279
        %vm5286 = vmor %vm5284, %vm5285
        %v5287 = vsel %vm5286, %v5279, %v5283
        %v5288 = vand.u32 2147483647, %v5177
        %vm5289 = vcmp.eq.f32.partialorder %v5288, 8.507059e+37
        %v5290 = vand.u32 %v5177, 2147483648
        %v5291 = vor.u32 1.1754944e-38, %v5290
        %v5292 = vsel %vm5289, %v5291, %v5287
        %v5293 = vmul.f32 1.0, %v5292
        %v5294 = vrcp.pop %v5179
        %v5295 = vmul.f32 %v5179, %v5294
        %v5296 = vsub.f32 1.0, %v5295
        %v5297 = vmul.f32 %v5294, %v5296
        %v5298 = vadd.f32 %v5294, %v5297
        %vm5299 = vweird.f32 %v5179
        %vm5300 = vweird.f32 %v5294
        %vm5301 = vmor %vm5299, %vm5300
        %v5302 = vsel %vm5301, %v5294, %v5298
        %v5303 = vand.u32 2147483647, %v5179
        %vm5304 = vcmp.eq.f32.partialorder %v5303, 8.507059e+37
        %v5305 = vand.u32 %v5179, 2147483648
        %v5306 = vor.u32 1.1754944e-38, %v5305
        %v5307 = vsel %vm5304, %v5306, %v5302
        %v5308 = vmul.f32 1.0, %v5307
        %v5309 = vrcp.pop %v5181
        %v5310 = vmul.f32 %v5181, %v5309
        %v5311 = vsub.f32 1.0, %v5310
        %v5312 = vmul.f32 %v5309, %v5311
        %v5313 = vadd.f32 %v5309, %v5312
        %vm5314 = vweird.f32 %v5181
        %vm5315 = vweird.f32 %v5309
        %vm5316 = vmor %vm5314, %vm5315
        %v5317 = vsel %vm5316, %v5309, %v5313
        %v5318 = vand.u32 2147483647, %v5181
        %vm5319 = vcmp.eq.f32.partialorder %v5318, 8.507059e+37
        %v5320 = vand.u32 %v5181, 2147483648
        %v5321 = vor.u32 1.1754944e-38, %v5320
        %v5322 = vsel %vm5319, %v5321, %v5317
        %v5323 = vmul.f32 1.0, %v5322
        %v5324 = vrcp.pop %v5183
        %v5325 = vmul.f32 %v5183, %v5324
        %v5326 = vsub.f32 1.0, %v5325
        %v5327 = vmul.f32 %v5324, %v5326
        %v5328 = vadd.f32 %v5324, %v5327
        %vm5329 = vweird.f32 %v5183
        %vm5330 = vweird.f32 %v5324
        %vm5331 = vmor %vm5329, %vm5330
        %v5332 = vsel %vm5331, %v5324, %v5328
        %v5333 = vand.u32 2147483647, %v5183
        %vm5334 = vcmp.eq.f32.partialorder %v5333, 8.507059e+37
        %v5335 = vand.u32 %v5183, 2147483648
        %v5336 = vor.u32 1.1754944e-38, %v5335
        %v5337 = vsel %vm5334, %v5336, %v5332
        %v5338 = vmul.f32 1.0, %v5337
        %v5339 = vrcp.pop %v5185
        %v5340 = vmul.f32 %v5185, %v5339
        %v5341 = vsub.f32 1.0, %v5340
        %v5342 = vmul.f32 %v5339, %v5341
        %v5343 = vadd.f32 %v5339, %v5342
        %vm5344 = vweird.f32 %v5185
        %vm5345 = vweird.f32 %v5339
        %vm5346 = vmor %vm5344, %vm5345
        %v5347 = vsel %vm5346, %v5339, %v5343
        %v5348 = vand.u32 2147483647, %v5185
        %vm5349 = vcmp.eq.f32.partialorder %v5348, 8.507059e+37
        %v5350 = vand.u32 %v5185, 2147483648
        %v5351 = vor.u32 1.1754944e-38, %v5350
        %v5352 = vsel %vm5349, %v5351, %v5347
        %v5353 = vmul.f32 1.0, %v5352
        %v5354 = vrcp.pop %v5187
        %v5355 = vmul.f32 %v5187, %v5354
        %v5356 = vsub.f32 1.0, %v5355
        %v5357 = vmul.f32 %v5354, %v5356
        %v5358 = vadd.f32 %v5354, %v5357
        %vm5359 = vweird.f32 %v5187
        %vm5360 = vweird.f32 %v5354
        %vm5361 = vmor %vm5359, %vm5360
        %v5362 = vsel %vm5361, %v5354, %v5358
        %v5363 = vand.u32 2147483647, %v5187
        %vm5364 = vcmp.eq.f32.partialorder %v5363, 8.507059e+37
        %v5365 = vand.u32 %v5187, 2147483648
        %v5366 = vor.u32 1.1754944e-38, %v5365
        %v5367 = vsel %vm5364, %v5366, %v5362
        %v5368 = vmul.f32 1.0, %v5367
        %v5369 = vrcp.pop %v5189
        %v5370 = vmul.f32 %v5189, %v5369
        %v5371 = vsub.f32 1.0, %v5370
        %v5372 = vmul.f32 %v5369, %v5371
        %v5373 = vadd.f32 %v5369, %v5372
        %vm5374 = vweird.f32 %v5189
        %vm5375 = vweird.f32 %v5369
        %vm5376 = vmor %vm5374, %vm5375
        %v5377 = vsel %vm5376, %v5369, %v5373
        %v5378 = vand.u32 2147483647, %v5189
        %vm5379 = vcmp.eq.f32.partialorder %v5378, 8.507059e+37
        %v5380 = vand.u32 %v5189, 2147483648
        %v5381 = vor.u32 1.1754944e-38, %v5380
        %v5382 = vsel %vm5379, %v5381, %v5377
        %v5383 = vmul.f32 1.0, %v5382
        %v5384 = vrcp.pop %v5191
        %v5385 = vmul.f32 %v5191, %v5384
        %v5386 = vsub.f32 1.0, %v5385
        %v5387 = vmul.f32 %v5384, %v5386
        %v5388 = vadd.f32 %v5384, %v5387
        %vm5389 = vweird.f32 %v5191
        %vm5390 = vweird.f32 %v5384
        %vm5391 = vmor %vm5389, %vm5390
        %v5392 = vsel %vm5391, %v5384, %v5388
        %v5393 = vand.u32 2147483647, %v5191
        %vm5394 = vcmp.eq.f32.partialorder %v5393, 8.507059e+37
        %v5395 = vand.u32 %v5191, 2147483648
        %v5396 = vor.u32 1.1754944e-38, %v5395
        %v5397 = vsel %vm5394, %v5396, %v5392
        %v5398 = vmul.f32 1.0, %v5397
        %v5399 = vrcp.pop %v5193
        %v5400 = vmul.f32 %v5193, %v5399
        %v5401 = vsub.f32 1.0, %v5400
        %v5402 = vmul.f32 %v5399, %v5401
        %v5403 = vadd.f32 %v5399, %v5402
        %vm5404 = vweird.f32 %v5193
        %vm5405 = vweird.f32 %v5399
        %vm5406 = vmor %vm5404, %vm5405
        %v5407 = vsel %vm5406, %v5399, %v5403
        %v5408 = vand.u32 2147483647, %v5193
        %vm5409 = vcmp.eq.f32.partialorder %v5408, 8.507059e+37
        %v5410 = vand.u32 %v5193, 2147483648
        %v5411 = vor.u32 1.1754944e-38, %v5410
        %v5412 = vsel %vm5409, %v5411, %v5407
        %v5413 = vmul.f32 1.0, %v5412
        %v5414 = vrcp.pop %v5195
        %v5415 = vmul.f32 %v5195, %v5414
        %v5416 = vsub.f32 1.0, %v5415
        %v5417 = vmul.f32 %v5414, %v5416
        %v5418 = vadd.f32 %v5414, %v5417
        %vm5419 = vweird.f32 %v5195
        %vm5420 = vweird.f32 %v5414
        %vm5421 = vmor %vm5419, %vm5420
        %v5422 = vsel %vm5421, %v5414, %v5418
        %v5423 = vand.u32 2147483647, %v5195
        %vm5424 = vcmp.eq.f32.partialorder %v5423, 8.507059e+37
        %v5425 = vand.u32 %v5195, 2147483648
        %v5426 = vor.u32 1.1754944e-38, %v5425
        %v5427 = vsel %vm5424, %v5426, %v5422
        %v5428 = vmul.f32 1.0, %v5427
        %v5429 = vrcp.pop %v5197
        %v5430 = vmul.f32 %v5197, %v5429
        %v5431 = vsub.f32 1.0, %v5430
        %v5432 = vmul.f32 %v5429, %v5431
        %v5433 = vadd.f32 %v5429, %v5432
        %vm5434 = vweird.f32 %v5197
        %vm5435 = vweird.f32 %v5429
        %vm5436 = vmor %vm5434, %vm5435
        %v5437 = vsel %vm5436, %v5429, %v5433
        %v5438 = vand.u32 2147483647, %v5197
        %vm5439 = vcmp.eq.f32.partialorder %v5438, 8.507059e+37
        %v5440 = vand.u32 %v5197, 2147483648
        %v5441 = vor.u32 1.1754944e-38, %v5440
        %v5442 = vsel %vm5439, %v5441, %v5437
        %v5443 = vmul.f32 1.0, %v5442
        %v5444 = vrcp.pop %v5199
        %v5445 = vmul.f32 %v5199, %v5444
        %v5446 = vsub.f32 1.0, %v5445
        %v5447 = vmul.f32 %v5444, %v5446
        %v5448 = vadd.f32 %v5444, %v5447
        %vm5449 = vweird.f32 %v5199
        %vm5450 = vweird.f32 %v5444
        %vm5451 = vmor %vm5449, %vm5450
        %v5452 = vsel %vm5451, %v5444, %v5448
        %v5453 = vand.u32 2147483647, %v5199
        %vm5454 = vcmp.eq.f32.partialorder %v5453, 8.507059e+37
        %v5455 = vand.u32 %v5199, 2147483648
        %v5456 = vor.u32 1.1754944e-38, %v5455
        %v5457 = vsel %vm5454, %v5456, %v5452
        %v5458 = vmul.f32 1.0, %v5457
        %v5459 = vrcp.pop %v5201
        %v5460 = vmul.f32 %v5201, %v5459
        %v5461 = vsub.f32 1.0, %v5460
        %v5462 = vmul.f32 %v5459, %v5461
        %v5463 = vadd.f32 %v5459, %v5462
        %vm5464 = vweird.f32 %v5201
        %vm5465 = vweird.f32 %v5459
        %vm5466 = vmor %vm5464, %vm5465
        %v5467 = vsel %vm5466, %v5459, %v5463
        %v5468 = vand.u32 2147483647, %v5201
        %vm5469 = vcmp.eq.f32.partialorder %v5468, 8.507059e+37
        %v5470 = vand.u32 %v5201, 2147483648
        %v5471 = vor.u32 1.1754944e-38, %v5470
        %v5472 = vsel %vm5469, %v5471, %v5467
        %v5473 = vmul.f32 1.0, %v5472
        %v5474 = vrcp.pop %v5203
        %v5475 = vmul.f32 %v5203, %v5474
        %v5476 = vsub.f32 1.0, %v5475
        %v5477 = vmul.f32 %v5474, %v5476
        %v5478 = vadd.f32 %v5474, %v5477
        %vm5479 = vweird.f32 %v5203
        %vm5480 = vweird.f32 %v5474
        %vm5481 = vmor %vm5479, %vm5480
        %v5482 = vsel %vm5481, %v5474, %v5478
        %v5483 = vand.u32 2147483647, %v5203
        %vm5484 = vcmp.eq.f32.partialorder %v5483, 8.507059e+37
        %v5485 = vand.u32 %v5203, 2147483648
        %v5486 = vor.u32 1.1754944e-38, %v5485
        %v5487 = vsel %vm5484, %v5486, %v5482
        %v5488 = vmul.f32 1.0, %v5487
        %v5489 = vrcp.pop %v5205
        %v5490 = vmul.f32 %v5205, %v5489
        %v5491 = vsub.f32 1.0, %v5490
        %v5492 = vmul.f32 %v5489, %v5491
        %v5493 = vadd.f32 %v5489, %v5492
        %vm5494 = vweird.f32 %v5205
        %vm5495 = vweird.f32 %v5489
        %vm5496 = vmor %vm5494, %vm5495
        %v5497 = vsel %vm5496, %v5489, %v5493
        %v5498 = vand.u32 2147483647, %v5205
        %vm5499 = vcmp.eq.f32.partialorder %v5498, 8.507059e+37
        %v5500 = vand.u32 %v5205, 2147483648
        %v5501 = vor.u32 1.1754944e-38, %v5500
        %v5502 = vsel %vm5499, %v5501, %v5497
        %v5503 = vmul.f32 1.0, %v5502
        %v5504 = vrcp.pop %v5207
        %v5505 = vmul.f32 %v5207, %v5504
        %v5506 = vsub.f32 1.0, %v5505
        %v5507 = vmul.f32 %v5504, %v5506
        %v5508 = vadd.f32 %v5504, %v5507
        %vm5509 = vweird.f32 %v5207
        %vm5510 = vweird.f32 %v5504
        %vm5511 = vmor %vm5509, %vm5510
        %v5512 = vsel %vm5511, %v5504, %v5508
        %v5513 = vand.u32 2147483647, %v5207
        %vm5514 = vcmp.eq.f32.partialorder %v5513, 8.507059e+37
        %v5515 = vand.u32 %v5207, 2147483648
        %v5516 = vor.u32 1.1754944e-38, %v5515
        %v5517 = vsel %vm5514, %v5516, %v5512
        %v5518 = vmul.f32 1.0, %v5517
        %v5519 = vrcp.pop %v5209
        %v5520 = vmul.f32 %v5209, %v5519
        %v5521 = vsub.f32 1.0, %v5520
        %v5522 = vmul.f32 %v5519, %v5521
        %v5523 = vadd.f32 %v5519, %v5522
        %vm5524 = vweird.f32 %v5209
        %vm5525 = vweird.f32 %v5519
        %vm5526 = vmor %vm5524, %vm5525
        %v5527 = vsel %vm5526, %v5519, %v5523
        %v5528 = vand.u32 2147483647, %v5209
        %vm5529 = vcmp.eq.f32.partialorder %v5528, 8.507059e+37
        %v5530 = vand.u32 %v5209, 2147483648
        %v5531 = vor.u32 1.1754944e-38, %v5530
        %v5532 = vsel %vm5529, %v5531, %v5527
        %v5533 = vmul.f32 1.0, %v5532
        %v5534 = vrcp.pop %v5211
        %v5535 = vmul.f32 %v5211, %v5534
        %v5536 = vsub.f32 1.0, %v5535
        %v5537 = vmul.f32 %v5534, %v5536
        %v5538 = vadd.f32 %v5534, %v5537
        %vm5539 = vweird.f32 %v5211
        %vm5540 = vweird.f32 %v5534
        %vm5541 = vmor %vm5539, %vm5540
        %v5542 = vsel %vm5541, %v5534, %v5538
        %v5543 = vand.u32 2147483647, %v5211
        %vm5544 = vcmp.eq.f32.partialorder %v5543, 8.507059e+37
        %v5545 = vand.u32 %v5211, 2147483648
        %v5546 = vor.u32 1.1754944e-38, %v5545
        %v5547 = vsel %vm5544, %v5546, %v5542
        %v5548 = vmul.f32 1.0, %v5547
        %v5549 = vrcp.pop %v5213
        %v5550 = vmul.f32 %v5213, %v5549
        %v5551 = vsub.f32 1.0, %v5550
        %v5552 = vmul.f32 %v5549, %v5551
        %v5553 = vadd.f32 %v5549, %v5552
        %vm5554 = vweird.f32 %v5213
        %vm5555 = vweird.f32 %v5549
        %vm5556 = vmor %vm5554, %vm5555
        %v5557 = vsel %vm5556, %v5549, %v5553
        %v5558 = vand.u32 2147483647, %v5213
        %vm5559 = vcmp.eq.f32.partialorder %v5558, 8.507059e+37
        %v5560 = vand.u32 %v5213, 2147483648
        %v5561 = vor.u32 1.1754944e-38, %v5560
        %v5562 = vsel %vm5559, %v5561, %v5557
        %v5563 = vmul.f32 1.0, %v5562
        %v5564 = vrcp.pop %v5215
        %v5565 = vmul.f32 %v5215, %v5564
        %v5566 = vsub.f32 1.0, %v5565
        %v5567 = vmul.f32 %v5564, %v5566
        %v5568 = vadd.f32 %v5564, %v5567
        %vm5569 = vweird.f32 %v5215
        %vm5570 = vweird.f32 %v5564
        %vm5571 = vmor %vm5569, %vm5570
        %v5572 = vsel %vm5571, %v5564, %v5568
        %v5573 = vand.u32 2147483647, %v5215
        %vm5574 = vcmp.eq.f32.partialorder %v5573, 8.507059e+37
        %v5575 = vand.u32 %v5215, 2147483648
        %v5576 = vor.u32 1.1754944e-38, %v5575
        %v5577 = vsel %vm5574, %v5576, %v5572
        %v5578 = vmul.f32 1.0, %v5577
        %v5579 = vrcp.pop %v5217
        %v5580 = vmul.f32 %v5217, %v5579
        %v5581 = vsub.f32 1.0, %v5580
        %v5582 = vmul.f32 %v5579, %v5581
        %v5583 = vadd.f32 %v5579, %v5582
        %vm5584 = vweird.f32 %v5217
        %vm5585 = vweird.f32 %v5579
        %vm5586 = vmor %vm5584, %vm5585
        %v5587 = vsel %vm5586, %v5579, %v5583
        %v5588 = vand.u32 2147483647, %v5217
        %vm5589 = vcmp.eq.f32.partialorder %v5588, 8.507059e+37
        %v5590 = vand.u32 %v5217, 2147483648
        %v5591 = vor.u32 1.1754944e-38, %v5590
        %v5592 = vsel %vm5589, %v5591, %v5587
        %v5593 = vmul.f32 1.0, %v5592
        %v5594 = vrcp.pop %v5219
        %v5595 = vmul.f32 %v5219, %v5594
        %v5596 = vsub.f32 1.0, %v5595
        %v5597 = vmul.f32 %v5594, %v5596
        %v5598 = vadd.f32 %v5594, %v5597
        %vm5599 = vweird.f32 %v5219
        %vm5600 = vweird.f32 %v5594
        %vm5601 = vmor %vm5599, %vm5600
        %v5602 = vsel %vm5601, %v5594, %v5598
        %v5603 = vand.u32 2147483647, %v5219
        %vm5604 = vcmp.eq.f32.partialorder %v5603, 8.507059e+37
        %v5605 = vand.u32 %v5219, 2147483648
        %v5606 = vor.u32 1.1754944e-38, %v5605
        %v5607 = vsel %vm5604, %v5606, %v5602
        %v5608 = vmul.f32 1.0, %v5607
        %v5609 = vrcp.pop %v5221
        %v5610 = vmul.f32 %v5221, %v5609
        %v5611 = vsub.f32 1.0, %v5610
        %v5612 = vmul.f32 %v5609, %v5611
        %v5613 = vadd.f32 %v5609, %v5612
        %vm5614 = vweird.f32 %v5221
        %vm5615 = vweird.f32 %v5609
        %vm5616 = vmor %vm5614, %vm5615
        %v5617 = vsel %vm5616, %v5609, %v5613
        %v5618 = vand.u32 2147483647, %v5221
        %vm5619 = vcmp.eq.f32.partialorder %v5618, 8.507059e+37
        %v5620 = vand.u32 %v5221, 2147483648
        %v5621 = vor.u32 1.1754944e-38, %v5620
        %v5622 = vsel %vm5619, %v5621, %v5617
        %v5623 = vmul.f32 1.0, %v5622
        %v5624 = vrcp.pop %v5223
        %v5625 = vmul.f32 %v5223, %v5624
        %v5626 = vsub.f32 1.0, %v5625
        %v5627 = vmul.f32 %v5624, %v5626
        %v5628 = vadd.f32 %v5624, %v5627
        %vm5629 = vweird.f32 %v5223
        %vm5630 = vweird.f32 %v5624
        %vm5631 = vmor %vm5629, %vm5630
        %v5632 = vsel %vm5631, %v5624, %v5628
        %v5633 = vand.u32 2147483647, %v5223
        %vm5634 = vcmp.eq.f32.partialorder %v5633, 8.507059e+37
        %v5635 = vand.u32 %v5223, 2147483648
        %v5636 = vor.u32 1.1754944e-38, %v5635
        %v5637 = vsel %vm5634, %v5636, %v5632
        %v5638 = vmul.f32 1.0, %v5637
        %v5639 = vrcp.pop %v5225
        %v5640 = vmul.f32 %v5225, %v5639
        %v5641 = vsub.f32 1.0, %v5640
        %v5642 = vmul.f32 %v5639, %v5641
        %v5643 = vadd.f32 %v5639, %v5642
        %vm5644 = vweird.f32 %v5225
        %vm5645 = vweird.f32 %v5639
        %vm5646 = vmor %vm5644, %vm5645
        %v5647 = vsel %vm5646, %v5639, %v5643
        %v5648 = vand.u32 2147483647, %v5225
        %vm5649 = vcmp.eq.f32.partialorder %v5648, 8.507059e+37
        %v5650 = vand.u32 %v5225, 2147483648
        %v5651 = vor.u32 1.1754944e-38, %v5650
        %v5652 = vsel %vm5649, %v5651, %v5647
        %v5653 = vmul.f32 1.0, %v5652
        %v5654 = vrcp.pop %v5227
        %v5655 = vmul.f32 %v5227, %v5654
        %v5656 = vsub.f32 1.0, %v5655
        %v5657 = vmul.f32 %v5654, %v5656
        %v5658 = vadd.f32 %v5654, %v5657
        %vm5659 = vweird.f32 %v5227
        %vm5660 = vweird.f32 %v5654
        %vm5661 = vmor %vm5659, %vm5660
        %v5662 = vsel %vm5661, %v5654, %v5658
        %v5663 = vand.u32 2147483647, %v5227
        %vm5664 = vcmp.eq.f32.partialorder %v5663, 8.507059e+37
        %v5665 = vand.u32 %v5227, 2147483648
        %v5666 = vor.u32 1.1754944e-38, %v5665
        %v5667 = vsel %vm5664, %v5666, %v5662
        %v5668 = vmul.f32 1.0, %v5667
        %v5669 = vrcp.pop %v5229
        %v5670 = vmul.f32 %v5229, %v5669
        %v5671 = vsub.f32 1.0, %v5670
        %v5672 = vmul.f32 %v5669, %v5671
        %v5673 = vadd.f32 %v5669, %v5672
        %vm5674 = vweird.f32 %v5229
        %vm5675 = vweird.f32 %v5669
        %vm5676 = vmor %vm5674, %vm5675
        %v5677 = vsel %vm5676, %v5669, %v5673
        %v5678 = vand.u32 2147483647, %v5229
        %vm5679 = vcmp.eq.f32.partialorder %v5678, 8.507059e+37
        %v5680 = vand.u32 %v5229, 2147483648
        %v5681 = vor.u32 1.1754944e-38, %v5680
        %v5682 = vsel %vm5679, %v5681, %v5677
        %v5683 = vmul.f32 1.0, %v5682
        %v5684 = vrcp.pop %v5231
        %v5685 = vmul.f32 %v5231, %v5684
        %v5686 = vsub.f32 1.0, %v5685
        %v5687 = vmul.f32 %v5684, %v5686
        %v5688 = vadd.f32 %v5684, %v5687
        %vm5689 = vweird.f32 %v5231
        %vm5690 = vweird.f32 %v5684
        %vm5691 = vmor %vm5689, %vm5690
        %v5692 = vsel %vm5691, %v5684, %v5688
        %v5693 = vand.u32 2147483647, %v5231
        %vm5694 = vcmp.eq.f32.partialorder %v5693, 8.507059e+37
        %v5695 = vand.u32 %v5231, 2147483648
        %v5696 = vor.u32 1.1754944e-38, %v5695
        %v5697 = vsel %vm5694, %v5696, %v5692
        %v5698 = vmul.f32 1.0, %v5697
        %v5699 = vrcp.pop %v5233
        %v5700 = vmul.f32 %v5233, %v5699
        %v5701 = vsub.f32 1.0, %v5700
        %v5702 = vmul.f32 %v5699, %v5701
        %v5703 = vadd.f32 %v5699, %v5702
        %vm5704 = vweird.f32 %v5233
        %vm5705 = vweird.f32 %v5699
        %vm5706 = vmor %vm5704, %vm5705
        %v5707 = vsel %vm5706, %v5699, %v5703
        %v5708 = vand.u32 2147483647, %v5233
        %vm5709 = vcmp.eq.f32.partialorder %v5708, 8.507059e+37
        %v5710 = vand.u32 %v5233, 2147483648
        %v5711 = vor.u32 1.1754944e-38, %v5710
        %v5712 = vsel %vm5709, %v5711, %v5707
        %v5713 = vmul.f32 1.0, %v5712
        %v5714 = vadd.f32 %v5171, %v5248
        %v5715 = vadd.f32 %v5173, %v5263
        %v5716 = vadd.f32 %v5175, %v5278
        %v5717 = vadd.f32 %v5177, %v5293
        %v5718 = vadd.f32 %v5179, %v5308
        %v5719 = vadd.f32 %v5181, %v5323
        %v5720 = vadd.f32 %v5183, %v5338
        %v5721 = vadd.f32 %v5185, %v5353
        %v5722 = vadd.f32 %v5187, %v5368
        %v5723 = vadd.f32 %v5189, %v5383
        %v5724 = vadd.f32 %v5191, %v5398
        %v5725 = vadd.f32 %v5193, %v5413
        %v5726 = vadd.f32 %v5195, %v5428
        %v5727 = vadd.f32 %v5197, %v5443
        %v5728 = vadd.f32 %v5199, %v5458
        %v5729 = vadd.f32 %v5201, %v5473
        %v5730 = vadd.f32 %v5203, %v5488
        %v5731 = vadd.f32 %v5205, %v5503
        %v5732 = vadd.f32 %v5207, %v5518
        %v5733 = vadd.f32 %v5209, %v5533
        %v5734 = vadd.f32 %v5211, %v5548
        %v5735 = vadd.f32 %v5213, %v5563
        %v5736 = vadd.f32 %v5215, %v5578
        %v5737 = vadd.f32 %v5217, %v5593
        %v5738 = vadd.f32 %v5219, %v5608
        %v5739 = vadd.f32 %v5221, %v5623
        %v5740 = vadd.f32 %v5223, %v5638
        %v5741 = vadd.f32 %v5225, %v5653
        %v5742 = vadd.f32 %v5227, %v5668
        %v5743 = vadd.f32 %v5229, %v5683
        %v5744 = vadd.f32 %v5231, %v5698
        %v5745 = vadd.f32 %v5233, %v5713
        %v5746 = vmul.f32 %v5714, 0.5
        %v5747 = vmul.f32 %v5715, 0.5
        %v5748 = vmul.f32 %v5716, 0.5
        %v5749 = vmul.f32 %v5717, 0.5
        %v5750 = vmul.f32 %v5718, 0.5
        %v5751 = vmul.f32 %v5719, 0.5
        %v5752 = vmul.f32 %v5720, 0.5
        %v5753 = vmul.f32 %v5721, 0.5
        %v5754 = vmul.f32 %v5722, 0.5
        %v5755 = vmul.f32 %v5723, 0.5
        %v5756 = vmul.f32 %v5724, 0.5
        %v5757 = vmul.f32 %v5725, 0.5
        %v5758 = vmul.f32 %v5726, 0.5
        %v5759 = vmul.f32 %v5727, 0.5
        %v5760 = vmul.f32 %v5728, 0.5
        %v5761 = vmul.f32 %v5729, 0.5
        %v5762 = vmul.f32 %v5730, 0.5
        %v5763 = vmul.f32 %v5731, 0.5
        %v5764 = vmul.f32 %v5732, 0.5
        %v5765 = vmul.f32 %v5733, 0.5
        %v5766 = vmul.f32 %v5734, 0.5
        %v5767 = vmul.f32 %v5735, 0.5
        %v5768 = vmul.f32 %v5736, 0.5
        %v5769 = vmul.f32 %v5737, 0.5
        %v5770 = vmul.f32 %v5738, 0.5
        %v5771 = vmul.f32 %v5739, 0.5
        %v5772 = vmul.f32 %v5740, 0.5
        %v5773 = vmul.f32 %v5741, 0.5
        %v5774 = vmul.f32 %v5742, 0.5
        %v5775 = vmul.f32 %v5743, 0.5
        %v5776 = vmul.f32 %v5744, 0.5
        %v5777 = vmul.f32 %v5745, 0.5
        %v5778 = vsub.f32 %v5171, %v5248
        %v5779 = vsub.f32 %v5173, %v5263
        %v5780 = vsub.f32 %v5175, %v5278
        %v5781 = vsub.f32 %v5177, %v5293
        %v5782 = vsub.f32 %v5179, %v5308
        %v5783 = vsub.f32 %v5181, %v5323
        %v5784 = vsub.f32 %v5183, %v5338
        %v5785 = vsub.f32 %v5185, %v5353
        %v5786 = vsub.f32 %v5187, %v5368
        %v5787 = vsub.f32 %v5189, %v5383
        %v5788 = vsub.f32 %v5191, %v5398
        %v5789 = vsub.f32 %v5193, %v5413
        %v5790 = vsub.f32 %v5195, %v5428
        %v5791 = vsub.f32 %v5197, %v5443
        %v5792 = vsub.f32 %v5199, %v5458
        %v5793 = vsub.f32 %v5201, %v5473
        %v5794 = vsub.f32 %v5203, %v5488
        %v5795 = vsub.f32 %v5205, %v5503
        %v5796 = vsub.f32 %v5207, %v5518
        %v5797 = vsub.f32 %v5209, %v5533
        %v5798 = vsub.f32 %v5211, %v5548
        %v5799 = vsub.f32 %v5213, %v5563
        %v5800 = vsub.f32 %v5215, %v5578
        %v5801 = vsub.f32 %v5217, %v5593
        %v5802 = vsub.f32 %v5219, %v5608
        %v5803 = vsub.f32 %v5221, %v5623
        %v5804 = vsub.f32 %v5223, %v5638
        %v5805 = vsub.f32 %v5225, %v5653
        %v5806 = vsub.f32 %v5227, %v5668
        %v5807 = vsub.f32 %v5229, %v5683
        %v5808 = vsub.f32 %v5231, %v5698
        %v5809 = vsub.f32 %v5233, %v5713
        %v5810 = vmul.f32 %v5778, 0.5
        %v5811 = vmul.f32 %v5779, 0.5
        %v5812 = vmul.f32 %v5780, 0.5
        %v5813 = vmul.f32 %v5781, 0.5
        %v5814 = vmul.f32 %v5782, 0.5
        %v5815 = vmul.f32 %v5783, 0.5
        %v5816 = vmul.f32 %v5784, 0.5
        %v5817 = vmul.f32 %v5785, 0.5
        %v5818 = vmul.f32 %v5786, 0.5
        %v5819 = vmul.f32 %v5787, 0.5
        %v5820 = vmul.f32 %v5788, 0.5
        %v5821 = vmul.f32 %v5789, 0.5
        %v5822 = vmul.f32 %v5790, 0.5
        %v5823 = vmul.f32 %v5791, 0.5
        %v5824 = vmul.f32 %v5792, 0.5
        %v5825 = vmul.f32 %v5793, 0.5
        %v5826 = vmul.f32 %v5794, 0.5
        %v5827 = vmul.f32 %v5795, 0.5
        %v5828 = vmul.f32 %v5796, 0.5
        %v5829 = vmul.f32 %v5797, 0.5
        %v5830 = vmul.f32 %v5798, 0.5
        %v5831 = vmul.f32 %v5799, 0.5
        %v5832 = vmul.f32 %v5800, 0.5
        %v5833 = vmul.f32 %v5801, 0.5
        %v5834 = vmul.f32 %v5802, 0.5
        %v5835 = vmul.f32 %v5803, 0.5
        %v5836 = vmul.f32 %v5804, 0.5
        %v5837 = vmul.f32 %v5805, 0.5
        %v5838 = vmul.f32 %v5806, 0.5
        %v5839 = vmul.f32 %v5807, 0.5
        %v5840 = vmul.f32 %v5808, 0.5
        %v5841 = vmul.f32 %v5809, 0.5
        %v5842 = vrcp.pop %v5138
        %v5843 = vrcp.pop %v5139
        %v5844 = vrcp.pop %v5140
        %v5845 = vrcp.pop %v5141
        %v5846 = vrcp.pop %v5142
        %v5847 = vrcp.pop %v5143
        %v5848 = vrcp.pop %v5144
        %v5849 = vrcp.pop %v5145
        %v5850 = vrcp.pop %v5146
        %v5851 = vrcp.pop %v5147
        %v5852 = vrcp.pop %v5148
        %v5853 = vrcp.pop %v5149
        %v5854 = vrcp.pop %v5150
        %v5855 = vrcp.pop %v5151
        %v5856 = vrcp.pop %v5152
        %v5857 = vrcp.pop %v5153
        %v5858 = vrcp.pop %v5154
        %v5859 = vrcp.pop %v5155
        %v5860 = vrcp.pop %v5156
        %v5861 = vrcp.pop %v5157
        %v5862 = vrcp.pop %v5158
        %v5863 = vrcp.pop %v5159
        %v5864 = vrcp.pop %v5160
        %v5865 = vrcp.pop %v5161
        %v5866 = vrcp.pop %v5162
        %v5867 = vrcp.pop %v5163
        %v5868 = vrcp.pop %v5164
        %v5869 = vrcp.pop %v5165
        %v5870 = vrcp.pop %v5166
        %v5871 = vrcp.pop %v5167
        %v5872 = vrcp.pop %v5168
        %v5873 = vrcp.pop %v5169
        %v5874 = vmul.f32 %v5810, %v5842
        %v5875 = vmul.f32 %v5811, %v5843
        %v5876 = vmul.f32 %v5812, %v5844
        %v5877 = vmul.f32 %v5813, %v5845
        %v5878 = vmul.f32 %v5814, %v5846
        %v5879 = vmul.f32 %v5815, %v5847
        %v5880 = vmul.f32 %v5816, %v5848
        %v5881 = vmul.f32 %v5817, %v5849
        %v5882 = vmul.f32 %v5818, %v5850
        %v5883 = vmul.f32 %v5819, %v5851
        %v5884 = vmul.f32 %v5820, %v5852
        %v5885 = vmul.f32 %v5821, %v5853
        %v5886 = vmul.f32 %v5822, %v5854
        %v5887 = vmul.f32 %v5823, %v5855
        %v5888 = vmul.f32 %v5824, %v5856
        %v5889 = vmul.f32 %v5825, %v5857
        %v5890 = vmul.f32 %v5826, %v5858
        %v5891 = vmul.f32 %v5827, %v5859
        %v5892 = vmul.f32 %v5828, %v5860
        %v5893 = vmul.f32 %v5829, %v5861
        %v5894 = vmul.f32 %v5830, %v5862
        %v5895 = vmul.f32 %v5831, %v5863
        %v5896 = vmul.f32 %v5832, %v5864
        %v5897 = vmul.f32 %v5833, %v5865
        %v5898 = vmul.f32 %v5834, %v5866
        %v5899 = vmul.f32 %v5835, %v5867
        %v5900 = vmul.f32 %v5836, %v5868
        %v5901 = vmul.f32 %v5837, %v5869
        %v5902 = vmul.f32 %v5838, %v5870
        %v5903 = vmul.f32 %v5839, %v5871
        %v5904 = vmul.f32 %v5840, %v5872
        %v5905 = vmul.f32 %v5841, %v5873
        %v5906 = vmul.f32 %v5746, %v5746
        %v5907 = vmul.f32 %v5747, %v5747
        %v5908 = vmul.f32 %v5748, %v5748
        %v5909 = vmul.f32 %v5749, %v5749
        %v5910 = vmul.f32 %v5750, %v5750
        %v5911 = vmul.f32 %v5751, %v5751
        %v5912 = vmul.f32 %v5752, %v5752
        %v5913 = vmul.f32 %v5753, %v5753
        %v5914 = vmul.f32 %v5754, %v5754
        %v5915 = vmul.f32 %v5755, %v5755
        %v5916 = vmul.f32 %v5756, %v5756
        %v5917 = vmul.f32 %v5757, %v5757
        %v5918 = vmul.f32 %v5758, %v5758
        %v5919 = vmul.f32 %v5759, %v5759
        %v5920 = vmul.f32 %v5760, %v5760
        %v5921 = vmul.f32 %v5761, %v5761
        %v5922 = vmul.f32 %v5762, %v5762
        %v5923 = vmul.f32 %v5763, %v5763
        %v5924 = vmul.f32 %v5764, %v5764
        %v5925 = vmul.f32 %v5765, %v5765
        %v5926 = vmul.f32 %v5766, %v5766
        %v5927 = vmul.f32 %v5767, %v5767
        %v5928 = vmul.f32 %v5768, %v5768
        %v5929 = vmul.f32 %v5769, %v5769
        %v5930 = vmul.f32 %v5770, %v5770
        %v5931 = vmul.f32 %v5771, %v5771
        %v5932 = vmul.f32 %v5772, %v5772
        %v5933 = vmul.f32 %v5773, %v5773
        %v5934 = vmul.f32 %v5774, %v5774
        %v5935 = vmul.f32 %v5775, %v5775
        %v5936 = vmul.f32 %v5776, %v5776
        %v5937 = vmul.f32 %v5777, %v5777
        %v5938 = vmul.f32 %v5906, %v2920
        %v5939 = vmul.f32 %v5907, %v2921
        %v5940 = vmul.f32 %v5908, %v2922
        %v5941 = vmul.f32 %v5909, %v2923
        %v5942 = vmul.f32 %v5910, %v2924
        %v5943 = vmul.f32 %v5911, %v2925
        %v5944 = vmul.f32 %v5912, %v2926
        %v5945 = vmul.f32 %v5913, %v2927
        %v5946 = vmul.f32 %v5914, %v2928
        %v5947 = vmul.f32 %v5915, %v2929
        %v5948 = vmul.f32 %v5916, %v2930
        %v5949 = vmul.f32 %v5917, %v2931
        %v5950 = vmul.f32 %v5918, %v2932
        %v5951 = vmul.f32 %v5919, %v2933
        %v5952 = vmul.f32 %v5920, %v2934
        %v5953 = vmul.f32 %v5921, %v2935
        %v5954 = vmul.f32 %v5922, %v2936
        %v5955 = vmul.f32 %v5923, %v2937
        %v5956 = vmul.f32 %v5924, %v2938
        %v5957 = vmul.f32 %v5925, %v2939
        %v5958 = vmul.f32 %v5926, %v2940
        %v5959 = vmul.f32 %v5927, %v2941
        %v5960 = vmul.f32 %v5928, %v2942
        %v5961 = vmul.f32 %v5929, %v2943
        %v5962 = vmul.f32 %v5930, %v2944
        %v5963 = vmul.f32 %v5931, %v2945
        %v5964 = vmul.f32 %v5932, %v2946
        %v5965 = vmul.f32 %v5933, %v2947
        %v5966 = vmul.f32 %v5934, %v2948
        %v5967 = vmul.f32 %v5935, %v2949
        %v5968 = vmul.f32 %v5936, %v2950
        %v5969 = vmul.f32 %v5937, %v2951
        %v5970 = vmul.f32 %v5746, 2.0
        %v5971 = vmul.f32 %v5747, 2.0
        %v5972 = vmul.f32 %v5748, 2.0
        %v5973 = vmul.f32 %v5749, 2.0
        %v5974 = vmul.f32 %v5750, 2.0
        %v5975 = vmul.f32 %v5751, 2.0
        %v5976 = vmul.f32 %v5752, 2.0
        %v5977 = vmul.f32 %v5753, 2.0
        %v5978 = vmul.f32 %v5754, 2.0
        %v5979 = vmul.f32 %v5755, 2.0
        %v5980 = vmul.f32 %v5756, 2.0
        %v5981 = vmul.f32 %v5757, 2.0
        %v5982 = vmul.f32 %v5758, 2.0
        %v5983 = vmul.f32 %v5759, 2.0
        %v5984 = vmul.f32 %v5760, 2.0
        %v5985 = vmul.f32 %v5761, 2.0
        %v5986 = vmul.f32 %v5762, 2.0
        %v5987 = vmul.f32 %v5763, 2.0
        %v5988 = vmul.f32 %v5764, 2.0
        %v5989 = vmul.f32 %v5765, 2.0
        %v5990 = vmul.f32 %v5766, 2.0
        %v5991 = vmul.f32 %v5767, 2.0
        %v5992 = vmul.f32 %v5768, 2.0
        %v5993 = vmul.f32 %v5769, 2.0
        %v5994 = vmul.f32 %v5770, 2.0
        %v5995 = vmul.f32 %v5771, 2.0
        %v5996 = vmul.f32 %v5772, 2.0
        %v5997 = vmul.f32 %v5773, 2.0
        %v5998 = vmul.f32 %v5774, 2.0
        %v5999 = vmul.f32 %v5775, 2.0
        %v6000 = vmul.f32 %v5776, 2.0
        %v6001 = vmul.f32 %v5777, 2.0
        %v6002 = vmul.f32 %v5970, %v5874
        %v6003 = vmul.f32 %v5971, %v5875
        %v6004 = vmul.f32 %v5972, %v5876
        %v6005 = vmul.f32 %v5973, %v5877
        %v6006 = vmul.f32 %v5974, %v5878
        %v6007 = vmul.f32 %v5975, %v5879
        %v6008 = vmul.f32 %v5976, %v5880
        %v6009 = vmul.f32 %v5977, %v5881
        %v6010 = vmul.f32 %v5978, %v5882
        %v6011 = vmul.f32 %v5979, %v5883
        %v6012 = vmul.f32 %v5980, %v5884
        %v6013 = vmul.f32 %v5981, %v5885
        %v6014 = vmul.f32 %v5982, %v5886
        %v6015 = vmul.f32 %v5983, %v5887
        %v6016 = vmul.f32 %v5984, %v5888
        %v6017 = vmul.f32 %v5985, %v5889
        %v6018 = vmul.f32 %v5986, %v5890
        %v6019 = vmul.f32 %v5987, %v5891
        %v6020 = vmul.f32 %v5988, %v5892
        %v6021 = vmul.f32 %v5989, %v5893
        %v6022 = vmul.f32 %v5990, %v5894
        %v6023 = vmul.f32 %v5991, %v5895
        %v6024 = vmul.f32 %v5992, %v5896
        %v6025 = vmul.f32 %v5993, %v5897
        %v6026 = vmul.f32 %v5994, %v5898
        %v6027 = vmul.f32 %v5995, %v5899
        %v6028 = vmul.f32 %v5996, %v5900
        %v6029 = vmul.f32 %v5997, %v5901
        %v6030 = vmul.f32 %v5998, %v5902
        %v6031 = vmul.f32 %v5999, %v5903
        %v6032 = vmul.f32 %v6000, %v5904
        %v6033 = vmul.f32 %v6001, %v5905
        %v6034 = vmul.f32 %v6002, %v4146
        %v6035 = vmul.f32 %v6003, %v4147
        %v6036 = vmul.f32 %v6004, %v4148
        %v6037 = vmul.f32 %v6005, %v4149
        %v6038 = vmul.f32 %v6006, %v4150
        %v6039 = vmul.f32 %v6007, %v4151
        %v6040 = vmul.f32 %v6008, %v4152
        %v6041 = vmul.f32 %v6009, %v4153
        %v6042 = vmul.f32 %v6010, %v4154
        %v6043 = vmul.f32 %v6011, %v4155
        %v6044 = vmul.f32 %v6012, %v4156
        %v6045 = vmul.f32 %v6013, %v4157
        %v6046 = vmul.f32 %v6014, %v4158
        %v6047 = vmul.f32 %v6015, %v4159
        %v6048 = vmul.f32 %v6016, %v4160
        %v6049 = vmul.f32 %v6017, %v4161
        %v6050 = vmul.f32 %v6018, %v4162
        %v6051 = vmul.f32 %v6019, %v4163
        %v6052 = vmul.f32 %v6020, %v4164
        %v6053 = vmul.f32 %v6021, %v4165
        %v6054 = vmul.f32 %v6022, %v4166
        %v6055 = vmul.f32 %v6023, %v4167
        %v6056 = vmul.f32 %v6024, %v4168
        %v6057 = vmul.f32 %v6025, %v4169
        %v6058 = vmul.f32 %v6026, %v4170
        %v6059 = vmul.f32 %v6027, %v4171
        %v6060 = vmul.f32 %v6028, %v4172
        %v6061 = vmul.f32 %v6029, %v4173
        %v6062 = vmul.f32 %v6030, %v4174
        %v6063 = vmul.f32 %v6031, %v4175
        %v6064 = vmul.f32 %v6032, %v4176
        %v6065 = vmul.f32 %v6033, %v4177
        %v6066 = vadd.f32 %v5938, %v6034
        %v6067 = vadd.f32 %v5939, %v6035
        %v6068 = vadd.f32 %v5940, %v6036
        %v6069 = vadd.f32 %v5941, %v6037
        %v6070 = vadd.f32 %v5942, %v6038
        %v6071 = vadd.f32 %v5943, %v6039
        %v6072 = vadd.f32 %v5944, %v6040
        %v6073 = vadd.f32 %v5945, %v6041
        %v6074 = vadd.f32 %v5946, %v6042
        %v6075 = vadd.f32 %v5947, %v6043
        %v6076 = vadd.f32 %v5948, %v6044
        %v6077 = vadd.f32 %v5949, %v6045
        %v6078 = vadd.f32 %v5950, %v6046
        %v6079 = vadd.f32 %v5951, %v6047
        %v6080 = vadd.f32 %v5952, %v6048
        %v6081 = vadd.f32 %v5953, %v6049
        %v6082 = vadd.f32 %v5954, %v6050
        %v6083 = vadd.f32 %v5955, %v6051
        %v6084 = vadd.f32 %v5956, %v6052
        %v6085 = vadd.f32 %v5957, %v6053
        %v6086 = vadd.f32 %v5958, %v6054
        %v6087 = vadd.f32 %v5959, %v6055
        %v6088 = vadd.f32 %v5960, %v6056
        %v6089 = vadd.f32 %v5961, %v6057
        %v6090 = vadd.f32 %v5962, %v6058
        %v6091 = vadd.f32 %v5963, %v6059
        %v6092 = vadd.f32 %v5964, %v6060
        %v6093 = vadd.f32 %v5965, %v6061
        %v6094 = vadd.f32 %v5966, %v6062
        %v6095 = vadd.f32 %v5967, %v6063
        %v6096 = vadd.f32 %v5968, %v6064
        %v6097 = vadd.f32 %v5969, %v6065
        %v6098 = vmul.f32 %v5874, %v5874
        %v6099 = vmul.f32 %v5875, %v5875
        %v6100 = vmul.f32 %v5876, %v5876
        %v6101 = vmul.f32 %v5877, %v5877
        %v6102 = vmul.f32 %v5878, %v5878
        %v6103 = vmul.f32 %v5879, %v5879
        %v6104 = vmul.f32 %v5880, %v5880
        %v6105 = vmul.f32 %v5881, %v5881
        %v6106 = vmul.f32 %v5882, %v5882
        %v6107 = vmul.f32 %v5883, %v5883
        %v6108 = vmul.f32 %v5884, %v5884
        %v6109 = vmul.f32 %v5885, %v5885
        %v6110 = vmul.f32 %v5886, %v5886
        %v6111 = vmul.f32 %v5887, %v5887
        %v6112 = vmul.f32 %v5888, %v5888
        %v6113 = vmul.f32 %v5889, %v5889
        %v6114 = vmul.f32 %v5890, %v5890
        %v6115 = vmul.f32 %v5891, %v5891
        %v6116 = vmul.f32 %v5892, %v5892
        %v6117 = vmul.f32 %v5893, %v5893
        %v6118 = vmul.f32 %v5894, %v5894
        %v6119 = vmul.f32 %v5895, %v5895
        %v6120 = vmul.f32 %v5896, %v5896
        %v6121 = vmul.f32 %v5897, %v5897
        %v6122 = vmul.f32 %v5898, %v5898
        %v6123 = vmul.f32 %v5899, %v5899
        %v6124 = vmul.f32 %v5900, %v5900
        %v6125 = vmul.f32 %v5901, %v5901
        %v6126 = vmul.f32 %v5902, %v5902
        %v6127 = vmul.f32 %v5903, %v5903
        %v6128 = vmul.f32 %v5904, %v5904
        %v6129 = vmul.f32 %v5905, %v5905
        %v6130 = vmul.f32 %v6098, %v4082
        %v6131 = vmul.f32 %v6099, %v4083
        %v6132 = vmul.f32 %v6100, %v4084
        %v6133 = vmul.f32 %v6101, %v4085
        %v6134 = vmul.f32 %v6102, %v4086
        %v6135 = vmul.f32 %v6103, %v4087
        %v6136 = vmul.f32 %v6104, %v4088
        %v6137 = vmul.f32 %v6105, %v4089
        %v6138 = vmul.f32 %v6106, %v4090
        %v6139 = vmul.f32 %v6107, %v4091
        %v6140 = vmul.f32 %v6108, %v4092
        %v6141 = vmul.f32 %v6109, %v4093
        %v6142 = vmul.f32 %v6110, %v4094
        %v6143 = vmul.f32 %v6111, %v4095
        %v6144 = vmul.f32 %v6112, %v4096
        %v6145 = vmul.f32 %v6113, %v4097
        %v6146 = vmul.f32 %v6114, %v4098
        %v6147 = vmul.f32 %v6115, %v4099
        %v6148 = vmul.f32 %v6116, %v4100
        %v6149 = vmul.f32 %v6117, %v4101
        %v6150 = vmul.f32 %v6118, %v4102
        %v6151 = vmul.f32 %v6119, %v4103
        %v6152 = vmul.f32 %v6120, %v4104
        %v6153 = vmul.f32 %v6121, %v4105
        %v6154 = vmul.f32 %v6122, %v4106
        %v6155 = vmul.f32 %v6123, %v4107
        %v6156 = vmul.f32 %v6124, %v4108
        %v6157 = vmul.f32 %v6125, %v4109
        %v6158 = vmul.f32 %v6126, %v4110
        %v6159 = vmul.f32 %v6127, %v4111
        %v6160 = vmul.f32 %v6128, %v4112
        %v6161 = vmul.f32 %v6129, %v4113
        %v6162 = vadd.f32 %v6066, %v6130
        %v6163 = vadd.f32 %v6067, %v6131
        %v6164 = vadd.f32 %v6068, %v6132
        %v6165 = vadd.f32 %v6069, %v6133
        %v6166 = vadd.f32 %v6070, %v6134
        %v6167 = vadd.f32 %v6071, %v6135
        %v6168 = vadd.f32 %v6072, %v6136
        %v6169 = vadd.f32 %v6073, %v6137
        %v6170 = vadd.f32 %v6074, %v6138
        %v6171 = vadd.f32 %v6075, %v6139
        %v6172 = vadd.f32 %v6076, %v6140
        %v6173 = vadd.f32 %v6077, %v6141
        %v6174 = vadd.f32 %v6078, %v6142
        %v6175 = vadd.f32 %v6079, %v6143
        %v6176 = vadd.f32 %v6080, %v6144
        %v6177 = vadd.f32 %v6081, %v6145
        %v6178 = vadd.f32 %v6082, %v6146
        %v6179 = vadd.f32 %v6083, %v6147
        %v6180 = vadd.f32 %v6084, %v6148
        %v6181 = vadd.f32 %v6085, %v6149
        %v6182 = vadd.f32 %v6086, %v6150
        %v6183 = vadd.f32 %v6087, %v6151
        %v6184 = vadd.f32 %v6088, %v6152
        %v6185 = vadd.f32 %v6089, %v6153
        %v6186 = vadd.f32 %v6090, %v6154
        %v6187 = vadd.f32 %v6091, %v6155
        %v6188 = vadd.f32 %v6092, %v6156
        %v6189 = vadd.f32 %v6093, %v6157
        %v6190 = vadd.f32 %v6094, %v6158
        %v6191 = vadd.f32 %v6095, %v6159
        %v6192 = vadd.f32 %v6096, %v6160
        %v6193 = vadd.f32 %v6097, %v6161
        %v6194 = vmul.f32 %v5874, %v3889
        %v6195 = vmul.f32 %v5875, %v3890
        %v6196 = vmul.f32 %v5876, %v3891
        %v6197 = vmul.f32 %v5877, %v3892
        %v6198 = vmul.f32 %v5878, %v3893
        %v6199 = vmul.f32 %v5879, %v3894
        %v6200 = vmul.f32 %v5880, %v3895
        %v6201 = vmul.f32 %v5881, %v3896
        %v6202 = vmul.f32 %v5882, %v3897
        %v6203 = vmul.f32 %v5883, %v3898
        %v6204 = vmul.f32 %v5884, %v3899
        %v6205 = vmul.f32 %v5885, %v3900
        %v6206 = vmul.f32 %v5886, %v3901
        %v6207 = vmul.f32 %v5887, %v3902
        %v6208 = vmul.f32 %v5888, %v3903
        %v6209 = vmul.f32 %v5889, %v3904
        %v6210 = vmul.f32 %v5890, %v3905
        %v6211 = vmul.f32 %v5891, %v3906
        %v6212 = vmul.f32 %v5892, %v3907
        %v6213 = vmul.f32 %v5893, %v3908
        %v6214 = vmul.f32 %v5894, %v3909
        %v6215 = vmul.f32 %v5895, %v3910
        %v6216 = vmul.f32 %v5896, %v3911
        %v6217 = vmul.f32 %v5897, %v3912
        %v6218 = vmul.f32 %v5898, %v3913
        %v6219 = vmul.f32 %v5899, %v3914
        %v6220 = vmul.f32 %v5900, %v3915
        %v6221 = vmul.f32 %v5901, %v3916
        %v6222 = vmul.f32 %v5902, %v3917
        %v6223 = vmul.f32 %v5903, %v3918
        %v6224 = vmul.f32 %v5904, %v3919
        %v6225 = vmul.f32 %v5905, %v3920
        %v6226 = vsub.f32 %v5746, %v6194
        %v6227 = vsub.f32 %v5747, %v6195
        %v6228 = vsub.f32 %v5748, %v6196
        %v6229 = vsub.f32 %v5749, %v6197
        %v6230 = vsub.f32 %v5750, %v6198
        %v6231 = vsub.f32 %v5751, %v6199
        %v6232 = vsub.f32 %v5752, %v6200
        %v6233 = vsub.f32 %v5753, %v6201
        %v6234 = vsub.f32 %v5754, %v6202
        %v6235 = vsub.f32 %v5755, %v6203
        %v6236 = vsub.f32 %v5756, %v6204
        %v6237 = vsub.f32 %v5757, %v6205
        %v6238 = vsub.f32 %v5758, %v6206
        %v6239 = vsub.f32 %v5759, %v6207
        %v6240 = vsub.f32 %v5760, %v6208
        %v6241 = vsub.f32 %v5761, %v6209
        %v6242 = vsub.f32 %v5762, %v6210
        %v6243 = vsub.f32 %v5763, %v6211
        %v6244 = vsub.f32 %v5764, %v6212
        %v6245 = vsub.f32 %v5765, %v6213
        %v6246 = vsub.f32 %v5766, %v6214
        %v6247 = vsub.f32 %v5767, %v6215
        %v6248 = vsub.f32 %v5768, %v6216
        %v6249 = vsub.f32 %v5769, %v6217
        %v6250 = vsub.f32 %v5770, %v6218
        %v6251 = vsub.f32 %v5771, %v6219
        %v6252 = vsub.f32 %v5772, %v6220
        %v6253 = vsub.f32 %v5773, %v6221
        %v6254 = vsub.f32 %v5774, %v6222
        %v6255 = vsub.f32 %v5775, %v6223
        %v6256 = vsub.f32 %v5776, %v6224
        %v6257 = vsub.f32 %v5777, %v6225
        %v6258 = vmul.f32 %v6226, %v2856
        %v6259 = vmul.f32 %v6227, %v2857
        %v6260 = vmul.f32 %v6228, %v2858
        %v6261 = vmul.f32 %v6229, %v2859
        %v6262 = vmul.f32 %v6230, %v2860
        %v6263 = vmul.f32 %v6231, %v2861
        %v6264 = vmul.f32 %v6232, %v2862
        %v6265 = vmul.f32 %v6233, %v2863
        %v6266 = vmul.f32 %v6234, %v2864
        %v6267 = vmul.f32 %v6235, %v2865
        %v6268 = vmul.f32 %v6236, %v2866
        %v6269 = vmul.f32 %v6237, %v2867
        %v6270 = vmul.f32 %v6238, %v2868
        %v6271 = vmul.f32 %v6239, %v2869
        %v6272 = vmul.f32 %v6240, %v2870
        %v6273 = vmul.f32 %v6241, %v2871
        %v6274 = vmul.f32 %v6242, %v2872
        %v6275 = vmul.f32 %v6243, %v2873
        %v6276 = vmul.f32 %v6244, %v2874
        %v6277 = vmul.f32 %v6245, %v2875
        %v6278 = vmul.f32 %v6246, %v2876
        %v6279 = vmul.f32 %v6247, %v2877
        %v6280 = vmul.f32 %v6248, %v2878
        %v6281 = vmul.f32 %v6249, %v2879
        %v6282 = vmul.f32 %v6250, %v2880
        %v6283 = vmul.f32 %v6251, %v2881
        %v6284 = vmul.f32 %v6252, %v2882
        %v6285 = vmul.f32 %v6253, %v2883
        %v6286 = vmul.f32 %v6254, %v2884
        %v6287 = vmul.f32 %v6255, %v2885
        %v6288 = vmul.f32 %v6256, %v2886
        %v6289 = vmul.f32 %v6257, %v2887
        %v6290 = vmul.f32 %v5874, %v3727
        %v6291 = vmul.f32 %v5875, %v3727
        %v6292 = vmul.f32 %v5876, %v3727
        %v6293 = vmul.f32 %v5877, %v3727
        %v6294 = vmul.f32 %v5878, %v3727
        %v6295 = vmul.f32 %v5879, %v3727
        %v6296 = vmul.f32 %v5880, %v3727
        %v6297 = vmul.f32 %v5881, %v3727
        %v6298 = vmul.f32 %v5882, %v3727
        %v6299 = vmul.f32 %v5883, %v3727
        %v6300 = vmul.f32 %v5884, %v3727
        %v6301 = vmul.f32 %v5885, %v3727
        %v6302 = vmul.f32 %v5886, %v3727
        %v6303 = vmul.f32 %v5887, %v3727
        %v6304 = vmul.f32 %v5888, %v3727
        %v6305 = vmul.f32 %v5889, %v3727
        %v6306 = vmul.f32 %v5890, %v3727
        %v6307 = vmul.f32 %v5891, %v3727
        %v6308 = vmul.f32 %v5892, %v3727
        %v6309 = vmul.f32 %v5893, %v3727
        %v6310 = vmul.f32 %v5894, %v3727
        %v6311 = vmul.f32 %v5895, %v3727
        %v6312 = vmul.f32 %v5896, %v3727
        %v6313 = vmul.f32 %v5897, %v3727
        %v6314 = vmul.f32 %v5898, %v3727
        %v6315 = vmul.f32 %v5899, %v3727
        %v6316 = vmul.f32 %v5900, %v3727
        %v6317 = vmul.f32 %v5901, %v3727
        %v6318 = vmul.f32 %v5902, %v3727
        %v6319 = vmul.f32 %v5903, %v3727
        %v6320 = vmul.f32 %v5904, %v3727
        %v6321 = vmul.f32 %v5905, %v3727
        %v6322 = vadd.f32 %v6258, %v6290
        %v6323 = vadd.f32 %v6259, %v6291
        %v6324 = vadd.f32 %v6260, %v6292
        %v6325 = vadd.f32 %v6261, %v6293
        %v6326 = vadd.f32 %v6262, %v6294
        %v6327 = vadd.f32 %v6263, %v6295
        %v6328 = vadd.f32 %v6264, %v6296
        %v6329 = vadd.f32 %v6265, %v6297
        %v6330 = vadd.f32 %v6266, %v6298
        %v6331 = vadd.f32 %v6267, %v6299
        %v6332 = vadd.f32 %v6268, %v6300
        %v6333 = vadd.f32 %v6269, %v6301
        %v6334 = vadd.f32 %v6270, %v6302
        %v6335 = vadd.f32 %v6271, %v6303
        %v6336 = vadd.f32 %v6272, %v6304
        %v6337 = vadd.f32 %v6273, %v6305
        %v6338 = vadd.f32 %v6274, %v6306
        %v6339 = vadd.f32 %v6275, %v6307
        %v6340 = vadd.f32 %v6276, %v6308
        %v6341 = vadd.f32 %v6277, %v6309
        %v6342 = vadd.f32 %v6278, %v6310
        %v6343 = vadd.f32 %v6279, %v6311
        %v6344 = vadd.f32 %v6280, %v6312
        %v6345 = vadd.f32 %v6281, %v6313
        %v6346 = vadd.f32 %v6282, %v6314
        %v6347 = vadd.f32 %v6283, %v6315
        %v6348 = vadd.f32 %v6284, %v6316
        %v6349 = vadd.f32 %v6285, %v6317
        %v6350 = vadd.f32 %v6286, %v6318
        %v6351 = vadd.f32 %v6287, %v6319
        %v6352 = vadd.f32 %v6288, %v6320
        %v6353 = vadd.f32 %v6289, %v6321
        %v6354 = vmax.f32 %v6162, 0.004
        %v6355 = vmax.f32 %v6163, 0.004
        %v6356 = vmax.f32 %v6164, 0.004
        %v6357 = vmax.f32 %v6165, 0.004
        %v6358 = vmax.f32 %v6166, 0.004
        %v6359 = vmax.f32 %v6167, 0.004
        %v6360 = vmax.f32 %v6168, 0.004
        %v6361 = vmax.f32 %v6169, 0.004
        %v6362 = vmax.f32 %v6170, 0.004
        %v6363 = vmax.f32 %v6171, 0.004
        %v6364 = vmax.f32 %v6172, 0.004
        %v6365 = vmax.f32 %v6173, 0.004
        %v6366 = vmax.f32 %v6174, 0.004
        %v6367 = vmax.f32 %v6175, 0.004
        %v6368 = vmax.f32 %v6176, 0.004
        %v6369 = vmax.f32 %v6177, 0.004
        %v6370 = vmax.f32 %v6178, 0.004
        %v6371 = vmax.f32 %v6179, 0.004
        %v6372 = vmax.f32 %v6180, 0.004
        %v6373 = vmax.f32 %v6181, 0.004
        %v6374 = vmax.f32 %v6182, 0.004
        %v6375 = vmax.f32 %v6183, 0.004
        %v6376 = vmax.f32 %v6184, 0.004
        %v6377 = vmax.f32 %v6185, 0.004
        %v6378 = vmax.f32 %v6186, 0.004
        %v6379 = vmax.f32 %v6187, 0.004
        %v6380 = vmax.f32 %v6188, 0.004
        %v6381 = vmax.f32 %v6189, 0.004
        %v6382 = vmax.f32 %v6190, 0.004
        %v6383 = vmax.f32 %v6191, 0.004
        %v6384 = vmax.f32 %v6192, 0.004
        %v6385 = vmax.f32 %v6193, 0.004
        %v6386 = vrsqrt.pop %v6354
        %v6387 = vmul.f32 %v6386, %v6354
        %v6388 = vmul.f32 %v6387, %v6386
        %v6389 = vmul.f32 0.5, %v6388
        %v6390 = vsub.f32 1.5, %v6389
        %v6391 = vmul.f32 %v6386, %v6390
        %v6392 = vmul.f32 %v6354, %v6391
        %vm6393 = vcmp.eq.f32.partialorder %v6354, inf
        %v6394 = vsel %vm6393, %v6354, %v6392
        %vm6395 = vcmp.eq.f32.partialorder %v6354, 0.0
        %v6396 = vand.u32 %v6354, 2147483648
        %v6397 = vsel %vm6395, %v6396, %v6394
        %v6398 = vrsqrt.pop %v6355
        %v6399 = vmul.f32 %v6398, %v6355
        %v6400 = vmul.f32 %v6399, %v6398
        %v6401 = vmul.f32 0.5, %v6400
        %v6402 = vsub.f32 1.5, %v6401
        %v6403 = vmul.f32 %v6398, %v6402
        %v6404 = vmul.f32 %v6355, %v6403
        %vm6405 = vcmp.eq.f32.partialorder %v6355, inf
        %v6406 = vsel %vm6405, %v6355, %v6404
        %vm6407 = vcmp.eq.f32.partialorder %v6355, 0.0
        %v6408 = vand.u32 %v6355, 2147483648
        %v6409 = vsel %vm6407, %v6408, %v6406
        %v6410 = vrsqrt.pop %v6356
        %v6411 = vmul.f32 %v6410, %v6356
        %v6412 = vmul.f32 %v6411, %v6410
        %v6413 = vmul.f32 0.5, %v6412
        %v6414 = vsub.f32 1.5, %v6413
        %v6415 = vmul.f32 %v6410, %v6414
        %v6416 = vmul.f32 %v6356, %v6415
        %vm6417 = vcmp.eq.f32.partialorder %v6356, inf
        %v6418 = vsel %vm6417, %v6356, %v6416
        %vm6419 = vcmp.eq.f32.partialorder %v6356, 0.0
        %v6420 = vand.u32 %v6356, 2147483648
        %v6421 = vsel %vm6419, %v6420, %v6418
        %v6422 = vrsqrt.pop %v6357
        %v6423 = vmul.f32 %v6422, %v6357
        %v6424 = vmul.f32 %v6423, %v6422
        %v6425 = vmul.f32 0.5, %v6424
        %v6426 = vsub.f32 1.5, %v6425
        %v6427 = vmul.f32 %v6422, %v6426
        %v6428 = vmul.f32 %v6357, %v6427
        %vm6429 = vcmp.eq.f32.partialorder %v6357, inf
        %v6430 = vsel %vm6429, %v6357, %v6428
        %vm6431 = vcmp.eq.f32.partialorder %v6357, 0.0
        %v6432 = vand.u32 %v6357, 2147483648
        %v6433 = vsel %vm6431, %v6432, %v6430
        %v6434 = vrsqrt.pop %v6358
        %v6435 = vmul.f32 %v6434, %v6358
        %v6436 = vmul.f32 %v6435, %v6434
        %v6437 = vmul.f32 0.5, %v6436
        %v6438 = vsub.f32 1.5, %v6437
        %v6439 = vmul.f32 %v6434, %v6438
        %v6440 = vmul.f32 %v6358, %v6439
        %vm6441 = vcmp.eq.f32.partialorder %v6358, inf
        %v6442 = vsel %vm6441, %v6358, %v6440
        %vm6443 = vcmp.eq.f32.partialorder %v6358, 0.0
        %v6444 = vand.u32 %v6358, 2147483648
        %v6445 = vsel %vm6443, %v6444, %v6442
        %v6446 = vrsqrt.pop %v6359
        %v6447 = vmul.f32 %v6446, %v6359
        %v6448 = vmul.f32 %v6447, %v6446
        %v6449 = vmul.f32 0.5, %v6448
        %v6450 = vsub.f32 1.5, %v6449
        %v6451 = vmul.f32 %v6446, %v6450
        %v6452 = vmul.f32 %v6359, %v6451
        %vm6453 = vcmp.eq.f32.partialorder %v6359, inf
        %v6454 = vsel %vm6453, %v6359, %v6452
        %vm6455 = vcmp.eq.f32.partialorder %v6359, 0.0
        %v6456 = vand.u32 %v6359, 2147483648
        %v6457 = vsel %vm6455, %v6456, %v6454
        %v6458 = vrsqrt.pop %v6360
        %v6459 = vmul.f32 %v6458, %v6360
        %v6460 = vmul.f32 %v6459, %v6458
        %v6461 = vmul.f32 0.5, %v6460
        %v6462 = vsub.f32 1.5, %v6461
        %v6463 = vmul.f32 %v6458, %v6462
        %v6464 = vmul.f32 %v6360, %v6463
        %vm6465 = vcmp.eq.f32.partialorder %v6360, inf
        %v6466 = vsel %vm6465, %v6360, %v6464
        %vm6467 = vcmp.eq.f32.partialorder %v6360, 0.0
        %v6468 = vand.u32 %v6360, 2147483648
        %v6469 = vsel %vm6467, %v6468, %v6466
        %v6470 = vrsqrt.pop %v6361
        %v6471 = vmul.f32 %v6470, %v6361
        %v6472 = vmul.f32 %v6471, %v6470
        %v6473 = vmul.f32 0.5, %v6472
        %v6474 = vsub.f32 1.5, %v6473
        %v6475 = vmul.f32 %v6470, %v6474
        %v6476 = vmul.f32 %v6361, %v6475
        %vm6477 = vcmp.eq.f32.partialorder %v6361, inf
        %v6478 = vsel %vm6477, %v6361, %v6476
        %vm6479 = vcmp.eq.f32.partialorder %v6361, 0.0
        %v6480 = vand.u32 %v6361, 2147483648
        %v6481 = vsel %vm6479, %v6480, %v6478
        %v6482 = vrsqrt.pop %v6362
        %v6483 = vmul.f32 %v6482, %v6362
        %v6484 = vmul.f32 %v6483, %v6482
        %v6485 = vmul.f32 0.5, %v6484
        %v6486 = vsub.f32 1.5, %v6485
        %v6487 = vmul.f32 %v6482, %v6486
        %v6488 = vmul.f32 %v6362, %v6487
        %vm6489 = vcmp.eq.f32.partialorder %v6362, inf
        %v6490 = vsel %vm6489, %v6362, %v6488
        %vm6491 = vcmp.eq.f32.partialorder %v6362, 0.0
        %v6492 = vand.u32 %v6362, 2147483648
        %v6493 = vsel %vm6491, %v6492, %v6490
        %v6494 = vrsqrt.pop %v6363
        %v6495 = vmul.f32 %v6494, %v6363
        %v6496 = vmul.f32 %v6495, %v6494
        %v6497 = vmul.f32 0.5, %v6496
        %v6498 = vsub.f32 1.5, %v6497
        %v6499 = vmul.f32 %v6494, %v6498
        %v6500 = vmul.f32 %v6363, %v6499
        %vm6501 = vcmp.eq.f32.partialorder %v6363, inf
        %v6502 = vsel %vm6501, %v6363, %v6500
        %vm6503 = vcmp.eq.f32.partialorder %v6363, 0.0
        %v6504 = vand.u32 %v6363, 2147483648
        %v6505 = vsel %vm6503, %v6504, %v6502
        %v6506 = vrsqrt.pop %v6364
        %v6507 = vmul.f32 %v6506, %v6364
        %v6508 = vmul.f32 %v6507, %v6506
        %v6509 = vmul.f32 0.5, %v6508
        %v6510 = vsub.f32 1.5, %v6509
        %v6511 = vmul.f32 %v6506, %v6510
        %v6512 = vmul.f32 %v6364, %v6511
        %vm6513 = vcmp.eq.f32.partialorder %v6364, inf
        %v6514 = vsel %vm6513, %v6364, %v6512
        %vm6515 = vcmp.eq.f32.partialorder %v6364, 0.0
        %v6516 = vand.u32 %v6364, 2147483648
        %v6517 = vsel %vm6515, %v6516, %v6514
        %v6518 = vrsqrt.pop %v6365
        %v6519 = vmul.f32 %v6518, %v6365
        %v6520 = vmul.f32 %v6519, %v6518
        %v6521 = vmul.f32 0.5, %v6520
        %v6522 = vsub.f32 1.5, %v6521
        %v6523 = vmul.f32 %v6518, %v6522
        %v6524 = vmul.f32 %v6365, %v6523
        %vm6525 = vcmp.eq.f32.partialorder %v6365, inf
        %v6526 = vsel %vm6525, %v6365, %v6524
        %vm6527 = vcmp.eq.f32.partialorder %v6365, 0.0
        %v6528 = vand.u32 %v6365, 2147483648
        %v6529 = vsel %vm6527, %v6528, %v6526
        %v6530 = vrsqrt.pop %v6366
        %v6531 = vmul.f32 %v6530, %v6366
        %v6532 = vmul.f32 %v6531, %v6530
        %v6533 = vmul.f32 0.5, %v6532
        %v6534 = vsub.f32 1.5, %v6533
        %v6535 = vmul.f32 %v6530, %v6534
        %v6536 = vmul.f32 %v6366, %v6535
        %vm6537 = vcmp.eq.f32.partialorder %v6366, inf
        %v6538 = vsel %vm6537, %v6366, %v6536
        %vm6539 = vcmp.eq.f32.partialorder %v6366, 0.0
        %v6540 = vand.u32 %v6366, 2147483648
        %v6541 = vsel %vm6539, %v6540, %v6538
        %v6542 = vrsqrt.pop %v6367
        %v6543 = vmul.f32 %v6542, %v6367
        %v6544 = vmul.f32 %v6543, %v6542
        %v6545 = vmul.f32 0.5, %v6544
        %v6546 = vsub.f32 1.5, %v6545
        %v6547 = vmul.f32 %v6542, %v6546
        %v6548 = vmul.f32 %v6367, %v6547
        %vm6549 = vcmp.eq.f32.partialorder %v6367, inf
        %v6550 = vsel %vm6549, %v6367, %v6548
        %vm6551 = vcmp.eq.f32.partialorder %v6367, 0.0
        %v6552 = vand.u32 %v6367, 2147483648
        %v6553 = vsel %vm6551, %v6552, %v6550
        %v6554 = vrsqrt.pop %v6368
        %v6555 = vmul.f32 %v6554, %v6368
        %v6556 = vmul.f32 %v6555, %v6554
        %v6557 = vmul.f32 0.5, %v6556
        %v6558 = vsub.f32 1.5, %v6557
        %v6559 = vmul.f32 %v6554, %v6558
        %v6560 = vmul.f32 %v6368, %v6559
        %vm6561 = vcmp.eq.f32.partialorder %v6368, inf
        %v6562 = vsel %vm6561, %v6368, %v6560
        %vm6563 = vcmp.eq.f32.partialorder %v6368, 0.0
        %v6564 = vand.u32 %v6368, 2147483648
        %v6565 = vsel %vm6563, %v6564, %v6562
        %v6566 = vrsqrt.pop %v6369
        %v6567 = vmul.f32 %v6566, %v6369
        %v6568 = vmul.f32 %v6567, %v6566
        %v6569 = vmul.f32 0.5, %v6568
        %v6570 = vsub.f32 1.5, %v6569
        %v6571 = vmul.f32 %v6566, %v6570
        %v6572 = vmul.f32 %v6369, %v6571
        %vm6573 = vcmp.eq.f32.partialorder %v6369, inf
        %v6574 = vsel %vm6573, %v6369, %v6572
        %vm6575 = vcmp.eq.f32.partialorder %v6369, 0.0
        %v6576 = vand.u32 %v6369, 2147483648
        %v6577 = vsel %vm6575, %v6576, %v6574
        %v6578 = vrsqrt.pop %v6370
        %v6579 = vmul.f32 %v6578, %v6370
        %v6580 = vmul.f32 %v6579, %v6578
        %v6581 = vmul.f32 0.5, %v6580
        %v6582 = vsub.f32 1.5, %v6581
        %v6583 = vmul.f32 %v6578, %v6582
        %v6584 = vmul.f32 %v6370, %v6583
        %vm6585 = vcmp.eq.f32.partialorder %v6370, inf
        %v6586 = vsel %vm6585, %v6370, %v6584
        %vm6587 = vcmp.eq.f32.partialorder %v6370, 0.0
        %v6588 = vand.u32 %v6370, 2147483648
        %v6589 = vsel %vm6587, %v6588, %v6586
        %v6590 = vrsqrt.pop %v6371
        %v6591 = vmul.f32 %v6590, %v6371
        %v6592 = vmul.f32 %v6591, %v6590
        %v6593 = vmul.f32 0.5, %v6592
        %v6594 = vsub.f32 1.5, %v6593
        %v6595 = vmul.f32 %v6590, %v6594
        %v6596 = vmul.f32 %v6371, %v6595
        %vm6597 = vcmp.eq.f32.partialorder %v6371, inf
        %v6598 = vsel %vm6597, %v6371, %v6596
        %vm6599 = vcmp.eq.f32.partialorder %v6371, 0.0
        %v6600 = vand.u32 %v6371, 2147483648
        %v6601 = vsel %vm6599, %v6600, %v6598
        %v6602 = vrsqrt.pop %v6372
        %v6603 = vmul.f32 %v6602, %v6372
        %v6604 = vmul.f32 %v6603, %v6602
        %v6605 = vmul.f32 0.5, %v6604
        %v6606 = vsub.f32 1.5, %v6605
        %v6607 = vmul.f32 %v6602, %v6606
        %v6608 = vmul.f32 %v6372, %v6607
        %vm6609 = vcmp.eq.f32.partialorder %v6372, inf
        %v6610 = vsel %vm6609, %v6372, %v6608
        %vm6611 = vcmp.eq.f32.partialorder %v6372, 0.0
        %v6612 = vand.u32 %v6372, 2147483648
        %v6613 = vsel %vm6611, %v6612, %v6610
        %v6614 = vrsqrt.pop %v6373
        %v6615 = vmul.f32 %v6614, %v6373
        %v6616 = vmul.f32 %v6615, %v6614
        %v6617 = vmul.f32 0.5, %v6616
        %v6618 = vsub.f32 1.5, %v6617
        %v6619 = vmul.f32 %v6614, %v6618
        %v6620 = vmul.f32 %v6373, %v6619
        %vm6621 = vcmp.eq.f32.partialorder %v6373, inf
        %v6622 = vsel %vm6621, %v6373, %v6620
        %vm6623 = vcmp.eq.f32.partialorder %v6373, 0.0
        %v6624 = vand.u32 %v6373, 2147483648
        %v6625 = vsel %vm6623, %v6624, %v6622
        %v6626 = vrsqrt.pop %v6374
        %v6627 = vmul.f32 %v6626, %v6374
        %v6628 = vmul.f32 %v6627, %v6626
        %v6629 = vmul.f32 0.5, %v6628
        %v6630 = vsub.f32 1.5, %v6629
        %v6631 = vmul.f32 %v6626, %v6630
        %v6632 = vmul.f32 %v6374, %v6631
        %vm6633 = vcmp.eq.f32.partialorder %v6374, inf
        %v6634 = vsel %vm6633, %v6374, %v6632
        %vm6635 = vcmp.eq.f32.partialorder %v6374, 0.0
        %v6636 = vand.u32 %v6374, 2147483648
        %v6637 = vsel %vm6635, %v6636, %v6634
        %v6638 = vrsqrt.pop %v6375
        %v6639 = vmul.f32 %v6638, %v6375
        %v6640 = vmul.f32 %v6639, %v6638
        %v6641 = vmul.f32 0.5, %v6640
        %v6642 = vsub.f32 1.5, %v6641
        %v6643 = vmul.f32 %v6638, %v6642
        %v6644 = vmul.f32 %v6375, %v6643
        %vm6645 = vcmp.eq.f32.partialorder %v6375, inf
        %v6646 = vsel %vm6645, %v6375, %v6644
        %vm6647 = vcmp.eq.f32.partialorder %v6375, 0.0
        %v6648 = vand.u32 %v6375, 2147483648
        %v6649 = vsel %vm6647, %v6648, %v6646
        %v6650 = vrsqrt.pop %v6376
        %v6651 = vmul.f32 %v6650, %v6376
        %v6652 = vmul.f32 %v6651, %v6650
        %v6653 = vmul.f32 0.5, %v6652
        %v6654 = vsub.f32 1.5, %v6653
        %v6655 = vmul.f32 %v6650, %v6654
        %v6656 = vmul.f32 %v6376, %v6655
        %vm6657 = vcmp.eq.f32.partialorder %v6376, inf
        %v6658 = vsel %vm6657, %v6376, %v6656
        %vm6659 = vcmp.eq.f32.partialorder %v6376, 0.0
        %v6660 = vand.u32 %v6376, 2147483648
        %v6661 = vsel %vm6659, %v6660, %v6658
        %v6662 = vrsqrt.pop %v6377
        %v6663 = vmul.f32 %v6662, %v6377
        %v6664 = vmul.f32 %v6663, %v6662
        %v6665 = vmul.f32 0.5, %v6664
        %v6666 = vsub.f32 1.5, %v6665
        %v6667 = vmul.f32 %v6662, %v6666
        %v6668 = vmul.f32 %v6377, %v6667
        %vm6669 = vcmp.eq.f32.partialorder %v6377, inf
        %v6670 = vsel %vm6669, %v6377, %v6668
        %vm6671 = vcmp.eq.f32.partialorder %v6377, 0.0
        %v6672 = vand.u32 %v6377, 2147483648
        %v6673 = vsel %vm6671, %v6672, %v6670
        %v6674 = vrsqrt.pop %v6378
        %v6675 = vmul.f32 %v6674, %v6378
        %v6676 = vmul.f32 %v6675, %v6674
        %v6677 = vmul.f32 0.5, %v6676
        %v6678 = vsub.f32 1.5, %v6677
        %v6679 = vmul.f32 %v6674, %v6678
        %v6680 = vmul.f32 %v6378, %v6679
        %vm6681 = vcmp.eq.f32.partialorder %v6378, inf
        %v6682 = vsel %vm6681, %v6378, %v6680
        %vm6683 = vcmp.eq.f32.partialorder %v6378, 0.0
        %v6684 = vand.u32 %v6378, 2147483648
        %v6685 = vsel %vm6683, %v6684, %v6682
        %v6686 = vrsqrt.pop %v6379
        %v6687 = vmul.f32 %v6686, %v6379
        %v6688 = vmul.f32 %v6687, %v6686
        %v6689 = vmul.f32 0.5, %v6688
        %v6690 = vsub.f32 1.5, %v6689
        %v6691 = vmul.f32 %v6686, %v6690
        %v6692 = vmul.f32 %v6379, %v6691
        %vm6693 = vcmp.eq.f32.partialorder %v6379, inf
        %v6694 = vsel %vm6693, %v6379, %v6692
        %vm6695 = vcmp.eq.f32.partialorder %v6379, 0.0
        %v6696 = vand.u32 %v6379, 2147483648
        %v6697 = vsel %vm6695, %v6696, %v6694
        %v6698 = vrsqrt.pop %v6380
        %v6699 = vmul.f32 %v6698, %v6380
        %v6700 = vmul.f32 %v6699, %v6698
        %v6701 = vmul.f32 0.5, %v6700
        %v6702 = vsub.f32 1.5, %v6701
        %v6703 = vmul.f32 %v6698, %v6702
        %v6704 = vmul.f32 %v6380, %v6703
        %vm6705 = vcmp.eq.f32.partialorder %v6380, inf
        %v6706 = vsel %vm6705, %v6380, %v6704
        %vm6707 = vcmp.eq.f32.partialorder %v6380, 0.0
        %v6708 = vand.u32 %v6380, 2147483648
        %v6709 = vsel %vm6707, %v6708, %v6706
        %v6710 = vrsqrt.pop %v6381
        %v6711 = vmul.f32 %v6710, %v6381
        %v6712 = vmul.f32 %v6711, %v6710
        %v6713 = vmul.f32 0.5, %v6712
        %v6714 = vsub.f32 1.5, %v6713
        %v6715 = vmul.f32 %v6710, %v6714
        %v6716 = vmul.f32 %v6381, %v6715
        %vm6717 = vcmp.eq.f32.partialorder %v6381, inf
        %v6718 = vsel %vm6717, %v6381, %v6716
        %vm6719 = vcmp.eq.f32.partialorder %v6381, 0.0
        %v6720 = vand.u32 %v6381, 2147483648
        %v6721 = vsel %vm6719, %v6720, %v6718
        %v6722 = vrsqrt.pop %v6382
        %v6723 = vmul.f32 %v6722, %v6382
        %v6724 = vmul.f32 %v6723, %v6722
        %v6725 = vmul.f32 0.5, %v6724
        %v6726 = vsub.f32 1.5, %v6725
        %v6727 = vmul.f32 %v6722, %v6726
        %v6728 = vmul.f32 %v6382, %v6727
        %vm6729 = vcmp.eq.f32.partialorder %v6382, inf
        %v6730 = vsel %vm6729, %v6382, %v6728
        %vm6731 = vcmp.eq.f32.partialorder %v6382, 0.0
        %v6732 = vand.u32 %v6382, 2147483648
        %v6733 = vsel %vm6731, %v6732, %v6730
        %v6734 = vrsqrt.pop %v6383
        %v6735 = vmul.f32 %v6734, %v6383
        %v6736 = vmul.f32 %v6735, %v6734
        %v6737 = vmul.f32 0.5, %v6736
        %v6738 = vsub.f32 1.5, %v6737
        %v6739 = vmul.f32 %v6734, %v6738
        %v6740 = vmul.f32 %v6383, %v6739
        %vm6741 = vcmp.eq.f32.partialorder %v6383, inf
        %v6742 = vsel %vm6741, %v6383, %v6740
        %vm6743 = vcmp.eq.f32.partialorder %v6383, 0.0
        %v6744 = vand.u32 %v6383, 2147483648
        %v6745 = vsel %vm6743, %v6744, %v6742
        %v6746 = vrsqrt.pop %v6384
        %v6747 = vmul.f32 %v6746, %v6384
        %v6748 = vmul.f32 %v6747, %v6746
        %v6749 = vmul.f32 0.5, %v6748
        %v6750 = vsub.f32 1.5, %v6749
        %v6751 = vmul.f32 %v6746, %v6750
        %v6752 = vmul.f32 %v6384, %v6751
        %vm6753 = vcmp.eq.f32.partialorder %v6384, inf
        %v6754 = vsel %vm6753, %v6384, %v6752
        %vm6755 = vcmp.eq.f32.partialorder %v6384, 0.0
        %v6756 = vand.u32 %v6384, 2147483648
        %v6757 = vsel %vm6755, %v6756, %v6754
        %v6758 = vrsqrt.pop %v6385
        %v6759 = vmul.f32 %v6758, %v6385
        %v6760 = vmul.f32 %v6759, %v6758
        %v6761 = vmul.f32 0.5, %v6760
        %v6762 = vsub.f32 1.5, %v6761
        %v6763 = vmul.f32 %v6758, %v6762
        %v6764 = vmul.f32 %v6385, %v6763
        %vm6765 = vcmp.eq.f32.partialorder %v6385, inf
        %v6766 = vsel %vm6765, %v6385, %v6764
        %vm6767 = vcmp.eq.f32.partialorder %v6385, 0.0
        %v6768 = vand.u32 %v6385, 2147483648
        %v6769 = vsel %vm6767, %v6768, %v6766
        %v6770 = vmul.f32 %v6397, %v213
        %v6771 = vmul.f32 %v6409, %v213
        %v6772 = vmul.f32 %v6421, %v213
        %v6773 = vmul.f32 %v6433, %v213
        %v6774 = vmul.f32 %v6445, %v213
        %v6775 = vmul.f32 %v6457, %v213
        %v6776 = vmul.f32 %v6469, %v213
        %v6777 = vmul.f32 %v6481, %v213
        %v6778 = vmul.f32 %v6493, %v213
        %v6779 = vmul.f32 %v6505, %v213
        %v6780 = vmul.f32 %v6517, %v213
        %v6781 = vmul.f32 %v6529, %v213
        %v6782 = vmul.f32 %v6541, %v213
        %v6783 = vmul.f32 %v6553, %v213
        %v6784 = vmul.f32 %v6565, %v213
        %v6785 = vmul.f32 %v6577, %v213
        %v6786 = vmul.f32 %v6589, %v213
        %v6787 = vmul.f32 %v6601, %v213
        %v6788 = vmul.f32 %v6613, %v213
        %v6789 = vmul.f32 %v6625, %v213
        %v6790 = vmul.f32 %v6637, %v213
        %v6791 = vmul.f32 %v6649, %v213
        %v6792 = vmul.f32 %v6661, %v213
        %v6793 = vmul.f32 %v6673, %v213
        %v6794 = vmul.f32 %v6685, %v213
        %v6795 = vmul.f32 %v6697, %v213
        %v6796 = vmul.f32 %v6709, %v213
        %v6797 = vmul.f32 %v6721, %v213
        %v6798 = vmul.f32 %v6733, %v213
        %v6799 = vmul.f32 %v6745, %v213
        %v6800 = vmul.f32 %v6757, %v213
        %v6801 = vmul.f32 %v6769, %v213
        %v6802 = vadd.f32 %v6770, %v6322
        %v6803 = vadd.f32 %v6771, %v6323
        %v6804 = vadd.f32 %v6772, %v6324
        %v6805 = vadd.f32 %v6773, %v6325
        %v6806 = vadd.f32 %v6774, %v6326
        %v6807 = vadd.f32 %v6775, %v6327
        %v6808 = vadd.f32 %v6776, %v6328
        %v6809 = vadd.f32 %v6777, %v6329
        %v6810 = vadd.f32 %v6778, %v6330
        %v6811 = vadd.f32 %v6779, %v6331
        %v6812 = vadd.f32 %v6780, %v6332
        %v6813 = vadd.f32 %v6781, %v6333
        %v6814 = vadd.f32 %v6782, %v6334
        %v6815 = vadd.f32 %v6783, %v6335
        %v6816 = vadd.f32 %v6784, %v6336
        %v6817 = vadd.f32 %v6785, %v6337
        %v6818 = vadd.f32 %v6786, %v6338
        %v6819 = vadd.f32 %v6787, %v6339
        %v6820 = vadd.f32 %v6788, %v6340
        %v6821 = vadd.f32 %v6789, %v6341
        %v6822 = vadd.f32 %v6790, %v6342
        %v6823 = vadd.f32 %v6791, %v6343
        %v6824 = vadd.f32 %v6792, %v6344
        %v6825 = vadd.f32 %v6793, %v6345
        %v6826 = vadd.f32 %v6794, %v6346
        %v6827 = vadd.f32 %v6795, %v6347
        %v6828 = vadd.f32 %v6796, %v6348
        %v6829 = vadd.f32 %v6797, %v6349
        %v6830 = vadd.f32 %v6798, %v6350
        %v6831 = vadd.f32 %v6799, %v6351
        %v6832 = vadd.f32 %v6800, %v6352
        %v6833 = vadd.f32 %v6801, %v6353
        %6834 = vst [vmem:[%s164] sm:$0xff] %v6802
        %6835 = vst [vmem:[%s164 + $0x8] sm:$0xff] %v6803
        %6836 = vst [vmem:[%s164 + $0x10] sm:$0xff] %v6804
        %6837 = vst [vmem:[%s164 + $0x18] sm:$0xff] %v6805
        %6838 = vst [vmem:[%s164 + $0x20] sm:$0xff] %v6806
        %6839 = vst [vmem:[%s164 + $0x28] sm:$0xff] %v6807
        %6840 = vst [vmem:[%s164 + $0x30] sm:$0xff] %v6808
        %6841 = vst [vmem:[%s164 + $0x38] sm:$0xff] %v6809
        %6842 = vst [vmem:[%s164 + $0x40] sm:$0xff] %v6810
        %6843 = vst [vmem:[%s164 + $0x48] sm:$0xff] %v6811
        %6844 = vst [vmem:[%s164 + $0x50] sm:$0xff] %v6812
        %6845 = vst [vmem:[%s164 + $0x58] sm:$0xff] %v6813
        %6846 = vst [vmem:[%s164 + $0x60] sm:$0xff] %v6814
        %6847 = vst [vmem:[%s164 + $0x68] sm:$0xff] %v6815
        %6848 = vst [vmem:[%s164 + $0x70] sm:$0xff] %v6816
        %6849 = vst [vmem:[%s164 + $0x78] sm:$0xff] %v6817
        %6850 = vst [vmem:[%s164 + $0x80] sm:$0xff] %v6818
        %6851 = vst [vmem:[%s164 + $0x88] sm:$0xff] %v6819
        %6852 = vst [vmem:[%s164 + $0x90] sm:$0xff] %v6820
        %6853 = vst [vmem:[%s164 + $0x98] sm:$0xff] %v6821
        %6854 = vst [vmem:[%s164 + $0xa0] sm:$0xff] %v6822
        %6855 = vst [vmem:[%s164 + $0xa8] sm:$0xff] %v6823
        %6856 = vst [vmem:[%s164 + $0xb0] sm:$0xff] %v6824
        %6857 = vst [vmem:[%s164 + $0xb8] sm:$0xff] %v6825
        %6858 = vst [vmem:[%s164 + $0xc0] sm:$0xff] %v6826
        %6859 = vst [vmem:[%s164 + $0xc8] sm:$0xff] %v6827
        %6860 = vst [vmem:[%s164 + $0xd0] sm:$0xff] %v6828
        %6861 = vst [vmem:[%s164 + $0xd8] sm:$0xff] %v6829
        %6862 = vst [vmem:[%s164 + $0xe0] sm:$0xff] %v6830
        %6863 = vst [vmem:[%s164 + $0xe8] sm:$0xff] %v6831
        %6864 = vst [vmem:[%s164 + $0xf0] sm:$0xff] %v6832
        %6865 = vst [vmem:[%s164 + $0xf8] sm:$0xff] %v6833
        %s6866 = sand.u32 %s93, 1
        %s6867 = scalar_lea.sflag [#allocation3], %s6866
        %s6868 = sand.u32 %s93, 1
        %s6869 = smul.addr %s6868, 256
        %s6870 = scalar_lea.vmem [#allocation2], %s6869
        // Predicated region
        $region33: #{tpu_custom_call.1} parent=31 // pred_check
          %p6871 = pneg %p103
        $region34: #{tpu_custom_call.1} parent=31 // pred_check_branch
          %6873 = sbr.rel (%p6871) target = $region36
        $region35: #{tpu_custom_call.1} parent=31 // pred_region
          %s6874 = smul.u32 32, %s17
          %6876 = vsyncadd %s6867, 0
          %s6877 = smul.addr %s6874, 8
          %s6878 = scalar_lea.hbm %s3, %s6877
          %s6879 = sshll.u32 %s6870, 4
          %s6880 = int_to_ptr.vmem [resolvable:$true] %s6879
          %s6881 = sshll.u32 %s6878, 4
          %s6882 = int_to_ptr.hbm [resolvable:$true] %s6881
          %6887 = dma.vmem_to_hbm [thread:$0]  %s6880, 4096, %s6882, %s6867, 128, 128, 8
        $region36: #{tpu_custom_call.1} parent=31 // pred_fallthru
          _
      $region32: #{tpu_custom_call.1} parent=5 // pred_fallthru
        _
      %p6888 = scmp.le.s32.totalorder 2, %s12
      // Predicated region
      $region37: #{tpu_custom_call.1} parent=5 // pred_check
        %p6889 = pneg %p6888
      $region38: #{tpu_custom_call.1} parent=5 // pred_check_branch
        %6891 = sbr.rel (%p6889) target = $region40
      $region39: #{tpu_custom_call.1} parent=5 // pred_region
        %s6892 = ssub.s32 %s12, 2
        // Predicated region
        $region41: #{tpu_custom_call.1} parent=39 // pred_check
          %p6893 = pneg %p109
        $region42: #{tpu_custom_call.1} parent=39 // pred_check_branch
          %6895 = sbr.rel (%p6893) target = $region44
        $region43: #{tpu_custom_call.1} parent=39 // pred_region
          %s6896 = sand.u32 %s94, 1
          %s6897 = scalar_lea.sflag [#allocation3], %s6896
          %s6898 = sand.u32 %s94, 1
          %s6899 = smul.addr %s6898, 256
          %s6900 = scalar_lea.vmem [#allocation2], %s6899
          %6902 = dma.done %s6897, 4096
        $region44: #{tpu_custom_call.1} parent=39 // pred_fallthru
          _
      $region40: #{tpu_custom_call.1} parent=5 // pred_fallthru
        _
    $region6: #{tpu_custom_call.1} parent=1 // loop_footer
      %s16 = sadd.s32 1, %s12
    $region7: #{tpu_custom_call.1} parent=1 // loop_footer_branch
      %11 = sbr.rel target = $region3
    $region8: #{tpu_custom_call.1} parent=1 // loop_exit
      _
    %6903 = vsyncpa [#allocation3], 1
    %s6904 = scalar_lea.sflag [#allocation3], 1
    %6905 = vsyncpa %s6904, 1

</llo_original>
